<compile_context>
chip_gen: v5e
topology: v5e:2x2
jax: 0.10.0
libtpu: 0.0.40
codegen_flags: <defaults>
</compile_context>

<pallas_src>
from functools import partial

import jax
import jax.numpy as jnp
from jax.experimental import pallas as pl
from jax.experimental.pallas import tpu as pltpu

_LANE = 128


def _round_up(n, m):
    return ((n + m - 1) // m) * m


# ----------------------------------------------------------------------------
# Kernels
# ----------------------------------------------------------------------------
def _conv3x3_kernel(*refs, H, W, Cin, Cp, pre_bn, fused):
    """[optional bn+relu on input] -> 3x3 conv (stride 1, pad 1) -> BN partials.

    One grid step == one image.  The zero-padded activation lives in a bf16
    VMEM scratch; the conv is either one fused im2col matmul (small Cin) or
    9 K=Cin matmuls accumulated in an f32 VMEM scratch (Cin >= 128).
    """
    if pre_bn:
        x_ref, scale_ref, shift_ref, w_ref, y_ref, s_ref, q_ref = refs[:7]
        scratch = refs[7:]
    else:
        x_ref, w_ref, y_ref, s_ref, q_ref = refs[:5]
        scratch = refs[5:]
    xpad_ref, acc_ref = scratch[0], scratch[1]
    strip_ref = scratch[2] if fused else None

    P = H * W

    # Zero only the 1-pixel halo (the interior is fully overwritten below).
    # Done every step: the scratch is uninitialized and persists per core, so
    # a program_id==0 gate would leave the halo garbage on the second core of
    # a core-parallel grid split.
    zrow = jnp.zeros((1, W + 2, Cin), xpad_ref.dtype)
    zcol = jnp.zeros((H, 1, Cin), xpad_ref.dtype)
    xpad_ref[0:1, :, :] = zrow
    xpad_ref[H + 1:H + 2, :, :] = zrow
    xpad_ref[1:H + 1, 0:1, :] = zcol
    xpad_ref[1:H + 1, W + 1:W + 2, :] = zcol

    # Load the image, apply bn+relu in f32 (VPU math stays f32), cast once to
    # bf16 and write it into the interior of the padded scratch.
    x = x_ref[0].astype(jnp.float32)                          # (H*W, Cin)
    if pre_bn:
        x = jnp.maximum(x * scale_ref[...] + shift_ref[...], 0.0)
    xpad_ref[1:H + 1, 1:W + 1, :] = x.reshape(H, W, Cin).astype(jnp.bfloat16)

    if fused:
        # Small Cin: (H*W, 9*Cin) bf16 im2col strip, then a single MXU matmul.
        for t in range(9):
            dy, dx = divmod(t, 3)
            win = xpad_ref[dy:dy + H, dx:dx + W, :]           # (H, W, Cin) bf16
            strip_ref[:, t * Cin:(t + 1) * Cin] = win.reshape(P, Cin)
        acc_ref[...] = jnp.dot(strip_ref[...], w_ref[...],
                               preferred_element_type=jnp.float32)
    else:
        # Cin already MXU-deep (>=128): per-tap K=Cin matmuls accumulated into
        # the explicit f32 VMEM accumulator.
        for t in range(9):
            dy, dx = divmod(t, 3)
            win = xpad_ref[dy:dy + H, dx:dx + W, :].reshape(P, Cin)
            part = jnp.dot(win, w_ref[t * Cin:(t + 1) * Cin, :],
                           preferred_element_type=jnp.float32)
            if t == 0:
                acc_ref[...] = part
            else:
                acc_ref[...] += part

    # Conv bias intentionally omitted: the train-mode BatchNorm that follows
    # subtracts the batch mean, so a per-channel constant cannot change the
    # block's forward output.
    acc = acc_ref[...]
    y_ref[0] = acc.astype(y_ref.dtype)                        # (H*W, Cp) dense
    s_ref[0] = jnp.sum(acc, axis=0, keepdims=True)            # (1, Cp)
    q_ref[0] = jnp.sum(acc * acc, axis=0, keepdims=True)


def _bn_relu_kernel(x_ref, scale_ref, shift_ref, o_ref):
    x = x_ref[...].astype(jnp.float32)
    o_ref[...] = jnp.maximum(x * scale_ref[...] + shift_ref[...], 0.0)


# ----------------------------------------------------------------------------
# Wrappers
# ----------------------------------------------------------------------------
def conv3x3_bn_stats(x, w, *, H, W, scale=None, shift=None):
    """x: (B, H*W, Cin) activations; w: (9*Cin, Cp) bf16 per-tap weights.

    Returns (y, sum, sumsq): y = conv3x3(pad=1)(relu(bn(x)) if scale is given,
    else x) stored bf16 / channel-padded / lane-dense, plus per-image,
    per-channel partial sums of y and y*y for the train-mode BatchNorm.
    """
    B, P, Cin = x.shape
    Cp = w.shape[1]
    pre_bn = scale is not None
    fused = Cin < _LANE      # small Cin -> single im2col matmul with K=9*Cin

    kernel = partial(_conv3x3_kernel, H=H, W=W, Cin=Cin, Cp=Cp,
                     pre_bn=pre_bn, fused=fused)

    in_specs = [pl.BlockSpec((1, P, Cin), lambda i: (i, 0, 0))]
    args = [x]
    if pre_bn:
        cspec = pl.BlockSpec((1, Cp), lambda i: (0, 0))
        in_specs += [cspec, cspec]
        args += [scale.reshape(1, Cp), shift.reshape(1, Cp)]
    in_specs += [pl.BlockSpec((9 * Cin, Cp), lambda i: (0, 0))]
    args += [w]

    scratch = [pltpu.VMEM((H + 2, W + 2, Cin), jnp.bfloat16),   # padded act
               pltpu.VMEM((P, Cp), jnp.float32)]                # f32 accumulator
    if fused:
        scratch += [pltpu.VMEM((P, 9 * Cin), jnp.bfloat16)]     # im2col strip

    # VMEM budget from actual (double-buffered) blocks + scratch + headroom.
    blk_bytes = (P * Cin * x.dtype.itemsize        # input block
                 + 9 * Cin * Cp * 2                # weights (bf16)
                 + P * Cp * 2                      # y block (bf16)
                 + 2 * Cp * 4                      # stats blocks
                 + (2 * Cp * 4 if pre_bn else 0))  # scale/shift
    scr_bytes = ((H + 2) * (W + 2) * Cin * 2 + P * Cp * 4
                 + (P * 9 * Cin * 2 if fused else 0))
    vmem_limit = int(min(max(2 * blk_bytes + scr_bytes + (8 << 20), 16 << 20),
                         64 << 20))

    return pl.pallas_call(
        kernel,
        grid=(B,),
        in_specs=in_specs,
        out_specs=(pl.BlockSpec((1, P, Cp), lambda i: (i, 0, 0)),
                   pl.BlockSpec((1, 1, Cp), lambda i: (i, 0, 0)),
                   pl.BlockSpec((1, 1, Cp), lambda i: (i, 0, 0))),
        out_shape=(
            jax.ShapeDtypeStruct((B, P, Cp), jnp.bfloat16),     # y (bf16)
            jax.ShapeDtypeStruct((B, 1, Cp), jnp.float32),      # sum
            jax.ShapeDtypeStruct((B, 1, Cp), jnp.float32),      # sum of squares
        ),
        scratch_shapes=scratch,
        compiler_params=pltpu.CompilerParams(
            dimension_semantics=("parallel",),
            vmem_limit_bytes=vmem_limit,
        ),
    )(*args)


def bn_relu(x, scale, shift):
    """Elementwise relu(x * scale + shift) on (B, H*W, Cp) lane-dense blocks."""
    B, P, Cp = x.shape
    spec = pl.BlockSpec((1, P, Cp), lambda i: (i, 0, 0))
    cspec = pl.BlockSpec((1, 1, Cp), lambda i: (0, 0, 0))
    return pl.pallas_call(
        _bn_relu_kernel,
        grid=(B,),
        in_specs=[spec, cspec, cspec],
        out_specs=pl.BlockSpec((1, P, Cp), lambda i: (i, 0, 0)),
        out_shape=jax.ShapeDtypeStruct((B, P, Cp), jnp.float32),
        compiler_params=pltpu.CompilerParams(
            dimension_semantics=("parallel",)),
    )(x, scale.reshape(1, 1, Cp), shift.reshape(1, 1, Cp))


def _bn_affine(s, q, count, gamma, beta, eps=1e-5):
    """Finalize train-mode BN: per-channel scale/shift from partial sums (O(C)).

    TODO(synk): E[y^2]-mean^2 can cancel for very large count / magnitudes;
    switch to a shifted/Welford accumulation if that regime matters.
    """
    mean = jnp.sum(s, axis=(0, 1)) / count
    var = jnp.maximum(jnp.sum(q, axis=(0, 1)) / count - mean * mean, 0.0)
    rstd = jax.lax.rsqrt(var + eps)
    scale = gamma * rstd
    shift = beta - mean * scale
    return scale, shift


def prepare_params(w1, b1, w2, b2, gamma, beta):
    """PyTorch-layout params -> kernel layout.

    w*: (Cout, Cin, 3, 3) f32, gamma/beta: (Cout,) f32.  Output channel dims
    are zero-padded to a multiple of 128 so all HBM-facing accesses are
    unmasked 128-lane ops (a no-op for real nets with Cout % 128 == 0).
    b1/b2 are accepted for interface parity but unused: the train-mode
    BatchNorm after each conv cancels any per-channel constant, so the block's
    forward output is identical without them.
    """
    del b1, b2
    Cout, Cin = w1.shape[0], w1.shape[1]
    Cp = max(_round_up(Cout, _LANE), _LANE)

    def tap_layout(w, cin_pad):
        co, ci = w.shape[0], w.shape[1]
        w = jnp.transpose(w, (2, 3, 1, 0))                   # (3, 3, ci, co)
        w = jnp.pad(w, ((0, 0), (0, 0), (0, cin_pad - ci), (0, Cp - co)))
        return w.reshape(9 * cin_pad, Cp).astype(jnp.bfloat16)

    return {
        "w1": tap_layout(w1, Cin),    # conv1: true Cin (no input padding)
        "w2": tap_layout(w2, Cp),     # conv2: input channels = padded y1
        "gamma": jnp.pad(gamma, (0, Cp - Cout)).astype(jnp.float32),
        "beta": jnp.pad(beta, (0, Cp - Cout)).astype(jnp.float32),
    }


def conv_block(x_nchw, p, *, out_ch):
    """Forward of Conv_Block.  Input/output NCHW (PyTorch convention)."""
    B, Cin, H, W = x_nchw.shape
    count = B * H * W

    # Tiny boundary relayout NCHW -> (B, H*W, Cin); kernels then work on
    # lane-dense flattened activations end to end.
    x = jnp.transpose(x_nchw, (0, 2, 3, 1)).reshape(B, H * W, Cin)

    # conv1 + BN partial stats (train-mode batch statistics, biased variance).
    y1, s1, q1 = conv3x3_bn_stats(x, p["w1"], H=H, W=W)
    scale1, shift1 = _bn_affine(s1, q1, count, p["gamma"], p["beta"])

    # relu(bn(y1)) fused into the conv2 kernel's input path, then conv2 + stats.
    y2, s2, q2 = conv3x3_bn_stats(y1, p["w2"], H=H, W=W,
                                  scale=scale1, shift=shift1)
    scale2, shift2 = _bn_affine(s2, q2, count, p["gamma"], p["beta"])

    out = bn_relu(y2, scale2, shift2)                        # (B, H*W, Cp) f32
    out = out[:, :, :out_ch].reshape(B, H, W, out_ch)
    return jnp.transpose(out, (0, 3, 1, 2))                  # back to NCHW


# ----------------------------------------------------------------------------
# Main
# ----------------------------------------------------------------------------
if __name__ == "__main__":
    key = jax.random.PRNGKey(0)
    ks = jax.random.split(key, 5)

    B, in_ch, out_ch, H, W = 2, 4, 8, 16, 16

    x = jax.random.normal(ks[0], (B, in_ch, H, W), jnp.float32)

    # PyTorch-layout parameters (Conv2d weight (Cout, Cin, 3, 3), bias (Cout,),
    # shared BatchNorm2d(out_ch) affine params at default init).
    w1 = 0.1 * jax.random.normal(ks[1], (out_ch, in_ch, 3, 3), jnp.float32)
    b1 = 0.1 * jax.random.normal(ks[2], (out_ch,), jnp.float32)
    w2 = 0.1 * jax.random.normal(ks[3], (out_ch, out_ch, 3, 3), jnp.float32)
    b2 = 0.1 * jax.random.normal(ks[4], (out_ch,), jnp.float32)
    gamma = jnp.ones((out_ch,), jnp.float32)
    beta = jnp.zeros((out_ch,), jnp.float32)

    params = prepare_params(w1, b1, w2, b2, gamma, beta)

    fwd = jax.jit(conv_block, static_argnames=("out_ch",))
    out = fwd(x, params, out_ch=out_ch)
    out = jax.block_until_ready(out)

    assert out.shape == (B, out_ch, H, W), out.shape
    assert out.dtype == jnp.float32
    print("KERNEL_OK")
</pallas_src>

<mosaic_0001>
module attributes {stable_mosaic.version = 11 : i64} {
  func.func @_conv3x3_kernel(%arg0: i32, %arg1: memref<1x256x128xbf16, #tpu.memory_space<vmem>>, %arg2: memref<1x128xf32, #tpu.memory_space<vmem>>, %arg3: memref<1x128xf32, #tpu.memory_space<vmem>>, %arg4: memref<1152x128xbf16, #tpu.memory_space<vmem>>, %arg5: memref<1x256x128xbf16, #tpu.memory_space<vmem>>, %arg6: memref<1x1x128xf32, #tpu.memory_space<vmem>>, %arg7: memref<1x1x128xf32, #tpu.memory_space<vmem>>, %arg8: memref<18x18x128xbf16, #tpu.memory_space<vmem>>, %arg9: memref<256x128xf32, #tpu.memory_space<vmem>>) attributes {dimension_semantics = [#tpu.dimension_semantics<parallel>], iteration_bounds = array<i64: 2>, scalar_prefetch = 0 : i64, scratch_operands = 2 : i64, tpu.core_type = #tpu.core_type<tc>, window_params = [{transform_indices = @transform_0, window_bounds = array<i64: 1, 256, 128>}, {pipeline_mode = #tpu.pipeline_mode<synchronous>, transform_indices = @transform_1, window_bounds = array<i64: 1, 128>}, {pipeline_mode = #tpu.pipeline_mode<synchronous>, transform_indices = @transform_2, window_bounds = array<i64: 1, 128>}, {pipeline_mode = #tpu.pipeline_mode<synchronous>, transform_indices = @transform_3, window_bounds = array<i64: 1152, 128>}, {transform_indices = @transform_4, window_bounds = array<i64: 1, 256, 128>}, {transform_indices = @transform_5, window_bounds = array<i64: 1, 1, 128>}, {transform_indices = @transform_6, window_bounds = array<i64: 1, 1, 128>}]} {
    %cst = arith.constant 0.000000e+00 : bf16
    %0 = vector.broadcast %cst : bf16 to vector<1x18x128xbf16>
    %cst_0 = arith.constant 0.000000e+00 : bf16
    %1 = vector.broadcast %cst_0 : bf16 to vector<16x1x128xbf16>
    %c0 = arith.constant 0 : index
    %c0_1 = arith.constant 0 : index
    %c0_2 = arith.constant 0 : index
    %2 = vector.load %arg8[%c0, %c0_1, %c0_2] : memref<18x18x128xbf16, #tpu.memory_space<vmem>>, vector<1x18x128xbf16>
    tpu.vector_store %arg8[%c0, %c0_1, %c0_2], %0 {strides = array<i32>} : memref<18x18x128xbf16, #tpu.memory_space<vmem>>, vector<1x18x128xbf16>,
    %c17 = arith.constant 17 : index
    %c0_3 = arith.constant 0 : index
    %c0_4 = arith.constant 0 : index
    %3 = vector.load %arg8[%c17, %c0_3, %c0_4] : memref<18x18x128xbf16, #tpu.memory_space<vmem>>, vector<1x18x128xbf16>
    tpu.vector_store %arg8[%c17, %c0_3, %c0_4], %0 {strides = array<i32>} : memref<18x18x128xbf16, #tpu.memory_space<vmem>>, vector<1x18x128xbf16>,
    %c1 = arith.constant 1 : index
    %c0_5 = arith.constant 0 : index
    %c0_6 = arith.constant 0 : index
    %4 = vector.load %arg8[%c1, %c0_5, %c0_6] : memref<18x18x128xbf16, #tpu.memory_space<vmem>>, vector<16x1x128xbf16>
    tpu.vector_store %arg8[%c1, %c0_5, %c0_6], %1 {strides = array<i32>} : memref<18x18x128xbf16, #tpu.memory_space<vmem>>, vector<16x1x128xbf16>,
    %c1_7 = arith.constant 1 : index
    %c17_8 = arith.constant 17 : index
    %c0_9 = arith.constant 0 : index
    %5 = vector.load %arg8[%c1_7, %c17_8, %c0_9] : memref<18x18x128xbf16, #tpu.memory_space<vmem>>, vector<16x1x128xbf16>
    tpu.vector_store %arg8[%c1_7, %c17_8, %c0_9], %1 {strides = array<i32>} : memref<18x18x128xbf16, #tpu.memory_space<vmem>>, vector<16x1x128xbf16>,
    %c0_10 = arith.constant 0 : index
    %c0_11 = arith.constant 0 : index
    %c0_12 = arith.constant 0 : index
    %6 = vector.load %arg1[%c0_10, %c0_11, %c0_12] : memref<1x256x128xbf16, #tpu.memory_space<vmem>>, vector<1x256x128xbf16>
    %7 = vector.shape_cast %6 : vector<1x256x128xbf16> to vector<256x128xbf16>
    %8 = arith.extf %7 : vector<256x128xbf16> to vector<256x128xf32>
    %c0_13 = arith.constant 0 : index
    %c0_14 = arith.constant 0 : index
    %9 = vector.load %arg2[%c0_13, %c0_14] : memref<1x128xf32, #tpu.memory_space<vmem>>, vector<1x128xf32>
    %10 = vector.broadcast %9 : vector<1x128xf32> to vector<256x128xf32>
    %11 = arith.mulf %8, %10 : vector<256x128xf32>
    %c0_15 = arith.constant 0 : index
    %c0_16 = arith.constant 0 : index
    %12 = vector.load %arg3[%c0_15, %c0_16] : memref<1x128xf32, #tpu.memory_space<vmem>>, vector<1x128xf32>
    %13 = vector.broadcast %12 : vector<1x128xf32> to vector<256x128xf32>
    %14 = arith.addf %11, %13 : vector<256x128xf32>
    %cst_17 = arith.constant 0.000000e+00 : f32
    %15 = vector.broadcast %cst_17 : f32 to vector<256x128xf32>
    %16 = arith.maximumf %14, %15 : vector<256x128xf32>
    %17 = vector.shape_cast %16 : vector<256x128xf32> to vector<16x16x128xf32>
    %18 = arith.truncf %17 : vector<16x16x128xf32> to vector<16x16x128xbf16>
    %c1_18 = arith.constant 1 : index
    %c1_19 = arith.constant 1 : index
    %c0_20 = arith.constant 0 : index
    %19 = vector.load %arg8[%c1_18, %c1_19, %c0_20] : memref<18x18x128xbf16, #tpu.memory_space<vmem>>, vector<16x16x128xbf16>
    tpu.vector_store %arg8[%c1_18, %c1_19, %c0_20], %18 {strides = array<i32>} : memref<18x18x128xbf16, #tpu.memory_space<vmem>>, vector<16x16x128xbf16>,
    %c0_21 = arith.constant 0 : index
    %c0_22 = arith.constant 0 : index
    %c0_23 = arith.constant 0 : index
    %20 = vector.load %arg8[%c0_21, %c0_22, %c0_23] : memref<18x18x128xbf16, #tpu.memory_space<vmem>>, vector<16x16x128xbf16>
    %21 = vector.shape_cast %20 : vector<16x16x128xbf16> to vector<256x128xbf16>
    %c0_24 = arith.constant 0 : index
    %c0_25 = arith.constant 0 : index
    %22 = vector.load %arg4[%c0_24, %c0_25] : memref<1152x128xbf16, #tpu.memory_space<vmem>>, vector<128x128xbf16>
    %cst_26 = arith.constant dense<0.000000e+00> : vector<256x128xf32>
    %23 = tpu.matmul %21, %22, %cst_26 {dimension_numbers = #tpu.dot_dimension_numbers<[1], [0], [0], [1], [0, 0, 1, 1], [], []>} : vector<256x128xbf16>, vector<128x128xbf16>, vector<256x128xf32> -> vector<256x128xf32>
    %c0_27 = arith.constant 0 : index
    %c0_28 = arith.constant 0 : index
    %24 = vector.load %arg9[%c0_27, %c0_28] : memref<256x128xf32, #tpu.memory_space<vmem>>, vector<256x128xf32>
    tpu.vector_store %arg9[%c0_27, %c0_28], %23 {strides = array<i32>} : memref<256x128xf32, #tpu.memory_space<vmem>>, vector<256x128xf32>,
    %c0_29 = arith.constant 0 : index
    %c1_30 = arith.constant 1 : index
    %c0_31 = arith.constant 0 : index
    %25 = vector.load %arg8[%c0_29, %c1_30, %c0_31] : memref<18x18x128xbf16, #tpu.memory_space<vmem>>, vector<16x16x128xbf16>
    %26 = vector.shape_cast %25 : vector<16x16x128xbf16> to vector<256x128xbf16>
    %c128 = arith.constant 128 : index
    %c0_32 = arith.constant 0 : index
    %27 = vector.load %arg4[%c128, %c0_32] : memref<1152x128xbf16, #tpu.memory_space<vmem>>, vector<128x128xbf16>
    %cst_33 = arith.constant dense<0.000000e+00> : vector<256x128xf32>
    %28 = tpu.matmul %26, %27, %cst_33 {dimension_numbers = #tpu.dot_dimension_numbers<[1], [0], [0], [1], [0, 0, 1, 1], [], []>} : vector<256x128xbf16>, vector<128x128xbf16>, vector<256x128xf32> -> vector<256x128xf32>
    %c0_34 = arith.constant 0 : index
    %c0_35 = arith.constant 0 : index
    %29 = vector.load %arg9[%c0_34, %c0_35] : memref<256x128xf32, #tpu.memory_space<vmem>>, vector<256x128xf32>
    %30 = arith.addf %29, %28 : vector<256x128xf32>
    %c0_36 = arith.constant 0 : index
    %c0_37 = arith.constant 0 : index
    %31 = vector.load %arg9[%c0_36, %c0_37] : memref<256x128xf32, #tpu.memory_space<vmem>>, vector<256x128xf32>
    tpu.vector_store %arg9[%c0_36, %c0_37], %30 {strides = array<i32>} : memref<256x128xf32, #tpu.memory_space<vmem>>, vector<256x128xf32>,
    %c0_38 = arith.constant 0 : index
    %c2 = arith.constant 2 : index
    %c0_39 = arith.constant 0 : index
    %32 = vector.load %arg8[%c0_38, %c2, %c0_39] : memref<18x18x128xbf16, #tpu.memory_space<vmem>>, vector<16x16x128xbf16>
    %33 = vector.shape_cast %32 : vector<16x16x128xbf16> to vector<256x128xbf16>
    %c256 = arith.constant 256 : index
    %c0_40 = arith.constant 0 : index
    %34 = vector.load %arg4[%c256, %c0_40] : memref<1152x128xbf16, #tpu.memory_space<vmem>>, vector<128x128xbf16>
    %cst_41 = arith.constant dense<0.000000e+00> : vector<256x128xf32>
    %35 = tpu.matmul %33, %34, %cst_41 {dimension_numbers = #tpu.dot_dimension_numbers<[1], [0], [0], [1], [0, 0, 1, 1], [], []>} : vector<256x128xbf16>, vector<128x128xbf16>, vector<256x128xf32> -> vector<256x128xf32>
    %c0_42 = arith.constant 0 : index
    %c0_43 = arith.constant 0 : index
    %36 = vector.load %arg9[%c0_42, %c0_43] : memref<256x128xf32, #tpu.memory_space<vmem>>, vector<256x128xf32>
    %37 = arith.addf %36, %35 : vector<256x128xf32>
    %c0_44 = arith.constant 0 : index
    %c0_45 = arith.constant 0 : index
    %38 = vector.load %arg9[%c0_44, %c0_45] : memref<256x128xf32, #tpu.memory_space<vmem>>, vector<256x128xf32>
    tpu.vector_store %arg9[%c0_44, %c0_45], %37 {strides = array<i32>} : memref<256x128xf32, #tpu.memory_space<vmem>>, vector<256x128xf32>,
    %c1_46 = arith.constant 1 : index
    %c0_47 = arith.constant 0 : index
    %c0_48 = arith.constant 0 : index
    %39 = vector.load %arg8[%c1_46, %c0_47, %c0_48] : memref<18x18x128xbf16, #tpu.memory_space<vmem>>, vector<16x16x128xbf16>
    %40 = vector.shape_cast %39 : vector<16x16x128xbf16> to vector<256x128xbf16>
    %c384 = arith.constant 384 : index
    %c0_49 = arith.constant 0 : index
    %41 = vector.load %arg4[%c384, %c0_49] : memref<1152x128xbf16, #tpu.memory_space<vmem>>, vector<128x128xbf16>
    %cst_50 = arith.constant dense<0.000000e+00> : vector<256x128xf32>
    %42 = tpu.matmul %40, %41, %cst_50 {dimension_numbers = #tpu.dot_dimension_numbers<[1], [0], [0], [1], [0, 0, 1, 1], [], []>} : vector<256x128xbf16>, vector<128x128xbf16>, vector<256x128xf32> -> vector<256x128xf32>
    %c0_51 = arith.constant 0 : index
    %c0_52 = arith.constant 0 : index
    %43 = vector.load %arg9[%c0_51, %c0_52] : memref<256x128xf32, #tpu.memory_space<vmem>>, vector<256x128xf32>
    %44 = arith.addf %43, %42 : vector<256x128xf32>
    %c0_53 = arith.constant 0 : index
    %c0_54 = arith.constant 0 : index
    %45 = vector.load %arg9[%c0_53, %c0_54] : memref<256x128xf32, #tpu.memory_space<vmem>>, vector<256x128xf32>
    tpu.vector_store %arg9[%c0_53, %c0_54], %44 {strides = array<i32>} : memref<256x128xf32, #tpu.memory_space<vmem>>, vector<256x128xf32>,
    %c1_55 = arith.constant 1 : index
    %c1_56 = arith.constant 1 : index
    %c0_57 = arith.constant 0 : index
    %46 = vector.load %arg8[%c1_55, %c1_56, %c0_57] : memref<18x18x128xbf16, #tpu.memory_space<vmem>>, vector<16x16x128xbf16>
    %47 = vector.shape_cast %46 : vector<16x16x128xbf16> to vector<256x128xbf16>
    %c512 = arith.constant 512 : index
    %c0_58 = arith.constant 0 : index
    %48 = vector.load %arg4[%c512, %c0_58] : memref<1152x128xbf16, #tpu.memory_space<vmem>>, vector<128x128xbf16>
    %cst_59 = arith.constant dense<0.000000e+00> : vector<256x128xf32>
    %49 = tpu.matmul %47, %48, %cst_59 {dimension_numbers = #tpu.dot_dimension_numbers<[1], [0], [0], [1], [0, 0, 1, 1], [], []>} : vector<256x128xbf16>, vector<128x128xbf16>, vector<256x128xf32> -> vector<256x128xf32>
    %c0_60 = arith.constant 0 : index
    %c0_61 = arith.constant 0 : index
    %50 = vector.load %arg9[%c0_60, %c0_61] : memref<256x128xf32, #tpu.memory_space<vmem>>, vector<256x128xf32>
    %51 = arith.addf %50, %49 : vector<256x128xf32>
    %c0_62 = arith.constant 0 : index
    %c0_63 = arith.constant 0 : index
    %52 = vector.load %arg9[%c0_62, %c0_63] : memref<256x128xf32, #tpu.memory_space<vmem>>, vector<256x128xf32>
    tpu.vector_store %arg9[%c0_62, %c0_63], %51 {strides = array<i32>} : memref<256x128xf32, #tpu.memory_space<vmem>>, vector<256x128xf32>,
    %c1_64 = arith.constant 1 : index
    %c2_65 = arith.constant 2 : index
    %c0_66 = arith.constant 0 : index
    %53 = vector.load %arg8[%c1_64, %c2_65, %c0_66] : memref<18x18x128xbf16, #tpu.memory_space<vmem>>, vector<16x16x128xbf16>
    %54 = vector.shape_cast %53 : vector<16x16x128xbf16> to vector<256x128xbf16>
    %c640 = arith.constant 640 : index
    %c0_67 = arith.constant 0 : index
    %55 = vector.load %arg4[%c640, %c0_67] : memref<1152x128xbf16, #tpu.memory_space<vmem>>, vector<128x128xbf16>
    %cst_68 = arith.constant dense<0.000000e+00> : vector<256x128xf32>
    %56 = tpu.matmul %54, %55, %cst_68 {dimension_numbers = #tpu.dot_dimension_numbers<[1], [0], [0], [1], [0, 0, 1, 1], [], []>} : vector<256x128xbf16>, vector<128x128xbf16>, vector<256x128xf32> -> vector<256x128xf32>
    %c0_69 = arith.constant 0 : index
    %c0_70 = arith.constant 0 : index
    %57 = vector.load %arg9[%c0_69, %c0_70] : memref<256x128xf32, #tpu.memory_space<vmem>>, vector<256x128xf32>
    %58 = arith.addf %57, %56 : vector<256x128xf32>
    %c0_71 = arith.constant 0 : index
    %c0_72 = arith.constant 0 : index
    %59 = vector.load %arg9[%c0_71, %c0_72] : memref<256x128xf32, #tpu.memory_space<vmem>>, vector<256x128xf32>
    tpu.vector_store %arg9[%c0_71, %c0_72], %58 {strides = array<i32>} : memref<256x128xf32, #tpu.memory_space<vmem>>, vector<256x128xf32>,
    %c2_73 = arith.constant 2 : index
    %c0_74 = arith.constant 0 : index
    %c0_75 = arith.constant 0 : index
    %60 = vector.load %arg8[%c2_73, %c0_74, %c0_75] : memref<18x18x128xbf16, #tpu.memory_space<vmem>>, vector<16x16x128xbf16>
    %61 = vector.shape_cast %60 : vector<16x16x128xbf16> to vector<256x128xbf16>
    %c768 = arith.constant 768 : index
    %c0_76 = arith.constant 0 : index
    %62 = vector.load %arg4[%c768, %c0_76] : memref<1152x128xbf16, #tpu.memory_space<vmem>>, vector<128x128xbf16>
    %cst_77 = arith.constant dense<0.000000e+00> : vector<256x128xf32>
    %63 = tpu.matmul %61, %62, %cst_77 {dimension_numbers = #tpu.dot_dimension_numbers<[1], [0], [0], [1], [0, 0, 1, 1], [], []>} : vector<256x128xbf16>, vector<128x128xbf16>, vector<256x128xf32> -> vector<256x128xf32>
    %c0_78 = arith.constant 0 : index
    %c0_79 = arith.constant 0 : index
    %64 = vector.load %arg9[%c0_78, %c0_79] : memref<256x128xf32, #tpu.memory_space<vmem>>, vector<256x128xf32>
    %65 = arith.addf %64, %63 : vector<256x128xf32>
    %c0_80 = arith.constant 0 : index
    %c0_81 = arith.constant 0 : index
    %66 = vector.load %arg9[%c0_80, %c0_81] : memref<256x128xf32, #tpu.memory_space<vmem>>, vector<256x128xf32>
    tpu.vector_store %arg9[%c0_80, %c0_81], %65 {strides = array<i32>} : memref<256x128xf32, #tpu.memory_space<vmem>>, vector<256x128xf32>,
    %c2_82 = arith.constant 2 : index
    %c1_83 = arith.constant 1 : index
    %c0_84 = arith.constant 0 : index
    %67 = vector.load %arg8[%c2_82, %c1_83, %c0_84] : memref<18x18x128xbf16, #tpu.memory_space<vmem>>, vector<16x16x128xbf16>
    %68 = vector.shape_cast %67 : vector<16x16x128xbf16> to vector<256x128xbf16>
    %c896 = arith.constant 896 : index
    %c0_85 = arith.constant 0 : index
    %69 = vector.load %arg4[%c896, %c0_85] : memref<1152x128xbf16, #tpu.memory_space<vmem>>, vector<128x128xbf16>
    %cst_86 = arith.constant dense<0.000000e+00> : vector<256x128xf32>
    %70 = tpu.matmul %68, %69, %cst_86 {dimension_numbers = #tpu.dot_dimension_numbers<[1], [0], [0], [1], [0, 0, 1, 1], [], []>} : vector<256x128xbf16>, vector<128x128xbf16>, vector<256x128xf32> -> vector<256x128xf32>
    %c0_87 = arith.constant 0 : index
    %c0_88 = arith.constant 0 : index
    %71 = vector.load %arg9[%c0_87, %c0_88] : memref<256x128xf32, #tpu.memory_space<vmem>>, vector<256x128xf32>
    %72 = arith.addf %71, %70 : vector<256x128xf32>
    %c0_89 = arith.constant 0 : index
    %c0_90 = arith.constant 0 : index
    %73 = vector.load %arg9[%c0_89, %c0_90] : memref<256x128xf32, #tpu.memory_space<vmem>>, vector<256x128xf32>
    tpu.vector_store %arg9[%c0_89, %c0_90], %72 {strides = array<i32>} : memref<256x128xf32, #tpu.memory_space<vmem>>, vector<256x128xf32>,
    %c2_91 = arith.constant 2 : index
    %c2_92 = arith.constant 2 : index
    %c0_93 = arith.constant 0 : index
    %74 = vector.load %arg8[%c2_91, %c2_92, %c0_93] : memref<18x18x128xbf16, #tpu.memory_space<vmem>>, vector<16x16x128xbf16>
    %75 = vector.shape_cast %74 : vector<16x16x128xbf16> to vector<256x128xbf16>
    %c1024 = arith.constant 1024 : index
    %c0_94 = arith.constant 0 : index
    %76 = vector.load %arg4[%c1024, %c0_94] : memref<1152x128xbf16, #tpu.memory_space<vmem>>, vector<128x128xbf16>
    %cst_95 = arith.constant dense<0.000000e+00> : vector<256x128xf32>
    %77 = tpu.matmul %75, %76, %cst_95 {dimension_numbers = #tpu.dot_dimension_numbers<[1], [0], [0], [1], [0, 0, 1, 1], [], []>} : vector<256x128xbf16>, vector<128x128xbf16>, vector<256x128xf32> -> vector<256x128xf32>
    %c0_96 = arith.constant 0 : index
    %c0_97 = arith.constant 0 : index
    %78 = vector.load %arg9[%c0_96, %c0_97] : memref<256x128xf32, #tpu.memory_space<vmem>>, vector<256x128xf32>
    %79 = arith.addf %78, %77 : vector<256x128xf32>
    %c0_98 = arith.constant 0 : index
    %c0_99 = arith.constant 0 : index
    %80 = vector.load %arg9[%c0_98, %c0_99] : memref<256x128xf32, #tpu.memory_space<vmem>>, vector<256x128xf32>
    tpu.vector_store %arg9[%c0_98, %c0_99], %79 {strides = array<i32>} : memref<256x128xf32, #tpu.memory_space<vmem>>, vector<256x128xf32>,
    %c0_100 = arith.constant 0 : index
    %c0_101 = arith.constant 0 : index
    %81 = vector.load %arg9[%c0_100, %c0_101] : memref<256x128xf32, #tpu.memory_space<vmem>>, vector<256x128xf32>
    %82 = arith.truncf %81 : vector<256x128xf32> to vector<256x128xbf16>
    %c0_102 = arith.constant 0 : index
    %c0_103 = arith.constant 0 : index
    %c0_104 = arith.constant 0 : index
    %83 = vector.load %arg5[%c0_102, %c0_103, %c0_104] : memref<1x256x128xbf16, #tpu.memory_space<vmem>>, vector<1x256x128xbf16>
    %84 = vector.shape_cast %83 : vector<1x256x128xbf16> to vector<256x128xbf16>
    %85 = vector.shape_cast %82 : vector<256x128xbf16> to vector<1x256x128xbf16>
    tpu.vector_store %arg5[%c0_102, %c0_103, %c0_104], %85 {strides = array<i32>} : memref<1x256x128xbf16, #tpu.memory_space<vmem>>, vector<1x256x128xbf16>,
    %cst_105 = arith.constant dense<0.000000e+00> : vector<128xf32>
    %86 = vector.multi_reduction <add>, %81, %cst_105 [0] : vector<256x128xf32> to vector<128xf32>
    %87 = vector.shape_cast %86 : vector<128xf32> to vector<1x128xf32>
    %c0_106 = arith.constant 0 : index
    %c0_107 = arith.constant 0 : index
    %c0_108 = arith.constant 0 : index
    %88 = vector.load %arg6[%c0_106, %c0_107, %c0_108] : memref<1x1x128xf32, #tpu.memory_space<vmem>>, vector<1x1x128xf32>
    %89 = vector.shape_cast %88 : vector<1x1x128xf32> to vector<1x128xf32>
    %90 = vector.shape_cast %87 : vector<1x128xf32> to vector<1x1x128xf32>
    tpu.vector_store %arg6[%c0_106, %c0_107, %c0_108], %90 {strides = array<i32>} : memref<1x1x128xf32, #tpu.memory_space<vmem>>, vector<1x1x128xf32>,
    %91 = arith.mulf %81, %81 : vector<256x128xf32>
    %cst_109 = arith.constant dense<0.000000e+00> : vector<128xf32>
    %92 = vector.multi_reduction <add>, %91, %cst_109 [0] : vector<256x128xf32> to vector<128xf32>
    %93 = vector.shape_cast %92 : vector<128xf32> to vector<1x128xf32>
    %c0_110 = arith.constant 0 : index
    %c0_111 = arith.constant 0 : index
    %c0_112 = arith.constant 0 : index
    %94 = vector.load %arg7[%c0_110, %c0_111, %c0_112] : memref<1x1x128xf32, #tpu.memory_space<vmem>>, vector<1x1x128xf32>
    %95 = vector.shape_cast %94 : vector<1x1x128xf32> to vector<1x128xf32>
    %96 = vector.shape_cast %93 : vector<1x128xf32> to vector<1x1x128xf32>
    tpu.vector_store %arg7[%c0_110, %c0_111, %c0_112], %96 {strides = array<i32>} : memref<1x1x128xf32, #tpu.memory_space<vmem>>, vector<1x1x128xf32>,
    return
  }
  func.func @transform_0(%arg0: i32) -> (i32, i32, i32) {
    %c0_i32 = arith.constant 0 : i32
    %c0_i32_0 = arith.constant 0 : i32
    %c0_i32_1 = arith.constant 0 : i32
    return %arg0, %c0_i32, %c0_i32_0 : i32, i32, i32
  }
  func.func @transform_1(%arg0: i32) -> (i32, i32) {
    %c0_i32 = arith.constant 0 : i32
    %c0_i32_0 = arith.constant 0 : i32
    %c0_i32_1 = arith.constant 0 : i32
    return %c0_i32, %c0_i32_0 : i32, i32
  }
  func.func @transform_2(%arg0: i32) -> (i32, i32) {
    %c0_i32 = arith.constant 0 : i32
    %c0_i32_0 = arith.constant 0 : i32
    %c0_i32_1 = arith.constant 0 : i32
    return %c0_i32, %c0_i32_0 : i32, i32
  }
  func.func @transform_3(%arg0: i32) -> (i32, i32) {
    %c0_i32 = arith.constant 0 : i32
    %c0_i32_0 = arith.constant 0 : i32
    %c0_i32_1 = arith.constant 0 : i32
    return %c0_i32, %c0_i32_0 : i32, i32
  }
  func.func @transform_4(%arg0: i32) -> (i32, i32, i32) {
    %c0_i32 = arith.constant 0 : i32
    %c0_i32_0 = arith.constant 0 : i32
    %c0_i32_1 = arith.constant 0 : i32
    return %arg0, %c0_i32, %c0_i32_0 : i32, i32, i32
  }
  func.func @transform_5(%arg0: i32) -> (i32, i32, i32) {
    %c0_i32 = arith.constant 0 : i32
    %c0_i32_0 = arith.constant 0 : i32
    %c0_i32_1 = arith.constant 0 : i32
    return %arg0, %c0_i32, %c0_i32_0 : i32, i32, i32
  }
  func.func @transform_6(%arg0: i32) -> (i32, i32, i32) {
    %c0_i32 = arith.constant 0 : i32
    %c0_i32_0 = arith.constant 0 : i32
    %c0_i32_1 = arith.constant 0 : i32
    return %arg0, %c0_i32, %c0_i32_0 : i32, i32, i32
  }
}

module attributes {stable_mosaic.version = 11 : i64} {
  func.func @_conv3x3_kernel(%arg0: i32, %arg1: memref<1x256x4xf32, #tpu.memory_space<vmem>>, %arg2: memref<36x128xbf16, #tpu.memory_space<vmem>>, %arg3: memref<1x256x128xbf16, #tpu.memory_space<vmem>>, %arg4: memref<1x1x128xf32, #tpu.memory_space<vmem>>, %arg5: memref<1x1x128xf32, #tpu.memory_space<vmem>>, %arg6: memref<18x18x4xbf16, #tpu.memory_space<vmem>>, %arg7: memref<256x128xf32, #tpu.memory_space<vmem>>, %arg8: memref<256x36xbf16, #tpu.memory_space<vmem>>) attributes {dimension_semantics = [#tpu.dimension_semantics<parallel>], iteration_bounds = array<i64: 2>, scalar_prefetch = 0 : i64, scratch_operands = 3 : i64, tpu.core_type = #tpu.core_type<tc>, window_params = [{transform_indices = @transform_0, window_bounds = array<i64: 1, 256, 4>}, {pipeline_mode = #tpu.pipeline_mode<synchronous>, transform_indices = @transform_1, window_bounds = array<i64: 36, 128>}, {transform_indices = @transform_2, window_bounds = array<i64: 1, 256, 128>}, {transform_indices = @transform_3, window_bounds = array<i64: 1, 1, 128>}, {transform_indices = @transform_4, window_bounds = array<i64: 1, 1, 128>}]} {
    %cst = arith.constant 0.000000e+00 : bf16
    %0 = vector.broadcast %cst : bf16 to vector<1x18x4xbf16>
    %cst_0 = arith.constant 0.000000e+00 : bf16
    %1 = vector.broadcast %cst_0 : bf16 to vector<16x1x4xbf16>
    %c0 = arith.constant 0 : index
    %c0_1 = arith.constant 0 : index
    %c0_2 = arith.constant 0 : index
    %2 = vector.load %arg6[%c0, %c0_1, %c0_2] : memref<18x18x4xbf16, #tpu.memory_space<vmem>>, vector<1x18x4xbf16>
    tpu.vector_store %arg6[%c0, %c0_1, %c0_2], %0 {strides = array<i32>} : memref<18x18x4xbf16, #tpu.memory_space<vmem>>, vector<1x18x4xbf16>,
    %c17 = arith.constant 17 : index
    %c0_3 = arith.constant 0 : index
    %c0_4 = arith.constant 0 : index
    %3 = vector.load %arg6[%c17, %c0_3, %c0_4] : memref<18x18x4xbf16, #tpu.memory_space<vmem>>, vector<1x18x4xbf16>
    tpu.vector_store %arg6[%c17, %c0_3, %c0_4], %0 {strides = array<i32>} : memref<18x18x4xbf16, #tpu.memory_space<vmem>>, vector<1x18x4xbf16>,
    %c1 = arith.constant 1 : index
    %c0_5 = arith.constant 0 : index
    %c0_6 = arith.constant 0 : index
    %4 = vector.load %arg6[%c1, %c0_5, %c0_6] : memref<18x18x4xbf16, #tpu.memory_space<vmem>>, vector<16x1x4xbf16>
    tpu.vector_store %arg6[%c1, %c0_5, %c0_6], %1 {strides = array<i32>} : memref<18x18x4xbf16, #tpu.memory_space<vmem>>, vector<16x1x4xbf16>,
    %c1_7 = arith.constant 1 : index
    %c17_8 = arith.constant 17 : index
    %c0_9 = arith.constant 0 : index
    %5 = vector.load %arg6[%c1_7, %c17_8, %c0_9] : memref<18x18x4xbf16, #tpu.memory_space<vmem>>, vector<16x1x4xbf16>
    tpu.vector_store %arg6[%c1_7, %c17_8, %c0_9], %1 {strides = array<i32>} : memref<18x18x4xbf16, #tpu.memory_space<vmem>>, vector<16x1x4xbf16>,
    %c0_10 = arith.constant 0 : index
    %c0_11 = arith.constant 0 : index
    %c0_12 = arith.constant 0 : index
    %6 = vector.load %arg1[%c0_10, %c0_11, %c0_12] : memref<1x256x4xf32, #tpu.memory_space<vmem>>, vector<1x256x4xf32>
    %7 = vector.shape_cast %6 : vector<1x256x4xf32> to vector<256x4xf32>
    %8 = vector.shape_cast %7 : vector<256x4xf32> to vector<16x16x4xf32>
    %9 = arith.truncf %8 : vector<16x16x4xf32> to vector<16x16x4xbf16>
    %c1_13 = arith.constant 1 : index
    %c1_14 = arith.constant 1 : index
    %c0_15 = arith.constant 0 : index
    %10 = vector.load %arg6[%c1_13, %c1_14, %c0_15] : memref<18x18x4xbf16, #tpu.memory_space<vmem>>, vector<16x16x4xbf16>
    tpu.vector_store %arg6[%c1_13, %c1_14, %c0_15], %9 {strides = array<i32>} : memref<18x18x4xbf16, #tpu.memory_space<vmem>>, vector<16x16x4xbf16>,
    %c0_16 = arith.constant 0 : index
    %c0_17 = arith.constant 0 : index
    %c0_18 = arith.constant 0 : index
    %11 = vector.load %arg6[%c0_16, %c0_17, %c0_18] : memref<18x18x4xbf16, #tpu.memory_space<vmem>>, vector<16x16x4xbf16>
    %12 = vector.shape_cast %11 : vector<16x16x4xbf16> to vector<256x4xbf16>
    %c0_19 = arith.constant 0 : index
    %c0_20 = arith.constant 0 : index
    %13 = vector.load %arg8[%c0_19, %c0_20] : memref<256x36xbf16, #tpu.memory_space<vmem>>, vector<256x4xbf16>
    tpu.vector_store %arg8[%c0_19, %c0_20], %12 {strides = array<i32>} : memref<256x36xbf16, #tpu.memory_space<vmem>>, vector<256x4xbf16>,
    %c0_21 = arith.constant 0 : index
    %c1_22 = arith.constant 1 : index
    %c0_23 = arith.constant 0 : index
    %14 = vector.load %arg6[%c0_21, %c1_22, %c0_23] : memref<18x18x4xbf16, #tpu.memory_space<vmem>>, vector<16x16x4xbf16>
    %15 = vector.shape_cast %14 : vector<16x16x4xbf16> to vector<256x4xbf16>
    %c0_24 = arith.constant 0 : index
    %c4 = arith.constant 4 : index
    %16 = vector.load %arg8[%c0_24, %c4] : memref<256x36xbf16, #tpu.memory_space<vmem>>, vector<256x4xbf16>
    tpu.vector_store %arg8[%c0_24, %c4], %15 {strides = array<i32>} : memref<256x36xbf16, #tpu.memory_space<vmem>>, vector<256x4xbf16>,
    %c0_25 = arith.constant 0 : index
    %c2 = arith.constant 2 : index
    %c0_26 = arith.constant 0 : index
    %17 = vector.load %arg6[%c0_25, %c2, %c0_26] : memref<18x18x4xbf16, #tpu.memory_space<vmem>>, vector<16x16x4xbf16>
    %18 = vector.shape_cast %17 : vector<16x16x4xbf16> to vector<256x4xbf16>
    %c0_27 = arith.constant 0 : index
    %c8 = arith.constant 8 : index
    %19 = vector.load %arg8[%c0_27, %c8] : memref<256x36xbf16, #tpu.memory_space<vmem>>, vector<256x4xbf16>
    tpu.vector_store %arg8[%c0_27, %c8], %18 {strides = array<i32>} : memref<256x36xbf16, #tpu.memory_space<vmem>>, vector<256x4xbf16>,
    %c1_28 = arith.constant 1 : index
    %c0_29 = arith.constant 0 : index
    %c0_30 = arith.constant 0 : index
    %20 = vector.load %arg6[%c1_28, %c0_29, %c0_30] : memref<18x18x4xbf16, #tpu.memory_space<vmem>>, vector<16x16x4xbf16>
    %21 = vector.shape_cast %20 : vector<16x16x4xbf16> to vector<256x4xbf16>
    %c0_31 = arith.constant 0 : index
    %c12 = arith.constant 12 : index
    %22 = vector.load %arg8[%c0_31, %c12] : memref<256x36xbf16, #tpu.memory_space<vmem>>, vector<256x4xbf16>
    tpu.vector_store %arg8[%c0_31, %c12], %21 {strides = array<i32>} : memref<256x36xbf16, #tpu.memory_space<vmem>>, vector<256x4xbf16>,
    %c1_32 = arith.constant 1 : index
    %c1_33 = arith.constant 1 : index
    %c0_34 = arith.constant 0 : index
    %23 = vector.load %arg6[%c1_32, %c1_33, %c0_34] : memref<18x18x4xbf16, #tpu.memory_space<vmem>>, vector<16x16x4xbf16>
    %24 = vector.shape_cast %23 : vector<16x16x4xbf16> to vector<256x4xbf16>
    %c0_35 = arith.constant 0 : index
    %c16 = arith.constant 16 : index
    %25 = vector.load %arg8[%c0_35, %c16] : memref<256x36xbf16, #tpu.memory_space<vmem>>, vector<256x4xbf16>
    tpu.vector_store %arg8[%c0_35, %c16], %24 {strides = array<i32>} : memref<256x36xbf16, #tpu.memory_space<vmem>>, vector<256x4xbf16>,
    %c1_36 = arith.constant 1 : index
    %c2_37 = arith.constant 2 : index
    %c0_38 = arith.constant 0 : index
    %26 = vector.load %arg6[%c1_36, %c2_37, %c0_38] : memref<18x18x4xbf16, #tpu.memory_space<vmem>>, vector<16x16x4xbf16>
    %27 = vector.shape_cast %26 : vector<16x16x4xbf16> to vector<256x4xbf16>
    %c0_39 = arith.constant 0 : index
    %c20 = arith.constant 20 : index
    %28 = vector.load %arg8[%c0_39, %c20] : memref<256x36xbf16, #tpu.memory_space<vmem>>, vector<256x4xbf16>
    tpu.vector_store %arg8[%c0_39, %c20], %27 {strides = array<i32>} : memref<256x36xbf16, #tpu.memory_space<vmem>>, vector<256x4xbf16>,
    %c2_40 = arith.constant 2 : index
    %c0_41 = arith.constant 0 : index
    %c0_42 = arith.constant 0 : index
    %29 = vector.load %arg6[%c2_40, %c0_41, %c0_42] : memref<18x18x4xbf16, #tpu.memory_space<vmem>>, vector<16x16x4xbf16>
    %30 = vector.shape_cast %29 : vector<16x16x4xbf16> to vector<256x4xbf16>
    %c0_43 = arith.constant 0 : index
    %c24 = arith.constant 24 : index
    %31 = vector.load %arg8[%c0_43, %c24] : memref<256x36xbf16, #tpu.memory_space<vmem>>, vector<256x4xbf16>
    tpu.vector_store %arg8[%c0_43, %c24], %30 {strides = array<i32>} : memref<256x36xbf16, #tpu.memory_space<vmem>>, vector<256x4xbf16>,
    %c2_44 = arith.constant 2 : index
    %c1_45 = arith.constant 1 : index
    %c0_46 = arith.constant 0 : index
    %32 = vector.load %arg6[%c2_44, %c1_45, %c0_46] : memref<18x18x4xbf16, #tpu.memory_space<vmem>>, vector<16x16x4xbf16>
    %33 = vector.shape_cast %32 : vector<16x16x4xbf16> to vector<256x4xbf16>
    %c0_47 = arith.constant 0 : index
    %c28 = arith.constant 28 : index
    %34 = vector.load %arg8[%c0_47, %c28] : memref<256x36xbf16, #tpu.memory_space<vmem>>, vector<256x4xbf16>
    tpu.vector_store %arg8[%c0_47, %c28], %33 {strides = array<i32>} : memref<256x36xbf16, #tpu.memory_space<vmem>>, vector<256x4xbf16>,
    %c2_48 = arith.constant 2 : index
    %c2_49 = arith.constant 2 : index
    %c0_50 = arith.constant 0 : index
    %35 = vector.load %arg6[%c2_48, %c2_49, %c0_50] : memref<18x18x4xbf16, #tpu.memory_space<vmem>>, vector<16x16x4xbf16>
    %36 = vector.shape_cast %35 : vector<16x16x4xbf16> to vector<256x4xbf16>
    %c0_51 = arith.constant 0 : index
    %c32 = arith.constant 32 : index
    %37 = vector.load %arg8[%c0_51, %c32] : memref<256x36xbf16, #tpu.memory_space<vmem>>, vector<256x4xbf16>
    tpu.vector_store %arg8[%c0_51, %c32], %36 {strides = array<i32>} : memref<256x36xbf16, #tpu.memory_space<vmem>>, vector<256x4xbf16>,
    %c0_52 = arith.constant 0 : index
    %c0_53 = arith.constant 0 : index
    %38 = vector.load %arg8[%c0_52, %c0_53] : memref<256x36xbf16, #tpu.memory_space<vmem>>, vector<256x36xbf16>
    %c0_54 = arith.constant 0 : index
    %c0_55 = arith.constant 0 : index
    %39 = vector.load %arg2[%c0_54, %c0_55] : memref<36x128xbf16, #tpu.memory_space<vmem>>, vector<36x128xbf16>
    %cst_56 = arith.constant dense<0.000000e+00> : vector<256x128xf32>
    %40 = tpu.matmul %38, %39, %cst_56 {dimension_numbers = #tpu.dot_dimension_numbers<[1], [0], [0], [1], [0, 0, 1, 1], [], []>} : vector<256x36xbf16>, vector<36x128xbf16>, vector<256x128xf32> -> vector<256x128xf32>
    %c0_57 = arith.constant 0 : index
    %c0_58 = arith.constant 0 : index
    %41 = vector.load %arg7[%c0_57, %c0_58] : memref<256x128xf32, #tpu.memory_space<vmem>>, vector<256x128xf32>
    tpu.vector_store %arg7[%c0_57, %c0_58], %40 {strides = array<i32>} : memref<256x128xf32, #tpu.memory_space<vmem>>, vector<256x128xf32>,
    %c0_59 = arith.constant 0 : index
    %c0_60 = arith.constant 0 : index
    %42 = vector.load %arg7[%c0_59, %c0_60] : memref<256x128xf32, #tpu.memory_space<vmem>>, vector<256x128xf32>
    %43 = arith.truncf %42 : vector<256x128xf32> to vector<256x128xbf16>
    %c0_61 = arith.constant 0 : index
    %c0_62 = arith.constant 0 : index
    %c0_63 = arith.constant 0 : index
    %44 = vector.load %arg3[%c0_61, %c0_62, %c0_63] : memref<1x256x128xbf16, #tpu.memory_space<vmem>>, vector<1x256x128xbf16>
    %45 = vector.shape_cast %44 : vector<1x256x128xbf16> to vector<256x128xbf16>
    %46 = vector.shape_cast %43 : vector<256x128xbf16> to vector<1x256x128xbf16>
    tpu.vector_store %arg3[%c0_61, %c0_62, %c0_63], %46 {strides = array<i32>} : memref<1x256x128xbf16, #tpu.memory_space<vmem>>, vector<1x256x128xbf16>,
    %cst_64 = arith.constant dense<0.000000e+00> : vector<128xf32>
    %47 = vector.multi_reduction <add>, %42, %cst_64 [0] : vector<256x128xf32> to vector<128xf32>
    %48 = vector.shape_cast %47 : vector<128xf32> to vector<1x128xf32>
    %c0_65 = arith.constant 0 : index
    %c0_66 = arith.constant 0 : index
    %c0_67 = arith.constant 0 : index
    %49 = vector.load %arg4[%c0_65, %c0_66, %c0_67] : memref<1x1x128xf32, #tpu.memory_space<vmem>>, vector<1x1x128xf32>
    %50 = vector.shape_cast %49 : vector<1x1x128xf32> to vector<1x128xf32>
    %51 = vector.shape_cast %48 : vector<1x128xf32> to vector<1x1x128xf32>
    tpu.vector_store %arg4[%c0_65, %c0_66, %c0_67], %51 {strides = array<i32>} : memref<1x1x128xf32, #tpu.memory_space<vmem>>, vector<1x1x128xf32>,
    %52 = arith.mulf %42, %42 : vector<256x128xf32>
    %cst_68 = arith.constant dense<0.000000e+00> : vector<128xf32>
    %53 = vector.multi_reduction <add>, %52, %cst_68 [0] : vector<256x128xf32> to vector<128xf32>
    %54 = vector.shape_cast %53 : vector<128xf32> to vector<1x128xf32>
    %c0_69 = arith.constant 0 : index
    %c0_70 = arith.constant 0 : index
    %c0_71 = arith.constant 0 : index
    %55 = vector.load %arg5[%c0_69, %c0_70, %c0_71] : memref<1x1x128xf32, #tpu.memory_space<vmem>>, vector<1x1x128xf32>
    %56 = vector.shape_cast %55 : vector<1x1x128xf32> to vector<1x128xf32>
    %57 = vector.shape_cast %54 : vector<1x128xf32> to vector<1x1x128xf32>
    tpu.vector_store %arg5[%c0_69, %c0_70, %c0_71], %57 {strides = array<i32>} : memref<1x1x128xf32, #tpu.memory_space<vmem>>, vector<1x1x128xf32>,
    return
  }
  func.func @transform_0(%arg0: i32) -> (i32, i32, i32) {
    %c0_i32 = arith.constant 0 : i32
    %c0_i32_0 = arith.constant 0 : i32
    %c0_i32_1 = arith.constant 0 : i32
    return %arg0, %c0_i32, %c0_i32_0 : i32, i32, i32
  }
  func.func @transform_1(%arg0: i32) -> (i32, i32) {
    %c0_i32 = arith.constant 0 : i32
    %c0_i32_0 = arith.constant 0 : i32
    %c0_i32_1 = arith.constant 0 : i32
    return %c0_i32, %c0_i32_0 : i32, i32
  }
  func.func @transform_2(%arg0: i32) -> (i32, i32, i32) {
    %c0_i32 = arith.constant 0 : i32
    %c0_i32_0 = arith.constant 0 : i32
    %c0_i32_1 = arith.constant 0 : i32
    return %arg0, %c0_i32, %c0_i32_0 : i32, i32, i32
  }
  func.func @transform_3(%arg0: i32) -> (i32, i32, i32) {
    %c0_i32 = arith.constant 0 : i32
    %c0_i32_0 = arith.constant 0 : i32
    %c0_i32_1 = arith.constant 0 : i32
    return %arg0, %c0_i32, %c0_i32_0 : i32, i32, i32
  }
  func.func @transform_4(%arg0: i32) -> (i32, i32, i32) {
    %c0_i32 = arith.constant 0 : i32
    %c0_i32_0 = arith.constant 0 : i32
    %c0_i32_1 = arith.constant 0 : i32
    return %arg0, %c0_i32, %c0_i32_0 : i32, i32, i32
  }
}

module attributes {stable_mosaic.version = 11 : i64} {
  func.func @_bn_relu_kernel(%arg0: i32, %arg1: memref<1x256x128xbf16, #tpu.memory_space<vmem>>, %arg2: memref<1x1x128xf32, #tpu.memory_space<vmem>>, %arg3: memref<1x1x128xf32, #tpu.memory_space<vmem>>, %arg4: memref<1x256x128xf32, #tpu.memory_space<vmem>>) attributes {dimension_semantics = [#tpu.dimension_semantics<parallel>], iteration_bounds = array<i64: 2>, scalar_prefetch = 0 : i64, scratch_operands = 0 : i64, tpu.core_type = #tpu.core_type<tc>, window_params = [{transform_indices = @transform_0, window_bounds = array<i64: 1, 256, 128>}, {pipeline_mode = #tpu.pipeline_mode<synchronous>, transform_indices = @transform_1, window_bounds = array<i64: 1, 1, 128>}, {pipeline_mode = #tpu.pipeline_mode<synchronous>, transform_indices = @transform_2, window_bounds = array<i64: 1, 1, 128>}, {transform_indices = @transform_3, window_bounds = array<i64: 1, 256, 128>}]} {
    %c0 = arith.constant 0 : index
    %c0_0 = arith.constant 0 : index
    %c0_1 = arith.constant 0 : index
    %0 = vector.load %arg1[%c0, %c0_0, %c0_1] : memref<1x256x128xbf16, #tpu.memory_space<vmem>>, vector<1x256x128xbf16>
    %1 = arith.extf %0 : vector<1x256x128xbf16> to vector<1x256x128xf32>
    %c0_2 = arith.constant 0 : index
    %c0_3 = arith.constant 0 : index
    %c0_4 = arith.constant 0 : index
    %2 = vector.load %arg2[%c0_2, %c0_3, %c0_4] : memref<1x1x128xf32, #tpu.memory_space<vmem>>, vector<1x1x128xf32>
    %3 = vector.broadcast %2 : vector<1x1x128xf32> to vector<1x256x128xf32>
    %4 = arith.mulf %1, %3 : vector<1x256x128xf32>
    %c0_5 = arith.constant 0 : index
    %c0_6 = arith.constant 0 : index
    %c0_7 = arith.constant 0 : index
    %5 = vector.load %arg3[%c0_5, %c0_6, %c0_7] : memref<1x1x128xf32, #tpu.memory_space<vmem>>, vector<1x1x128xf32>
    %6 = vector.broadcast %5 : vector<1x1x128xf32> to vector<1x256x128xf32>
    %7 = arith.addf %4, %6 : vector<1x256x128xf32>
    %cst = arith.constant 0.000000e+00 : f32
    %8 = vector.broadcast %cst : f32 to vector<1x256x128xf32>
    %9 = arith.maximumf %7, %8 : vector<1x256x128xf32>
    %c0_8 = arith.constant 0 : index
    %c0_9 = arith.constant 0 : index
    %c0_10 = arith.constant 0 : index
    %10 = vector.load %arg4[%c0_8, %c0_9, %c0_10] : memref<1x256x128xf32, #tpu.memory_space<vmem>>, vector<1x256x128xf32>
    tpu.vector_store %arg4[%c0_8, %c0_9, %c0_10], %9 {strides = array<i32>} : memref<1x256x128xf32, #tpu.memory_space<vmem>>, vector<1x256x128xf32>,
    return
  }
  func.func @transform_0(%arg0: i32) -> (i32, i32, i32) {
    %c0_i32 = arith.constant 0 : i32
    %c0_i32_0 = arith.constant 0 : i32
    %c0_i32_1 = arith.constant 0 : i32
    return %arg0, %c0_i32, %c0_i32_0 : i32, i32, i32
  }
  func.func @transform_1(%arg0: i32) -> (i32, i32, i32) {
    %c0_i32 = arith.constant 0 : i32
    %c0_i32_0 = arith.constant 0 : i32
    %c0_i32_1 = arith.constant 0 : i32
    %c0_i32_2 = arith.constant 0 : i32
    return %c0_i32, %c0_i32_0, %c0_i32_1 : i32, i32, i32
  }
  func.func @transform_2(%arg0: i32) -> (i32, i32, i32) {
    %c0_i32 = arith.constant 0 : i32
    %c0_i32_0 = arith.constant 0 : i32
    %c0_i32_1 = arith.constant 0 : i32
    %c0_i32_2 = arith.constant 0 : i32
    return %c0_i32, %c0_i32_0, %c0_i32_1 : i32, i32, i32
  }
  func.func @transform_3(%arg0: i32) -> (i32, i32, i32) {
    %c0_i32 = arith.constant 0 : i32
    %c0_i32_0 = arith.constant 0 : i32
    %c0_i32_1 = arith.constant 0 : i32
    return %arg0, %c0_i32, %c0_i32_0 : i32, i32, i32
  }
}

</mosaic_0001>

<llo_original>
// kernel: conv_block.5
$region0: #{conv_block.5}
  #allocation0 [shape = 'u32[]', space=smem, size = 0x4, offset = 0x4, fixed_abs, tag = 'smem constant byte address 0x4 - core index']
  #allocation1 [shape = 'u32[72,128]{1,0:T(1,128)}', space=vmem, size = 0x9000, scoped, tag = 'internal scratch']
  %s0 = inlined_call_operand.vmem [shape: bf16[2,256,128], index: 0, kind: input, shape index: {}]
  %s1 = inlined_call_operand.vmem [shape: f32[1,1,128], index: 1, kind: input, shape index: {}]
  %s2 = inlined_call_operand.vmem [shape: f32[1,1,128], index: 2, kind: input, shape index: {}]
  %s3 = inlined_call_operand.vmem [shape: f32[2,256,128], index: 3, kind: output, shape index: {}]
  %s4 = sld [smem:[#allocation0]]
  $region45: #{conv_block.5} parent=0
    _
  %s6 = ssub.s32 1, %s4
  %s7 = scalar_select 0, %s6, %s4
  loop: start=0, step=1, limit=4
  $region2: #{conv_block.5} parent=0 // loop_pre_header
    _
  $region3: #{conv_block.5} parent=0 // loop_header
    %s9 = sphi 0, %s13
    %p10 = scmp.ge.s32.totalorder %s9, 4
    %s19 = sphi 0, %s21
    %s22 = sphi 0, %s19
    %s23 = sphi 0, %s22
    %s39 = sphi 0, %s23
    %s43 = sphi 0, %s43
    %s45 = sphi 0, %s43
    %s46 = sphi 0, %s45
    %s60 = sphi 0, %s46
    %s64 = sphi 0, %s64
    %s66 = sphi 0, %s64
    %s67 = sphi 0, %s66
    %s81 = sphi 0, %s67
    %s87 = sphi 0, %s89
    %s90 = sphi 0, %s87
    %s91 = sphi 0, %s90
    %s107 = sphi 0, %s91
  $region4: #{conv_block.5} parent=0 // loop_header_branch
    %12 = sbr.rel (%p10) target = $region8
  $region5: #{conv_block.5} parent=0 // loop_body
    %s14 = ssub.s32 %s9, 1
    %s15 = ssub.s32 %s9, 2
    %s16 = sadd.s32 %s9, 1
    %s17 = ssub.s32 %s9, %s16
    %p18 = scmp.eq.s32.totalorder %s17, 0
    %s20 = sadd.s32 %s19, 1
    %s21 = scalar_select %p18, %s19, %s20
    %p24 = pneg %p18
    %p25 = scmp.eq.s32.totalorder %s9, 1
    %p26 = por %p24, %p25
    %p27 = scmp.ne.s32.totalorder %s19, %s22
    %p28 = scmp.eq.s32.totalorder %s9, 0
    %p29 = por %p27, %p28
    %p30 = scmp.ne.s32.totalorder %s19, %s22
    %p31 = scmp.eq.s32.totalorder %s14, 1
    %p32 = por %p30, %p31
    %p33 = scmp.ne.s32.totalorder %s22, %s23
    %p34 = scmp.eq.s32.totalorder %s14, 0
    %p35 = por %p33, %p34
    %p36 = scmp.ne.s32.totalorder %s22, %s23
    %p37 = scmp.eq.s32.totalorder %s15, 1
    %p38 = por %p36, %p37
    %p40 = scmp.ne.s32.totalorder %s23, %s39
    %p41 = scmp.eq.s32.totalorder %s15, 0
    %p42 = por %p40, %p41
    %s44 = sadd.s32 %s43, 1
    %p47 = scmp.eq.s32.totalorder %s9, 1
    %p48 = scmp.ne.s32.totalorder %s43, %s45
    %p49 = scmp.eq.s32.totalorder %s9, 0
    %p50 = por %p48, %p49
    %p51 = scmp.ne.s32.totalorder %s43, %s45
    %p52 = scmp.eq.s32.totalorder %s14, 1
    %p53 = por %p51, %p52
    %p54 = scmp.ne.s32.totalorder %s45, %s46
    %p55 = scmp.eq.s32.totalorder %s14, 0
    %p56 = por %p54, %p55
    %p57 = scmp.ne.s32.totalorder %s45, %s46
    %p58 = scmp.eq.s32.totalorder %s15, 1
    %p59 = por %p57, %p58
    %p61 = scmp.ne.s32.totalorder %s46, %s60
    %p62 = scmp.eq.s32.totalorder %s15, 0
    %p63 = por %p61, %p62
    %s65 = sadd.s32 %s64, 1
    %p68 = scmp.eq.s32.totalorder %s9, 1
    %p69 = scmp.ne.s32.totalorder %s64, %s66
    %p70 = scmp.eq.s32.totalorder %s9, 0
    %p71 = por %p69, %p70
    %p72 = scmp.ne.s32.totalorder %s64, %s66
    %p73 = scmp.eq.s32.totalorder %s14, 1
    %p74 = por %p72, %p73
    %p75 = scmp.ne.s32.totalorder %s66, %s67
    %p76 = scmp.eq.s32.totalorder %s14, 0
    %p77 = por %p75, %p76
    %p78 = scmp.ne.s32.totalorder %s66, %s67
    %p79 = scmp.eq.s32.totalorder %s15, 1
    %p80 = por %p78, %p79
    %p82 = scmp.ne.s32.totalorder %s67, %s81
    %p83 = scmp.eq.s32.totalorder %s15, 0
    %p84 = por %p82, %p83
    %s85 = ssub.s32 %s9, %s16
    %p86 = scmp.eq.s32.totalorder %s85, 0
    %s88 = sadd.s32 %s87, 1
    %s89 = scalar_select %p86, %s87, %s88
    %p92 = pneg %p86
    %p93 = scmp.eq.s32.totalorder %s9, 1
    %p94 = por %p92, %p93
    %p95 = scmp.ne.s32.totalorder %s87, %s90
    %p96 = scmp.eq.s32.totalorder %s9, 0
    %p97 = por %p95, %p96
    %p98 = scmp.ne.s32.totalorder %s87, %s90
    %p99 = scmp.eq.s32.totalorder %s14, 1
    %p100 = por %p98, %p99
    %p101 = scmp.ne.s32.totalorder %s90, %s91
    %p102 = scmp.eq.s32.totalorder %s14, 0
    %p103 = por %p101, %p102
    %p104 = scmp.ne.s32.totalorder %s90, %s91
    %p105 = scmp.eq.s32.totalorder %s15, 1
    %p106 = por %p104, %p105
    %p108 = scmp.ne.s32.totalorder %s91, %s107
    %p109 = scmp.eq.s32.totalorder %s15, 0
    %p110 = por %p108, %p109
    %p111 = scmp.le.s32.totalorder 1, %s9
    %p112 = scmp.lt.s32.totalorder %s9, 3
    %p113 = pnand %p111, %p112
    %p114 = pneg %p113
    // Predicated region
    $region9: #{conv_block.5} parent=5 // pred_check
      _
    $region10: #{conv_block.5} parent=5 // pred_check_branch
      %116 = sbr.rel (%p113) target = $region12
    $region11: #{conv_block.5} parent=5 // pred_region
      %s117 = ssub.s32 %s9, 1
      // Predicated region
      $region13: #{conv_block.5} parent=11 // pred_check
        %p118 = pneg %p56
      $region14: #{conv_block.5} parent=11 // pred_check_branch
        %120 = sbr.rel (%p118) target = $region16
      $region15: #{conv_block.5} parent=11 // pred_region
        _
      $region16: #{conv_block.5} parent=11 // pred_fallthru
        _
      // Predicated region
      $region17: #{conv_block.5} parent=11 // pred_check
        %p121 = pneg %p77
      $region18: #{conv_block.5} parent=11 // pred_check_branch
        %123 = sbr.rel (%p121) target = $region20
      $region19: #{conv_block.5} parent=11 // pred_region
        _
      $region20: #{conv_block.5} parent=11 // pred_fallthru
        _
    $region12: #{conv_block.5} parent=5 // pred_fallthru
      _
    %p124 = scmp.lt.s32.totalorder %s9, 2
    // Predicated region
    $region21: #{conv_block.5} parent=5 // pred_check
      %p125 = pneg %p124
    $region22: #{conv_block.5} parent=5 // pred_check_branch
      %127 = sbr.rel (%p125) target = $region24
    $region23: #{conv_block.5} parent=5 // pred_region
      // Predicated region
      $region25: #{conv_block.5} parent=23 // pred_check
        %p128 = pneg %p29
      $region26: #{conv_block.5} parent=23 // pred_check_branch
        %130 = sbr.rel (%p128) target = $region28
      $region27: #{conv_block.5} parent=23 // pred_region
        %p131 = scmp.lt.s32.totalorder %s9, 1
        %s132 = scalar_select %p131, %s9, 1
        %s133 = smul.addr %s132, 32
        %s134 = smul.addr %s133, 4
        %s135 = scalar_lea.vmem %s0, %s134
      $region28: #{conv_block.5} parent=23 // pred_fallthru
        _
    $region24: #{conv_block.5} parent=5 // pred_fallthru
      _
    %p136 = scmp.le.s32.totalorder 1, %s9
    %p137 = scmp.lt.s32.totalorder %s9, 3
    %p138 = pnand %p136, %p137
    %p139 = pneg %p138
    // Predicated region
    $region29: #{conv_block.5} parent=5 // pred_check
      _
    $region30: #{conv_block.5} parent=5 // pred_check_branch
      %141 = sbr.rel (%p138) target = $region32
    $region31: #{conv_block.5} parent=5 // pred_region
      %s142 = ssub.s32 %s9, 1
      %p143 = scmp.lt.s32.totalorder %s14, 1
      %s144 = scalar_select %p143, %s14, 1
      %s145 = smul.addr %s144, 32
      %s146 = smul.addr %s145, 4
      %s147 = scalar_lea.vmem %s0, %s146
      %p148 = pneg %p35
      %p149 = pneg %p32
      %p150 = pneg %p56
      %p151 = pneg %p53
      %p152 = pneg %p77
      %p153 = pneg %p74
      %p154 = pneg %p103
      %p155 = pneg %p100
      %p156 = scmp.lt.s32.totalorder %s14, 1
      %s157 = scalar_select %p156, %s14, 1
      %s158 = smul.addr %s157, 32
      %s159 = smul.addr %s158, 8
      %s160 = scalar_lea.vmem %s3, %s159
      %p161 = scmp.lt.s32.totalorder %s14, 1
      %s162 = scalar_select %p161, %s14, 1
      %s163 = smul.addr %s162, 32
      %s164 = smul.addr %s163, 4
      %s165 = scalar_lea.vmem %s0, %s164
      %p166 = scmp.lt.s32.totalorder %s14, 1
      %s167 = scalar_select %p166, %s14, 1
      %s168 = smul.addr %s167, 32
      %s169 = smul.addr %s168, 8
      %s170 = scalar_lea.vmem %s3, %s169
      %v171 = vld [vmem:[%s165] sm:$0xf]
      %v172 = vld [vmem:[%s165 + $0x4] sm:$0xf]
      %v173 = vld [vmem:[%s165 + $0x8] sm:$0xf]
      %v174 = vld [vmem:[%s165 + $0xc] sm:$0xf]
      %v175 = vld [vmem:[%s165 + $0x10] sm:$0xf]
      %v176 = vld [vmem:[%s165 + $0x14] sm:$0xf]
      %v177 = vld [vmem:[%s165 + $0x18] sm:$0xf]
      %v178 = vld [vmem:[%s165 + $0x1c] sm:$0xf]
      %v179 = vld [vmem:[%s165 + $0x20] sm:$0xf]
      %v180 = vld [vmem:[%s165 + $0x24] sm:$0xf]
      %v181 = vld [vmem:[%s165 + $0x28] sm:$0xf]
      %v182 = vld [vmem:[%s165 + $0x2c] sm:$0xf]
      %v183 = vld [vmem:[%s165 + $0x30] sm:$0xf]
      %v184 = vld [vmem:[%s165 + $0x34] sm:$0xf]
      %v185 = vld [vmem:[%s165 + $0x38] sm:$0xf]
      %v186 = vld [vmem:[%s165 + $0x3c] sm:$0xf]
      %v187 = vld [vmem:[%s165 + $0x40] sm:$0xf]
      %v188 = vld [vmem:[%s165 + $0x44] sm:$0xf]
      %v189 = vld [vmem:[%s165 + $0x48] sm:$0xf]
      %v190 = vld [vmem:[%s165 + $0x4c] sm:$0xf]
      %v191 = vld [vmem:[%s165 + $0x50] sm:$0xf]
      %v192 = vld [vmem:[%s165 + $0x54] sm:$0xf]
      %v193 = vld [vmem:[%s165 + $0x58] sm:$0xf]
      %v194 = vld [vmem:[%s165 + $0x5c] sm:$0xf]
      %v195 = vld [vmem:[%s165 + $0x60] sm:$0xf]
      %v196 = vld [vmem:[%s165 + $0x64] sm:$0xf]
      %v197 = vld [vmem:[%s165 + $0x68] sm:$0xf]
      %v198 = vld [vmem:[%s165 + $0x6c] sm:$0xf]
      %v199 = vld [vmem:[%s165 + $0x70] sm:$0xf]
      %v200 = vld [vmem:[%s165 + $0x74] sm:$0xf]
      %v201 = vld [vmem:[%s165 + $0x78] sm:$0xf]
      %v202 = vld [vmem:[%s165 + $0x7c] sm:$0xf]
      %v203 = vunpack.c.l.bf16 %v171
      %v204 = vunpack.c.l.bf16 %v172
      %v205 = vunpack.c.l.bf16 %v173
      %v206 = vunpack.c.l.bf16 %v174
      %v207 = vunpack.c.l.bf16 %v175
      %v208 = vunpack.c.l.bf16 %v176
      %v209 = vunpack.c.l.bf16 %v177
      %v210 = vunpack.c.l.bf16 %v178
      %v211 = vunpack.c.l.bf16 %v179
      %v212 = vunpack.c.l.bf16 %v180
      %v213 = vunpack.c.l.bf16 %v181
      %v214 = vunpack.c.l.bf16 %v182
      %v215 = vunpack.c.l.bf16 %v183
      %v216 = vunpack.c.l.bf16 %v184
      %v217 = vunpack.c.l.bf16 %v185
      %v218 = vunpack.c.l.bf16 %v186
      %v219 = vunpack.c.l.bf16 %v187
      %v220 = vunpack.c.l.bf16 %v188
      %v221 = vunpack.c.l.bf16 %v189
      %v222 = vunpack.c.l.bf16 %v190
      %v223 = vunpack.c.l.bf16 %v191
      %v224 = vunpack.c.l.bf16 %v192
      %v225 = vunpack.c.l.bf16 %v193
      %v226 = vunpack.c.l.bf16 %v194
      %v227 = vunpack.c.l.bf16 %v195
      %v228 = vunpack.c.l.bf16 %v196
      %v229 = vunpack.c.l.bf16 %v197
      %v230 = vunpack.c.l.bf16 %v198
      %v231 = vunpack.c.l.bf16 %v199
      %v232 = vunpack.c.l.bf16 %v200
      %v233 = vunpack.c.l.bf16 %v201
      %v234 = vunpack.c.l.bf16 %v202
      %v235 = vld [vmem:[%s1] sm:$0x1]
      %v237 = vperm.slane %v235, 0
      %v239 = vmul.f32 %v203, %v237
      %v240 = vmul.f32 %v204, %v237
      %v241 = vmul.f32 %v205, %v237
      %v242 = vmul.f32 %v206, %v237
      %v243 = vmul.f32 %v207, %v237
      %v244 = vmul.f32 %v208, %v237
      %v245 = vmul.f32 %v209, %v237
      %v246 = vmul.f32 %v210, %v237
      %v247 = vmul.f32 %v211, %v237
      %v248 = vmul.f32 %v212, %v237
      %v249 = vmul.f32 %v213, %v237
      %v250 = vmul.f32 %v214, %v237
      %v251 = vmul.f32 %v215, %v237
      %v252 = vmul.f32 %v216, %v237
      %v253 = vmul.f32 %v217, %v237
      %v254 = vmul.f32 %v218, %v237
      %v255 = vmul.f32 %v219, %v237
      %v256 = vmul.f32 %v220, %v237
      %v257 = vmul.f32 %v221, %v237
      %v258 = vmul.f32 %v222, %v237
      %v259 = vmul.f32 %v223, %v237
      %v260 = vmul.f32 %v224, %v237
      %v261 = vmul.f32 %v225, %v237
      %v262 = vmul.f32 %v226, %v237
      %v263 = vmul.f32 %v227, %v237
      %v264 = vmul.f32 %v228, %v237
      %v265 = vmul.f32 %v229, %v237
      %v266 = vmul.f32 %v230, %v237
      %v267 = vmul.f32 %v231, %v237
      %v268 = vmul.f32 %v232, %v237
      %v269 = vmul.f32 %v233, %v237
      %v270 = vmul.f32 %v234, %v237
      %v271 = vld [vmem:[%s2] sm:$0x1]
      %v273 = vperm.slane %v271, 0
      %v275 = vadd.f32 %v239, %v273
      %v276 = vadd.f32 %v240, %v273
      %v277 = vadd.f32 %v241, %v273
      %v278 = vadd.f32 %v242, %v273
      %v279 = vadd.f32 %v243, %v273
      %v280 = vadd.f32 %v244, %v273
      %v281 = vadd.f32 %v245, %v273
      %v282 = vadd.f32 %v246, %v273
      %v283 = vadd.f32 %v247, %v273
      %v284 = vadd.f32 %v248, %v273
      %v285 = vadd.f32 %v249, %v273
      %v286 = vadd.f32 %v250, %v273
      %v287 = vadd.f32 %v251, %v273
      %v288 = vadd.f32 %v252, %v273
      %v289 = vadd.f32 %v253, %v273
      %v290 = vadd.f32 %v254, %v273
      %v291 = vadd.f32 %v255, %v273
      %v292 = vadd.f32 %v256, %v273
      %v293 = vadd.f32 %v257, %v273
      %v294 = vadd.f32 %v258, %v273
      %v295 = vadd.f32 %v259, %v273
      %v296 = vadd.f32 %v260, %v273
      %v297 = vadd.f32 %v261, %v273
      %v298 = vadd.f32 %v262, %v273
      %v299 = vadd.f32 %v263, %v273
      %v300 = vadd.f32 %v264, %v273
      %v301 = vadd.f32 %v265, %v273
      %v302 = vadd.f32 %v266, %v273
      %v303 = vadd.f32 %v267, %v273
      %v304 = vadd.f32 %v268, %v273
      %v305 = vadd.f32 %v269, %v273
      %v306 = vadd.f32 %v270, %v273
      %v307 = vmax.f32 %v275, 0.0
      %v308 = vmax.f32 %v276, 0.0
      %v309 = vmax.f32 %v277, 0.0
      %v310 = vmax.f32 %v278, 0.0
      %v311 = vmax.f32 %v279, 0.0
      %v312 = vmax.f32 %v280, 0.0
      %v313 = vmax.f32 %v281, 0.0
      %v314 = vmax.f32 %v282, 0.0
      %v315 = vmax.f32 %v283, 0.0
      %v316 = vmax.f32 %v284, 0.0
      %v317 = vmax.f32 %v285, 0.0
      %v318 = vmax.f32 %v286, 0.0
      %v319 = vmax.f32 %v287, 0.0
      %v320 = vmax.f32 %v288, 0.0
      %v321 = vmax.f32 %v289, 0.0
      %v322 = vmax.f32 %v290, 0.0
      %v323 = vmax.f32 %v291, 0.0
      %v324 = vmax.f32 %v292, 0.0
      %v325 = vmax.f32 %v293, 0.0
      %v326 = vmax.f32 %v294, 0.0
      %v327 = vmax.f32 %v295, 0.0
      %v328 = vmax.f32 %v296, 0.0
      %v329 = vmax.f32 %v297, 0.0
      %v330 = vmax.f32 %v298, 0.0
      %v331 = vmax.f32 %v299, 0.0
      %v332 = vmax.f32 %v300, 0.0
      %v333 = vmax.f32 %v301, 0.0
      %v334 = vmax.f32 %v302, 0.0
      %v335 = vmax.f32 %v303, 0.0
      %v336 = vmax.f32 %v304, 0.0
      %v337 = vmax.f32 %v305, 0.0
      %v338 = vmax.f32 %v306, 0.0
      %339 = vst [vmem:[%s170] sm:$0xff] %v307
      %340 = vst [vmem:[%s170 + $0x8] sm:$0xff] %v308
      %341 = vst [vmem:[%s170 + $0x10] sm:$0xff] %v309
      %342 = vst [vmem:[%s170 + $0x18] sm:$0xff] %v310
      %343 = vst [vmem:[%s170 + $0x20] sm:$0xff] %v311
      %344 = vst [vmem:[%s170 + $0x28] sm:$0xff] %v312
      %345 = vst [vmem:[%s170 + $0x30] sm:$0xff] %v313
      %346 = vst [vmem:[%s170 + $0x38] sm:$0xff] %v314
      %347 = vst [vmem:[%s170 + $0x40] sm:$0xff] %v315
      %348 = vst [vmem:[%s170 + $0x48] sm:$0xff] %v316
      %349 = vst [vmem:[%s170 + $0x50] sm:$0xff] %v317
      %350 = vst [vmem:[%s170 + $0x58] sm:$0xff] %v318
      %351 = vst [vmem:[%s170 + $0x60] sm:$0xff] %v319
      %352 = vst [vmem:[%s170 + $0x68] sm:$0xff] %v320
      %353 = vst [vmem:[%s170 + $0x70] sm:$0xff] %v321
      %354 = vst [vmem:[%s170 + $0x78] sm:$0xff] %v322
      %355 = vst [vmem:[%s170 + $0x80] sm:$0xff] %v323
      %356 = vst [vmem:[%s170 + $0x88] sm:$0xff] %v324
      %357 = vst [vmem:[%s170 + $0x90] sm:$0xff] %v325
      %358 = vst [vmem:[%s170 + $0x98] sm:$0xff] %v326
      %359 = vst [vmem:[%s170 + $0xa0] sm:$0xff] %v327
      %360 = vst [vmem:[%s170 + $0xa8] sm:$0xff] %v328
      %361 = vst [vmem:[%s170 + $0xb0] sm:$0xff] %v329
      %362 = vst [vmem:[%s170 + $0xb8] sm:$0xff] %v330
      %363 = vst [vmem:[%s170 + $0xc0] sm:$0xff] %v331
      %364 = vst [vmem:[%s170 + $0xc8] sm:$0xff] %v332
      %365 = vst [vmem:[%s170 + $0xd0] sm:$0xff] %v333
      %366 = vst [vmem:[%s170 + $0xd8] sm:$0xff] %v334
      %367 = vst [vmem:[%s170 + $0xe0] sm:$0xff] %v335
      %368 = vst [vmem:[%s170 + $0xe8] sm:$0xff] %v336
      %369 = vst [vmem:[%s170 + $0xf0] sm:$0xff] %v337
      %370 = vst [vmem:[%s170 + $0xf8] sm:$0xff] %v338
      %p371 = scmp.lt.s32.totalorder %s14, 1
      %s372 = scalar_select %p371, %s14, 1
      %s373 = smul.addr %s372, 32
      %s374 = smul.addr %s373, 8
      %s375 = scalar_lea.vmem %s3, %s374
      // Predicated region
      $region33: #{conv_block.5} parent=31 // pred_check
        %p376 = pneg %p100
      $region34: #{conv_block.5} parent=31 // pred_check_branch
        %378 = sbr.rel (%p376) target = $region36
      $region35: #{conv_block.5} parent=31 // pred_region
        _
      $region36: #{conv_block.5} parent=31 // pred_fallthru
        _
    $region32: #{conv_block.5} parent=5 // pred_fallthru
      _
    %p379 = scmp.le.s32.totalorder 2, %s9
    // Predicated region
    $region37: #{conv_block.5} parent=5 // pred_check
      %p380 = pneg %p379
    $region38: #{conv_block.5} parent=5 // pred_check_branch
      %382 = sbr.rel (%p380) target = $region40
    $region39: #{conv_block.5} parent=5 // pred_region
      %s383 = ssub.s32 %s9, 2
      // Predicated region
      $region41: #{conv_block.5} parent=39 // pred_check
        %p384 = pneg %p106
      $region42: #{conv_block.5} parent=39 // pred_check_branch
        %386 = sbr.rel (%p384) target = $region44
      $region43: #{conv_block.5} parent=39 // pred_region
        %p387 = scmp.lt.s32.totalorder %s15, 1
        %s388 = scalar_select %p387, %s15, 1
        %s389 = smul.addr %s388, 32
        %s390 = smul.addr %s389, 8
        %s391 = scalar_lea.vmem %s3, %s390
      $region44: #{conv_block.5} parent=39 // pred_fallthru
        _
    $region40: #{conv_block.5} parent=5 // pred_fallthru
      _
  $region6: #{conv_block.5} parent=0 // loop_footer
    %s13 = sadd.s32 1, %s9
  $region7: #{conv_block.5} parent=0 // loop_footer_branch
    %8 = sbr.rel target = $region3
  $region8: #{conv_block.5} parent=0 // loop_exit
    _

// kernel: conv_block.3
$region0: #{conv_block.3}
  #allocation0 [shape = 'u32[]', space=smem, size = 0x4, offset = 0x4, fixed_abs, tag = 'smem constant byte address 0x4 - core index']
  #allocation1 [shape = 'u32[72,128]{1,0:T(1,128)}', space=vmem, size = 0x9000, scoped, tag = 'internal scratch']
  #allocation2 [shape = 'bf16[18,18,4]{2,1,0:T(8,128)(2,1)}', space=vmem, size = 0x1b000, scoped, tag = 'scratch operand']
  #allocation3 [shape = 'f32[256,128]{1,0:T(8,128)}', space=vmem, size = 0x20000, scoped, tag = 'scratch operand']
  #allocation4 [shape = 'bf16[256,36]{1,0:T(8,128)(2,1)}', space=vmem, size = 0x10000, scoped, tag = 'scratch operand']
  %s0 = inlined_call_operand.vmem [shape: f32[2,256,4], index: 0, kind: input, shape index: {}]
  %s1 = inlined_call_operand.vmem [shape: bf16[36,128], index: 1, kind: input, shape index: {}]
  %s2 = inlined_call_operand.vmem [shape: bf16[2,256,128], index: 2, kind: output, shape index: {0}]
  %s3 = inlined_call_operand.vmem [shape: f32[2,1,128], index: 3, kind: output, shape index: {1}]
  %s4 = inlined_call_operand.vmem [shape: f32[2,1,128], index: 4, kind: output, shape index: {2}]
  %5 = xla_tuple %s2, %s3, %s4
  %s6 = sld [smem:[#allocation0]]
  $region57: #{conv_block.3} parent=0
    _
  %s8 = ssub.s32 1, %s6
  %s9 = scalar_select 0, %s8, %s6
  loop: start=0, step=1, limit=4
  $region2: #{conv_block.3} parent=0 // loop_pre_header
    _
  $region3: #{conv_block.3} parent=0 // loop_header
    %s11 = sphi 0, %s15
    %p12 = scmp.ge.s32.totalorder %s11, 4
    %s21 = sphi 0, %s23
    %s24 = sphi 0, %s21
    %s25 = sphi 0, %s24
    %s41 = sphi 0, %s25
    %s45 = sphi 0, %s45
    %s47 = sphi 0, %s45
    %s48 = sphi 0, %s47
    %s62 = sphi 0, %s48
    %s68 = sphi 0, %s70
    %s71 = sphi 0, %s68
    %s72 = sphi 0, %s71
    %s88 = sphi 0, %s72
    %s94 = sphi 0, %s96
    %s97 = sphi 0, %s94
    %s98 = sphi 0, %s97
    %s114 = sphi 0, %s98
    %s120 = sphi 0, %s122
    %s123 = sphi 0, %s120
    %s124 = sphi 0, %s123
    %s140 = sphi 0, %s124
  $region4: #{conv_block.3} parent=0 // loop_header_branch
    %14 = sbr.rel (%p12) target = $region8
  $region5: #{conv_block.3} parent=0 // loop_body
    %s16 = ssub.s32 %s11, 1
    %s17 = ssub.s32 %s11, 2
    %s18 = sadd.s32 %s11, 1
    %s19 = ssub.s32 %s11, %s18
    %p20 = scmp.eq.s32.totalorder %s19, 0
    %s22 = sadd.s32 %s21, 1
    %s23 = scalar_select %p20, %s21, %s22
    %p26 = pneg %p20
    %p27 = scmp.eq.s32.totalorder %s11, 1
    %p28 = por %p26, %p27
    %p29 = scmp.ne.s32.totalorder %s21, %s24
    %p30 = scmp.eq.s32.totalorder %s11, 0
    %p31 = por %p29, %p30
    %p32 = scmp.ne.s32.totalorder %s21, %s24
    %p33 = scmp.eq.s32.totalorder %s16, 1
    %p34 = por %p32, %p33
    %p35 = scmp.ne.s32.totalorder %s24, %s25
    %p36 = scmp.eq.s32.totalorder %s16, 0
    %p37 = por %p35, %p36
    %p38 = scmp.ne.s32.totalorder %s24, %s25
    %p39 = scmp.eq.s32.totalorder %s17, 1
    %p40 = por %p38, %p39
    %p42 = scmp.ne.s32.totalorder %s25, %s41
    %p43 = scmp.eq.s32.totalorder %s17, 0
    %p44 = por %p42, %p43
    %s46 = sadd.s32 %s45, 1
    %p49 = scmp.eq.s32.totalorder %s11, 1
    %p50 = scmp.ne.s32.totalorder %s45, %s47
    %p51 = scmp.eq.s32.totalorder %s11, 0
    %p52 = por %p50, %p51
    %p53 = scmp.ne.s32.totalorder %s45, %s47
    %p54 = scmp.eq.s32.totalorder %s16, 1
    %p55 = por %p53, %p54
    %p56 = scmp.ne.s32.totalorder %s47, %s48
    %p57 = scmp.eq.s32.totalorder %s16, 0
    %p58 = por %p56, %p57
    %p59 = scmp.ne.s32.totalorder %s47, %s48
    %p60 = scmp.eq.s32.totalorder %s17, 1
    %p61 = por %p59, %p60
    %p63 = scmp.ne.s32.totalorder %s48, %s62
    %p64 = scmp.eq.s32.totalorder %s17, 0
    %p65 = por %p63, %p64
    %s66 = ssub.s32 %s11, %s18
    %p67 = scmp.eq.s32.totalorder %s66, 0
    %s69 = sadd.s32 %s68, 1
    %s70 = scalar_select %p67, %s68, %s69
    %p73 = pneg %p67
    %p74 = scmp.eq.s32.totalorder %s11, 1
    %p75 = por %p73, %p74
    %p76 = scmp.ne.s32.totalorder %s68, %s71
    %p77 = scmp.eq.s32.totalorder %s11, 0
    %p78 = por %p76, %p77
    %p79 = scmp.ne.s32.totalorder %s68, %s71
    %p80 = scmp.eq.s32.totalorder %s16, 1
    %p81 = por %p79, %p80
    %p82 = scmp.ne.s32.totalorder %s71, %s72
    %p83 = scmp.eq.s32.totalorder %s16, 0
    %p84 = por %p82, %p83
    %p85 = scmp.ne.s32.totalorder %s71, %s72
    %p86 = scmp.eq.s32.totalorder %s17, 1
    %p87 = por %p85, %p86
    %p89 = scmp.ne.s32.totalorder %s72, %s88
    %p90 = scmp.eq.s32.totalorder %s17, 0
    %p91 = por %p89, %p90
    %s92 = ssub.s32 %s11, %s18
    %p93 = scmp.eq.s32.totalorder %s92, 0
    %s95 = sadd.s32 %s94, 1
    %s96 = scalar_select %p93, %s94, %s95
    %p99 = pneg %p93
    %p100 = scmp.eq.s32.totalorder %s11, 1
    %p101 = por %p99, %p100
    %p102 = scmp.ne.s32.totalorder %s94, %s97
    %p103 = scmp.eq.s32.totalorder %s11, 0
    %p104 = por %p102, %p103
    %p105 = scmp.ne.s32.totalorder %s94, %s97
    %p106 = scmp.eq.s32.totalorder %s16, 1
    %p107 = por %p105, %p106
    %p108 = scmp.ne.s32.totalorder %s97, %s98
    %p109 = scmp.eq.s32.totalorder %s16, 0
    %p110 = por %p108, %p109
    %p111 = scmp.ne.s32.totalorder %s97, %s98
    %p112 = scmp.eq.s32.totalorder %s17, 1
    %p113 = por %p111, %p112
    %p115 = scmp.ne.s32.totalorder %s98, %s114
    %p116 = scmp.eq.s32.totalorder %s17, 0
    %p117 = por %p115, %p116
    %s118 = ssub.s32 %s11, %s18
    %p119 = scmp.eq.s32.totalorder %s118, 0
    %s121 = sadd.s32 %s120, 1
    %s122 = scalar_select %p119, %s120, %s121
    %p125 = pneg %p119
    %p126 = scmp.eq.s32.totalorder %s11, 1
    %p127 = por %p125, %p126
    %p128 = scmp.ne.s32.totalorder %s120, %s123
    %p129 = scmp.eq.s32.totalorder %s11, 0
    %p130 = por %p128, %p129
    %p131 = scmp.ne.s32.totalorder %s120, %s123
    %p132 = scmp.eq.s32.totalorder %s16, 1
    %p133 = por %p131, %p132
    %p134 = scmp.ne.s32.totalorder %s123, %s124
    %p135 = scmp.eq.s32.totalorder %s16, 0
    %p136 = por %p134, %p135
    %p137 = scmp.ne.s32.totalorder %s123, %s124
    %p138 = scmp.eq.s32.totalorder %s17, 1
    %p139 = por %p137, %p138
    %p141 = scmp.ne.s32.totalorder %s124, %s140
    %p142 = scmp.eq.s32.totalorder %s17, 0
    %p143 = por %p141, %p142
    %p144 = scmp.le.s32.totalorder 1, %s11
    %p145 = scmp.lt.s32.totalorder %s11, 3
    %p146 = pnand %p144, %p145
    %p147 = pneg %p146
    // Predicated region
    $region9: #{conv_block.3} parent=5 // pred_check
      _
    $region10: #{conv_block.3} parent=5 // pred_check_branch
      %149 = sbr.rel (%p146) target = $region12
    $region11: #{conv_block.3} parent=5 // pred_region
      %s150 = ssub.s32 %s11, 1
      // Predicated region
      $region13: #{conv_block.3} parent=11 // pred_check
        %p151 = pneg %p58
      $region14: #{conv_block.3} parent=11 // pred_check_branch
        %153 = sbr.rel (%p151) target = $region16
      $region15: #{conv_block.3} parent=11 // pred_region
        _
      $region16: #{conv_block.3} parent=11 // pred_fallthru
        _
    $region12: #{conv_block.3} parent=5 // pred_fallthru
      _
    %p154 = scmp.lt.s32.totalorder %s11, 2
    // Predicated region
    $region17: #{conv_block.3} parent=5 // pred_check
      %p155 = pneg %p154
    $region18: #{conv_block.3} parent=5 // pred_check_branch
      %157 = sbr.rel (%p155) target = $region20
    $region19: #{conv_block.3} parent=5 // pred_region
      // Predicated region
      $region21: #{conv_block.3} parent=19 // pred_check
        %p158 = pneg %p31
      $region22: #{conv_block.3} parent=19 // pred_check_branch
        %160 = sbr.rel (%p158) target = $region24
      $region23: #{conv_block.3} parent=19 // pred_region
        %p161 = scmp.lt.s32.totalorder %s11, 1
        %s162 = scalar_select %p161, %s11, 1
        %s163 = smul.addr %s162, 32
        %s164 = smul.addr %s163, 8
        %s165 = scalar_lea.vmem %s0, %s164
      $region24: #{conv_block.3} parent=19 // pred_fallthru
        _
    $region20: #{conv_block.3} parent=5 // pred_fallthru
      _
    %p166 = scmp.le.s32.totalorder 1, %s11
    %p167 = scmp.lt.s32.totalorder %s11, 3
    %p168 = pnand %p166, %p167
    %p169 = pneg %p168
    // Predicated region
    $region25: #{conv_block.3} parent=5 // pred_check
      _
    $region26: #{conv_block.3} parent=5 // pred_check_branch
      %171 = sbr.rel (%p168) target = $region28
    $region27: #{conv_block.3} parent=5 // pred_region
      %s172 = ssub.s32 %s11, 1
      %p173 = scmp.lt.s32.totalorder %s16, 1
      %s174 = scalar_select %p173, %s16, 1
      %s175 = smul.addr %s174, 32
      %s176 = smul.addr %s175, 8
      %s177 = scalar_lea.vmem %s0, %s176
      %p178 = pneg %p37
      %p179 = pneg %p34
      %p180 = pneg %p58
      %p181 = pneg %p55
      %p182 = pneg %p84
      %p183 = pneg %p81
      %p184 = scmp.lt.s32.totalorder %s16, 1
      %s185 = scalar_select %p184, %s16, 1
      %s186 = smul.addr %s185, 32
      %s187 = smul.addr %s186, 4
      %s188 = scalar_lea.vmem %s2, %s187
      %p189 = pneg %p110
      %p190 = pneg %p107
      %p191 = scmp.lt.s32.totalorder %s16, 1
      %s192 = scalar_select %p191, %s16, 1
      %s193 = scalar_lea.vmem %s3, %s192
      %p194 = pneg %p136
      %p195 = pneg %p133
      %p196 = scmp.lt.s32.totalorder %s16, 1
      %s197 = scalar_select %p196, %s16, 1
      %s198 = scalar_lea.vmem %s4, %s197
      %p199 = scmp.lt.s32.totalorder %s16, 1
      %s200 = scalar_select %p199, %s16, 1
      %s201 = smul.addr %s200, 32
      %s202 = smul.addr %s201, 8
      %s203 = scalar_lea.vmem %s0, %s202
      %p204 = scmp.lt.s32.totalorder %s16, 1
      %s205 = scalar_select %p204, %s16, 1
      %s206 = smul.addr %s205, 32
      %s207 = smul.addr %s206, 4
      %s208 = scalar_lea.vmem %s2, %s207
      %p209 = scmp.lt.s32.totalorder %s16, 1
      %s210 = scalar_select %p209, %s16, 1
      %s211 = scalar_lea.vmem %s3, %s210
      %p212 = scmp.lt.s32.totalorder %s16, 1
      %s213 = scalar_select %p212, %s16, 1
      %s214 = scalar_lea.vmem %s4, %s213
      %vm216 = vcmask 27648
      %217 = vst.msk [vmem:[#allocation2] sm:$0xf] %vm216, 0
      %218 = vst.msk [vmem:[#allocation2 + $0x4] sm:$0xf] %vm216, 0
      %vm219 = vcmask 24576
      %220 = vst.msk [vmem:[#allocation2 + $0x8] sm:$0x1] %vm219, 0
      %s221 = scalar_lea.vmem [#allocation2], 204
      %222 = vst.msk [vmem:[%s221] sm:$0xf] %vm216, 0
      %223 = vst.msk [vmem:[%s221 + $0x4] sm:$0xf] %vm216, 0
      %224 = vst.msk [vmem:[%s221 + $0x8] sm:$0x1] %vm219, 0
      %s225 = scalar_lea.vmem [#allocation2], 12
      %vm226 = vcmask 24576
      %vm227 = vsmask.f32 256
      %vm228 = vmand %vm226, %vm227
      %v229 = vld [vmem:[%s225] sm:$0x1]
      %v230 = vsel %vm228, 0, %v229
      %231 = vst [vmem:[%s225] sm:$0x1] %v230
      %v232 = vld [vmem:[%s225 + $0xc] sm:$0x1]
      %v233 = vsel %vm228, 0, %v232
      %234 = vst [vmem:[%s225 + $0xc] sm:$0x1] %v233
      %v235 = vld [vmem:[%s225 + $0x18] sm:$0x1]
      %v236 = vsel %vm228, 0, %v235
      %237 = vst [vmem:[%s225 + $0x18] sm:$0x1] %v236
      %v238 = vld [vmem:[%s225 + $0x24] sm:$0x1]
      %v239 = vsel %vm228, 0, %v238
      %240 = vst [vmem:[%s225 + $0x24] sm:$0x1] %v239
      %v241 = vld [vmem:[%s225 + $0x30] sm:$0x1]
      %v242 = vsel %vm228, 0, %v241
      %243 = vst [vmem:[%s225 + $0x30] sm:$0x1] %v242
      %v244 = vld [vmem:[%s225 + $0x3c] sm:$0x1]
      %v245 = vsel %vm228, 0, %v244
      %246 = vst [vmem:[%s225 + $0x3c] sm:$0x1] %v245
      %v247 = vld [vmem:[%s225 + $0x48] sm:$0x1]
      %v248 = vsel %vm228, 0, %v247
      %249 = vst [vmem:[%s225 + $0x48] sm:$0x1] %v248
      %v250 = vld [vmem:[%s225 + $0x54] sm:$0x1]
      %v251 = vsel %vm228, 0, %v250
      %252 = vst [vmem:[%s225 + $0x54] sm:$0x1] %v251
      %v253 = vld [vmem:[%s225 + $0x60] sm:$0x1]
      %v254 = vsel %vm228, 0, %v253
      %255 = vst [vmem:[%s225 + $0x60] sm:$0x1] %v254
      %v256 = vld [vmem:[%s225 + $0x6c] sm:$0x1]
      %v257 = vsel %vm228, 0, %v256
      %258 = vst [vmem:[%s225 + $0x6c] sm:$0x1] %v257
      %v259 = vld [vmem:[%s225 + $0x78] sm:$0x1]
      %v260 = vsel %vm228, 0, %v259
      %261 = vst [vmem:[%s225 + $0x78] sm:$0x1] %v260
      %v262 = vld [vmem:[%s225 + $0x84] sm:$0x1]
      %v263 = vsel %vm228, 0, %v262
      %264 = vst [vmem:[%s225 + $0x84] sm:$0x1] %v263
      %v265 = vld [vmem:[%s225 + $0x90] sm:$0x1]
      %v266 = vsel %vm228, 0, %v265
      %267 = vst [vmem:[%s225 + $0x90] sm:$0x1] %v266
      %v268 = vld [vmem:[%s225 + $0x9c] sm:$0x1]
      %v269 = vsel %vm228, 0, %v268
      %270 = vst [vmem:[%s225 + $0x9c] sm:$0x1] %v269
      %v271 = vld [vmem:[%s225 + $0xa8] sm:$0x1]
      %v272 = vsel %vm228, 0, %v271
      %273 = vst [vmem:[%s225 + $0xa8] sm:$0x1] %v272
      %v274 = vld [vmem:[%s225 + $0xb4] sm:$0x1]
      %v275 = vsel %vm228, 0, %v274
      %276 = vst [vmem:[%s225 + $0xb4] sm:$0x1] %v275
      %vm277 = vsmask.f32 7938
      %vm278 = vmand %vm226, %vm277
      %v279 = vld [vmem:[%s225 + $0x8] sm:$0x1]
      %v280 = vsel %vm278, 0, %v279
      %281 = vst [vmem:[%s225 + $0x8] sm:$0x1] %v280
      %v282 = vld [vmem:[%s225 + $0x14] sm:$0x1]
      %v283 = vsel %vm278, 0, %v282
      %284 = vst [vmem:[%s225 + $0x14] sm:$0x1] %v283
      %v285 = vld [vmem:[%s225 + $0x20] sm:$0x1]
      %v286 = vsel %vm278, 0, %v285
      %287 = vst [vmem:[%s225 + $0x20] sm:$0x1] %v286
      %v288 = vld [vmem:[%s225 + $0x2c] sm:$0x1]
      %v289 = vsel %vm278, 0, %v288
      %290 = vst [vmem:[%s225 + $0x2c] sm:$0x1] %v289
      %v291 = vld [vmem:[%s225 + $0x38] sm:$0x1]
      %v292 = vsel %vm278, 0, %v291
      %293 = vst [vmem:[%s225 + $0x38] sm:$0x1] %v292
      %v294 = vld [vmem:[%s225 + $0x44] sm:$0x1]
      %v295 = vsel %vm278, 0, %v294
      %296 = vst [vmem:[%s225 + $0x44] sm:$0x1] %v295
      %v297 = vld [vmem:[%s225 + $0x50] sm:$0x1]
      %v298 = vsel %vm278, 0, %v297
      %299 = vst [vmem:[%s225 + $0x50] sm:$0x1] %v298
      %v300 = vld [vmem:[%s225 + $0x5c] sm:$0x1]
      %v301 = vsel %vm278, 0, %v300
      %302 = vst [vmem:[%s225 + $0x5c] sm:$0x1] %v301
      %v303 = vld [vmem:[%s225 + $0x68] sm:$0x1]
      %v304 = vsel %vm278, 0, %v303
      %305 = vst [vmem:[%s225 + $0x68] sm:$0x1] %v304
      %v306 = vld [vmem:[%s225 + $0x74] sm:$0x1]
      %v307 = vsel %vm278, 0, %v306
      %308 = vst [vmem:[%s225 + $0x74] sm:$0x1] %v307
      %v309 = vld [vmem:[%s225 + $0x80] sm:$0x1]
      %v310 = vsel %vm278, 0, %v309
      %311 = vst [vmem:[%s225 + $0x80] sm:$0x1] %v310
      %v312 = vld [vmem:[%s225 + $0x8c] sm:$0x1]
      %v313 = vsel %vm278, 0, %v312
      %314 = vst [vmem:[%s225 + $0x8c] sm:$0x1] %v313
      %v315 = vld [vmem:[%s225 + $0x98] sm:$0x1]
      %v316 = vsel %vm278, 0, %v315
      %317 = vst [vmem:[%s225 + $0x98] sm:$0x1] %v316
      %v318 = vld [vmem:[%s225 + $0xa4] sm:$0x1]
      %v319 = vsel %vm278, 0, %v318
      %320 = vst [vmem:[%s225 + $0xa4] sm:$0x1] %v319
      %v321 = vld [vmem:[%s225 + $0xb0] sm:$0x1]
      %v322 = vsel %vm278, 0, %v321
      %323 = vst [vmem:[%s225 + $0xb0] sm:$0x1] %v322
      %v324 = vld [vmem:[%s225 + $0xbc] sm:$0x1]
      %v325 = vsel %vm278, 0, %v324
      %326 = vst [vmem:[%s225 + $0xbc] sm:$0x1] %v325
      %v327 = vld [vmem:[%s203] sm:$0xff]
      %v328 = vld [vmem:[%s203 + $0x8] sm:$0xff]
      %v329 = vld [vmem:[%s203 + $0x10] sm:$0xff]
      %v330 = vld [vmem:[%s203 + $0x18] sm:$0xff]
      %v331 = vld [vmem:[%s203 + $0x20] sm:$0xff]
      %v332 = vld [vmem:[%s203 + $0x28] sm:$0xff]
      %v333 = vld [vmem:[%s203 + $0x30] sm:$0xff]
      %v334 = vld [vmem:[%s203 + $0x38] sm:$0xff]
      %v335 = vld [vmem:[%s203 + $0x40] sm:$0xff]
      %v336 = vld [vmem:[%s203 + $0x48] sm:$0xff]
      %v337 = vld [vmem:[%s203 + $0x50] sm:$0xff]
      %v338 = vld [vmem:[%s203 + $0x58] sm:$0xff]
      %v339 = vld [vmem:[%s203 + $0x60] sm:$0xff]
      %v340 = vld [vmem:[%s203 + $0x68] sm:$0xff]
      %v341 = vld [vmem:[%s203 + $0x70] sm:$0xff]
      %v342 = vld [vmem:[%s203 + $0x78] sm:$0xff]
      %v343 = vld [vmem:[%s203 + $0x80] sm:$0xff]
      %v344 = vld [vmem:[%s203 + $0x88] sm:$0xff]
      %v345 = vld [vmem:[%s203 + $0x90] sm:$0xff]
      %v346 = vld [vmem:[%s203 + $0x98] sm:$0xff]
      %v347 = vld [vmem:[%s203 + $0xa0] sm:$0xff]
      %v348 = vld [vmem:[%s203 + $0xa8] sm:$0xff]
      %v349 = vld [vmem:[%s203 + $0xb0] sm:$0xff]
      %v350 = vld [vmem:[%s203 + $0xb8] sm:$0xff]
      %v351 = vld [vmem:[%s203 + $0xc0] sm:$0xff]
      %v352 = vld [vmem:[%s203 + $0xc8] sm:$0xff]
      %v353 = vld [vmem:[%s203 + $0xd0] sm:$0xff]
      %v354 = vld [vmem:[%s203 + $0xd8] sm:$0xff]
      %v355 = vld [vmem:[%s203 + $0xe0] sm:$0xff]
      %v356 = vld [vmem:[%s203 + $0xe8] sm:$0xff]
      %v357 = vld [vmem:[%s203 + $0xf0] sm:$0xff]
      %v358 = vld [vmem:[%s203 + $0xf8] sm:$0xff]
      %v359 = vpack.c.bf16 %v327, %v327
      %v360 = vpack.c.bf16 %v328, %v328
      %v361 = vpack.c.bf16 %v329, %v329
      %v362 = vpack.c.bf16 %v330, %v330
      %v363 = vpack.c.bf16 %v331, %v331
      %v364 = vpack.c.bf16 %v332, %v332
      %v365 = vpack.c.bf16 %v333, %v333
      %v366 = vpack.c.bf16 %v334, %v334
      %v367 = vpack.c.bf16 %v335, %v335
      %v368 = vpack.c.bf16 %v336, %v336
      %v369 = vpack.c.bf16 %v337, %v337
      %v370 = vpack.c.bf16 %v338, %v338
      %v371 = vpack.c.bf16 %v339, %v339
      %v372 = vpack.c.bf16 %v340, %v340
      %v373 = vpack.c.bf16 %v341, %v341
      %v374 = vpack.c.bf16 %v342, %v342
      %v375 = vpack.c.bf16 %v343, %v343
      %v376 = vpack.c.bf16 %v344, %v344
      %v377 = vpack.c.bf16 %v345, %v345
      %v378 = vpack.c.bf16 %v346, %v346
      %v379 = vpack.c.bf16 %v347, %v347
      %v380 = vpack.c.bf16 %v348, %v348
      %v381 = vpack.c.bf16 %v349, %v349
      %v382 = vpack.c.bf16 %v350, %v350
      %v383 = vpack.c.bf16 %v351, %v351
      %v384 = vpack.c.bf16 %v352, %v352
      %v385 = vpack.c.bf16 %v353, %v353
      %v386 = vpack.c.bf16 %v354, %v354
      %v387 = vpack.c.bf16 %v355, %v355
      %v388 = vpack.c.bf16 %v356, %v356
      %v389 = vpack.c.bf16 %v357, %v357
      %v390 = vpack.c.bf16 %v358, %v358
      %vm391 = vsmask.f32 4368
      %vm392 = vmor %vm227, %vm391
      %v394 = vshrl.u32 %v359, 16
      %v396 = vrot.slane %v394, 7
      %v397 = vshll.u32 %v359, 16
      %v399 = vor.u32 %v396, %v397
      %v400 = vrot.slane %v396, 4
      %v402 = vshrl.u32 %v360, 16
      %v404 = vrot.slane %v402, 7
      %v405 = vshll.u32 %v360, 16
      %v407 = vor.u32 %v404, %v405
      %v408 = vsel %vm392, %v400, %v407
      %v409 = vrot.slane %v404, 4
      %v411 = vshrl.u32 %v361, 16
      %v413 = vrot.slane %v411, 7
      %v414 = vshll.u32 %v361, 16
      %v416 = vor.u32 %v413, %v414
      %v417 = vrot.slane %v413, 4
      %v419 = vshrl.u32 %v362, 16
      %v421 = vrot.slane %v419, 7
      %v422 = vshll.u32 %v362, 16
      %v424 = vor.u32 %v421, %v422
      %v425 = vsel %vm392, %v417, %v424
      %v426 = vrot.slane %v421, 4
      %v428 = vshrl.u32 %v363, 16
      %v430 = vrot.slane %v428, 7
      %v431 = vshll.u32 %v363, 16
      %v433 = vor.u32 %v430, %v431
      %v434 = vrot.slane %v430, 4
      %v436 = vshrl.u32 %v364, 16
      %v438 = vrot.slane %v436, 7
      %v439 = vshll.u32 %v364, 16
      %v441 = vor.u32 %v438, %v439
      %v442 = vsel %vm392, %v434, %v441
      %v443 = vrot.slane %v438, 4
      %v445 = vshrl.u32 %v365, 16
      %v447 = vrot.slane %v445, 7
      %v448 = vshll.u32 %v365, 16
      %v450 = vor.u32 %v447, %v448
      %v451 = vrot.slane %v447, 4
      %v453 = vshrl.u32 %v366, 16
      %v455 = vrot.slane %v453, 7
      %v456 = vshll.u32 %v366, 16
      %v458 = vor.u32 %v455, %v456
      %v459 = vsel %vm392, %v451, %v458
      %v460 = vrot.slane %v455, 4
      %v462 = vshrl.u32 %v367, 16
      %v464 = vrot.slane %v462, 7
      %v465 = vshll.u32 %v367, 16
      %v467 = vor.u32 %v464, %v465
      %v468 = vrot.slane %v464, 4
      %v470 = vshrl.u32 %v368, 16
      %v472 = vrot.slane %v470, 7
      %v473 = vshll.u32 %v368, 16
      %v475 = vor.u32 %v472, %v473
      %v476 = vsel %vm392, %v468, %v475
      %v477 = vrot.slane %v472, 4
      %v479 = vshrl.u32 %v369, 16
      %v481 = vrot.slane %v479, 7
      %v482 = vshll.u32 %v369, 16
      %v484 = vor.u32 %v481, %v482
      %v485 = vrot.slane %v481, 4
      %v487 = vshrl.u32 %v370, 16
      %v489 = vrot.slane %v487, 7
      %v490 = vshll.u32 %v370, 16
      %v492 = vor.u32 %v489, %v490
      %v493 = vsel %vm392, %v485, %v492
      %v494 = vrot.slane %v489, 4
      %v496 = vshrl.u32 %v371, 16
      %v498 = vrot.slane %v496, 7
      %v499 = vshll.u32 %v371, 16
      %v501 = vor.u32 %v498, %v499
      %v502 = vrot.slane %v498, 4
      %v504 = vshrl.u32 %v372, 16
      %v506 = vrot.slane %v504, 7
      %v507 = vshll.u32 %v372, 16
      %v509 = vor.u32 %v506, %v507
      %v510 = vsel %vm392, %v502, %v509
      %v511 = vrot.slane %v506, 4
      %v513 = vshrl.u32 %v373, 16
      %v515 = vrot.slane %v513, 7
      %v516 = vshll.u32 %v373, 16
      %v518 = vor.u32 %v515, %v516
      %v519 = vrot.slane %v515, 4
      %v521 = vshrl.u32 %v374, 16
      %v523 = vrot.slane %v521, 7
      %v524 = vshll.u32 %v374, 16
      %v526 = vor.u32 %v523, %v524
      %v527 = vsel %vm392, %v519, %v526
      %v528 = vrot.slane %v523, 4
      %v530 = vshrl.u32 %v375, 16
      %v532 = vrot.slane %v530, 7
      %v533 = vshll.u32 %v375, 16
      %v535 = vor.u32 %v532, %v533
      %v536 = vrot.slane %v532, 4
      %v538 = vshrl.u32 %v376, 16
      %v540 = vrot.slane %v538, 7
      %v541 = vshll.u32 %v376, 16
      %v543 = vor.u32 %v540, %v541
      %v544 = vsel %vm392, %v536, %v543
      %v545 = vrot.slane %v540, 4
      %v547 = vshrl.u32 %v377, 16
      %v549 = vrot.slane %v547, 7
      %v550 = vshll.u32 %v377, 16
      %v552 = vor.u32 %v549, %v550
      %v553 = vrot.slane %v549, 4
      %v555 = vshrl.u32 %v378, 16
      %v557 = vrot.slane %v555, 7
      %v558 = vshll.u32 %v378, 16
      %v560 = vor.u32 %v557, %v558
      %v561 = vsel %vm392, %v553, %v560
      %v562 = vrot.slane %v557, 4
      %v564 = vshrl.u32 %v379, 16
      %v566 = vrot.slane %v564, 7
      %v567 = vshll.u32 %v379, 16
      %v569 = vor.u32 %v566, %v567
      %v570 = vrot.slane %v566, 4
      %v572 = vshrl.u32 %v380, 16
      %v574 = vrot.slane %v572, 7
      %v575 = vshll.u32 %v380, 16
      %v577 = vor.u32 %v574, %v575
      %v578 = vsel %vm392, %v570, %v577
      %v579 = vrot.slane %v574, 4
      %v581 = vshrl.u32 %v381, 16
      %v583 = vrot.slane %v581, 7
      %v584 = vshll.u32 %v381, 16
      %v586 = vor.u32 %v583, %v584
      %v587 = vrot.slane %v583, 4
      %v589 = vshrl.u32 %v382, 16
      %v591 = vrot.slane %v589, 7
      %v592 = vshll.u32 %v382, 16
      %v594 = vor.u32 %v591, %v592
      %v595 = vsel %vm392, %v587, %v594
      %v596 = vrot.slane %v591, 4
      %v598 = vshrl.u32 %v383, 16
      %v600 = vrot.slane %v598, 7
      %v601 = vshll.u32 %v383, 16
      %v603 = vor.u32 %v600, %v601
      %v604 = vrot.slane %v600, 4
      %v606 = vshrl.u32 %v384, 16
      %v608 = vrot.slane %v606, 7
      %v609 = vshll.u32 %v384, 16
      %v611 = vor.u32 %v608, %v609
      %v612 = vsel %vm392, %v604, %v611
      %v613 = vrot.slane %v608, 4
      %v615 = vshrl.u32 %v385, 16
      %v617 = vrot.slane %v615, 7
      %v618 = vshll.u32 %v385, 16
      %v620 = vor.u32 %v617, %v618
      %v621 = vrot.slane %v617, 4
      %v623 = vshrl.u32 %v386, 16
      %v625 = vrot.slane %v623, 7
      %v626 = vshll.u32 %v386, 16
      %v628 = vor.u32 %v625, %v626
      %v629 = vsel %vm392, %v621, %v628
      %v630 = vrot.slane %v625, 4
      %v632 = vshrl.u32 %v387, 16
      %v634 = vrot.slane %v632, 7
      %v635 = vshll.u32 %v387, 16
      %v637 = vor.u32 %v634, %v635
      %v638 = vrot.slane %v634, 4
      %v640 = vshrl.u32 %v388, 16
      %v642 = vrot.slane %v640, 7
      %v643 = vshll.u32 %v388, 16
      %v645 = vor.u32 %v642, %v643
      %v646 = vsel %vm392, %v638, %v645
      %v647 = vrot.slane %v642, 4
      %v649 = vshrl.u32 %v389, 16
      %v651 = vrot.slane %v649, 7
      %v652 = vshll.u32 %v389, 16
      %v654 = vor.u32 %v651, %v652
      %v655 = vrot.slane %v651, 4
      %v657 = vshrl.u32 %v390, 16
      %v659 = vrot.slane %v657, 7
      %v660 = vshll.u32 %v390, 16
      %v662 = vor.u32 %v659, %v660
      %v663 = vsel %vm392, %v655, %v662
      %v664 = vrot.slane %v659, 4
      %vm713 = vcmask 27648
      %vm714 = vmand %vm713, %vm277
      %v715 = vld [vmem:[%s225] sm:$0xf]
      %v716 = vsel %vm714, %v399, %v715
      %717 = vst [vmem:[%s225] sm:$0xf] %v716
      %718 = vst.msk [vmem:[%s225 + $0x4] sm:$0xf] %vm216, %v408
      %v719 = vld [vmem:[%s225 + $0x8] sm:$0x1]
      %v720 = vsel %vm228, %v409, %v719
      %721 = vst [vmem:[%s225 + $0x8] sm:$0x1] %v720
      %v722 = vld [vmem:[%s225 + $0xc] sm:$0xf]
      %v723 = vsel %vm714, %v416, %v722
      %724 = vst [vmem:[%s225 + $0xc] sm:$0xf] %v723
      %725 = vst.msk [vmem:[%s225 + $0x10] sm:$0xf] %vm216, %v425
      %v726 = vld [vmem:[%s225 + $0x14] sm:$0x1]
      %v727 = vsel %vm228, %v426, %v726
      %728 = vst [vmem:[%s225 + $0x14] sm:$0x1] %v727
      %v729 = vld [vmem:[%s225 + $0x18] sm:$0xf]
      %v730 = vsel %vm714, %v433, %v729
      %731 = vst [vmem:[%s225 + $0x18] sm:$0xf] %v730
      %732 = vst.msk [vmem:[%s225 + $0x1c] sm:$0xf] %vm216, %v442
      %v733 = vld [vmem:[%s225 + $0x20] sm:$0x1]
      %v734 = vsel %vm228, %v443, %v733
      %735 = vst [vmem:[%s225 + $0x20] sm:$0x1] %v734
      %v736 = vld [vmem:[%s225 + $0x24] sm:$0xf]
      %v737 = vsel %vm714, %v450, %v736
      %738 = vst [vmem:[%s225 + $0x24] sm:$0xf] %v737
      %739 = vst.msk [vmem:[%s225 + $0x28] sm:$0xf] %vm216, %v459
      %v740 = vld [vmem:[%s225 + $0x2c] sm:$0x1]
      %v741 = vsel %vm228, %v460, %v740
      %742 = vst [vmem:[%s225 + $0x2c] sm:$0x1] %v741
      %v743 = vld [vmem:[%s225 + $0x30] sm:$0xf]
      %v744 = vsel %vm714, %v467, %v743
      %745 = vst [vmem:[%s225 + $0x30] sm:$0xf] %v744
      %746 = vst.msk [vmem:[%s225 + $0x34] sm:$0xf] %vm216, %v476
      %v747 = vld [vmem:[%s225 + $0x38] sm:$0x1]
      %v748 = vsel %vm228, %v477, %v747
      %749 = vst [vmem:[%s225 + $0x38] sm:$0x1] %v748
      %v750 = vld [vmem:[%s225 + $0x3c] sm:$0xf]
      %v751 = vsel %vm714, %v484, %v750
      %752 = vst [vmem:[%s225 + $0x3c] sm:$0xf] %v751
      %753 = vst.msk [vmem:[%s225 + $0x40] sm:$0xf] %vm216, %v493
      %v754 = vld [vmem:[%s225 + $0x44] sm:$0x1]
      %v755 = vsel %vm228, %v494, %v754
      %756 = vst [vmem:[%s225 + $0x44] sm:$0x1] %v755
      %v757 = vld [vmem:[%s225 + $0x48] sm:$0xf]
      %v758 = vsel %vm714, %v501, %v757
      %759 = vst [vmem:[%s225 + $0x48] sm:$0xf] %v758
      %760 = vst.msk [vmem:[%s225 + $0x4c] sm:$0xf] %vm216, %v510
      %v761 = vld [vmem:[%s225 + $0x50] sm:$0x1]
      %v762 = vsel %vm228, %v511, %v761
      %763 = vst [vmem:[%s225 + $0x50] sm:$0x1] %v762
      %v764 = vld [vmem:[%s225 + $0x54] sm:$0xf]
      %v765 = vsel %vm714, %v518, %v764
      %766 = vst [vmem:[%s225 + $0x54] sm:$0xf] %v765
      %767 = vst.msk [vmem:[%s225 + $0x58] sm:$0xf] %vm216, %v527
      %v768 = vld [vmem:[%s225 + $0x5c] sm:$0x1]
      %v769 = vsel %vm228, %v528, %v768
      %770 = vst [vmem:[%s225 + $0x5c] sm:$0x1] %v769
      %v771 = vld [vmem:[%s225 + $0x60] sm:$0xf]
      %v772 = vsel %vm714, %v535, %v771
      %773 = vst [vmem:[%s225 + $0x60] sm:$0xf] %v772
      %774 = vst.msk [vmem:[%s225 + $0x64] sm:$0xf] %vm216, %v544
      %v775 = vld [vmem:[%s225 + $0x68] sm:$0x1]
      %v776 = vsel %vm228, %v545, %v775
      %777 = vst [vmem:[%s225 + $0x68] sm:$0x1] %v776
      %v778 = vld [vmem:[%s225 + $0x6c] sm:$0xf]
      %v779 = vsel %vm714, %v552, %v778
      %780 = vst [vmem:[%s225 + $0x6c] sm:$0xf] %v779
      %781 = vst.msk [vmem:[%s225 + $0x70] sm:$0xf] %vm216, %v561
      %v782 = vld [vmem:[%s225 + $0x74] sm:$0x1]
      %v783 = vsel %vm228, %v562, %v782
      %784 = vst [vmem:[%s225 + $0x74] sm:$0x1] %v783
      %v785 = vld [vmem:[%s225 + $0x78] sm:$0xf]
      %v786 = vsel %vm714, %v569, %v785
      %787 = vst [vmem:[%s225 + $0x78] sm:$0xf] %v786
      %788 = vst.msk [vmem:[%s225 + $0x7c] sm:$0xf] %vm216, %v578
      %v789 = vld [vmem:[%s225 + $0x80] sm:$0x1]
      %v790 = vsel %vm228, %v579, %v789
      %791 = vst [vmem:[%s225 + $0x80] sm:$0x1] %v790
      %v792 = vld [vmem:[%s225 + $0x84] sm:$0xf]
      %v793 = vsel %vm714, %v586, %v792
      %794 = vst [vmem:[%s225 + $0x84] sm:$0xf] %v793
      %795 = vst.msk [vmem:[%s225 + $0x88] sm:$0xf] %vm216, %v595
      %v796 = vld [vmem:[%s225 + $0x8c] sm:$0x1]
      %v797 = vsel %vm228, %v596, %v796
      %798 = vst [vmem:[%s225 + $0x8c] sm:$0x1] %v797
      %v799 = vld [vmem:[%s225 + $0x90] sm:$0xf]
      %v800 = vsel %vm714, %v603, %v799
      %801 = vst [vmem:[%s225 + $0x90] sm:$0xf] %v800
      %802 = vst.msk [vmem:[%s225 + $0x94] sm:$0xf] %vm216, %v612
      %v803 = vld [vmem:[%s225 + $0x98] sm:$0x1]
      %v804 = vsel %vm228, %v613, %v803
      %805 = vst [vmem:[%s225 + $0x98] sm:$0x1] %v804
      %v806 = vld [vmem:[%s225 + $0x9c] sm:$0xf]
      %v807 = vsel %vm714, %v620, %v806
      %808 = vst [vmem:[%s225 + $0x9c] sm:$0xf] %v807
      %809 = vst.msk [vmem:[%s225 + $0xa0] sm:$0xf] %vm216, %v629
      %v810 = vld [vmem:[%s225 + $0xa4] sm:$0x1]
      %v811 = vsel %vm228, %v630, %v810
      %812 = vst [vmem:[%s225 + $0xa4] sm:$0x1] %v811
      %v813 = vld [vmem:[%s225 + $0xa8] sm:$0xf]
      %v814 = vsel %vm714, %v637, %v813
      %815 = vst [vmem:[%s225 + $0xa8] sm:$0xf] %v814
      %816 = vst.msk [vmem:[%s225 + $0xac] sm:$0xf] %vm216, %v646
      %v817 = vld [vmem:[%s225 + $0xb0] sm:$0x1]
      %v818 = vsel %vm228, %v647, %v817
      %819 = vst [vmem:[%s225 + $0xb0] sm:$0x1] %v818
      %v820 = vld [vmem:[%s225 + $0xb4] sm:$0xf]
      %v821 = vsel %vm714, %v654, %v820
      %822 = vst [vmem:[%s225 + $0xb4] sm:$0xf] %v821
      %823 = vst.msk [vmem:[%s225 + $0xb8] sm:$0xf] %vm216, %v663
      %v824 = vld [vmem:[%s225 + $0xbc] sm:$0x1]
      %v825 = vsel %vm228, %v664, %v824
      %826 = vst [vmem:[%s225 + $0xbc] sm:$0x1] %v825
      %v827 = vld [vmem:[#allocation2] sm:$0xf]
      %v828 = vld [vmem:[#allocation2 + $0x4] sm:$0xf]
      %v829 = vld [vmem:[#allocation2 + $0xc] sm:$0xf]
      %v830 = vld [vmem:[#allocation2 + $0x10] sm:$0xf]
      %v831 = vld [vmem:[#allocation2 + $0x18] sm:$0xf]
      %v832 = vld [vmem:[#allocation2 + $0x1c] sm:$0xf]
      %v833 = vld [vmem:[#allocation2 + $0x24] sm:$0xf]
      %v834 = vld [vmem:[#allocation2 + $0x28] sm:$0xf]
      %v835 = vld [vmem:[#allocation2 + $0x30] sm:$0xf]
      %v836 = vld [vmem:[#allocation2 + $0x34] sm:$0xf]
      %v837 = vld [vmem:[#allocation2 + $0x3c] sm:$0xf]
      %v838 = vld [vmem:[#allocation2 + $0x40] sm:$0xf]
      %v839 = vld [vmem:[#allocation2 + $0x48] sm:$0xf]
      %v840 = vld [vmem:[#allocation2 + $0x4c] sm:$0xf]
      %v841 = vld [vmem:[#allocation2 + $0x54] sm:$0xf]
      %v842 = vld [vmem:[#allocation2 + $0x58] sm:$0xf]
      %v843 = vld [vmem:[#allocation2 + $0x60] sm:$0xf]
      %v844 = vld [vmem:[#allocation2 + $0x64] sm:$0xf]
      %v845 = vld [vmem:[#allocation2 + $0x6c] sm:$0xf]
      %v846 = vld [vmem:[#allocation2 + $0x70] sm:$0xf]
      %v847 = vld [vmem:[#allocation2 + $0x78] sm:$0xf]
      %v848 = vld [vmem:[#allocation2 + $0x7c] sm:$0xf]
      %v849 = vld [vmem:[#allocation2 + $0x84] sm:$0xf]
      %v850 = vld [vmem:[#allocation2 + $0x88] sm:$0xf]
      %v851 = vld [vmem:[#allocation2 + $0x90] sm:$0xf]
      %v852 = vld [vmem:[#allocation2 + $0x94] sm:$0xf]
      %v853 = vld [vmem:[#allocation2 + $0x9c] sm:$0xf]
      %v854 = vld [vmem:[#allocation2 + $0xa0] sm:$0xf]
      %v855 = vld [vmem:[#allocation2 + $0xa8] sm:$0xf]
      %v856 = vld [vmem:[#allocation2 + $0xac] sm:$0xf]
      %v857 = vld [vmem:[#allocation2 + $0xb4] sm:$0xf]
      %v858 = vld [vmem:[#allocation2 + $0xb8] sm:$0xf]
      %859 = vst.msk [vmem:[#allocation4] sm:$0xf] %vm216, %v827
      %860 = vst.msk [vmem:[#allocation4 + $0x4] sm:$0xf] %vm216, %v828
      %861 = vst.msk [vmem:[#allocation4 + $0x8] sm:$0xf] %vm216, %v829
      %862 = vst.msk [vmem:[#allocation4 + $0xc] sm:$0xf] %vm216, %v830
      %863 = vst.msk [vmem:[#allocation4 + $0x10] sm:$0xf] %vm216, %v831
      %864 = vst.msk [vmem:[#allocation4 + $0x14] sm:$0xf] %vm216, %v832
      %865 = vst.msk [vmem:[#allocation4 + $0x18] sm:$0xf] %vm216, %v833
      %866 = vst.msk [vmem:[#allocation4 + $0x1c] sm:$0xf] %vm216, %v834
      %867 = vst.msk [vmem:[#allocation4 + $0x20] sm:$0xf] %vm216, %v835
      %868 = vst.msk [vmem:[#allocation4 + $0x24] sm:$0xf] %vm216, %v836
      %869 = vst.msk [vmem:[#allocation4 + $0x28] sm:$0xf] %vm216, %v837
      %870 = vst.msk [vmem:[#allocation4 + $0x2c] sm:$0xf] %vm216, %v838
      %871 = vst.msk [vmem:[#allocation4 + $0x30] sm:$0xf] %vm216, %v839
      %872 = vst.msk [vmem:[#allocation4 + $0x34] sm:$0xf] %vm216, %v840
      %873 = vst.msk [vmem:[#allocation4 + $0x38] sm:$0xf] %vm216, %v841
      %874 = vst.msk [vmem:[#allocation4 + $0x3c] sm:$0xf] %vm216, %v842
      %875 = vst.msk [vmem:[#allocation4 + $0x40] sm:$0xf] %vm216, %v843
      %876 = vst.msk [vmem:[#allocation4 + $0x44] sm:$0xf] %vm216, %v844
      %877 = vst.msk [vmem:[#allocation4 + $0x48] sm:$0xf] %vm216, %v845
      %878 = vst.msk [vmem:[#allocation4 + $0x4c] sm:$0xf] %vm216, %v846
      %879 = vst.msk [vmem:[#allocation4 + $0x50] sm:$0xf] %vm216, %v847
      %880 = vst.msk [vmem:[#allocation4 + $0x54] sm:$0xf] %vm216, %v848
      %881 = vst.msk [vmem:[#allocation4 + $0x58] sm:$0xf] %vm216, %v849
      %882 = vst.msk [vmem:[#allocation4 + $0x5c] sm:$0xf] %vm216, %v850
      %883 = vst.msk [vmem:[#allocation4 + $0x60] sm:$0xf] %vm216, %v851
      %884 = vst.msk [vmem:[#allocation4 + $0x64] sm:$0xf] %vm216, %v852
      %885 = vst.msk [vmem:[#allocation4 + $0x68] sm:$0xf] %vm216, %v853
      %886 = vst.msk [vmem:[#allocation4 + $0x6c] sm:$0xf] %vm216, %v854
      %887 = vst.msk [vmem:[#allocation4 + $0x70] sm:$0xf] %vm216, %v855
      %888 = vst.msk [vmem:[#allocation4 + $0x74] sm:$0xf] %vm216, %v856
      %889 = vst.msk [vmem:[#allocation4 + $0x78] sm:$0xf] %vm216, %v857
      %890 = vst.msk [vmem:[#allocation4 + $0x7c] sm:$0xf] %vm216, %v858
      %v891 = vld [vmem:[#allocation2] sm:$0xf]
      %v892 = vld [vmem:[#allocation2 + $0x4] sm:$0xf]
      %v893 = vld [vmem:[#allocation2 + $0x8] sm:$0x1]
      %v894 = vld [vmem:[#allocation2 + $0xc] sm:$0xf]
      %v895 = vld [vmem:[#allocation2 + $0x10] sm:$0xf]
      %v896 = vld [vmem:[#allocation2 + $0x14] sm:$0x1]
      %v897 = vld [vmem:[#allocation2 + $0x18] sm:$0xf]
      %v898 = vld [vmem:[#allocation2 + $0x1c] sm:$0xf]
      %v899 = vld [vmem:[#allocation2 + $0x20] sm:$0x1]
      %v900 = vld [vmem:[#allocation2 + $0x24] sm:$0xf]
      %v901 = vld [vmem:[#allocation2 + $0x28] sm:$0xf]
      %v902 = vld [vmem:[#allocation2 + $0x2c] sm:$0x1]
      %v903 = vld [vmem:[#allocation2 + $0x30] sm:$0xf]
      %v904 = vld [vmem:[#allocation2 + $0x34] sm:$0xf]
      %v905 = vld [vmem:[#allocation2 + $0x38] sm:$0x1]
      %v906 = vld [vmem:[#allocation2 + $0x3c] sm:$0xf]
      %v907 = vld [vmem:[#allocation2 + $0x40] sm:$0xf]
      %v908 = vld [vmem:[#allocation2 + $0x44] sm:$0x1]
      %v909 = vld [vmem:[#allocation2 + $0x48] sm:$0xf]
      %v910 = vld [vmem:[#allocation2 + $0x4c] sm:$0xf]
      %v911 = vld [vmem:[#allocation2 + $0x50] sm:$0x1]
      %v912 = vld [vmem:[#allocation2 + $0x54] sm:$0xf]
      %v913 = vld [vmem:[#allocation2 + $0x58] sm:$0xf]
      %v914 = vld [vmem:[#allocation2 + $0x5c] sm:$0x1]
      %v915 = vld [vmem:[#allocation2 + $0x60] sm:$0xf]
      %v916 = vld [vmem:[#allocation2 + $0x64] sm:$0xf]
      %v917 = vld [vmem:[#allocation2 + $0x68] sm:$0x1]
      %v918 = vld [vmem:[#allocation2 + $0x6c] sm:$0xf]
      %v919 = vld [vmem:[#allocation2 + $0x70] sm:$0xf]
      %v920 = vld [vmem:[#allocation2 + $0x74] sm:$0x1]
      %v921 = vld [vmem:[#allocation2 + $0x78] sm:$0xf]
      %v922 = vld [vmem:[#allocation2 + $0x7c] sm:$0xf]
      %v923 = vld [vmem:[#allocation2 + $0x80] sm:$0x1]
      %v924 = vld [vmem:[#allocation2 + $0x84] sm:$0xf]
      %v925 = vld [vmem:[#allocation2 + $0x88] sm:$0xf]
      %v926 = vld [vmem:[#allocation2 + $0x8c] sm:$0x1]
      %v927 = vld [vmem:[#allocation2 + $0x90] sm:$0xf]
      %v928 = vld [vmem:[#allocation2 + $0x94] sm:$0xf]
      %v929 = vld [vmem:[#allocation2 + $0x98] sm:$0x1]
      %v930 = vld [vmem:[#allocation2 + $0x9c] sm:$0xf]
      %v931 = vld [vmem:[#allocation2 + $0xa0] sm:$0xf]
      %v932 = vld [vmem:[#allocation2 + $0xa4] sm:$0x1]
      %v933 = vld [vmem:[#allocation2 + $0xa8] sm:$0xf]
      %v934 = vld [vmem:[#allocation2 + $0xac] sm:$0xf]
      %v935 = vld [vmem:[#allocation2 + $0xb0] sm:$0x1]
      %v936 = vld [vmem:[#allocation2 + $0xb4] sm:$0xf]
      %v937 = vld [vmem:[#allocation2 + $0xb8] sm:$0xf]
      %v938 = vld [vmem:[#allocation2 + $0xbc] sm:$0x1]
      %vm939 = vsmask.f32 3328
      %vm940 = vsmask.f32 7440
      %vm941 = vmor %vm939, %vm940
      %v943 = vshrl.u32 %v891, 16
      %v945 = vrot.slane %v943, 4
      %v946 = vshll.u32 %v891, 16
      %v948 = vrot.slane %v946, 5
      %v949 = vor.u32 %v945, %v948
      %v950 = vrot.slane %v949, 4
      %v952 = vshll.u32 %v892, 16
      %v954 = vrot.slane %v952, 5
      %v955 = vsel %vm941, %v950, %v954
      %v956 = vshrl.u32 %v892, 16
      %v958 = vrot.slane %v956, 4
      %v959 = vor.u32 %v958, %v954
      %v960 = vrot.slane %v959, 4
      %v962 = vshll.u32 %v893, 16
      %v964 = vrot.slane %v962, 5
      %v965 = vsel %vm941, %v960, %v964
      %v967 = vshrl.u32 %v894, 16
      %v969 = vrot.slane %v967, 4
      %v970 = vshll.u32 %v894, 16
      %v972 = vrot.slane %v970, 5
      %v973 = vor.u32 %v969, %v972
      %v974 = vrot.slane %v973, 4
      %v976 = vshll.u32 %v895, 16
      %v978 = vrot.slane %v976, 5
      %v979 = vsel %vm941, %v974, %v978
      %v980 = vshrl.u32 %v895, 16
      %v982 = vrot.slane %v980, 4
      %v983 = vor.u32 %v982, %v978
      %v984 = vrot.slane %v983, 4
      %v986 = vshll.u32 %v896, 16
      %v988 = vrot.slane %v986, 5
      %v989 = vsel %vm941, %v984, %v988
      %v991 = vshrl.u32 %v897, 16
      %v993 = vrot.slane %v991, 4
      %v994 = vshll.u32 %v897, 16
      %v996 = vrot.slane %v994, 5
      %v997 = vor.u32 %v993, %v996
      %v998 = vrot.slane %v997, 4
      %v1000 = vshll.u32 %v898, 16
      %v1002 = vrot.slane %v1000, 5
      %v1003 = vsel %vm941, %v998, %v1002
      %v1004 = vshrl.u32 %v898, 16
      %v1006 = vrot.slane %v1004, 4
      %v1007 = vor.u32 %v1006, %v1002
      %v1008 = vrot.slane %v1007, 4
      %v1010 = vshll.u32 %v899, 16
      %v1012 = vrot.slane %v1010, 5
      %v1013 = vsel %vm941, %v1008, %v1012
      %v1015 = vshrl.u32 %v900, 16
      %v1017 = vrot.slane %v1015, 4
      %v1018 = vshll.u32 %v900, 16
      %v1020 = vrot.slane %v1018, 5
      %v1021 = vor.u32 %v1017, %v1020
      %v1022 = vrot.slane %v1021, 4
      %v1024 = vshll.u32 %v901, 16
      %v1026 = vrot.slane %v1024, 5
      %v1027 = vsel %vm941, %v1022, %v1026
      %v1028 = vshrl.u32 %v901, 16
      %v1030 = vrot.slane %v1028, 4
      %v1031 = vor.u32 %v1030, %v1026
      %v1032 = vrot.slane %v1031, 4
      %v1034 = vshll.u32 %v902, 16
      %v1036 = vrot.slane %v1034, 5
      %v1037 = vsel %vm941, %v1032, %v1036
      %v1039 = vshrl.u32 %v903, 16
      %v1041 = vrot.slane %v1039, 4
      %v1042 = vshll.u32 %v903, 16
      %v1044 = vrot.slane %v1042, 5
      %v1045 = vor.u32 %v1041, %v1044
      %v1046 = vrot.slane %v1045, 4
      %v1048 = vshll.u32 %v904, 16
      %v1050 = vrot.slane %v1048, 5
      %v1051 = vsel %vm941, %v1046, %v1050
      %v1052 = vshrl.u32 %v904, 16
      %v1054 = vrot.slane %v1052, 4
      %v1055 = vor.u32 %v1054, %v1050
      %v1056 = vrot.slane %v1055, 4
      %v1058 = vshll.u32 %v905, 16
      %v1060 = vrot.slane %v1058, 5
      %v1061 = vsel %vm941, %v1056, %v1060
      %v1063 = vshrl.u32 %v906, 16
      %v1065 = vrot.slane %v1063, 4
      %v1066 = vshll.u32 %v906, 16
      %v1068 = vrot.slane %v1066, 5
      %v1069 = vor.u32 %v1065, %v1068
      %v1070 = vrot.slane %v1069, 4
      %v1072 = vshll.u32 %v907, 16
      %v1074 = vrot.slane %v1072, 5
      %v1075 = vsel %vm941, %v1070, %v1074
      %v1076 = vshrl.u32 %v907, 16
      %v1078 = vrot.slane %v1076, 4
      %v1079 = vor.u32 %v1078, %v1074
      %v1080 = vrot.slane %v1079, 4
      %v1082 = vshll.u32 %v908, 16
      %v1084 = vrot.slane %v1082, 5
      %v1085 = vsel %vm941, %v1080, %v1084
      %v1087 = vshrl.u32 %v909, 16
      %v1089 = vrot.slane %v1087, 4
      %v1090 = vshll.u32 %v909, 16
      %v1092 = vrot.slane %v1090, 5
      %v1093 = vor.u32 %v1089, %v1092
      %v1094 = vrot.slane %v1093, 4
      %v1096 = vshll.u32 %v910, 16
      %v1098 = vrot.slane %v1096, 5
      %v1099 = vsel %vm941, %v1094, %v1098
      %v1100 = vshrl.u32 %v910, 16
      %v1102 = vrot.slane %v1100, 4
      %v1103 = vor.u32 %v1102, %v1098
      %v1104 = vrot.slane %v1103, 4
      %v1106 = vshll.u32 %v911, 16
      %v1108 = vrot.slane %v1106, 5
      %v1109 = vsel %vm941, %v1104, %v1108
      %v1111 = vshrl.u32 %v912, 16
      %v1113 = vrot.slane %v1111, 4
      %v1114 = vshll.u32 %v912, 16
      %v1116 = vrot.slane %v1114, 5
      %v1117 = vor.u32 %v1113, %v1116
      %v1118 = vrot.slane %v1117, 4
      %v1120 = vshll.u32 %v913, 16
      %v1122 = vrot.slane %v1120, 5
      %v1123 = vsel %vm941, %v1118, %v1122
      %v1124 = vshrl.u32 %v913, 16
      %v1126 = vrot.slane %v1124, 4
      %v1127 = vor.u32 %v1126, %v1122
      %v1128 = vrot.slane %v1127, 4
      %v1130 = vshll.u32 %v914, 16
      %v1132 = vrot.slane %v1130, 5
      %v1133 = vsel %vm941, %v1128, %v1132
      %v1135 = vshrl.u32 %v915, 16
      %v1137 = vrot.slane %v1135, 4
      %v1138 = vshll.u32 %v915, 16
      %v1140 = vrot.slane %v1138, 5
      %v1141 = vor.u32 %v1137, %v1140
      %v1142 = vrot.slane %v1141, 4
      %v1144 = vshll.u32 %v916, 16
      %v1146 = vrot.slane %v1144, 5
      %v1147 = vsel %vm941, %v1142, %v1146
      %v1148 = vshrl.u32 %v916, 16
      %v1150 = vrot.slane %v1148, 4
      %v1151 = vor.u32 %v1150, %v1146
      %v1152 = vrot.slane %v1151, 4
      %v1154 = vshll.u32 %v917, 16
      %v1156 = vrot.slane %v1154, 5
      %v1157 = vsel %vm941, %v1152, %v1156
      %v1159 = vshrl.u32 %v918, 16
      %v1161 = vrot.slane %v1159, 4
      %v1162 = vshll.u32 %v918, 16
      %v1164 = vrot.slane %v1162, 5
      %v1165 = vor.u32 %v1161, %v1164
      %v1166 = vrot.slane %v1165, 4
      %v1168 = vshll.u32 %v919, 16
      %v1170 = vrot.slane %v1168, 5
      %v1171 = vsel %vm941, %v1166, %v1170
      %v1172 = vshrl.u32 %v919, 16
      %v1174 = vrot.slane %v1172, 4
      %v1175 = vor.u32 %v1174, %v1170
      %v1176 = vrot.slane %v1175, 4
      %v1178 = vshll.u32 %v920, 16
      %v1180 = vrot.slane %v1178, 5
      %v1181 = vsel %vm941, %v1176, %v1180
      %v1183 = vshrl.u32 %v921, 16
      %v1185 = vrot.slane %v1183, 4
      %v1186 = vshll.u32 %v921, 16
      %v1188 = vrot.slane %v1186, 5
      %v1189 = vor.u32 %v1185, %v1188
      %v1190 = vrot.slane %v1189, 4
      %v1192 = vshll.u32 %v922, 16
      %v1194 = vrot.slane %v1192, 5
      %v1195 = vsel %vm941, %v1190, %v1194
      %v1196 = vshrl.u32 %v922, 16
      %v1198 = vrot.slane %v1196, 4
      %v1199 = vor.u32 %v1198, %v1194
      %v1200 = vrot.slane %v1199, 4
      %v1202 = vshll.u32 %v923, 16
      %v1204 = vrot.slane %v1202, 5
      %v1205 = vsel %vm941, %v1200, %v1204
      %v1207 = vshrl.u32 %v924, 16
      %v1209 = vrot.slane %v1207, 4
      %v1210 = vshll.u32 %v924, 16
      %v1212 = vrot.slane %v1210, 5
      %v1213 = vor.u32 %v1209, %v1212
      %v1214 = vrot.slane %v1213, 4
      %v1216 = vshll.u32 %v925, 16
      %v1218 = vrot.slane %v1216, 5
      %v1219 = vsel %vm941, %v1214, %v1218
      %v1220 = vshrl.u32 %v925, 16
      %v1222 = vrot.slane %v1220, 4
      %v1223 = vor.u32 %v1222, %v1218
      %v1224 = vrot.slane %v1223, 4
      %v1226 = vshll.u32 %v926, 16
      %v1228 = vrot.slane %v1226, 5
      %v1229 = vsel %vm941, %v1224, %v1228
      %v1231 = vshrl.u32 %v927, 16
      %v1233 = vrot.slane %v1231, 4
      %v1234 = vshll.u32 %v927, 16
      %v1236 = vrot.slane %v1234, 5
      %v1237 = vor.u32 %v1233, %v1236
      %v1238 = vrot.slane %v1237, 4
      %v1240 = vshll.u32 %v928, 16
      %v1242 = vrot.slane %v1240, 5
      %v1243 = vsel %vm941, %v1238, %v1242
      %v1244 = vshrl.u32 %v928, 16
      %v1246 = vrot.slane %v1244, 4
      %v1247 = vor.u32 %v1246, %v1242
      %v1248 = vrot.slane %v1247, 4
      %v1250 = vshll.u32 %v929, 16
      %v1252 = vrot.slane %v1250, 5
      %v1253 = vsel %vm941, %v1248, %v1252
      %v1255 = vshrl.u32 %v930, 16
      %v1257 = vrot.slane %v1255, 4
      %v1258 = vshll.u32 %v930, 16
      %v1260 = vrot.slane %v1258, 5
      %v1261 = vor.u32 %v1257, %v1260
      %v1262 = vrot.slane %v1261, 4
      %v1264 = vshll.u32 %v931, 16
      %v1266 = vrot.slane %v1264, 5
      %v1267 = vsel %vm941, %v1262, %v1266
      %v1268 = vshrl.u32 %v931, 16
      %v1270 = vrot.slane %v1268, 4
      %v1271 = vor.u32 %v1270, %v1266
      %v1272 = vrot.slane %v1271, 4
      %v1274 = vshll.u32 %v932, 16
      %v1276 = vrot.slane %v1274, 5
      %v1277 = vsel %vm941, %v1272, %v1276
      %v1279 = vshrl.u32 %v933, 16
      %v1281 = vrot.slane %v1279, 4
      %v1282 = vshll.u32 %v933, 16
      %v1284 = vrot.slane %v1282, 5
      %v1285 = vor.u32 %v1281, %v1284
      %v1286 = vrot.slane %v1285, 4
      %v1288 = vshll.u32 %v934, 16
      %v1290 = vrot.slane %v1288, 5
      %v1291 = vsel %vm941, %v1286, %v1290
      %v1292 = vshrl.u32 %v934, 16
      %v1294 = vrot.slane %v1292, 4
      %v1295 = vor.u32 %v1294, %v1290
      %v1296 = vrot.slane %v1295, 4
      %v1298 = vshll.u32 %v935, 16
      %v1300 = vrot.slane %v1298, 5
      %v1301 = vsel %vm941, %v1296, %v1300
      %v1303 = vshrl.u32 %v936, 16
      %v1305 = vrot.slane %v1303, 4
      %v1306 = vshll.u32 %v936, 16
      %v1308 = vrot.slane %v1306, 5
      %v1309 = vor.u32 %v1305, %v1308
      %v1310 = vrot.slane %v1309, 4
      %v1312 = vshll.u32 %v937, 16
      %v1314 = vrot.slane %v1312, 5
      %v1315 = vsel %vm941, %v1310, %v1314
      %v1316 = vshrl.u32 %v937, 16
      %v1318 = vrot.slane %v1316, 4
      %v1319 = vor.u32 %v1318, %v1314
      %v1320 = vrot.slane %v1319, 4
      %v1322 = vshll.u32 %v938, 16
      %v1324 = vrot.slane %v1322, 5
      %v1325 = vsel %vm941, %v1320, %v1324
      %1326 = vrot.lane.b32.xlu0 %v955, 4
      %v1327 = vpop.permute.xlu0 %1326
      %1328 = vrot.lane.b32.xlu0 %v965, 4
      %v1329 = vpop.permute.xlu0 %1328
      %1330 = vrot.lane.b32.xlu0 %v979, 4
      %v1331 = vpop.permute.xlu0 %1330
      %1332 = vrot.lane.b32.xlu0 %v989, 4
      %v1333 = vpop.permute.xlu0 %1332
      %1334 = vrot.lane.b32.xlu0 %v1003, 4
      %v1335 = vpop.permute.xlu0 %1334
      %1336 = vrot.lane.b32.xlu0 %v1013, 4
      %v1337 = vpop.permute.xlu0 %1336
      %1338 = vrot.lane.b32.xlu0 %v1027, 4
      %v1339 = vpop.permute.xlu0 %1338
      %1340 = vrot.lane.b32.xlu0 %v1037, 4
      %v1341 = vpop.permute.xlu0 %1340
      %1342 = vrot.lane.b32.xlu0 %v1051, 4
      %v1343 = vpop.permute.xlu0 %1342
      %1344 = vrot.lane.b32.xlu0 %v1061, 4
      %v1345 = vpop.permute.xlu0 %1344
      %1346 = vrot.lane.b32.xlu0 %v1075, 4
      %v1347 = vpop.permute.xlu0 %1346
      %1348 = vrot.lane.b32.xlu0 %v1085, 4
      %v1349 = vpop.permute.xlu0 %1348
      %1350 = vrot.lane.b32.xlu0 %v1099, 4
      %v1351 = vpop.permute.xlu0 %1350
      %1352 = vrot.lane.b32.xlu0 %v1109, 4
      %v1353 = vpop.permute.xlu0 %1352
      %1354 = vrot.lane.b32.xlu0 %v1123, 4
      %v1355 = vpop.permute.xlu0 %1354
      %1356 = vrot.lane.b32.xlu0 %v1133, 4
      %v1357 = vpop.permute.xlu0 %1356
      %1358 = vrot.lane.b32.xlu0 %v1147, 4
      %v1359 = vpop.permute.xlu0 %1358
      %1360 = vrot.lane.b32.xlu0 %v1157, 4
      %v1361 = vpop.permute.xlu0 %1360
      %1362 = vrot.lane.b32.xlu0 %v1171, 4
      %v1363 = vpop.permute.xlu0 %1362
      %1364 = vrot.lane.b32.xlu0 %v1181, 4
      %v1365 = vpop.permute.xlu0 %1364
      %1366 = vrot.lane.b32.xlu0 %v1195, 4
      %v1367 = vpop.permute.xlu0 %1366
      %1368 = vrot.lane.b32.xlu0 %v1205, 4
      %v1369 = vpop.permute.xlu0 %1368
      %1370 = vrot.lane.b32.xlu0 %v1219, 4
      %v1371 = vpop.permute.xlu0 %1370
      %1372 = vrot.lane.b32.xlu0 %v1229, 4
      %v1373 = vpop.permute.xlu0 %1372
      %1374 = vrot.lane.b32.xlu0 %v1243, 4
      %v1375 = vpop.permute.xlu0 %1374
      %1376 = vrot.lane.b32.xlu0 %v1253, 4
      %v1377 = vpop.permute.xlu0 %1376
      %1378 = vrot.lane.b32.xlu0 %v1267, 4
      %v1379 = vpop.permute.xlu0 %1378
      %1380 = vrot.lane.b32.xlu0 %v1277, 4
      %v1381 = vpop.permute.xlu0 %1380
      %1382 = vrot.lane.b32.xlu0 %v1291, 4
      %v1383 = vpop.permute.xlu0 %1382
      %1384 = vrot.lane.b32.xlu0 %v1301, 4
      %v1385 = vpop.permute.xlu0 %1384
      %1386 = vrot.lane.b32.xlu0 %v1315, 4
      %v1387 = vpop.permute.xlu0 %1386
      %1388 = vrot.lane.b32.xlu0 %v1325, 4
      %v1389 = vpop.permute.xlu0 %1388
      %vm1422 = vcmask 60448
      %1423 = vst.msk [vmem:[#allocation4] sm:$0xf] %vm1422, %v1327
      %1424 = vst.msk [vmem:[#allocation4 + $0x4] sm:$0xf] %vm1422, %v1329
      %1425 = vst.msk [vmem:[#allocation4 + $0x8] sm:$0xf] %vm1422, %v1331
      %1426 = vst.msk [vmem:[#allocation4 + $0xc] sm:$0xf] %vm1422, %v1333
      %1427 = vst.msk [vmem:[#allocation4 + $0x10] sm:$0xf] %vm1422, %v1335
      %1428 = vst.msk [vmem:[#allocation4 + $0x14] sm:$0xf] %vm1422, %v1337
      %1429 = vst.msk [vmem:[#allocation4 + $0x18] sm:$0xf] %vm1422, %v1339
      %1430 = vst.msk [vmem:[#allocation4 + $0x1c] sm:$0xf] %vm1422, %v1341
      %1431 = vst.msk [vmem:[#allocation4 + $0x20] sm:$0xf] %vm1422, %v1343
      %1432 = vst.msk [vmem:[#allocation4 + $0x24] sm:$0xf] %vm1422, %v1345
      %1433 = vst.msk [vmem:[#allocation4 + $0x28] sm:$0xf] %vm1422, %v1347
      %1434 = vst.msk [vmem:[#allocation4 + $0x2c] sm:$0xf] %vm1422, %v1349
      %1435 = vst.msk [vmem:[#allocation4 + $0x30] sm:$0xf] %vm1422, %v1351
      %1436 = vst.msk [vmem:[#allocation4 + $0x34] sm:$0xf] %vm1422, %v1353
      %1437 = vst.msk [vmem:[#allocation4 + $0x38] sm:$0xf] %vm1422, %v1355
      %1438 = vst.msk [vmem:[#allocation4 + $0x3c] sm:$0xf] %vm1422, %v1357
      %1439 = vst.msk [vmem:[#allocation4 + $0x40] sm:$0xf] %vm1422, %v1359
      %1440 = vst.msk [vmem:[#allocation4 + $0x44] sm:$0xf] %vm1422, %v1361
      %1441 = vst.msk [vmem:[#allocation4 + $0x48] sm:$0xf] %vm1422, %v1363
      %1442 = vst.msk [vmem:[#allocation4 + $0x4c] sm:$0xf] %vm1422, %v1365
      %1443 = vst.msk [vmem:[#allocation4 + $0x50] sm:$0xf] %vm1422, %v1367
      %1444 = vst.msk [vmem:[#allocation4 + $0x54] sm:$0xf] %vm1422, %v1369
      %1445 = vst.msk [vmem:[#allocation4 + $0x58] sm:$0xf] %vm1422, %v1371
      %1446 = vst.msk [vmem:[#allocation4 + $0x5c] sm:$0xf] %vm1422, %v1373
      %1447 = vst.msk [vmem:[#allocation4 + $0x60] sm:$0xf] %vm1422, %v1375
      %1448 = vst.msk [vmem:[#allocation4 + $0x64] sm:$0xf] %vm1422, %v1377
      %1449 = vst.msk [vmem:[#allocation4 + $0x68] sm:$0xf] %vm1422, %v1379
      %1450 = vst.msk [vmem:[#allocation4 + $0x6c] sm:$0xf] %vm1422, %v1381
      %1451 = vst.msk [vmem:[#allocation4 + $0x70] sm:$0xf] %vm1422, %v1383
      %1452 = vst.msk [vmem:[#allocation4 + $0x74] sm:$0xf] %vm1422, %v1385
      %1453 = vst.msk [vmem:[#allocation4 + $0x78] sm:$0xf] %vm1422, %v1387
      %1454 = vst.msk [vmem:[#allocation4 + $0x7c] sm:$0xf] %vm1422, %v1389
      %v1455 = vld [vmem:[#allocation2] sm:$0xe]
      %v1456 = vld [vmem:[#allocation2 + $0x4] sm:$0xf]
      %v1457 = vld [vmem:[#allocation2 + $0x8] sm:$0x1]
      %v1458 = vld [vmem:[#allocation2 + $0xc] sm:$0xe]
      %v1459 = vld [vmem:[#allocation2 + $0x10] sm:$0xf]
      %v1460 = vld [vmem:[#allocation2 + $0x14] sm:$0x1]
      %v1461 = vld [vmem:[#allocation2 + $0x18] sm:$0xe]
      %v1462 = vld [vmem:[#allocation2 + $0x1c] sm:$0xf]
      %v1463 = vld [vmem:[#allocation2 + $0x20] sm:$0x1]
      %v1464 = vld [vmem:[#allocation2 + $0x24] sm:$0xe]
      %v1465 = vld [vmem:[#allocation2 + $0x28] sm:$0xf]
      %v1466 = vld [vmem:[#allocation2 + $0x2c] sm:$0x1]
      %v1467 = vld [vmem:[#allocation2 + $0x30] sm:$0xe]
      %v1468 = vld [vmem:[#allocation2 + $0x34] sm:$0xf]
      %v1469 = vld [vmem:[#allocation2 + $0x38] sm:$0x1]
      %v1470 = vld [vmem:[#allocation2 + $0x3c] sm:$0xe]
      %v1471 = vld [vmem:[#allocation2 + $0x40] sm:$0xf]
      %v1472 = vld [vmem:[#allocation2 + $0x44] sm:$0x1]
      %v1473 = vld [vmem:[#allocation2 + $0x48] sm:$0xe]
      %v1474 = vld [vmem:[#allocation2 + $0x4c] sm:$0xf]
      %v1475 = vld [vmem:[#allocation2 + $0x50] sm:$0x1]
      %v1476 = vld [vmem:[#allocation2 + $0x54] sm:$0xe]
      %v1477 = vld [vmem:[#allocation2 + $0x58] sm:$0xf]
      %v1478 = vld [vmem:[#allocation2 + $0x5c] sm:$0x1]
      %v1479 = vld [vmem:[#allocation2 + $0x60] sm:$0xe]
      %v1480 = vld [vmem:[#allocation2 + $0x64] sm:$0xf]
      %v1481 = vld [vmem:[#allocation2 + $0x68] sm:$0x1]
      %v1482 = vld [vmem:[#allocation2 + $0x6c] sm:$0xe]
      %v1483 = vld [vmem:[#allocation2 + $0x70] sm:$0xf]
      %v1484 = vld [vmem:[#allocation2 + $0x74] sm:$0x1]
      %v1485 = vld [vmem:[#allocation2 + $0x78] sm:$0xe]
      %v1486 = vld [vmem:[#allocation2 + $0x7c] sm:$0xf]
      %v1487 = vld [vmem:[#allocation2 + $0x80] sm:$0x1]
      %v1488 = vld [vmem:[#allocation2 + $0x84] sm:$0xe]
      %v1489 = vld [vmem:[#allocation2 + $0x88] sm:$0xf]
      %v1490 = vld [vmem:[#allocation2 + $0x8c] sm:$0x1]
      %v1491 = vld [vmem:[#allocation2 + $0x90] sm:$0xe]
      %v1492 = vld [vmem:[#allocation2 + $0x94] sm:$0xf]
      %v1493 = vld [vmem:[#allocation2 + $0x98] sm:$0x1]
      %v1494 = vld [vmem:[#allocation2 + $0x9c] sm:$0xe]
      %v1495 = vld [vmem:[#allocation2 + $0xa0] sm:$0xf]
      %v1496 = vld [vmem:[#allocation2 + $0xa4] sm:$0x1]
      %v1497 = vld [vmem:[#allocation2 + $0xa8] sm:$0xe]
      %v1498 = vld [vmem:[#allocation2 + $0xac] sm:$0xf]
      %v1499 = vld [vmem:[#allocation2 + $0xb0] sm:$0x1]
      %v1500 = vld [vmem:[#allocation2 + $0xb4] sm:$0xe]
      %v1501 = vld [vmem:[#allocation2 + $0xb8] sm:$0xf]
      %v1502 = vld [vmem:[#allocation2 + $0xbc] sm:$0x1]
      %vm1551 = vcmask 1042432
      %vm1552 = vcmask 1046532
      %vm1553 = vmor %vm1551, %vm1552
      %v1554 = vrot.slane %v1455, 5
      %v1555 = vrot.slane %v1554, 4
      %v1556 = vrot.slane %v1456, 5
      %v1557 = vsel %vm1553, %v1555, %v1556
      %v1558 = vrot.slane %v1556, 4
      %v1559 = vrot.slane %v1457, 5
      %v1560 = vsel %vm1553, %v1558, %v1559
      %v1561 = vrot.slane %v1458, 5
      %v1562 = vrot.slane %v1561, 4
      %v1563 = vrot.slane %v1459, 5
      %v1564 = vsel %vm1553, %v1562, %v1563
      %v1565 = vrot.slane %v1563, 4
      %v1566 = vrot.slane %v1460, 5
      %v1567 = vsel %vm1553, %v1565, %v1566
      %v1568 = vrot.slane %v1461, 5
      %v1569 = vrot.slane %v1568, 4
      %v1570 = vrot.slane %v1462, 5
      %v1571 = vsel %vm1553, %v1569, %v1570
      %v1572 = vrot.slane %v1570, 4
      %v1573 = vrot.slane %v1463, 5
      %v1574 = vsel %vm1553, %v1572, %v1573
      %v1575 = vrot.slane %v1464, 5
      %v1576 = vrot.slane %v1575, 4
      %v1577 = vrot.slane %v1465, 5
      %v1578 = vsel %vm1553, %v1576, %v1577
      %v1579 = vrot.slane %v1577, 4
      %v1580 = vrot.slane %v1466, 5
      %v1581 = vsel %vm1553, %v1579, %v1580
      %v1582 = vrot.slane %v1467, 5
      %v1583 = vrot.slane %v1582, 4
      %v1584 = vrot.slane %v1468, 5
      %v1585 = vsel %vm1553, %v1583, %v1584
      %v1586 = vrot.slane %v1584, 4
      %v1587 = vrot.slane %v1469, 5
      %v1588 = vsel %vm1553, %v1586, %v1587
      %v1589 = vrot.slane %v1470, 5
      %v1590 = vrot.slane %v1589, 4
      %v1591 = vrot.slane %v1471, 5
      %v1592 = vsel %vm1553, %v1590, %v1591
      %v1593 = vrot.slane %v1591, 4
      %v1594 = vrot.slane %v1472, 5
      %v1595 = vsel %vm1553, %v1593, %v1594
      %v1596 = vrot.slane %v1473, 5
      %v1597 = vrot.slane %v1596, 4
      %v1598 = vrot.slane %v1474, 5
      %v1599 = vsel %vm1553, %v1597, %v1598
      %v1600 = vrot.slane %v1598, 4
      %v1601 = vrot.slane %v1475, 5
      %v1602 = vsel %vm1553, %v1600, %v1601
      %v1603 = vrot.slane %v1476, 5
      %v1604 = vrot.slane %v1603, 4
      %v1605 = vrot.slane %v1477, 5
      %v1606 = vsel %vm1553, %v1604, %v1605
      %v1607 = vrot.slane %v1605, 4
      %v1608 = vrot.slane %v1478, 5
      %v1609 = vsel %vm1553, %v1607, %v1608
      %v1610 = vrot.slane %v1479, 5
      %v1611 = vrot.slane %v1610, 4
      %v1612 = vrot.slane %v1480, 5
      %v1613 = vsel %vm1553, %v1611, %v1612
      %v1614 = vrot.slane %v1612, 4
      %v1615 = vrot.slane %v1481, 5
      %v1616 = vsel %vm1553, %v1614, %v1615
      %v1617 = vrot.slane %v1482, 5
      %v1618 = vrot.slane %v1617, 4
      %v1619 = vrot.slane %v1483, 5
      %v1620 = vsel %vm1553, %v1618, %v1619
      %v1621 = vrot.slane %v1619, 4
      %v1622 = vrot.slane %v1484, 5
      %v1623 = vsel %vm1553, %v1621, %v1622
      %v1624 = vrot.slane %v1485, 5
      %v1625 = vrot.slane %v1624, 4
      %v1626 = vrot.slane %v1486, 5
      %v1627 = vsel %vm1553, %v1625, %v1626
      %v1628 = vrot.slane %v1626, 4
      %v1629 = vrot.slane %v1487, 5
      %v1630 = vsel %vm1553, %v1628, %v1629
      %v1631 = vrot.slane %v1488, 5
      %v1632 = vrot.slane %v1631, 4
      %v1633 = vrot.slane %v1489, 5
      %v1634 = vsel %vm1553, %v1632, %v1633
      %v1635 = vrot.slane %v1633, 4
      %v1636 = vrot.slane %v1490, 5
      %v1637 = vsel %vm1553, %v1635, %v1636
      %v1638 = vrot.slane %v1491, 5
      %v1639 = vrot.slane %v1638, 4
      %v1640 = vrot.slane %v1492, 5
      %v1641 = vsel %vm1553, %v1639, %v1640
      %v1642 = vrot.slane %v1640, 4
      %v1643 = vrot.slane %v1493, 5
      %v1644 = vsel %vm1553, %v1642, %v1643
      %v1645 = vrot.slane %v1494, 5
      %v1646 = vrot.slane %v1645, 4
      %v1647 = vrot.slane %v1495, 5
      %v1648 = vsel %vm1553, %v1646, %v1647
      %v1649 = vrot.slane %v1647, 4
      %v1650 = vrot.slane %v1496, 5
      %v1651 = vsel %vm1553, %v1649, %v1650
      %v1652 = vrot.slane %v1497, 5
      %v1653 = vrot.slane %v1652, 4
      %v1654 = vrot.slane %v1498, 5
      %v1655 = vsel %vm1553, %v1653, %v1654
      %v1656 = vrot.slane %v1654, 4
      %v1657 = vrot.slane %v1499, 5
      %v1658 = vsel %vm1553, %v1656, %v1657
      %v1659 = vrot.slane %v1500, 5
      %v1660 = vrot.slane %v1659, 4
      %v1661 = vrot.slane %v1501, 5
      %v1662 = vsel %vm1553, %v1660, %v1661
      %v1663 = vrot.slane %v1661, 4
      %v1664 = vrot.slane %v1502, 5
      %v1665 = vsel %vm1553, %v1663, %v1664
      %1666 = vrot.lane.b32.xlu0 %v1557, 8
      %v1667 = vpop.permute.xlu0 %1666
      %1668 = vrot.lane.b32.xlu0 %v1560, 8
      %v1669 = vpop.permute.xlu0 %1668
      %1670 = vrot.lane.b32.xlu0 %v1564, 8
      %v1671 = vpop.permute.xlu0 %1670
      %1672 = vrot.lane.b32.xlu0 %v1567, 8
      %v1673 = vpop.permute.xlu0 %1672
      %1674 = vrot.lane.b32.xlu0 %v1571, 8
      %v1675 = vpop.permute.xlu0 %1674
      %1676 = vrot.lane.b32.xlu0 %v1574, 8
      %v1677 = vpop.permute.xlu0 %1676
      %1678 = vrot.lane.b32.xlu0 %v1578, 8
      %v1679 = vpop.permute.xlu0 %1678
      %1680 = vrot.lane.b32.xlu0 %v1581, 8
      %v1681 = vpop.permute.xlu0 %1680
      %1682 = vrot.lane.b32.xlu0 %v1585, 8
      %v1683 = vpop.permute.xlu0 %1682
      %1684 = vrot.lane.b32.xlu0 %v1588, 8
      %v1685 = vpop.permute.xlu0 %1684
      %1686 = vrot.lane.b32.xlu0 %v1592, 8
      %v1687 = vpop.permute.xlu0 %1686
      %1688 = vrot.lane.b32.xlu0 %v1595, 8
      %v1689 = vpop.permute.xlu0 %1688
      %1690 = vrot.lane.b32.xlu0 %v1599, 8
      %v1691 = vpop.permute.xlu0 %1690
      %1692 = vrot.lane.b32.xlu0 %v1602, 8
      %v1693 = vpop.permute.xlu0 %1692
      %1694 = vrot.lane.b32.xlu0 %v1606, 8
      %v1695 = vpop.permute.xlu0 %1694
      %1696 = vrot.lane.b32.xlu0 %v1609, 8
      %v1697 = vpop.permute.xlu0 %1696
      %1698 = vrot.lane.b32.xlu0 %v1613, 8
      %v1699 = vpop.permute.xlu0 %1698
      %1700 = vrot.lane.b32.xlu0 %v1616, 8
      %v1701 = vpop.permute.xlu0 %1700
      %1702 = vrot.lane.b32.xlu0 %v1620, 8
      %v1703 = vpop.permute.xlu0 %1702
      %1704 = vrot.lane.b32.xlu0 %v1623, 8
      %v1705 = vpop.permute.xlu0 %1704
      %1706 = vrot.lane.b32.xlu0 %v1627, 8
      %v1707 = vpop.permute.xlu0 %1706
      %1708 = vrot.lane.b32.xlu0 %v1630, 8
      %v1709 = vpop.permute.xlu0 %1708
      %1710 = vrot.lane.b32.xlu0 %v1634, 8
      %v1711 = vpop.permute.xlu0 %1710
      %1712 = vrot.lane.b32.xlu0 %v1637, 8
      %v1713 = vpop.permute.xlu0 %1712
      %1714 = vrot.lane.b32.xlu0 %v1641, 8
      %v1715 = vpop.permute.xlu0 %1714
      %1716 = vrot.lane.b32.xlu0 %v1644, 8
      %v1717 = vpop.permute.xlu0 %1716
      %1718 = vrot.lane.b32.xlu0 %v1648, 8
      %v1719 = vpop.permute.xlu0 %1718
      %1720 = vrot.lane.b32.xlu0 %v1651, 8
      %v1721 = vpop.permute.xlu0 %1720
      %1722 = vrot.lane.b32.xlu0 %v1655, 8
      %v1723 = vpop.permute.xlu0 %1722
      %1724 = vrot.lane.b32.xlu0 %v1658, 8
      %v1725 = vpop.permute.xlu0 %1724
      %1726 = vrot.lane.b32.xlu0 %v1662, 8
      %v1727 = vpop.permute.xlu0 %1726
      %1728 = vrot.lane.b32.xlu0 %v1665, 8
      %v1729 = vpop.permute.xlu0 %1728
      %vm1762 = vcmask 93248
      %1763 = vst.msk [vmem:[#allocation4] sm:$0xf] %vm1762, %v1667
      %1764 = vst.msk [vmem:[#allocation4 + $0x4] sm:$0xf] %vm1762, %v1669
      %1765 = vst.msk [vmem:[#allocation4 + $0x8] sm:$0xf] %vm1762, %v1671
      %1766 = vst.msk [vmem:[#allocation4 + $0xc] sm:$0xf] %vm1762, %v1673
      %1767 = vst.msk [vmem:[#allocation4 + $0x10] sm:$0xf] %vm1762, %v1675
      %1768 = vst.msk [vmem:[#allocation4 + $0x14] sm:$0xf] %vm1762, %v1677
      %1769 = vst.msk [vmem:[#allocation4 + $0x18] sm:$0xf] %vm1762, %v1679
      %1770 = vst.msk [vmem:[#allocation4 + $0x1c] sm:$0xf] %vm1762, %v1681
      %1771 = vst.msk [vmem:[#allocation4 + $0x20] sm:$0xf] %vm1762, %v1683
      %1772 = vst.msk [vmem:[#allocation4 + $0x24] sm:$0xf] %vm1762, %v1685
      %1773 = vst.msk [vmem:[#allocation4 + $0x28] sm:$0xf] %vm1762, %v1687
      %1774 = vst.msk [vmem:[#allocation4 + $0x2c] sm:$0xf] %vm1762, %v1689
      %1775 = vst.msk [vmem:[#allocation4 + $0x30] sm:$0xf] %vm1762, %v1691
      %1776 = vst.msk [vmem:[#allocation4 + $0x34] sm:$0xf] %vm1762, %v1693
      %1777 = vst.msk [vmem:[#allocation4 + $0x38] sm:$0xf] %vm1762, %v1695
      %1778 = vst.msk [vmem:[#allocation4 + $0x3c] sm:$0xf] %vm1762, %v1697
      %1779 = vst.msk [vmem:[#allocation4 + $0x40] sm:$0xf] %vm1762, %v1699
      %1780 = vst.msk [vmem:[#allocation4 + $0x44] sm:$0xf] %vm1762, %v1701
      %1781 = vst.msk [vmem:[#allocation4 + $0x48] sm:$0xf] %vm1762, %v1703
      %1782 = vst.msk [vmem:[#allocation4 + $0x4c] sm:$0xf] %vm1762, %v1705
      %1783 = vst.msk [vmem:[#allocation4 + $0x50] sm:$0xf] %vm1762, %v1707
      %1784 = vst.msk [vmem:[#allocation4 + $0x54] sm:$0xf] %vm1762, %v1709
      %1785 = vst.msk [vmem:[#allocation4 + $0x58] sm:$0xf] %vm1762, %v1711
      %1786 = vst.msk [vmem:[#allocation4 + $0x5c] sm:$0xf] %vm1762, %v1713
      %1787 = vst.msk [vmem:[#allocation4 + $0x60] sm:$0xf] %vm1762, %v1715
      %1788 = vst.msk [vmem:[#allocation4 + $0x64] sm:$0xf] %vm1762, %v1717
      %1789 = vst.msk [vmem:[#allocation4 + $0x68] sm:$0xf] %vm1762, %v1719
      %1790 = vst.msk [vmem:[#allocation4 + $0x6c] sm:$0xf] %vm1762, %v1721
      %1791 = vst.msk [vmem:[#allocation4 + $0x70] sm:$0xf] %vm1762, %v1723
      %1792 = vst.msk [vmem:[#allocation4 + $0x74] sm:$0xf] %vm1762, %v1725
      %1793 = vst.msk [vmem:[#allocation4 + $0x78] sm:$0xf] %vm1762, %v1727
      %1794 = vst.msk [vmem:[#allocation4 + $0x7c] sm:$0xf] %vm1762, %v1729
      %v1795 = vld [vmem:[%s225] sm:$0xf]
      %v1796 = vld [vmem:[%s225 + $0x4] sm:$0xf]
      %v1797 = vld [vmem:[%s225 + $0xc] sm:$0xf]
      %v1798 = vld [vmem:[%s225 + $0x10] sm:$0xf]
      %v1799 = vld [vmem:[%s225 + $0x18] sm:$0xf]
      %v1800 = vld [vmem:[%s225 + $0x1c] sm:$0xf]
      %v1801 = vld [vmem:[%s225 + $0x24] sm:$0xf]
      %v1802 = vld [vmem:[%s225 + $0x28] sm:$0xf]
      %v1803 = vld [vmem:[%s225 + $0x30] sm:$0xf]
      %v1804 = vld [vmem:[%s225 + $0x34] sm:$0xf]
      %v1805 = vld [vmem:[%s225 + $0x3c] sm:$0xf]
      %v1806 = vld [vmem:[%s225 + $0x40] sm:$0xf]
      %v1807 = vld [vmem:[%s225 + $0x48] sm:$0xf]
      %v1808 = vld [vmem:[%s225 + $0x4c] sm:$0xf]
      %v1809 = vld [vmem:[%s225 + $0x54] sm:$0xf]
      %v1810 = vld [vmem:[%s225 + $0x58] sm:$0xf]
      %v1811 = vld [vmem:[%s225 + $0x60] sm:$0xf]
      %v1812 = vld [vmem:[%s225 + $0x64] sm:$0xf]
      %v1813 = vld [vmem:[%s225 + $0x6c] sm:$0xf]
      %v1814 = vld [vmem:[%s225 + $0x70] sm:$0xf]
      %v1815 = vld [vmem:[%s225 + $0x78] sm:$0xf]
      %v1816 = vld [vmem:[%s225 + $0x7c] sm:$0xf]
      %v1817 = vld [vmem:[%s225 + $0x84] sm:$0xf]
      %v1818 = vld [vmem:[%s225 + $0x88] sm:$0xf]
      %v1819 = vld [vmem:[%s225 + $0x90] sm:$0xf]
      %v1820 = vld [vmem:[%s225 + $0x94] sm:$0xf]
      %v1821 = vld [vmem:[%s225 + $0x9c] sm:$0xf]
      %v1822 = vld [vmem:[%s225 + $0xa0] sm:$0xf]
      %v1823 = vld [vmem:[%s225 + $0xa8] sm:$0xf]
      %v1824 = vld [vmem:[%s225 + $0xac] sm:$0xf]
      %v1825 = vld [vmem:[%s225 + $0xb4] sm:$0xf]
      %v1826 = vld [vmem:[%s225 + $0xb8] sm:$0xf]
      %1859 = vrot.lane.b32.xlu0 %v1795, 12
      %v1860 = vpop.permute.xlu0 %1859
      %1861 = vrot.lane.b32.xlu0 %v1796, 12
      %v1862 = vpop.permute.xlu0 %1861
      %1863 = vrot.lane.b32.xlu0 %v1797, 12
      %v1864 = vpop.permute.xlu0 %1863
      %1865 = vrot.lane.b32.xlu0 %v1798, 12
      %v1866 = vpop.permute.xlu0 %1865
      %1867 = vrot.lane.b32.xlu0 %v1799, 12
      %v1868 = vpop.permute.xlu0 %1867
      %1869 = vrot.lane.b32.xlu0 %v1800, 12
      %v1870 = vpop.permute.xlu0 %1869
      %1871 = vrot.lane.b32.xlu0 %v1801, 12
      %v1872 = vpop.permute.xlu0 %1871
      %1873 = vrot.lane.b32.xlu0 %v1802, 12
      %v1874 = vpop.permute.xlu0 %1873
      %1875 = vrot.lane.b32.xlu0 %v1803, 12
      %v1876 = vpop.permute.xlu0 %1875
      %1877 = vrot.lane.b32.xlu0 %v1804, 12
      %v1878 = vpop.permute.xlu0 %1877
      %1879 = vrot.lane.b32.xlu0 %v1805, 12
      %v1880 = vpop.permute.xlu0 %1879
      %1881 = vrot.lane.b32.xlu0 %v1806, 12
      %v1882 = vpop.permute.xlu0 %1881
      %1883 = vrot.lane.b32.xlu0 %v1807, 12
      %v1884 = vpop.permute.xlu0 %1883
      %1885 = vrot.lane.b32.xlu0 %v1808, 12
      %v1886 = vpop.permute.xlu0 %1885
      %1887 = vrot.lane.b32.xlu0 %v1809, 12
      %v1888 = vpop.permute.xlu0 %1887
      %1889 = vrot.lane.b32.xlu0 %v1810, 12
      %v1890 = vpop.permute.xlu0 %1889
      %1891 = vrot.lane.b32.xlu0 %v1811, 12
      %v1892 = vpop.permute.xlu0 %1891
      %1893 = vrot.lane.b32.xlu0 %v1812, 12
      %v1894 = vpop.permute.xlu0 %1893
      %1895 = vrot.lane.b32.xlu0 %v1813, 12
      %v1896 = vpop.permute.xlu0 %1895
      %1897 = vrot.lane.b32.xlu0 %v1814, 12
      %v1898 = vpop.permute.xlu0 %1897
      %1899 = vrot.lane.b32.xlu0 %v1815, 12
      %v1900 = vpop.permute.xlu0 %1899
      %1901 = vrot.lane.b32.xlu0 %v1816, 12
      %v1902 = vpop.permute.xlu0 %1901
      %1903 = vrot.lane.b32.xlu0 %v1817, 12
      %v1904 = vpop.permute.xlu0 %1903
      %1905 = vrot.lane.b32.xlu0 %v1818, 12
      %v1906 = vpop.permute.xlu0 %1905
      %1907 = vrot.lane.b32.xlu0 %v1819, 12
      %v1908 = vpop.permute.xlu0 %1907
      %1909 = vrot.lane.b32.xlu0 %v1820, 12
      %v1910 = vpop.permute.xlu0 %1909
      %1911 = vrot.lane.b32.xlu0 %v1821, 12
      %v1912 = vpop.permute.xlu0 %1911
      %1913 = vrot.lane.b32.xlu0 %v1822, 12
      %v1914 = vpop.permute.xlu0 %1913
      %1915 = vrot.lane.b32.xlu0 %v1823, 12
      %v1916 = vpop.permute.xlu0 %1915
      %1917 = vrot.lane.b32.xlu0 %v1824, 12
      %v1918 = vpop.permute.xlu0 %1917
      %1919 = vrot.lane.b32.xlu0 %v1825, 12
      %v1920 = vpop.permute.xlu0 %1919
      %1921 = vrot.lane.b32.xlu0 %v1826, 12
      %v1922 = vpop.permute.xlu0 %1921
      %vm1955 = vcmask 126048
      %1956 = vst.msk [vmem:[#allocation4] sm:$0xf] %vm1955, %v1860
      %1957 = vst.msk [vmem:[#allocation4 + $0x4] sm:$0xf] %vm1955, %v1862
      %1958 = vst.msk [vmem:[#allocation4 + $0x8] sm:$0xf] %vm1955, %v1864
      %1959 = vst.msk [vmem:[#allocation4 + $0xc] sm:$0xf] %vm1955, %v1866
      %1960 = vst.msk [vmem:[#allocation4 + $0x10] sm:$0xf] %vm1955, %v1868
      %1961 = vst.msk [vmem:[#allocation4 + $0x14] sm:$0xf] %vm1955, %v1870
      %1962 = vst.msk [vmem:[#allocation4 + $0x18] sm:$0xf] %vm1955, %v1872
      %1963 = vst.msk [vmem:[#allocation4 + $0x1c] sm:$0xf] %vm1955, %v1874
      %1964 = vst.msk [vmem:[#allocation4 + $0x20] sm:$0xf] %vm1955, %v1876
      %1965 = vst.msk [vmem:[#allocation4 + $0x24] sm:$0xf] %vm1955, %v1878
      %1966 = vst.msk [vmem:[#allocation4 + $0x28] sm:$0xf] %vm1955, %v1880
      %1967 = vst.msk [vmem:[#allocation4 + $0x2c] sm:$0xf] %vm1955, %v1882
      %1968 = vst.msk [vmem:[#allocation4 + $0x30] sm:$0xf] %vm1955, %v1884
      %1969 = vst.msk [vmem:[#allocation4 + $0x34] sm:$0xf] %vm1955, %v1886
      %1970 = vst.msk [vmem:[#allocation4 + $0x38] sm:$0xf] %vm1955, %v1888
      %1971 = vst.msk [vmem:[#allocation4 + $0x3c] sm:$0xf] %vm1955, %v1890
      %1972 = vst.msk [vmem:[#allocation4 + $0x40] sm:$0xf] %vm1955, %v1892
      %1973 = vst.msk [vmem:[#allocation4 + $0x44] sm:$0xf] %vm1955, %v1894
      %1974 = vst.msk [vmem:[#allocation4 + $0x48] sm:$0xf] %vm1955, %v1896
      %1975 = vst.msk [vmem:[#allocation4 + $0x4c] sm:$0xf] %vm1955, %v1898
      %1976 = vst.msk [vmem:[#allocation4 + $0x50] sm:$0xf] %vm1955, %v1900
      %1977 = vst.msk [vmem:[#allocation4 + $0x54] sm:$0xf] %vm1955, %v1902
      %1978 = vst.msk [vmem:[#allocation4 + $0x58] sm:$0xf] %vm1955, %v1904
      %1979 = vst.msk [vmem:[#allocation4 + $0x5c] sm:$0xf] %vm1955, %v1906
      %1980 = vst.msk [vmem:[#allocation4 + $0x60] sm:$0xf] %vm1955, %v1908
      %1981 = vst.msk [vmem:[#allocation4 + $0x64] sm:$0xf] %vm1955, %v1910
      %1982 = vst.msk [vmem:[#allocation4 + $0x68] sm:$0xf] %vm1955, %v1912
      %1983 = vst.msk [vmem:[#allocation4 + $0x6c] sm:$0xf] %vm1955, %v1914
      %1984 = vst.msk [vmem:[#allocation4 + $0x70] sm:$0xf] %vm1955, %v1916
      %1985 = vst.msk [vmem:[#allocation4 + $0x74] sm:$0xf] %vm1955, %v1918
      %1986 = vst.msk [vmem:[#allocation4 + $0x78] sm:$0xf] %vm1955, %v1920
      %1987 = vst.msk [vmem:[#allocation4 + $0x7c] sm:$0xf] %vm1955, %v1922
      %v1988 = vld [vmem:[%s225] sm:$0xf]
      %v1989 = vld [vmem:[%s225 + $0x4] sm:$0xf]
      %v1990 = vld [vmem:[%s225 + $0x8] sm:$0x1]
      %v1991 = vld [vmem:[%s225 + $0xc] sm:$0xf]
      %v1992 = vld [vmem:[%s225 + $0x10] sm:$0xf]
      %v1993 = vld [vmem:[%s225 + $0x14] sm:$0x1]
      %v1994 = vld [vmem:[%s225 + $0x18] sm:$0xf]
      %v1995 = vld [vmem:[%s225 + $0x1c] sm:$0xf]
      %v1996 = vld [vmem:[%s225 + $0x20] sm:$0x1]
      %v1997 = vld [vmem:[%s225 + $0x24] sm:$0xf]
      %v1998 = vld [vmem:[%s225 + $0x28] sm:$0xf]
      %v1999 = vld [vmem:[%s225 + $0x2c] sm:$0x1]
      %v2000 = vld [vmem:[%s225 + $0x30] sm:$0xf]
      %v2001 = vld [vmem:[%s225 + $0x34] sm:$0xf]
      %v2002 = vld [vmem:[%s225 + $0x38] sm:$0x1]
      %v2003 = vld [vmem:[%s225 + $0x3c] sm:$0xf]
      %v2004 = vld [vmem:[%s225 + $0x40] sm:$0xf]
      %v2005 = vld [vmem:[%s225 + $0x44] sm:$0x1]
      %v2006 = vld [vmem:[%s225 + $0x48] sm:$0xf]
      %v2007 = vld [vmem:[%s225 + $0x4c] sm:$0xf]
      %v2008 = vld [vmem:[%s225 + $0x50] sm:$0x1]
      %v2009 = vld [vmem:[%s225 + $0x54] sm:$0xf]
      %v2010 = vld [vmem:[%s225 + $0x58] sm:$0xf]
      %v2011 = vld [vmem:[%s225 + $0x5c] sm:$0x1]
      %v2012 = vld [vmem:[%s225 + $0x60] sm:$0xf]
      %v2013 = vld [vmem:[%s225 + $0x64] sm:$0xf]
      %v2014 = vld [vmem:[%s225 + $0x68] sm:$0x1]
      %v2015 = vld [vmem:[%s225 + $0x6c] sm:$0xf]
      %v2016 = vld [vmem:[%s225 + $0x70] sm:$0xf]
      %v2017 = vld [vmem:[%s225 + $0x74] sm:$0x1]
      %v2018 = vld [vmem:[%s225 + $0x78] sm:$0xf]
      %v2019 = vld [vmem:[%s225 + $0x7c] sm:$0xf]
      %v2020 = vld [vmem:[%s225 + $0x80] sm:$0x1]
      %v2021 = vld [vmem:[%s225 + $0x84] sm:$0xf]
      %v2022 = vld [vmem:[%s225 + $0x88] sm:$0xf]
      %v2023 = vld [vmem:[%s225 + $0x8c] sm:$0x1]
      %v2024 = vld [vmem:[%s225 + $0x90] sm:$0xf]
      %v2025 = vld [vmem:[%s225 + $0x94] sm:$0xf]
      %v2026 = vld [vmem:[%s225 + $0x98] sm:$0x1]
      %v2027 = vld [vmem:[%s225 + $0x9c] sm:$0xf]
      %v2028 = vld [vmem:[%s225 + $0xa0] sm:$0xf]
      %v2029 = vld [vmem:[%s225 + $0xa4] sm:$0x1]
      %v2030 = vld [vmem:[%s225 + $0xa8] sm:$0xf]
      %v2031 = vld [vmem:[%s225 + $0xac] sm:$0xf]
      %v2032 = vld [vmem:[%s225 + $0xb0] sm:$0x1]
      %v2033 = vld [vmem:[%s225 + $0xb4] sm:$0xf]
      %v2034 = vld [vmem:[%s225 + $0xb8] sm:$0xf]
      %v2035 = vld [vmem:[%s225 + $0xbc] sm:$0x1]
      %v2037 = vshrl.u32 %v1988, 16
      %v2039 = vrot.slane %v2037, 4
      %v2040 = vshll.u32 %v1988, 16
      %v2042 = vrot.slane %v2040, 5
      %v2043 = vor.u32 %v2039, %v2042
      %v2044 = vrot.slane %v2043, 4
      %v2046 = vshll.u32 %v1989, 16
      %v2048 = vrot.slane %v2046, 5
      %v2049 = vsel %vm941, %v2044, %v2048
      %v2050 = vshrl.u32 %v1989, 16
      %v2052 = vrot.slane %v2050, 4
      %v2053 = vor.u32 %v2052, %v2048
      %v2054 = vrot.slane %v2053, 4
      %v2056 = vshll.u32 %v1990, 16
      %v2058 = vrot.slane %v2056, 5
      %v2059 = vsel %vm941, %v2054, %v2058
      %v2061 = vshrl.u32 %v1991, 16
      %v2063 = vrot.slane %v2061, 4
      %v2064 = vshll.u32 %v1991, 16
      %v2066 = vrot.slane %v2064, 5
      %v2067 = vor.u32 %v2063, %v2066
      %v2068 = vrot.slane %v2067, 4
      %v2070 = vshll.u32 %v1992, 16
      %v2072 = vrot.slane %v2070, 5
      %v2073 = vsel %vm941, %v2068, %v2072
      %v2074 = vshrl.u32 %v1992, 16
      %v2076 = vrot.slane %v2074, 4
      %v2077 = vor.u32 %v2076, %v2072
      %v2078 = vrot.slane %v2077, 4
      %v2080 = vshll.u32 %v1993, 16
      %v2082 = vrot.slane %v2080, 5
      %v2083 = vsel %vm941, %v2078, %v2082
      %v2085 = vshrl.u32 %v1994, 16
      %v2087 = vrot.slane %v2085, 4
      %v2088 = vshll.u32 %v1994, 16
      %v2090 = vrot.slane %v2088, 5
      %v2091 = vor.u32 %v2087, %v2090
      %v2092 = vrot.slane %v2091, 4
      %v2094 = vshll.u32 %v1995, 16
      %v2096 = vrot.slane %v2094, 5
      %v2097 = vsel %vm941, %v2092, %v2096
      %v2098 = vshrl.u32 %v1995, 16
      %v2100 = vrot.slane %v2098, 4
      %v2101 = vor.u32 %v2100, %v2096
      %v2102 = vrot.slane %v2101, 4
      %v2104 = vshll.u32 %v1996, 16
      %v2106 = vrot.slane %v2104, 5
      %v2107 = vsel %vm941, %v2102, %v2106
      %v2109 = vshrl.u32 %v1997, 16
      %v2111 = vrot.slane %v2109, 4
      %v2112 = vshll.u32 %v1997, 16
      %v2114 = vrot.slane %v2112, 5
      %v2115 = vor.u32 %v2111, %v2114
      %v2116 = vrot.slane %v2115, 4
      %v2118 = vshll.u32 %v1998, 16
      %v2120 = vrot.slane %v2118, 5
      %v2121 = vsel %vm941, %v2116, %v2120
      %v2122 = vshrl.u32 %v1998, 16
      %v2124 = vrot.slane %v2122, 4
      %v2125 = vor.u32 %v2124, %v2120
      %v2126 = vrot.slane %v2125, 4
      %v2128 = vshll.u32 %v1999, 16
      %v2130 = vrot.slane %v2128, 5
      %v2131 = vsel %vm941, %v2126, %v2130
      %v2133 = vshrl.u32 %v2000, 16
      %v2135 = vrot.slane %v2133, 4
      %v2136 = vshll.u32 %v2000, 16
      %v2138 = vrot.slane %v2136, 5
      %v2139 = vor.u32 %v2135, %v2138
      %v2140 = vrot.slane %v2139, 4
      %v2142 = vshll.u32 %v2001, 16
      %v2144 = vrot.slane %v2142, 5
      %v2145 = vsel %vm941, %v2140, %v2144
      %v2146 = vshrl.u32 %v2001, 16
      %v2148 = vrot.slane %v2146, 4
      %v2149 = vor.u32 %v2148, %v2144
      %v2150 = vrot.slane %v2149, 4
      %v2152 = vshll.u32 %v2002, 16
      %v2154 = vrot.slane %v2152, 5
      %v2155 = vsel %vm941, %v2150, %v2154
      %v2157 = vshrl.u32 %v2003, 16
      %v2159 = vrot.slane %v2157, 4
      %v2160 = vshll.u32 %v2003, 16
      %v2162 = vrot.slane %v2160, 5
      %v2163 = vor.u32 %v2159, %v2162
      %v2164 = vrot.slane %v2163, 4
      %v2166 = vshll.u32 %v2004, 16
      %v2168 = vrot.slane %v2166, 5
      %v2169 = vsel %vm941, %v2164, %v2168
      %v2170 = vshrl.u32 %v2004, 16
      %v2172 = vrot.slane %v2170, 4
      %v2173 = vor.u32 %v2172, %v2168
      %v2174 = vrot.slane %v2173, 4
      %v2176 = vshll.u32 %v2005, 16
      %v2178 = vrot.slane %v2176, 5
      %v2179 = vsel %vm941, %v2174, %v2178
      %v2181 = vshrl.u32 %v2006, 16
      %v2183 = vrot.slane %v2181, 4
      %v2184 = vshll.u32 %v2006, 16
      %v2186 = vrot.slane %v2184, 5
      %v2187 = vor.u32 %v2183, %v2186
      %v2188 = vrot.slane %v2187, 4
      %v2190 = vshll.u32 %v2007, 16
      %v2192 = vrot.slane %v2190, 5
      %v2193 = vsel %vm941, %v2188, %v2192
      %v2194 = vshrl.u32 %v2007, 16
      %v2196 = vrot.slane %v2194, 4
      %v2197 = vor.u32 %v2196, %v2192
      %v2198 = vrot.slane %v2197, 4
      %v2200 = vshll.u32 %v2008, 16
      %v2202 = vrot.slane %v2200, 5
      %v2203 = vsel %vm941, %v2198, %v2202
      %v2205 = vshrl.u32 %v2009, 16
      %v2207 = vrot.slane %v2205, 4
      %v2208 = vshll.u32 %v2009, 16
      %v2210 = vrot.slane %v2208, 5
      %v2211 = vor.u32 %v2207, %v2210
      %v2212 = vrot.slane %v2211, 4
      %v2214 = vshll.u32 %v2010, 16
      %v2216 = vrot.slane %v2214, 5
      %v2217 = vsel %vm941, %v2212, %v2216
      %v2218 = vshrl.u32 %v2010, 16
      %v2220 = vrot.slane %v2218, 4
      %v2221 = vor.u32 %v2220, %v2216
      %v2222 = vrot.slane %v2221, 4
      %v2224 = vshll.u32 %v2011, 16
      %v2226 = vrot.slane %v2224, 5
      %v2227 = vsel %vm941, %v2222, %v2226
      %v2229 = vshrl.u32 %v2012, 16
      %v2231 = vrot.slane %v2229, 4
      %v2232 = vshll.u32 %v2012, 16
      %v2234 = vrot.slane %v2232, 5
      %v2235 = vor.u32 %v2231, %v2234
      %v2236 = vrot.slane %v2235, 4
      %v2238 = vshll.u32 %v2013, 16
      %v2240 = vrot.slane %v2238, 5
      %v2241 = vsel %vm941, %v2236, %v2240
      %v2242 = vshrl.u32 %v2013, 16
      %v2244 = vrot.slane %v2242, 4
      %v2245 = vor.u32 %v2244, %v2240
      %v2246 = vrot.slane %v2245, 4
      %v2248 = vshll.u32 %v2014, 16
      %v2250 = vrot.slane %v2248, 5
      %v2251 = vsel %vm941, %v2246, %v2250
      %v2253 = vshrl.u32 %v2015, 16
      %v2255 = vrot.slane %v2253, 4
      %v2256 = vshll.u32 %v2015, 16
      %v2258 = vrot.slane %v2256, 5
      %v2259 = vor.u32 %v2255, %v2258
      %v2260 = vrot.slane %v2259, 4
      %v2262 = vshll.u32 %v2016, 16
      %v2264 = vrot.slane %v2262, 5
      %v2265 = vsel %vm941, %v2260, %v2264
      %v2266 = vshrl.u32 %v2016, 16
      %v2268 = vrot.slane %v2266, 4
      %v2269 = vor.u32 %v2268, %v2264
      %v2270 = vrot.slane %v2269, 4
      %v2272 = vshll.u32 %v2017, 16
      %v2274 = vrot.slane %v2272, 5
      %v2275 = vsel %vm941, %v2270, %v2274
      %v2277 = vshrl.u32 %v2018, 16
      %v2279 = vrot.slane %v2277, 4
      %v2280 = vshll.u32 %v2018, 16
      %v2282 = vrot.slane %v2280, 5
      %v2283 = vor.u32 %v2279, %v2282
      %v2284 = vrot.slane %v2283, 4
      %v2286 = vshll.u32 %v2019, 16
      %v2288 = vrot.slane %v2286, 5
      %v2289 = vsel %vm941, %v2284, %v2288
      %v2290 = vshrl.u32 %v2019, 16
      %v2292 = vrot.slane %v2290, 4
      %v2293 = vor.u32 %v2292, %v2288
      %v2294 = vrot.slane %v2293, 4
      %v2296 = vshll.u32 %v2020, 16
      %v2298 = vrot.slane %v2296, 5
      %v2299 = vsel %vm941, %v2294, %v2298
      %v2301 = vshrl.u32 %v2021, 16
      %v2303 = vrot.slane %v2301, 4
      %v2304 = vshll.u32 %v2021, 16
      %v2306 = vrot.slane %v2304, 5
      %v2307 = vor.u32 %v2303, %v2306
      %v2308 = vrot.slane %v2307, 4
      %v2310 = vshll.u32 %v2022, 16
      %v2312 = vrot.slane %v2310, 5
      %v2313 = vsel %vm941, %v2308, %v2312
      %v2314 = vshrl.u32 %v2022, 16
      %v2316 = vrot.slane %v2314, 4
      %v2317 = vor.u32 %v2316, %v2312
      %v2318 = vrot.slane %v2317, 4
      %v2320 = vshll.u32 %v2023, 16
      %v2322 = vrot.slane %v2320, 5
      %v2323 = vsel %vm941, %v2318, %v2322
      %v2325 = vshrl.u32 %v2024, 16
      %v2327 = vrot.slane %v2325, 4
      %v2328 = vshll.u32 %v2024, 16
      %v2330 = vrot.slane %v2328, 5
      %v2331 = vor.u32 %v2327, %v2330
      %v2332 = vrot.slane %v2331, 4
      %v2334 = vshll.u32 %v2025, 16
      %v2336 = vrot.slane %v2334, 5
      %v2337 = vsel %vm941, %v2332, %v2336
      %v2338 = vshrl.u32 %v2025, 16
      %v2340 = vrot.slane %v2338, 4
      %v2341 = vor.u32 %v2340, %v2336
      %v2342 = vrot.slane %v2341, 4
      %v2344 = vshll.u32 %v2026, 16
      %v2346 = vrot.slane %v2344, 5
      %v2347 = vsel %vm941, %v2342, %v2346
      %v2349 = vshrl.u32 %v2027, 16
      %v2351 = vrot.slane %v2349, 4
      %v2352 = vshll.u32 %v2027, 16
      %v2354 = vrot.slane %v2352, 5
      %v2355 = vor.u32 %v2351, %v2354
      %v2356 = vrot.slane %v2355, 4
      %v2358 = vshll.u32 %v2028, 16
      %v2360 = vrot.slane %v2358, 5
      %v2361 = vsel %vm941, %v2356, %v2360
      %v2362 = vshrl.u32 %v2028, 16
      %v2364 = vrot.slane %v2362, 4
      %v2365 = vor.u32 %v2364, %v2360
      %v2366 = vrot.slane %v2365, 4
      %v2368 = vshll.u32 %v2029, 16
      %v2370 = vrot.slane %v2368, 5
      %v2371 = vsel %vm941, %v2366, %v2370
      %v2373 = vshrl.u32 %v2030, 16
      %v2375 = vrot.slane %v2373, 4
      %v2376 = vshll.u32 %v2030, 16
      %v2378 = vrot.slane %v2376, 5
      %v2379 = vor.u32 %v2375, %v2378
      %v2380 = vrot.slane %v2379, 4
      %v2382 = vshll.u32 %v2031, 16
      %v2384 = vrot.slane %v2382, 5
      %v2385 = vsel %vm941, %v2380, %v2384
      %v2386 = vshrl.u32 %v2031, 16
      %v2388 = vrot.slane %v2386, 4
      %v2389 = vor.u32 %v2388, %v2384
      %v2390 = vrot.slane %v2389, 4
      %v2392 = vshll.u32 %v2032, 16
      %v2394 = vrot.slane %v2392, 5
      %v2395 = vsel %vm941, %v2390, %v2394
      %v2397 = vshrl.u32 %v2033, 16
      %v2399 = vrot.slane %v2397, 4
      %v2400 = vshll.u32 %v2033, 16
      %v2402 = vrot.slane %v2400, 5
      %v2403 = vor.u32 %v2399, %v2402
      %v2404 = vrot.slane %v2403, 4
      %v2406 = vshll.u32 %v2034, 16
      %v2408 = vrot.slane %v2406, 5
      %v2409 = vsel %vm941, %v2404, %v2408
      %v2410 = vshrl.u32 %v2034, 16
      %v2412 = vrot.slane %v2410, 4
      %v2413 = vor.u32 %v2412, %v2408
      %v2414 = vrot.slane %v2413, 4
      %v2416 = vshll.u32 %v2035, 16
      %v2418 = vrot.slane %v2416, 5
      %v2419 = vsel %vm941, %v2414, %v2418
      %2420 = vrot.lane.b32.xlu0 %v2049, 16
      %v2421 = vpop.permute.xlu0 %2420
      %2422 = vrot.lane.b32.xlu0 %v2059, 16
      %v2423 = vpop.permute.xlu0 %2422
      %2424 = vrot.lane.b32.xlu0 %v2073, 16
      %v2425 = vpop.permute.xlu0 %2424
      %2426 = vrot.lane.b32.xlu0 %v2083, 16
      %v2427 = vpop.permute.xlu0 %2426
      %2428 = vrot.lane.b32.xlu0 %v2097, 16
      %v2429 = vpop.permute.xlu0 %2428
      %2430 = vrot.lane.b32.xlu0 %v2107, 16
      %v2431 = vpop.permute.xlu0 %2430
      %2432 = vrot.lane.b32.xlu0 %v2121, 16
      %v2433 = vpop.permute.xlu0 %2432
      %2434 = vrot.lane.b32.xlu0 %v2131, 16
      %v2435 = vpop.permute.xlu0 %2434
      %2436 = vrot.lane.b32.xlu0 %v2145, 16
      %v2437 = vpop.permute.xlu0 %2436
      %2438 = vrot.lane.b32.xlu0 %v2155, 16
      %v2439 = vpop.permute.xlu0 %2438
      %2440 = vrot.lane.b32.xlu0 %v2169, 16
      %v2441 = vpop.permute.xlu0 %2440
      %2442 = vrot.lane.b32.xlu0 %v2179, 16
      %v2443 = vpop.permute.xlu0 %2442
      %2444 = vrot.lane.b32.xlu0 %v2193, 16
      %v2445 = vpop.permute.xlu0 %2444
      %2446 = vrot.lane.b32.xlu0 %v2203, 16
      %v2447 = vpop.permute.xlu0 %2446
      %2448 = vrot.lane.b32.xlu0 %v2217, 16
      %v2449 = vpop.permute.xlu0 %2448
      %2450 = vrot.lane.b32.xlu0 %v2227, 16
      %v2451 = vpop.permute.xlu0 %2450
      %2452 = vrot.lane.b32.xlu0 %v2241, 16
      %v2453 = vpop.permute.xlu0 %2452
      %2454 = vrot.lane.b32.xlu0 %v2251, 16
      %v2455 = vpop.permute.xlu0 %2454
      %2456 = vrot.lane.b32.xlu0 %v2265, 16
      %v2457 = vpop.permute.xlu0 %2456
      %2458 = vrot.lane.b32.xlu0 %v2275, 16
      %v2459 = vpop.permute.xlu0 %2458
      %2460 = vrot.lane.b32.xlu0 %v2289, 16
      %v2461 = vpop.permute.xlu0 %2460
      %2462 = vrot.lane.b32.xlu0 %v2299, 16
      %v2463 = vpop.permute.xlu0 %2462
      %2464 = vrot.lane.b32.xlu0 %v2313, 16
      %v2465 = vpop.permute.xlu0 %2464
      %2466 = vrot.lane.b32.xlu0 %v2323, 16
      %v2467 = vpop.permute.xlu0 %2466
      %2468 = vrot.lane.b32.xlu0 %v2337, 16
      %v2469 = vpop.permute.xlu0 %2468
      %2470 = vrot.lane.b32.xlu0 %v2347, 16
      %v2471 = vpop.permute.xlu0 %2470
      %2472 = vrot.lane.b32.xlu0 %v2361, 16
      %v2473 = vpop.permute.xlu0 %2472
      %2474 = vrot.lane.b32.xlu0 %v2371, 16
      %v2475 = vpop.permute.xlu0 %2474
      %2476 = vrot.lane.b32.xlu0 %v2385, 16
      %v2477 = vpop.permute.xlu0 %2476
      %2478 = vrot.lane.b32.xlu0 %v2395, 16
      %v2479 = vpop.permute.xlu0 %2478
      %2480 = vrot.lane.b32.xlu0 %v2409, 16
      %v2481 = vpop.permute.xlu0 %2480
      %2482 = vrot.lane.b32.xlu0 %v2419, 16
      %v2483 = vpop.permute.xlu0 %2482
      %vm2516 = vcmask 158848
      %2517 = vst.msk [vmem:[#allocation4] sm:$0xf] %vm2516, %v2421
      %2518 = vst.msk [vmem:[#allocation4 + $0x4] sm:$0xf] %vm2516, %v2423
      %2519 = vst.msk [vmem:[#allocation4 + $0x8] sm:$0xf] %vm2516, %v2425
      %2520 = vst.msk [vmem:[#allocation4 + $0xc] sm:$0xf] %vm2516, %v2427
      %2521 = vst.msk [vmem:[#allocation4 + $0x10] sm:$0xf] %vm2516, %v2429
      %2522 = vst.msk [vmem:[#allocation4 + $0x14] sm:$0xf] %vm2516, %v2431
      %2523 = vst.msk [vmem:[#allocation4 + $0x18] sm:$0xf] %vm2516, %v2433
      %2524 = vst.msk [vmem:[#allocation4 + $0x1c] sm:$0xf] %vm2516, %v2435
      %2525 = vst.msk [vmem:[#allocation4 + $0x20] sm:$0xf] %vm2516, %v2437
      %2526 = vst.msk [vmem:[#allocation4 + $0x24] sm:$0xf] %vm2516, %v2439
      %2527 = vst.msk [vmem:[#allocation4 + $0x28] sm:$0xf] %vm2516, %v2441
      %2528 = vst.msk [vmem:[#allocation4 + $0x2c] sm:$0xf] %vm2516, %v2443
      %2529 = vst.msk [vmem:[#allocation4 + $0x30] sm:$0xf] %vm2516, %v2445
      %2530 = vst.msk [vmem:[#allocation4 + $0x34] sm:$0xf] %vm2516, %v2447
      %2531 = vst.msk [vmem:[#allocation4 + $0x38] sm:$0xf] %vm2516, %v2449
      %2532 = vst.msk [vmem:[#allocation4 + $0x3c] sm:$0xf] %vm2516, %v2451
      %2533 = vst.msk [vmem:[#allocation4 + $0x40] sm:$0xf] %vm2516, %v2453
      %2534 = vst.msk [vmem:[#allocation4 + $0x44] sm:$0xf] %vm2516, %v2455
      %2535 = vst.msk [vmem:[#allocation4 + $0x48] sm:$0xf] %vm2516, %v2457
      %2536 = vst.msk [vmem:[#allocation4 + $0x4c] sm:$0xf] %vm2516, %v2459
      %2537 = vst.msk [vmem:[#allocation4 + $0x50] sm:$0xf] %vm2516, %v2461
      %2538 = vst.msk [vmem:[#allocation4 + $0x54] sm:$0xf] %vm2516, %v2463
      %2539 = vst.msk [vmem:[#allocation4 + $0x58] sm:$0xf] %vm2516, %v2465
      %2540 = vst.msk [vmem:[#allocation4 + $0x5c] sm:$0xf] %vm2516, %v2467
      %2541 = vst.msk [vmem:[#allocation4 + $0x60] sm:$0xf] %vm2516, %v2469
      %2542 = vst.msk [vmem:[#allocation4 + $0x64] sm:$0xf] %vm2516, %v2471
      %2543 = vst.msk [vmem:[#allocation4 + $0x68] sm:$0xf] %vm2516, %v2473
      %2544 = vst.msk [vmem:[#allocation4 + $0x6c] sm:$0xf] %vm2516, %v2475
      %2545 = vst.msk [vmem:[#allocation4 + $0x70] sm:$0xf] %vm2516, %v2477
      %2546 = vst.msk [vmem:[#allocation4 + $0x74] sm:$0xf] %vm2516, %v2479
      %2547 = vst.msk [vmem:[#allocation4 + $0x78] sm:$0xf] %vm2516, %v2481
      %2548 = vst.msk [vmem:[#allocation4 + $0x7c] sm:$0xf] %vm2516, %v2483
      %v2549 = vld [vmem:[%s225] sm:$0xe]
      %v2550 = vld [vmem:[%s225 + $0x4] sm:$0xf]
      %v2551 = vld [vmem:[%s225 + $0x8] sm:$0x1]
      %v2552 = vld [vmem:[%s225 + $0xc] sm:$0xe]
      %v2553 = vld [vmem:[%s225 + $0x10] sm:$0xf]
      %v2554 = vld [vmem:[%s225 + $0x14] sm:$0x1]
      %v2555 = vld [vmem:[%s225 + $0x18] sm:$0xe]
      %v2556 = vld [vmem:[%s225 + $0x1c] sm:$0xf]
      %v2557 = vld [vmem:[%s225 + $0x20] sm:$0x1]
      %v2558 = vld [vmem:[%s225 + $0x24] sm:$0xe]
      %v2559 = vld [vmem:[%s225 + $0x28] sm:$0xf]
      %v2560 = vld [vmem:[%s225 + $0x2c] sm:$0x1]
      %v2561 = vld [vmem:[%s225 + $0x30] sm:$0xe]
      %v2562 = vld [vmem:[%s225 + $0x34] sm:$0xf]
      %v2563 = vld [vmem:[%s225 + $0x38] sm:$0x1]
      %v2564 = vld [vmem:[%s225 + $0x3c] sm:$0xe]
      %v2565 = vld [vmem:[%s225 + $0x40] sm:$0xf]
      %v2566 = vld [vmem:[%s225 + $0x44] sm:$0x1]
      %v2567 = vld [vmem:[%s225 + $0x48] sm:$0xe]
      %v2568 = vld [vmem:[%s225 + $0x4c] sm:$0xf]
      %v2569 = vld [vmem:[%s225 + $0x50] sm:$0x1]
      %v2570 = vld [vmem:[%s225 + $0x54] sm:$0xe]
      %v2571 = vld [vmem:[%s225 + $0x58] sm:$0xf]
      %v2572 = vld [vmem:[%s225 + $0x5c] sm:$0x1]
      %v2573 = vld [vmem:[%s225 + $0x60] sm:$0xe]
      %v2574 = vld [vmem:[%s225 + $0x64] sm:$0xf]
      %v2575 = vld [vmem:[%s225 + $0x68] sm:$0x1]
      %v2576 = vld [vmem:[%s225 + $0x6c] sm:$0xe]
      %v2577 = vld [vmem:[%s225 + $0x70] sm:$0xf]
      %v2578 = vld [vmem:[%s225 + $0x74] sm:$0x1]
      %v2579 = vld [vmem:[%s225 + $0x78] sm:$0xe]
      %v2580 = vld [vmem:[%s225 + $0x7c] sm:$0xf]
      %v2581 = vld [vmem:[%s225 + $0x80] sm:$0x1]
      %v2582 = vld [vmem:[%s225 + $0x84] sm:$0xe]
      %v2583 = vld [vmem:[%s225 + $0x88] sm:$0xf]
      %v2584 = vld [vmem:[%s225 + $0x8c] sm:$0x1]
      %v2585 = vld [vmem:[%s225 + $0x90] sm:$0xe]
      %v2586 = vld [vmem:[%s225 + $0x94] sm:$0xf]
      %v2587 = vld [vmem:[%s225 + $0x98] sm:$0x1]
      %v2588 = vld [vmem:[%s225 + $0x9c] sm:$0xe]
      %v2589 = vld [vmem:[%s225 + $0xa0] sm:$0xf]
      %v2590 = vld [vmem:[%s225 + $0xa4] sm:$0x1]
      %v2591 = vld [vmem:[%s225 + $0xa8] sm:$0xe]
      %v2592 = vld [vmem:[%s225 + $0xac] sm:$0xf]
      %v2593 = vld [vmem:[%s225 + $0xb0] sm:$0x1]
      %v2594 = vld [vmem:[%s225 + $0xb4] sm:$0xe]
      %v2595 = vld [vmem:[%s225 + $0xb8] sm:$0xf]
      %v2596 = vld [vmem:[%s225 + $0xbc] sm:$0x1]
      %v2645 = vrot.slane %v2549, 5
      %v2646 = vrot.slane %v2645, 4
      %v2647 = vrot.slane %v2550, 5
      %v2648 = vsel %vm1553, %v2646, %v2647
      %v2649 = vrot.slane %v2647, 4
      %v2650 = vrot.slane %v2551, 5
      %v2651 = vsel %vm1553, %v2649, %v2650
      %v2652 = vrot.slane %v2552, 5
      %v2653 = vrot.slane %v2652, 4
      %v2654 = vrot.slane %v2553, 5
      %v2655 = vsel %vm1553, %v2653, %v2654
      %v2656 = vrot.slane %v2654, 4
      %v2657 = vrot.slane %v2554, 5
      %v2658 = vsel %vm1553, %v2656, %v2657
      %v2659 = vrot.slane %v2555, 5
      %v2660 = vrot.slane %v2659, 4
      %v2661 = vrot.slane %v2556, 5
      %v2662 = vsel %vm1553, %v2660, %v2661
      %v2663 = vrot.slane %v2661, 4
      %v2664 = vrot.slane %v2557, 5
      %v2665 = vsel %vm1553, %v2663, %v2664
      %v2666 = vrot.slane %v2558, 5
      %v2667 = vrot.slane %v2666, 4
      %v2668 = vrot.slane %v2559, 5
      %v2669 = vsel %vm1553, %v2667, %v2668
      %v2670 = vrot.slane %v2668, 4
      %v2671 = vrot.slane %v2560, 5
      %v2672 = vsel %vm1553, %v2670, %v2671
      %v2673 = vrot.slane %v2561, 5
      %v2674 = vrot.slane %v2673, 4
      %v2675 = vrot.slane %v2562, 5
      %v2676 = vsel %vm1553, %v2674, %v2675
      %v2677 = vrot.slane %v2675, 4
      %v2678 = vrot.slane %v2563, 5
      %v2679 = vsel %vm1553, %v2677, %v2678
      %v2680 = vrot.slane %v2564, 5
      %v2681 = vrot.slane %v2680, 4
      %v2682 = vrot.slane %v2565, 5
      %v2683 = vsel %vm1553, %v2681, %v2682
      %v2684 = vrot.slane %v2682, 4
      %v2685 = vrot.slane %v2566, 5
      %v2686 = vsel %vm1553, %v2684, %v2685
      %v2687 = vrot.slane %v2567, 5
      %v2688 = vrot.slane %v2687, 4
      %v2689 = vrot.slane %v2568, 5
      %v2690 = vsel %vm1553, %v2688, %v2689
      %v2691 = vrot.slane %v2689, 4
      %v2692 = vrot.slane %v2569, 5
      %v2693 = vsel %vm1553, %v2691, %v2692
      %v2694 = vrot.slane %v2570, 5
      %v2695 = vrot.slane %v2694, 4
      %v2696 = vrot.slane %v2571, 5
      %v2697 = vsel %vm1553, %v2695, %v2696
      %v2698 = vrot.slane %v2696, 4
      %v2699 = vrot.slane %v2572, 5
      %v2700 = vsel %vm1553, %v2698, %v2699
      %v2701 = vrot.slane %v2573, 5
      %v2702 = vrot.slane %v2701, 4
      %v2703 = vrot.slane %v2574, 5
      %v2704 = vsel %vm1553, %v2702, %v2703
      %v2705 = vrot.slane %v2703, 4
      %v2706 = vrot.slane %v2575, 5
      %v2707 = vsel %vm1553, %v2705, %v2706
      %v2708 = vrot.slane %v2576, 5
      %v2709 = vrot.slane %v2708, 4
      %v2710 = vrot.slane %v2577, 5
      %v2711 = vsel %vm1553, %v2709, %v2710
      %v2712 = vrot.slane %v2710, 4
      %v2713 = vrot.slane %v2578, 5
      %v2714 = vsel %vm1553, %v2712, %v2713
      %v2715 = vrot.slane %v2579, 5
      %v2716 = vrot.slane %v2715, 4
      %v2717 = vrot.slane %v2580, 5
      %v2718 = vsel %vm1553, %v2716, %v2717
      %v2719 = vrot.slane %v2717, 4
      %v2720 = vrot.slane %v2581, 5
      %v2721 = vsel %vm1553, %v2719, %v2720
      %v2722 = vrot.slane %v2582, 5
      %v2723 = vrot.slane %v2722, 4
      %v2724 = vrot.slane %v2583, 5
      %v2725 = vsel %vm1553, %v2723, %v2724
      %v2726 = vrot.slane %v2724, 4
      %v2727 = vrot.slane %v2584, 5
      %v2728 = vsel %vm1553, %v2726, %v2727
      %v2729 = vrot.slane %v2585, 5
      %v2730 = vrot.slane %v2729, 4
      %v2731 = vrot.slane %v2586, 5
      %v2732 = vsel %vm1553, %v2730, %v2731
      %v2733 = vrot.slane %v2731, 4
      %v2734 = vrot.slane %v2587, 5
      %v2735 = vsel %vm1553, %v2733, %v2734
      %v2736 = vrot.slane %v2588, 5
      %v2737 = vrot.slane %v2736, 4
      %v2738 = vrot.slane %v2589, 5
      %v2739 = vsel %vm1553, %v2737, %v2738
      %v2740 = vrot.slane %v2738, 4
      %v2741 = vrot.slane %v2590, 5
      %v2742 = vsel %vm1553, %v2740, %v2741
      %v2743 = vrot.slane %v2591, 5
      %v2744 = vrot.slane %v2743, 4
      %v2745 = vrot.slane %v2592, 5
      %v2746 = vsel %vm1553, %v2744, %v2745
      %v2747 = vrot.slane %v2745, 4
      %v2748 = vrot.slane %v2593, 5
      %v2749 = vsel %vm1553, %v2747, %v2748
      %v2750 = vrot.slane %v2594, 5
      %v2751 = vrot.slane %v2750, 4
      %v2752 = vrot.slane %v2595, 5
      %v2753 = vsel %vm1553, %v2751, %v2752
      %v2754 = vrot.slane %v2752, 4
      %v2755 = vrot.slane %v2596, 5
      %v2756 = vsel %vm1553, %v2754, %v2755
      %2757 = vrot.lane.b32.xlu0 %v2648, 20
      %v2758 = vpop.permute.xlu0 %2757
      %2759 = vrot.lane.b32.xlu0 %v2651, 20
      %v2760 = vpop.permute.xlu0 %2759
      %2761 = vrot.lane.b32.xlu0 %v2655, 20
      %v2762 = vpop.permute.xlu0 %2761
      %2763 = vrot.lane.b32.xlu0 %v2658, 20
      %v2764 = vpop.permute.xlu0 %2763
      %2765 = vrot.lane.b32.xlu0 %v2662, 20
      %v2766 = vpop.permute.xlu0 %2765
      %2767 = vrot.lane.b32.xlu0 %v2665, 20
      %v2768 = vpop.permute.xlu0 %2767
      %2769 = vrot.lane.b32.xlu0 %v2669, 20
      %v2770 = vpop.permute.xlu0 %2769
      %2771 = vrot.lane.b32.xlu0 %v2672, 20
      %v2772 = vpop.permute.xlu0 %2771
      %2773 = vrot.lane.b32.xlu0 %v2676, 20
      %v2774 = vpop.permute.xlu0 %2773
      %2775 = vrot.lane.b32.xlu0 %v2679, 20
      %v2776 = vpop.permute.xlu0 %2775
      %2777 = vrot.lane.b32.xlu0 %v2683, 20
      %v2778 = vpop.permute.xlu0 %2777
      %2779 = vrot.lane.b32.xlu0 %v2686, 20
      %v2780 = vpop.permute.xlu0 %2779
      %2781 = vrot.lane.b32.xlu0 %v2690, 20
      %v2782 = vpop.permute.xlu0 %2781
      %2783 = vrot.lane.b32.xlu0 %v2693, 20
      %v2784 = vpop.permute.xlu0 %2783
      %2785 = vrot.lane.b32.xlu0 %v2697, 20
      %v2786 = vpop.permute.xlu0 %2785
      %2787 = vrot.lane.b32.xlu0 %v2700, 20
      %v2788 = vpop.permute.xlu0 %2787
      %2789 = vrot.lane.b32.xlu0 %v2704, 20
      %v2790 = vpop.permute.xlu0 %2789
      %2791 = vrot.lane.b32.xlu0 %v2707, 20
      %v2792 = vpop.permute.xlu0 %2791
      %2793 = vrot.lane.b32.xlu0 %v2711, 20
      %v2794 = vpop.permute.xlu0 %2793
      %2795 = vrot.lane.b32.xlu0 %v2714, 20
      %v2796 = vpop.permute.xlu0 %2795
      %2797 = vrot.lane.b32.xlu0 %v2718, 20
      %v2798 = vpop.permute.xlu0 %2797
      %2799 = vrot.lane.b32.xlu0 %v2721, 20
      %v2800 = vpop.permute.xlu0 %2799
      %2801 = vrot.lane.b32.xlu0 %v2725, 20
      %v2802 = vpop.permute.xlu0 %2801
      %2803 = vrot.lane.b32.xlu0 %v2728, 20
      %v2804 = vpop.permute.xlu0 %2803
      %2805 = vrot.lane.b32.xlu0 %v2732, 20
      %v2806 = vpop.permute.xlu0 %2805
      %2807 = vrot.lane.b32.xlu0 %v2735, 20
      %v2808 = vpop.permute.xlu0 %2807
      %2809 = vrot.lane.b32.xlu0 %v2739, 20
      %v2810 = vpop.permute.xlu0 %2809
      %2811 = vrot.lane.b32.xlu0 %v2742, 20
      %v2812 = vpop.permute.xlu0 %2811
      %2813 = vrot.lane.b32.xlu0 %v2746, 20
      %v2814 = vpop.permute.xlu0 %2813
      %2815 = vrot.lane.b32.xlu0 %v2749, 20
      %v2816 = vpop.permute.xlu0 %2815
      %2817 = vrot.lane.b32.xlu0 %v2753, 20
      %v2818 = vpop.permute.xlu0 %2817
      %2819 = vrot.lane.b32.xlu0 %v2756, 20
      %v2820 = vpop.permute.xlu0 %2819
      %vm2853 = vcmask 191648
      %2854 = vst.msk [vmem:[#allocation4] sm:$0xf] %vm2853, %v2758
      %2855 = vst.msk [vmem:[#allocation4 + $0x4] sm:$0xf] %vm2853, %v2760
      %2856 = vst.msk [vmem:[#allocation4 + $0x8] sm:$0xf] %vm2853, %v2762
      %2857 = vst.msk [vmem:[#allocation4 + $0xc] sm:$0xf] %vm2853, %v2764
      %2858 = vst.msk [vmem:[#allocation4 + $0x10] sm:$0xf] %vm2853, %v2766
      %2859 = vst.msk [vmem:[#allocation4 + $0x14] sm:$0xf] %vm2853, %v2768
      %2860 = vst.msk [vmem:[#allocation4 + $0x18] sm:$0xf] %vm2853, %v2770
      %2861 = vst.msk [vmem:[#allocation4 + $0x1c] sm:$0xf] %vm2853, %v2772
      %2862 = vst.msk [vmem:[#allocation4 + $0x20] sm:$0xf] %vm2853, %v2774
      %2863 = vst.msk [vmem:[#allocation4 + $0x24] sm:$0xf] %vm2853, %v2776
      %2864 = vst.msk [vmem:[#allocation4 + $0x28] sm:$0xf] %vm2853, %v2778
      %2865 = vst.msk [vmem:[#allocation4 + $0x2c] sm:$0xf] %vm2853, %v2780
      %2866 = vst.msk [vmem:[#allocation4 + $0x30] sm:$0xf] %vm2853, %v2782
      %2867 = vst.msk [vmem:[#allocation4 + $0x34] sm:$0xf] %vm2853, %v2784
      %2868 = vst.msk [vmem:[#allocation4 + $0x38] sm:$0xf] %vm2853, %v2786
      %2869 = vst.msk [vmem:[#allocation4 + $0x3c] sm:$0xf] %vm2853, %v2788
      %2870 = vst.msk [vmem:[#allocation4 + $0x40] sm:$0xf] %vm2853, %v2790
      %2871 = vst.msk [vmem:[#allocation4 + $0x44] sm:$0xf] %vm2853, %v2792
      %2872 = vst.msk [vmem:[#allocation4 + $0x48] sm:$0xf] %vm2853, %v2794
      %2873 = vst.msk [vmem:[#allocation4 + $0x4c] sm:$0xf] %vm2853, %v2796
      %2874 = vst.msk [vmem:[#allocation4 + $0x50] sm:$0xf] %vm2853, %v2798
      %2875 = vst.msk [vmem:[#allocation4 + $0x54] sm:$0xf] %vm2853, %v2800
      %2876 = vst.msk [vmem:[#allocation4 + $0x58] sm:$0xf] %vm2853, %v2802
      %2877 = vst.msk [vmem:[#allocation4 + $0x5c] sm:$0xf] %vm2853, %v2804
      %2878 = vst.msk [vmem:[#allocation4 + $0x60] sm:$0xf] %vm2853, %v2806
      %2879 = vst.msk [vmem:[#allocation4 + $0x64] sm:$0xf] %vm2853, %v2808
      %2880 = vst.msk [vmem:[#allocation4 + $0x68] sm:$0xf] %vm2853, %v2810
      %2881 = vst.msk [vmem:[#allocation4 + $0x6c] sm:$0xf] %vm2853, %v2812
      %2882 = vst.msk [vmem:[#allocation4 + $0x70] sm:$0xf] %vm2853, %v2814
      %2883 = vst.msk [vmem:[#allocation4 + $0x74] sm:$0xf] %vm2853, %v2816
      %2884 = vst.msk [vmem:[#allocation4 + $0x78] sm:$0xf] %vm2853, %v2818
      %2885 = vst.msk [vmem:[#allocation4 + $0x7c] sm:$0xf] %vm2853, %v2820
      %s2886 = scalar_lea.vmem [#allocation2], 24
      %v2887 = vld [vmem:[%s2886] sm:$0xf]
      %v2888 = vld [vmem:[%s2886 + $0x4] sm:$0xf]
      %v2889 = vld [vmem:[%s2886 + $0xc] sm:$0xf]
      %v2890 = vld [vmem:[%s2886 + $0x10] sm:$0xf]
      %v2891 = vld [vmem:[%s2886 + $0x18] sm:$0xf]
      %v2892 = vld [vmem:[%s2886 + $0x1c] sm:$0xf]
      %v2893 = vld [vmem:[%s2886 + $0x24] sm:$0xf]
      %v2894 = vld [vmem:[%s2886 + $0x28] sm:$0xf]
      %v2895 = vld [vmem:[%s2886 + $0x30] sm:$0xf]
      %v2896 = vld [vmem:[%s2886 + $0x34] sm:$0xf]
      %v2897 = vld [vmem:[%s2886 + $0x3c] sm:$0xf]
      %v2898 = vld [vmem:[%s2886 + $0x40] sm:$0xf]
      %v2899 = vld [vmem:[%s2886 + $0x48] sm:$0xf]
      %v2900 = vld [vmem:[%s2886 + $0x4c] sm:$0xf]
      %v2901 = vld [vmem:[%s2886 + $0x54] sm:$0xf]
      %v2902 = vld [vmem:[%s2886 + $0x58] sm:$0xf]
      %v2903 = vld [vmem:[%s2886 + $0x60] sm:$0xf]
      %v2904 = vld [vmem:[%s2886 + $0x64] sm:$0xf]
      %v2905 = vld [vmem:[%s2886 + $0x6c] sm:$0xf]
      %v2906 = vld [vmem:[%s2886 + $0x70] sm:$0xf]
      %v2907 = vld [vmem:[%s2886 + $0x78] sm:$0xf]
      %v2908 = vld [vmem:[%s2886 + $0x7c] sm:$0xf]
      %v2909 = vld [vmem:[%s2886 + $0x84] sm:$0xf]
      %v2910 = vld [vmem:[%s2886 + $0x88] sm:$0xf]
      %v2911 = vld [vmem:[%s2886 + $0x90] sm:$0xf]
      %v2912 = vld [vmem:[%s2886 + $0x94] sm:$0xf]
      %v2913 = vld [vmem:[%s2886 + $0x9c] sm:$0xf]
      %v2914 = vld [vmem:[%s2886 + $0xa0] sm:$0xf]
      %v2915 = vld [vmem:[%s2886 + $0xa8] sm:$0xf]
      %v2916 = vld [vmem:[%s2886 + $0xac] sm:$0xf]
      %v2917 = vld [vmem:[%s2886 + $0xb4] sm:$0xf]
      %v2918 = vld [vmem:[%s2886 + $0xb8] sm:$0xf]
      %2951 = vrot.lane.b32.xlu0 %v2887, 24
      %v2952 = vpop.permute.xlu0 %2951
      %2953 = vrot.lane.b32.xlu0 %v2888, 24
      %v2954 = vpop.permute.xlu0 %2953
      %2955 = vrot.lane.b32.xlu0 %v2889, 24
      %v2956 = vpop.permute.xlu0 %2955
      %2957 = vrot.lane.b32.xlu0 %v2890, 24
      %v2958 = vpop.permute.xlu0 %2957
      %2959 = vrot.lane.b32.xlu0 %v2891, 24
      %v2960 = vpop.permute.xlu0 %2959
      %2961 = vrot.lane.b32.xlu0 %v2892, 24
      %v2962 = vpop.permute.xlu0 %2961
      %2963 = vrot.lane.b32.xlu0 %v2893, 24
      %v2964 = vpop.permute.xlu0 %2963
      %2965 = vrot.lane.b32.xlu0 %v2894, 24
      %v2966 = vpop.permute.xlu0 %2965
      %2967 = vrot.lane.b32.xlu0 %v2895, 24
      %v2968 = vpop.permute.xlu0 %2967
      %2969 = vrot.lane.b32.xlu0 %v2896, 24
      %v2970 = vpop.permute.xlu0 %2969
      %2971 = vrot.lane.b32.xlu0 %v2897, 24
      %v2972 = vpop.permute.xlu0 %2971
      %2973 = vrot.lane.b32.xlu0 %v2898, 24
      %v2974 = vpop.permute.xlu0 %2973
      %2975 = vrot.lane.b32.xlu0 %v2899, 24
      %v2976 = vpop.permute.xlu0 %2975
      %2977 = vrot.lane.b32.xlu0 %v2900, 24
      %v2978 = vpop.permute.xlu0 %2977
      %2979 = vrot.lane.b32.xlu0 %v2901, 24
      %v2980 = vpop.permute.xlu0 %2979
      %2981 = vrot.lane.b32.xlu0 %v2902, 24
      %v2982 = vpop.permute.xlu0 %2981
      %2983 = vrot.lane.b32.xlu0 %v2903, 24
      %v2984 = vpop.permute.xlu0 %2983
      %2985 = vrot.lane.b32.xlu0 %v2904, 24
      %v2986 = vpop.permute.xlu0 %2985
      %2987 = vrot.lane.b32.xlu0 %v2905, 24
      %v2988 = vpop.permute.xlu0 %2987
      %2989 = vrot.lane.b32.xlu0 %v2906, 24
      %v2990 = vpop.permute.xlu0 %2989
      %2991 = vrot.lane.b32.xlu0 %v2907, 24
      %v2992 = vpop.permute.xlu0 %2991
      %2993 = vrot.lane.b32.xlu0 %v2908, 24
      %v2994 = vpop.permute.xlu0 %2993
      %2995 = vrot.lane.b32.xlu0 %v2909, 24
      %v2996 = vpop.permute.xlu0 %2995
      %2997 = vrot.lane.b32.xlu0 %v2910, 24
      %v2998 = vpop.permute.xlu0 %2997
      %2999 = vrot.lane.b32.xlu0 %v2911, 24
      %v3000 = vpop.permute.xlu0 %2999
      %3001 = vrot.lane.b32.xlu0 %v2912, 24
      %v3002 = vpop.permute.xlu0 %3001
      %3003 = vrot.lane.b32.xlu0 %v2913, 24
      %v3004 = vpop.permute.xlu0 %3003
      %3005 = vrot.lane.b32.xlu0 %v2914, 24
      %v3006 = vpop.permute.xlu0 %3005
      %3007 = vrot.lane.b32.xlu0 %v2915, 24
      %v3008 = vpop.permute.xlu0 %3007
      %3009 = vrot.lane.b32.xlu0 %v2916, 24
      %v3010 = vpop.permute.xlu0 %3009
      %3011 = vrot.lane.b32.xlu0 %v2917, 24
      %v3012 = vpop.permute.xlu0 %3011
      %3013 = vrot.lane.b32.xlu0 %v2918, 24
      %v3014 = vpop.permute.xlu0 %3013
      %vm3047 = vcmask 224448
      %3048 = vst.msk [vmem:[#allocation4] sm:$0xf] %vm3047, %v2952
      %3049 = vst.msk [vmem:[#allocation4 + $0x4] sm:$0xf] %vm3047, %v2954
      %3050 = vst.msk [vmem:[#allocation4 + $0x8] sm:$0xf] %vm3047, %v2956
      %3051 = vst.msk [vmem:[#allocation4 + $0xc] sm:$0xf] %vm3047, %v2958
      %3052 = vst.msk [vmem:[#allocation4 + $0x10] sm:$0xf] %vm3047, %v2960
      %3053 = vst.msk [vmem:[#allocation4 + $0x14] sm:$0xf] %vm3047, %v2962
      %3054 = vst.msk [vmem:[#allocation4 + $0x18] sm:$0xf] %vm3047, %v2964
      %3055 = vst.msk [vmem:[#allocation4 + $0x1c] sm:$0xf] %vm3047, %v2966
      %3056 = vst.msk [vmem:[#allocation4 + $0x20] sm:$0xf] %vm3047, %v2968
      %3057 = vst.msk [vmem:[#allocation4 + $0x24] sm:$0xf] %vm3047, %v2970
      %3058 = vst.msk [vmem:[#allocation4 + $0x28] sm:$0xf] %vm3047, %v2972
      %3059 = vst.msk [vmem:[#allocation4 + $0x2c] sm:$0xf] %vm3047, %v2974
      %3060 = vst.msk [vmem:[#allocation4 + $0x30] sm:$0xf] %vm3047, %v2976
      %3061 = vst.msk [vmem:[#allocation4 + $0x34] sm:$0xf] %vm3047, %v2978
      %3062 = vst.msk [vmem:[#allocation4 + $0x38] sm:$0xf] %vm3047, %v2980
      %3063 = vst.msk [vmem:[#allocation4 + $0x3c] sm:$0xf] %vm3047, %v2982
      %3064 = vst.msk [vmem:[#allocation4 + $0x40] sm:$0xf] %vm3047, %v2984
      %3065 = vst.msk [vmem:[#allocation4 + $0x44] sm:$0xf] %vm3047, %v2986
      %3066 = vst.msk [vmem:[#allocation4 + $0x48] sm:$0xf] %vm3047, %v2988
      %3067 = vst.msk [vmem:[#allocation4 + $0x4c] sm:$0xf] %vm3047, %v2990
      %3068 = vst.msk [vmem:[#allocation4 + $0x50] sm:$0xf] %vm3047, %v2992
      %3069 = vst.msk [vmem:[#allocation4 + $0x54] sm:$0xf] %vm3047, %v2994
      %3070 = vst.msk [vmem:[#allocation4 + $0x58] sm:$0xf] %vm3047, %v2996
      %3071 = vst.msk [vmem:[#allocation4 + $0x5c] sm:$0xf] %vm3047, %v2998
      %3072 = vst.msk [vmem:[#allocation4 + $0x60] sm:$0xf] %vm3047, %v3000
      %3073 = vst.msk [vmem:[#allocation4 + $0x64] sm:$0xf] %vm3047, %v3002
      %3074 = vst.msk [vmem:[#allocation4 + $0x68] sm:$0xf] %vm3047, %v3004
      %3075 = vst.msk [vmem:[#allocation4 + $0x6c] sm:$0xf] %vm3047, %v3006
      %3076 = vst.msk [vmem:[#allocation4 + $0x70] sm:$0xf] %vm3047, %v3008
      %3077 = vst.msk [vmem:[#allocation4 + $0x74] sm:$0xf] %vm3047, %v3010
      %3078 = vst.msk [vmem:[#allocation4 + $0x78] sm:$0xf] %vm3047, %v3012
      %3079 = vst.msk [vmem:[#allocation4 + $0x7c] sm:$0xf] %vm3047, %v3014
      %v3080 = vld [vmem:[%s2886] sm:$0xf]
      %v3081 = vld [vmem:[%s2886 + $0x4] sm:$0xf]
      %v3082 = vld [vmem:[%s2886 + $0x8] sm:$0x1]
      %v3083 = vld [vmem:[%s2886 + $0xc] sm:$0xf]
      %v3084 = vld [vmem:[%s2886 + $0x10] sm:$0xf]
      %v3085 = vld [vmem:[%s2886 + $0x14] sm:$0x1]
      %v3086 = vld [vmem:[%s2886 + $0x18] sm:$0xf]
      %v3087 = vld [vmem:[%s2886 + $0x1c] sm:$0xf]
      %v3088 = vld [vmem:[%s2886 + $0x20] sm:$0x1]
      %v3089 = vld [vmem:[%s2886 + $0x24] sm:$0xf]
      %v3090 = vld [vmem:[%s2886 + $0x28] sm:$0xf]
      %v3091 = vld [vmem:[%s2886 + $0x2c] sm:$0x1]
      %v3092 = vld [vmem:[%s2886 + $0x30] sm:$0xf]
      %v3093 = vld [vmem:[%s2886 + $0x34] sm:$0xf]
      %v3094 = vld [vmem:[%s2886 + $0x38] sm:$0x1]
      %v3095 = vld [vmem:[%s2886 + $0x3c] sm:$0xf]
      %v3096 = vld [vmem:[%s2886 + $0x40] sm:$0xf]
      %v3097 = vld [vmem:[%s2886 + $0x44] sm:$0x1]
      %v3098 = vld [vmem:[%s2886 + $0x48] sm:$0xf]
      %v3099 = vld [vmem:[%s2886 + $0x4c] sm:$0xf]
      %v3100 = vld [vmem:[%s2886 + $0x50] sm:$0x1]
      %v3101 = vld [vmem:[%s2886 + $0x54] sm:$0xf]
      %v3102 = vld [vmem:[%s2886 + $0x58] sm:$0xf]
      %v3103 = vld [vmem:[%s2886 + $0x5c] sm:$0x1]
      %v3104 = vld [vmem:[%s2886 + $0x60] sm:$0xf]
      %v3105 = vld [vmem:[%s2886 + $0x64] sm:$0xf]
      %v3106 = vld [vmem:[%s2886 + $0x68] sm:$0x1]
      %v3107 = vld [vmem:[%s2886 + $0x6c] sm:$0xf]
      %v3108 = vld [vmem:[%s2886 + $0x70] sm:$0xf]
      %v3109 = vld [vmem:[%s2886 + $0x74] sm:$0x1]
      %v3110 = vld [vmem:[%s2886 + $0x78] sm:$0xf]
      %v3111 = vld [vmem:[%s2886 + $0x7c] sm:$0xf]
      %v3112 = vld [vmem:[%s2886 + $0x80] sm:$0x1]
      %v3113 = vld [vmem:[%s2886 + $0x84] sm:$0xf]
      %v3114 = vld [vmem:[%s2886 + $0x88] sm:$0xf]
      %v3115 = vld [vmem:[%s2886 + $0x8c] sm:$0x1]
      %v3116 = vld [vmem:[%s2886 + $0x90] sm:$0xf]
      %v3117 = vld [vmem:[%s2886 + $0x94] sm:$0xf]
      %v3118 = vld [vmem:[%s2886 + $0x98] sm:$0x1]
      %v3119 = vld [vmem:[%s2886 + $0x9c] sm:$0xf]
      %v3120 = vld [vmem:[%s2886 + $0xa0] sm:$0xf]
      %v3121 = vld [vmem:[%s2886 + $0xa4] sm:$0x1]
      %v3122 = vld [vmem:[%s2886 + $0xa8] sm:$0xf]
      %v3123 = vld [vmem:[%s2886 + $0xac] sm:$0xf]
      %v3124 = vld [vmem:[%s2886 + $0xb0] sm:$0x1]
      %v3125 = vld [vmem:[%s2886 + $0xb4] sm:$0xf]
      %v3126 = vld [vmem:[%s2886 + $0xb8] sm:$0xf]
      %v3127 = vld [vmem:[%s2886 + $0xbc] sm:$0x1]
      %v3129 = vshrl.u32 %v3080, 16
      %v3131 = vrot.slane %v3129, 4
      %v3132 = vshll.u32 %v3080, 16
      %v3134 = vrot.slane %v3132, 5
      %v3135 = vor.u32 %v3131, %v3134
      %v3136 = vrot.slane %v3135, 4
      %v3138 = vshll.u32 %v3081, 16
      %v3140 = vrot.slane %v3138, 5
      %v3141 = vsel %vm941, %v3136, %v3140
      %v3142 = vshrl.u32 %v3081, 16
      %v3144 = vrot.slane %v3142, 4
      %v3145 = vor.u32 %v3144, %v3140
      %v3146 = vrot.slane %v3145, 4
      %v3148 = vshll.u32 %v3082, 16
      %v3150 = vrot.slane %v3148, 5
      %v3151 = vsel %vm941, %v3146, %v3150
      %v3153 = vshrl.u32 %v3083, 16
      %v3155 = vrot.slane %v3153, 4
      %v3156 = vshll.u32 %v3083, 16
      %v3158 = vrot.slane %v3156, 5
      %v3159 = vor.u32 %v3155, %v3158
      %v3160 = vrot.slane %v3159, 4
      %v3162 = vshll.u32 %v3084, 16
      %v3164 = vrot.slane %v3162, 5
      %v3165 = vsel %vm941, %v3160, %v3164
      %v3166 = vshrl.u32 %v3084, 16
      %v3168 = vrot.slane %v3166, 4
      %v3169 = vor.u32 %v3168, %v3164
      %v3170 = vrot.slane %v3169, 4
      %v3172 = vshll.u32 %v3085, 16
      %v3174 = vrot.slane %v3172, 5
      %v3175 = vsel %vm941, %v3170, %v3174
      %v3177 = vshrl.u32 %v3086, 16
      %v3179 = vrot.slane %v3177, 4
      %v3180 = vshll.u32 %v3086, 16
      %v3182 = vrot.slane %v3180, 5
      %v3183 = vor.u32 %v3179, %v3182
      %v3184 = vrot.slane %v3183, 4
      %v3186 = vshll.u32 %v3087, 16
      %v3188 = vrot.slane %v3186, 5
      %v3189 = vsel %vm941, %v3184, %v3188
      %v3190 = vshrl.u32 %v3087, 16
      %v3192 = vrot.slane %v3190, 4
      %v3193 = vor.u32 %v3192, %v3188
      %v3194 = vrot.slane %v3193, 4
      %v3196 = vshll.u32 %v3088, 16
      %v3198 = vrot.slane %v3196, 5
      %v3199 = vsel %vm941, %v3194, %v3198
      %v3201 = vshrl.u32 %v3089, 16
      %v3203 = vrot.slane %v3201, 4
      %v3204 = vshll.u32 %v3089, 16
      %v3206 = vrot.slane %v3204, 5
      %v3207 = vor.u32 %v3203, %v3206
      %v3208 = vrot.slane %v3207, 4
      %v3210 = vshll.u32 %v3090, 16
      %v3212 = vrot.slane %v3210, 5
      %v3213 = vsel %vm941, %v3208, %v3212
      %v3214 = vshrl.u32 %v3090, 16
      %v3216 = vrot.slane %v3214, 4
      %v3217 = vor.u32 %v3216, %v3212
      %v3218 = vrot.slane %v3217, 4
      %v3220 = vshll.u32 %v3091, 16
      %v3222 = vrot.slane %v3220, 5
      %v3223 = vsel %vm941, %v3218, %v3222
      %v3225 = vshrl.u32 %v3092, 16
      %v3227 = vrot.slane %v3225, 4
      %v3228 = vshll.u32 %v3092, 16
      %v3230 = vrot.slane %v3228, 5
      %v3231 = vor.u32 %v3227, %v3230
      %v3232 = vrot.slane %v3231, 4
      %v3234 = vshll.u32 %v3093, 16
      %v3236 = vrot.slane %v3234, 5
      %v3237 = vsel %vm941, %v3232, %v3236
      %v3238 = vshrl.u32 %v3093, 16
      %v3240 = vrot.slane %v3238, 4
      %v3241 = vor.u32 %v3240, %v3236
      %v3242 = vrot.slane %v3241, 4
      %v3244 = vshll.u32 %v3094, 16
      %v3246 = vrot.slane %v3244, 5
      %v3247 = vsel %vm941, %v3242, %v3246
      %v3249 = vshrl.u32 %v3095, 16
      %v3251 = vrot.slane %v3249, 4
      %v3252 = vshll.u32 %v3095, 16
      %v3254 = vrot.slane %v3252, 5
      %v3255 = vor.u32 %v3251, %v3254
      %v3256 = vrot.slane %v3255, 4
      %v3258 = vshll.u32 %v3096, 16
      %v3260 = vrot.slane %v3258, 5
      %v3261 = vsel %vm941, %v3256, %v3260
      %v3262 = vshrl.u32 %v3096, 16
      %v3264 = vrot.slane %v3262, 4
      %v3265 = vor.u32 %v3264, %v3260
      %v3266 = vrot.slane %v3265, 4
      %v3268 = vshll.u32 %v3097, 16
      %v3270 = vrot.slane %v3268, 5
      %v3271 = vsel %vm941, %v3266, %v3270
      %v3273 = vshrl.u32 %v3098, 16
      %v3275 = vrot.slane %v3273, 4
      %v3276 = vshll.u32 %v3098, 16
      %v3278 = vrot.slane %v3276, 5
      %v3279 = vor.u32 %v3275, %v3278
      %v3280 = vrot.slane %v3279, 4
      %v3282 = vshll.u32 %v3099, 16
      %v3284 = vrot.slane %v3282, 5
      %v3285 = vsel %vm941, %v3280, %v3284
      %v3286 = vshrl.u32 %v3099, 16
      %v3288 = vrot.slane %v3286, 4
      %v3289 = vor.u32 %v3288, %v3284
      %v3290 = vrot.slane %v3289, 4
      %v3292 = vshll.u32 %v3100, 16
      %v3294 = vrot.slane %v3292, 5
      %v3295 = vsel %vm941, %v3290, %v3294
      %v3297 = vshrl.u32 %v3101, 16
      %v3299 = vrot.slane %v3297, 4
      %v3300 = vshll.u32 %v3101, 16
      %v3302 = vrot.slane %v3300, 5
      %v3303 = vor.u32 %v3299, %v3302
      %v3304 = vrot.slane %v3303, 4
      %v3306 = vshll.u32 %v3102, 16
      %v3308 = vrot.slane %v3306, 5
      %v3309 = vsel %vm941, %v3304, %v3308
      %v3310 = vshrl.u32 %v3102, 16
      %v3312 = vrot.slane %v3310, 4
      %v3313 = vor.u32 %v3312, %v3308
      %v3314 = vrot.slane %v3313, 4
      %v3316 = vshll.u32 %v3103, 16
      %v3318 = vrot.slane %v3316, 5
      %v3319 = vsel %vm941, %v3314, %v3318
      %v3321 = vshrl.u32 %v3104, 16
      %v3323 = vrot.slane %v3321, 4
      %v3324 = vshll.u32 %v3104, 16
      %v3326 = vrot.slane %v3324, 5
      %v3327 = vor.u32 %v3323, %v3326
      %v3328 = vrot.slane %v3327, 4
      %v3330 = vshll.u32 %v3105, 16
      %v3332 = vrot.slane %v3330, 5
      %v3333 = vsel %vm941, %v3328, %v3332
      %v3334 = vshrl.u32 %v3105, 16
      %v3336 = vrot.slane %v3334, 4
      %v3337 = vor.u32 %v3336, %v3332
      %v3338 = vrot.slane %v3337, 4
      %v3340 = vshll.u32 %v3106, 16
      %v3342 = vrot.slane %v3340, 5
      %v3343 = vsel %vm941, %v3338, %v3342
      %v3345 = vshrl.u32 %v3107, 16
      %v3347 = vrot.slane %v3345, 4
      %v3348 = vshll.u32 %v3107, 16
      %v3350 = vrot.slane %v3348, 5
      %v3351 = vor.u32 %v3347, %v3350
      %v3352 = vrot.slane %v3351, 4
      %v3354 = vshll.u32 %v3108, 16
      %v3356 = vrot.slane %v3354, 5
      %v3357 = vsel %vm941, %v3352, %v3356
      %v3358 = vshrl.u32 %v3108, 16
      %v3360 = vrot.slane %v3358, 4
      %v3361 = vor.u32 %v3360, %v3356
      %v3362 = vrot.slane %v3361, 4
      %v3364 = vshll.u32 %v3109, 16
      %v3366 = vrot.slane %v3364, 5
      %v3367 = vsel %vm941, %v3362, %v3366
      %v3369 = vshrl.u32 %v3110, 16
      %v3371 = vrot.slane %v3369, 4
      %v3372 = vshll.u32 %v3110, 16
      %v3374 = vrot.slane %v3372, 5
      %v3375 = vor.u32 %v3371, %v3374
      %v3376 = vrot.slane %v3375, 4
      %v3378 = vshll.u32 %v3111, 16
      %v3380 = vrot.slane %v3378, 5
      %v3381 = vsel %vm941, %v3376, %v3380
      %v3382 = vshrl.u32 %v3111, 16
      %v3384 = vrot.slane %v3382, 4
      %v3385 = vor.u32 %v3384, %v3380
      %v3386 = vrot.slane %v3385, 4
      %v3388 = vshll.u32 %v3112, 16
      %v3390 = vrot.slane %v3388, 5
      %v3391 = vsel %vm941, %v3386, %v3390
      %v3393 = vshrl.u32 %v3113, 16
      %v3395 = vrot.slane %v3393, 4
      %v3396 = vshll.u32 %v3113, 16
      %v3398 = vrot.slane %v3396, 5
      %v3399 = vor.u32 %v3395, %v3398
      %v3400 = vrot.slane %v3399, 4
      %v3402 = vshll.u32 %v3114, 16
      %v3404 = vrot.slane %v3402, 5
      %v3405 = vsel %vm941, %v3400, %v3404
      %v3406 = vshrl.u32 %v3114, 16
      %v3408 = vrot.slane %v3406, 4
      %v3409 = vor.u32 %v3408, %v3404
      %v3410 = vrot.slane %v3409, 4
      %v3412 = vshll.u32 %v3115, 16
      %v3414 = vrot.slane %v3412, 5
      %v3415 = vsel %vm941, %v3410, %v3414
      %v3417 = vshrl.u32 %v3116, 16
      %v3419 = vrot.slane %v3417, 4
      %v3420 = vshll.u32 %v3116, 16
      %v3422 = vrot.slane %v3420, 5
      %v3423 = vor.u32 %v3419, %v3422
      %v3424 = vrot.slane %v3423, 4
      %v3426 = vshll.u32 %v3117, 16
      %v3428 = vrot.slane %v3426, 5
      %v3429 = vsel %vm941, %v3424, %v3428
      %v3430 = vshrl.u32 %v3117, 16
      %v3432 = vrot.slane %v3430, 4
      %v3433 = vor.u32 %v3432, %v3428
      %v3434 = vrot.slane %v3433, 4
      %v3436 = vshll.u32 %v3118, 16
      %v3438 = vrot.slane %v3436, 5
      %v3439 = vsel %vm941, %v3434, %v3438
      %v3441 = vshrl.u32 %v3119, 16
      %v3443 = vrot.slane %v3441, 4
      %v3444 = vshll.u32 %v3119, 16
      %v3446 = vrot.slane %v3444, 5
      %v3447 = vor.u32 %v3443, %v3446
      %v3448 = vrot.slane %v3447, 4
      %v3450 = vshll.u32 %v3120, 16
      %v3452 = vrot.slane %v3450, 5
      %v3453 = vsel %vm941, %v3448, %v3452
      %v3454 = vshrl.u32 %v3120, 16
      %v3456 = vrot.slane %v3454, 4
      %v3457 = vor.u32 %v3456, %v3452
      %v3458 = vrot.slane %v3457, 4
      %v3460 = vshll.u32 %v3121, 16
      %v3462 = vrot.slane %v3460, 5
      %v3463 = vsel %vm941, %v3458, %v3462
      %v3465 = vshrl.u32 %v3122, 16
      %v3467 = vrot.slane %v3465, 4
      %v3468 = vshll.u32 %v3122, 16
      %v3470 = vrot.slane %v3468, 5
      %v3471 = vor.u32 %v3467, %v3470
      %v3472 = vrot.slane %v3471, 4
      %v3474 = vshll.u32 %v3123, 16
      %v3476 = vrot.slane %v3474, 5
      %v3477 = vsel %vm941, %v3472, %v3476
      %v3478 = vshrl.u32 %v3123, 16
      %v3480 = vrot.slane %v3478, 4
      %v3481 = vor.u32 %v3480, %v3476
      %v3482 = vrot.slane %v3481, 4
      %v3484 = vshll.u32 %v3124, 16
      %v3486 = vrot.slane %v3484, 5
      %v3487 = vsel %vm941, %v3482, %v3486
      %v3489 = vshrl.u32 %v3125, 16
      %v3491 = vrot.slane %v3489, 4
      %v3492 = vshll.u32 %v3125, 16
      %v3494 = vrot.slane %v3492, 5
      %v3495 = vor.u32 %v3491, %v3494
      %v3496 = vrot.slane %v3495, 4
      %v3498 = vshll.u32 %v3126, 16
      %v3500 = vrot.slane %v3498, 5
      %v3501 = vsel %vm941, %v3496, %v3500
      %v3502 = vshrl.u32 %v3126, 16
      %v3504 = vrot.slane %v3502, 4
      %v3505 = vor.u32 %v3504, %v3500
      %v3506 = vrot.slane %v3505, 4
      %v3508 = vshll.u32 %v3127, 16
      %v3510 = vrot.slane %v3508, 5
      %v3511 = vsel %vm941, %v3506, %v3510
      %3512 = vrot.lane.b32.xlu0 %v3141, 28
      %v3513 = vpop.permute.xlu0 %3512
      %3514 = vrot.lane.b32.xlu0 %v3151, 28
      %v3515 = vpop.permute.xlu0 %3514
      %3516 = vrot.lane.b32.xlu0 %v3165, 28
      %v3517 = vpop.permute.xlu0 %3516
      %3518 = vrot.lane.b32.xlu0 %v3175, 28
      %v3519 = vpop.permute.xlu0 %3518
      %3520 = vrot.lane.b32.xlu0 %v3189, 28
      %v3521 = vpop.permute.xlu0 %3520
      %3522 = vrot.lane.b32.xlu0 %v3199, 28
      %v3523 = vpop.permute.xlu0 %3522
      %3524 = vrot.lane.b32.xlu0 %v3213, 28
      %v3525 = vpop.permute.xlu0 %3524
      %3526 = vrot.lane.b32.xlu0 %v3223, 28
      %v3527 = vpop.permute.xlu0 %3526
      %3528 = vrot.lane.b32.xlu0 %v3237, 28
      %v3529 = vpop.permute.xlu0 %3528
      %3530 = vrot.lane.b32.xlu0 %v3247, 28
      %v3531 = vpop.permute.xlu0 %3530
      %3532 = vrot.lane.b32.xlu0 %v3261, 28
      %v3533 = vpop.permute.xlu0 %3532
      %3534 = vrot.lane.b32.xlu0 %v3271, 28
      %v3535 = vpop.permute.xlu0 %3534
      %3536 = vrot.lane.b32.xlu0 %v3285, 28
      %v3537 = vpop.permute.xlu0 %3536
      %3538 = vrot.lane.b32.xlu0 %v3295, 28
      %v3539 = vpop.permute.xlu0 %3538
      %3540 = vrot.lane.b32.xlu0 %v3309, 28
      %v3541 = vpop.permute.xlu0 %3540
      %3542 = vrot.lane.b32.xlu0 %v3319, 28
      %v3543 = vpop.permute.xlu0 %3542
      %3544 = vrot.lane.b32.xlu0 %v3333, 28
      %v3545 = vpop.permute.xlu0 %3544
      %3546 = vrot.lane.b32.xlu0 %v3343, 28
      %v3547 = vpop.permute.xlu0 %3546
      %3548 = vrot.lane.b32.xlu0 %v3357, 28
      %v3549 = vpop.permute.xlu0 %3548
      %3550 = vrot.lane.b32.xlu0 %v3367, 28
      %v3551 = vpop.permute.xlu0 %3550
      %3552 = vrot.lane.b32.xlu0 %v3381, 28
      %v3553 = vpop.permute.xlu0 %3552
      %3554 = vrot.lane.b32.xlu0 %v3391, 28
      %v3555 = vpop.permute.xlu0 %3554
      %3556 = vrot.lane.b32.xlu0 %v3405, 28
      %v3557 = vpop.permute.xlu0 %3556
      %3558 = vrot.lane.b32.xlu0 %v3415, 28
      %v3559 = vpop.permute.xlu0 %3558
      %3560 = vrot.lane.b32.xlu0 %v3429, 28
      %v3561 = vpop.permute.xlu0 %3560
      %3562 = vrot.lane.b32.xlu0 %v3439, 28
      %v3563 = vpop.permute.xlu0 %3562
      %3564 = vrot.lane.b32.xlu0 %v3453, 28
      %v3565 = vpop.permute.xlu0 %3564
      %3566 = vrot.lane.b32.xlu0 %v3463, 28
      %v3567 = vpop.permute.xlu0 %3566
      %3568 = vrot.lane.b32.xlu0 %v3477, 28
      %v3569 = vpop.permute.xlu0 %3568
      %3570 = vrot.lane.b32.xlu0 %v3487, 28
      %v3571 = vpop.permute.xlu0 %3570
      %3572 = vrot.lane.b32.xlu0 %v3501, 28
      %v3573 = vpop.permute.xlu0 %3572
      %3574 = vrot.lane.b32.xlu0 %v3511, 28
      %v3575 = vpop.permute.xlu0 %3574
      %vm3608 = vcmask 257248
      %3609 = vst.msk [vmem:[#allocation4] sm:$0xf] %vm3608, %v3513
      %3610 = vst.msk [vmem:[#allocation4 + $0x4] sm:$0xf] %vm3608, %v3515
      %3611 = vst.msk [vmem:[#allocation4 + $0x8] sm:$0xf] %vm3608, %v3517
      %3612 = vst.msk [vmem:[#allocation4 + $0xc] sm:$0xf] %vm3608, %v3519
      %3613 = vst.msk [vmem:[#allocation4 + $0x10] sm:$0xf] %vm3608, %v3521
      %3614 = vst.msk [vmem:[#allocation4 + $0x14] sm:$0xf] %vm3608, %v3523
      %3615 = vst.msk [vmem:[#allocation4 + $0x18] sm:$0xf] %vm3608, %v3525
      %3616 = vst.msk [vmem:[#allocation4 + $0x1c] sm:$0xf] %vm3608, %v3527
      %3617 = vst.msk [vmem:[#allocation4 + $0x20] sm:$0xf] %vm3608, %v3529
      %3618 = vst.msk [vmem:[#allocation4 + $0x24] sm:$0xf] %vm3608, %v3531
      %3619 = vst.msk [vmem:[#allocation4 + $0x28] sm:$0xf] %vm3608, %v3533
      %3620 = vst.msk [vmem:[#allocation4 + $0x2c] sm:$0xf] %vm3608, %v3535
      %3621 = vst.msk [vmem:[#allocation4 + $0x30] sm:$0xf] %vm3608, %v3537
      %3622 = vst.msk [vmem:[#allocation4 + $0x34] sm:$0xf] %vm3608, %v3539
      %3623 = vst.msk [vmem:[#allocation4 + $0x38] sm:$0xf] %vm3608, %v3541
      %3624 = vst.msk [vmem:[#allocation4 + $0x3c] sm:$0xf] %vm3608, %v3543
      %3625 = vst.msk [vmem:[#allocation4 + $0x40] sm:$0xf] %vm3608, %v3545
      %3626 = vst.msk [vmem:[#allocation4 + $0x44] sm:$0xf] %vm3608, %v3547
      %3627 = vst.msk [vmem:[#allocation4 + $0x48] sm:$0xf] %vm3608, %v3549
      %3628 = vst.msk [vmem:[#allocation4 + $0x4c] sm:$0xf] %vm3608, %v3551
      %3629 = vst.msk [vmem:[#allocation4 + $0x50] sm:$0xf] %vm3608, %v3553
      %3630 = vst.msk [vmem:[#allocation4 + $0x54] sm:$0xf] %vm3608, %v3555
      %3631 = vst.msk [vmem:[#allocation4 + $0x58] sm:$0xf] %vm3608, %v3557
      %3632 = vst.msk [vmem:[#allocation4 + $0x5c] sm:$0xf] %vm3608, %v3559
      %3633 = vst.msk [vmem:[#allocation4 + $0x60] sm:$0xf] %vm3608, %v3561
      %3634 = vst.msk [vmem:[#allocation4 + $0x64] sm:$0xf] %vm3608, %v3563
      %3635 = vst.msk [vmem:[#allocation4 + $0x68] sm:$0xf] %vm3608, %v3565
      %3636 = vst.msk [vmem:[#allocation4 + $0x6c] sm:$0xf] %vm3608, %v3567
      %3637 = vst.msk [vmem:[#allocation4 + $0x70] sm:$0xf] %vm3608, %v3569
      %3638 = vst.msk [vmem:[#allocation4 + $0x74] sm:$0xf] %vm3608, %v3571
      %3639 = vst.msk [vmem:[#allocation4 + $0x78] sm:$0xf] %vm3608, %v3573
      %3640 = vst.msk [vmem:[#allocation4 + $0x7c] sm:$0xf] %vm3608, %v3575
      %v3641 = vld [vmem:[%s2886] sm:$0xe]
      %v3642 = vld [vmem:[%s2886 + $0x4] sm:$0xf]
      %v3643 = vld [vmem:[%s2886 + $0x8] sm:$0x1]
      %v3644 = vld [vmem:[%s2886 + $0xc] sm:$0xe]
      %v3645 = vld [vmem:[%s2886 + $0x10] sm:$0xf]
      %v3646 = vld [vmem:[%s2886 + $0x14] sm:$0x1]
      %v3647 = vld [vmem:[%s2886 + $0x18] sm:$0xe]
      %v3648 = vld [vmem:[%s2886 + $0x1c] sm:$0xf]
      %v3649 = vld [vmem:[%s2886 + $0x20] sm:$0x1]
      %v3650 = vld [vmem:[%s2886 + $0x24] sm:$0xe]
      %v3651 = vld [vmem:[%s2886 + $0x28] sm:$0xf]
      %v3652 = vld [vmem:[%s2886 + $0x2c] sm:$0x1]
      %v3653 = vld [vmem:[%s2886 + $0x30] sm:$0xe]
      %v3654 = vld [vmem:[%s2886 + $0x34] sm:$0xf]
      %v3655 = vld [vmem:[%s2886 + $0x38] sm:$0x1]
      %v3656 = vld [vmem:[%s2886 + $0x3c] sm:$0xe]
      %v3657 = vld [vmem:[%s2886 + $0x40] sm:$0xf]
      %v3658 = vld [vmem:[%s2886 + $0x44] sm:$0x1]
      %v3659 = vld [vmem:[%s2886 + $0x48] sm:$0xe]
      %v3660 = vld [vmem:[%s2886 + $0x4c] sm:$0xf]
      %v3661 = vld [vmem:[%s2886 + $0x50] sm:$0x1]
      %v3662 = vld [vmem:[%s2886 + $0x54] sm:$0xe]
      %v3663 = vld [vmem:[%s2886 + $0x58] sm:$0xf]
      %v3664 = vld [vmem:[%s2886 + $0x5c] sm:$0x1]
      %v3665 = vld [vmem:[%s2886 + $0x60] sm:$0xe]
      %v3666 = vld [vmem:[%s2886 + $0x64] sm:$0xf]
      %v3667 = vld [vmem:[%s2886 + $0x68] sm:$0x1]
      %v3668 = vld [vmem:[%s2886 + $0x6c] sm:$0xe]
      %v3669 = vld [vmem:[%s2886 + $0x70] sm:$0xf]
      %v3670 = vld [vmem:[%s2886 + $0x74] sm:$0x1]
      %v3671 = vld [vmem:[%s2886 + $0x78] sm:$0xe]
      %v3672 = vld [vmem:[%s2886 + $0x7c] sm:$0xf]
      %v3673 = vld [vmem:[%s2886 + $0x80] sm:$0x1]
      %v3674 = vld [vmem:[%s2886 + $0x84] sm:$0xe]
      %v3675 = vld [vmem:[%s2886 + $0x88] sm:$0xf]
      %v3676 = vld [vmem:[%s2886 + $0x8c] sm:$0x1]
      %v3677 = vld [vmem:[%s2886 + $0x90] sm:$0xe]
      %v3678 = vld [vmem:[%s2886 + $0x94] sm:$0xf]
      %v3679 = vld [vmem:[%s2886 + $0x98] sm:$0x1]
      %v3680 = vld [vmem:[%s2886 + $0x9c] sm:$0xe]
      %v3681 = vld [vmem:[%s2886 + $0xa0] sm:$0xf]
      %v3682 = vld [vmem:[%s2886 + $0xa4] sm:$0x1]
      %v3683 = vld [vmem:[%s2886 + $0xa8] sm:$0xe]
      %v3684 = vld [vmem:[%s2886 + $0xac] sm:$0xf]
      %v3685 = vld [vmem:[%s2886 + $0xb0] sm:$0x1]
      %v3686 = vld [vmem:[%s2886 + $0xb4] sm:$0xe]
      %v3687 = vld [vmem:[%s2886 + $0xb8] sm:$0xf]
      %v3688 = vld [vmem:[%s2886 + $0xbc] sm:$0x1]
      %v3737 = vrot.slane %v3641, 5
      %v3738 = vrot.slane %v3737, 4
      %v3739 = vrot.slane %v3642, 5
      %v3740 = vsel %vm1553, %v3738, %v3739
      %v3741 = vrot.slane %v3739, 4
      %v3742 = vrot.slane %v3643, 5
      %v3743 = vsel %vm1553, %v3741, %v3742
      %v3744 = vrot.slane %v3644, 5
      %v3745 = vrot.slane %v3744, 4
      %v3746 = vrot.slane %v3645, 5
      %v3747 = vsel %vm1553, %v3745, %v3746
      %v3748 = vrot.slane %v3746, 4
      %v3749 = vrot.slane %v3646, 5
      %v3750 = vsel %vm1553, %v3748, %v3749
      %v3751 = vrot.slane %v3647, 5
      %v3752 = vrot.slane %v3751, 4
      %v3753 = vrot.slane %v3648, 5
      %v3754 = vsel %vm1553, %v3752, %v3753
      %v3755 = vrot.slane %v3753, 4
      %v3756 = vrot.slane %v3649, 5
      %v3757 = vsel %vm1553, %v3755, %v3756
      %v3758 = vrot.slane %v3650, 5
      %v3759 = vrot.slane %v3758, 4
      %v3760 = vrot.slane %v3651, 5
      %v3761 = vsel %vm1553, %v3759, %v3760
      %v3762 = vrot.slane %v3760, 4
      %v3763 = vrot.slane %v3652, 5
      %v3764 = vsel %vm1553, %v3762, %v3763
      %v3765 = vrot.slane %v3653, 5
      %v3766 = vrot.slane %v3765, 4
      %v3767 = vrot.slane %v3654, 5
      %v3768 = vsel %vm1553, %v3766, %v3767
      %v3769 = vrot.slane %v3767, 4
      %v3770 = vrot.slane %v3655, 5
      %v3771 = vsel %vm1553, %v3769, %v3770
      %v3772 = vrot.slane %v3656, 5
      %v3773 = vrot.slane %v3772, 4
      %v3774 = vrot.slane %v3657, 5
      %v3775 = vsel %vm1553, %v3773, %v3774
      %v3776 = vrot.slane %v3774, 4
      %v3777 = vrot.slane %v3658, 5
      %v3778 = vsel %vm1553, %v3776, %v3777
      %v3779 = vrot.slane %v3659, 5
      %v3780 = vrot.slane %v3779, 4
      %v3781 = vrot.slane %v3660, 5
      %v3782 = vsel %vm1553, %v3780, %v3781
      %v3783 = vrot.slane %v3781, 4
      %v3784 = vrot.slane %v3661, 5
      %v3785 = vsel %vm1553, %v3783, %v3784
      %v3786 = vrot.slane %v3662, 5
      %v3787 = vrot.slane %v3786, 4
      %v3788 = vrot.slane %v3663, 5
      %v3789 = vsel %vm1553, %v3787, %v3788
      %v3790 = vrot.slane %v3788, 4
      %v3791 = vrot.slane %v3664, 5
      %v3792 = vsel %vm1553, %v3790, %v3791
      %v3793 = vrot.slane %v3665, 5
      %v3794 = vrot.slane %v3793, 4
      %v3795 = vrot.slane %v3666, 5
      %v3796 = vsel %vm1553, %v3794, %v3795
      %v3797 = vrot.slane %v3795, 4
      %v3798 = vrot.slane %v3667, 5
      %v3799 = vsel %vm1553, %v3797, %v3798
      %v3800 = vrot.slane %v3668, 5
      %v3801 = vrot.slane %v3800, 4
      %v3802 = vrot.slane %v3669, 5
      %v3803 = vsel %vm1553, %v3801, %v3802
      %v3804 = vrot.slane %v3802, 4
      %v3805 = vrot.slane %v3670, 5
      %v3806 = vsel %vm1553, %v3804, %v3805
      %v3807 = vrot.slane %v3671, 5
      %v3808 = vrot.slane %v3807, 4
      %v3809 = vrot.slane %v3672, 5
      %v3810 = vsel %vm1553, %v3808, %v3809
      %v3811 = vrot.slane %v3809, 4
      %v3812 = vrot.slane %v3673, 5
      %v3813 = vsel %vm1553, %v3811, %v3812
      %v3814 = vrot.slane %v3674, 5
      %v3815 = vrot.slane %v3814, 4
      %v3816 = vrot.slane %v3675, 5
      %v3817 = vsel %vm1553, %v3815, %v3816
      %v3818 = vrot.slane %v3816, 4
      %v3819 = vrot.slane %v3676, 5
      %v3820 = vsel %vm1553, %v3818, %v3819
      %v3821 = vrot.slane %v3677, 5
      %v3822 = vrot.slane %v3821, 4
      %v3823 = vrot.slane %v3678, 5
      %v3824 = vsel %vm1553, %v3822, %v3823
      %v3825 = vrot.slane %v3823, 4
      %v3826 = vrot.slane %v3679, 5
      %v3827 = vsel %vm1553, %v3825, %v3826
      %v3828 = vrot.slane %v3680, 5
      %v3829 = vrot.slane %v3828, 4
      %v3830 = vrot.slane %v3681, 5
      %v3831 = vsel %vm1553, %v3829, %v3830
      %v3832 = vrot.slane %v3830, 4
      %v3833 = vrot.slane %v3682, 5
      %v3834 = vsel %vm1553, %v3832, %v3833
      %v3835 = vrot.slane %v3683, 5
      %v3836 = vrot.slane %v3835, 4
      %v3837 = vrot.slane %v3684, 5
      %v3838 = vsel %vm1553, %v3836, %v3837
      %v3839 = vrot.slane %v3837, 4
      %v3840 = vrot.slane %v3685, 5
      %v3841 = vsel %vm1553, %v3839, %v3840
      %v3842 = vrot.slane %v3686, 5
      %v3843 = vrot.slane %v3842, 4
      %v3844 = vrot.slane %v3687, 5
      %v3845 = vsel %vm1553, %v3843, %v3844
      %v3846 = vrot.slane %v3844, 4
      %v3847 = vrot.slane %v3688, 5
      %v3848 = vsel %vm1553, %v3846, %v3847
      %3849 = vrot.lane.b32.xlu0 %v3740, 32
      %v3850 = vpop.permute.xlu0 %3849
      %3851 = vrot.lane.b32.xlu0 %v3743, 32
      %v3852 = vpop.permute.xlu0 %3851
      %3853 = vrot.lane.b32.xlu0 %v3747, 32
      %v3854 = vpop.permute.xlu0 %3853
      %3855 = vrot.lane.b32.xlu0 %v3750, 32
      %v3856 = vpop.permute.xlu0 %3855
      %3857 = vrot.lane.b32.xlu0 %v3754, 32
      %v3858 = vpop.permute.xlu0 %3857
      %3859 = vrot.lane.b32.xlu0 %v3757, 32
      %v3860 = vpop.permute.xlu0 %3859
      %3861 = vrot.lane.b32.xlu0 %v3761, 32
      %v3862 = vpop.permute.xlu0 %3861
      %3863 = vrot.lane.b32.xlu0 %v3764, 32
      %v3864 = vpop.permute.xlu0 %3863
      %3865 = vrot.lane.b32.xlu0 %v3768, 32
      %v3866 = vpop.permute.xlu0 %3865
      %3867 = vrot.lane.b32.xlu0 %v3771, 32
      %v3868 = vpop.permute.xlu0 %3867
      %3869 = vrot.lane.b32.xlu0 %v3775, 32
      %v3870 = vpop.permute.xlu0 %3869
      %3871 = vrot.lane.b32.xlu0 %v3778, 32
      %v3872 = vpop.permute.xlu0 %3871
      %3873 = vrot.lane.b32.xlu0 %v3782, 32
      %v3874 = vpop.permute.xlu0 %3873
      %3875 = vrot.lane.b32.xlu0 %v3785, 32
      %v3876 = vpop.permute.xlu0 %3875
      %3877 = vrot.lane.b32.xlu0 %v3789, 32
      %v3878 = vpop.permute.xlu0 %3877
      %3879 = vrot.lane.b32.xlu0 %v3792, 32
      %v3880 = vpop.permute.xlu0 %3879
      %3881 = vrot.lane.b32.xlu0 %v3796, 32
      %v3882 = vpop.permute.xlu0 %3881
      %3883 = vrot.lane.b32.xlu0 %v3799, 32
      %v3884 = vpop.permute.xlu0 %3883
      %3885 = vrot.lane.b32.xlu0 %v3803, 32
      %v3886 = vpop.permute.xlu0 %3885
      %3887 = vrot.lane.b32.xlu0 %v3806, 32
      %v3888 = vpop.permute.xlu0 %3887
      %3889 = vrot.lane.b32.xlu0 %v3810, 32
      %v3890 = vpop.permute.xlu0 %3889
      %3891 = vrot.lane.b32.xlu0 %v3813, 32
      %v3892 = vpop.permute.xlu0 %3891
      %3893 = vrot.lane.b32.xlu0 %v3817, 32
      %v3894 = vpop.permute.xlu0 %3893
      %3895 = vrot.lane.b32.xlu0 %v3820, 32
      %v3896 = vpop.permute.xlu0 %3895
      %3897 = vrot.lane.b32.xlu0 %v3824, 32
      %v3898 = vpop.permute.xlu0 %3897
      %3899 = vrot.lane.b32.xlu0 %v3827, 32
      %v3900 = vpop.permute.xlu0 %3899
      %3901 = vrot.lane.b32.xlu0 %v3831, 32
      %v3902 = vpop.permute.xlu0 %3901
      %3903 = vrot.lane.b32.xlu0 %v3834, 32
      %v3904 = vpop.permute.xlu0 %3903
      %3905 = vrot.lane.b32.xlu0 %v3838, 32
      %v3906 = vpop.permute.xlu0 %3905
      %3907 = vrot.lane.b32.xlu0 %v3841, 32
      %v3908 = vpop.permute.xlu0 %3907
      %3909 = vrot.lane.b32.xlu0 %v3845, 32
      %v3910 = vpop.permute.xlu0 %3909
      %3911 = vrot.lane.b32.xlu0 %v3848, 32
      %v3912 = vpop.permute.xlu0 %3911
      %vm3945 = vcmask 290048
      %3946 = vst.msk [vmem:[#allocation4] sm:$0xf] %vm3945, %v3850
      %3947 = vst.msk [vmem:[#allocation4 + $0x4] sm:$0xf] %vm3945, %v3852
      %3948 = vst.msk [vmem:[#allocation4 + $0x8] sm:$0xf] %vm3945, %v3854
      %3949 = vst.msk [vmem:[#allocation4 + $0xc] sm:$0xf] %vm3945, %v3856
      %3950 = vst.msk [vmem:[#allocation4 + $0x10] sm:$0xf] %vm3945, %v3858
      %3951 = vst.msk [vmem:[#allocation4 + $0x14] sm:$0xf] %vm3945, %v3860
      %3952 = vst.msk [vmem:[#allocation4 + $0x18] sm:$0xf] %vm3945, %v3862
      %3953 = vst.msk [vmem:[#allocation4 + $0x1c] sm:$0xf] %vm3945, %v3864
      %3954 = vst.msk [vmem:[#allocation4 + $0x20] sm:$0xf] %vm3945, %v3866
      %3955 = vst.msk [vmem:[#allocation4 + $0x24] sm:$0xf] %vm3945, %v3868
      %3956 = vst.msk [vmem:[#allocation4 + $0x28] sm:$0xf] %vm3945, %v3870
      %3957 = vst.msk [vmem:[#allocation4 + $0x2c] sm:$0xf] %vm3945, %v3872
      %3958 = vst.msk [vmem:[#allocation4 + $0x30] sm:$0xf] %vm3945, %v3874
      %3959 = vst.msk [vmem:[#allocation4 + $0x34] sm:$0xf] %vm3945, %v3876
      %3960 = vst.msk [vmem:[#allocation4 + $0x38] sm:$0xf] %vm3945, %v3878
      %3961 = vst.msk [vmem:[#allocation4 + $0x3c] sm:$0xf] %vm3945, %v3880
      %3962 = vst.msk [vmem:[#allocation4 + $0x40] sm:$0xf] %vm3945, %v3882
      %3963 = vst.msk [vmem:[#allocation4 + $0x44] sm:$0xf] %vm3945, %v3884
      %3964 = vst.msk [vmem:[#allocation4 + $0x48] sm:$0xf] %vm3945, %v3886
      %3965 = vst.msk [vmem:[#allocation4 + $0x4c] sm:$0xf] %vm3945, %v3888
      %3966 = vst.msk [vmem:[#allocation4 + $0x50] sm:$0xf] %vm3945, %v3890
      %3967 = vst.msk [vmem:[#allocation4 + $0x54] sm:$0xf] %vm3945, %v3892
      %3968 = vst.msk [vmem:[#allocation4 + $0x58] sm:$0xf] %vm3945, %v3894
      %3969 = vst.msk [vmem:[#allocation4 + $0x5c] sm:$0xf] %vm3945, %v3896
      %3970 = vst.msk [vmem:[#allocation4 + $0x60] sm:$0xf] %vm3945, %v3898
      %3971 = vst.msk [vmem:[#allocation4 + $0x64] sm:$0xf] %vm3945, %v3900
      %3972 = vst.msk [vmem:[#allocation4 + $0x68] sm:$0xf] %vm3945, %v3902
      %3973 = vst.msk [vmem:[#allocation4 + $0x6c] sm:$0xf] %vm3945, %v3904
      %3974 = vst.msk [vmem:[#allocation4 + $0x70] sm:$0xf] %vm3945, %v3906
      %3975 = vst.msk [vmem:[#allocation4 + $0x74] sm:$0xf] %vm3945, %v3908
      %3976 = vst.msk [vmem:[#allocation4 + $0x78] sm:$0xf] %vm3945, %v3910
      %3977 = vst.msk [vmem:[#allocation4 + $0x7c] sm:$0xf] %vm3945, %v3912
      %v3978 = vld [vmem:[#allocation4] sm:$0xf]
      %v3979 = vld [vmem:[#allocation4 + $0x4] sm:$0xf]
      %v3980 = vld [vmem:[#allocation4 + $0x8] sm:$0xf]
      %v3981 = vld [vmem:[#allocation4 + $0xc] sm:$0xf]
      %v3982 = vld [vmem:[#allocation4 + $0x10] sm:$0xf]
      %v3983 = vld [vmem:[#allocation4 + $0x14] sm:$0xf]
      %v3984 = vld [vmem:[#allocation4 + $0x18] sm:$0xf]
      %v3985 = vld [vmem:[#allocation4 + $0x1c] sm:$0xf]
      %v3986 = vld [vmem:[#allocation4 + $0x20] sm:$0xf]
      %v3987 = vld [vmem:[#allocation4 + $0x24] sm:$0xf]
      %v3988 = vld [vmem:[#allocation4 + $0x28] sm:$0xf]
      %v3989 = vld [vmem:[#allocation4 + $0x2c] sm:$0xf]
      %v3990 = vld [vmem:[#allocation4 + $0x30] sm:$0xf]
      %v3991 = vld [vmem:[#allocation4 + $0x34] sm:$0xf]
      %v3992 = vld [vmem:[#allocation4 + $0x38] sm:$0xf]
      %v3993 = vld [vmem:[#allocation4 + $0x3c] sm:$0xf]
      %v3994 = vld [vmem:[#allocation4 + $0x40] sm:$0xf]
      %v3995 = vld [vmem:[#allocation4 + $0x44] sm:$0xf]
      %v3996 = vld [vmem:[#allocation4 + $0x48] sm:$0xf]
      %v3997 = vld [vmem:[#allocation4 + $0x4c] sm:$0xf]
      %v3998 = vld [vmem:[#allocation4 + $0x50] sm:$0xf]
      %v3999 = vld [vmem:[#allocation4 + $0x54] sm:$0xf]
      %v4000 = vld [vmem:[#allocation4 + $0x58] sm:$0xf]
      %v4001 = vld [vmem:[#allocation4 + $0x5c] sm:$0xf]
      %v4002 = vld [vmem:[#allocation4 + $0x60] sm:$0xf]
      %v4003 = vld [vmem:[#allocation4 + $0x64] sm:$0xf]
      %v4004 = vld [vmem:[#allocation4 + $0x68] sm:$0xf]
      %v4005 = vld [vmem:[#allocation4 + $0x6c] sm:$0xf]
      %v4006 = vld [vmem:[#allocation4 + $0x70] sm:$0xf]
      %v4007 = vld [vmem:[#allocation4 + $0x74] sm:$0xf]
      %v4008 = vld [vmem:[#allocation4 + $0x78] sm:$0xf]
      %v4009 = vld [vmem:[#allocation4 + $0x7c] sm:$0xf]
      %v4010 = vld [vmem:[%s1] sm:$0xf]
      %v4011 = vld [vmem:[%s1 + $0x4] sm:$0xf]
      %v4012 = vld [vmem:[%s1 + $0x8] sm:$0xf]
      %v4013 = vld [vmem:[%s1 + $0xc] sm:$0xf]
      %v4014 = vld [vmem:[%s1 + $0x10] sm:$0x3]
      %v4047 = vunpack.c.l.b16 %v3978
      %v4048 = vunpack.c.l.b16 %v3979
      %v4049 = vunpack.c.l.b16 %v3980
      %v4050 = vunpack.c.l.b16 %v3981
      %v4051 = vunpack.c.l.b16 %v3982
      %v4052 = vunpack.c.l.b16 %v3983
      %v4053 = vunpack.c.l.b16 %v3984
      %v4054 = vunpack.c.l.b16 %v3985
      %v4055 = vunpack.c.l.b16 %v3986
      %v4056 = vunpack.c.l.b16 %v3987
      %v4057 = vunpack.c.l.b16 %v3988
      %v4058 = vunpack.c.l.b16 %v3989
      %v4059 = vunpack.c.l.b16 %v3990
      %v4060 = vunpack.c.l.b16 %v3991
      %v4061 = vunpack.c.l.b16 %v3992
      %v4062 = vunpack.c.l.b16 %v3993
      %v4063 = vunpack.c.l.b16 %v3994
      %v4064 = vunpack.c.l.b16 %v3995
      %v4065 = vunpack.c.l.b16 %v3996
      %v4066 = vunpack.c.l.b16 %v3997
      %v4067 = vunpack.c.l.b16 %v3998
      %v4068 = vunpack.c.l.b16 %v3999
      %v4069 = vunpack.c.l.b16 %v4000
      %v4070 = vunpack.c.l.b16 %v4001
      %v4071 = vunpack.c.l.b16 %v4002
      %v4072 = vunpack.c.l.b16 %v4003
      %v4073 = vunpack.c.l.b16 %v4004
      %v4074 = vunpack.c.l.b16 %v4005
      %v4075 = vunpack.c.l.b16 %v4006
      %v4076 = vunpack.c.l.b16 %v4007
      %v4077 = vunpack.c.l.b16 %v4008
      %v4078 = vunpack.c.l.b16 %v4009
      %v4079 = vpack.c.b16 %v4048, %v4047
      %v4080 = vpack.c.b16 %v4050, %v4049
      %v4081 = vpack.c.b16 %v4052, %v4051
      %v4082 = vpack.c.b16 %v4054, %v4053
      %v4083 = vpack.c.b16 %v4056, %v4055
      %v4084 = vpack.c.b16 %v4058, %v4057
      %v4085 = vpack.c.b16 %v4060, %v4059
      %v4086 = vpack.c.b16 %v4062, %v4061
      %v4087 = vpack.c.b16 %v4064, %v4063
      %v4088 = vpack.c.b16 %v4066, %v4065
      %v4089 = vpack.c.b16 %v4068, %v4067
      %v4090 = vpack.c.b16 %v4070, %v4069
      %v4091 = vpack.c.b16 %v4072, %v4071
      %v4092 = vpack.c.b16 %v4074, %v4073
      %v4093 = vpack.c.b16 %v4076, %v4075
      %v4094 = vpack.c.b16 %v4078, %v4077
      %v4100 = vunpack.c.l.b16 %v4010
      %v4101 = vunpack.c.l.b16 %v4011
      %v4102 = vunpack.c.l.b16 %v4012
      %v4103 = vunpack.c.l.b16 %v4013
      %v4104 = vunpack.c.l.b16 %v4014
      %v4105 = vpack.c.b16 %v4101, %v4100
      %v4106 = vpack.c.b16 %v4103, %v4102
      %v4107 = vpack.c.b16 %v4104, %v4104
      %vm4110 = vcmask 293888
      %v4112 = vsel %vm4110, %v4079, 0
      %v4115 = vsel %vm4110, %v4080, 0
      %v4118 = vsel %vm4110, %v4081, 0
      %v4121 = vsel %vm4110, %v4082, 0
      %v4124 = vsel %vm4110, %v4083, 0
      %v4127 = vsel %vm4110, %v4084, 0
      %v4130 = vsel %vm4110, %v4085, 0
      %v4133 = vsel %vm4110, %v4086, 0
      %v4136 = vsel %vm4110, %v4087, 0
      %v4139 = vsel %vm4110, %v4088, 0
      %v4142 = vsel %vm4110, %v4089, 0
      %v4145 = vsel %vm4110, %v4090, 0
      %v4148 = vsel %vm4110, %v4091, 0
      %v4151 = vsel %vm4110, %v4092, 0
      %v4154 = vsel %vm4110, %v4093, 0
      %v4157 = vsel %vm4110, %v4094, 0
      %vm4159 = vcmask 1041408
      %v4161 = vsel %vm4159, %v4107, 0
      %4163 = vmatpush.bf16.msra.mxu0 0
      %4164 = vmatpush.bf16.msra.mxu0 0
      %4165 = vmatpush.bf16.msra.mxu0 0
      %4166 = vmatpush.bf16.msra.mxu0 0
      %4167 = vmatpush.bf16.msra.mxu0 0
      %4168 = vmatpush.bf16.msra.mxu0 %v4161
      %4169 = vmatpush.bf16.msra.mxu0 %v4106
      %4170 = vmatpush.bf16.msra.mxu0 %v4105
      %4171 = vmatmul.bf16.gmra.mxu0 %v4112
      %v4172 = vpop.f32.mrf.mxu0
      %v4173 = vadd.f32 0.0, %v4172
      %v4174 = vpop.f32.mrf.mxu0
      %v4175 = vadd.f32 0.0, %v4174
      %4176 = vmatmul.bf16.gmra.mxu0 %v4115
      %v4177 = vpop.f32.mrf.mxu0
      %v4178 = vadd.f32 0.0, %v4177
      %v4179 = vpop.f32.mrf.mxu0
      %v4180 = vadd.f32 0.0, %v4179
      %4181 = vmatmul.bf16.gmra.mxu0 %v4118
      %v4182 = vpop.f32.mrf.mxu0
      %v4183 = vadd.f32 0.0, %v4182
      %v4184 = vpop.f32.mrf.mxu0
      %v4185 = vadd.f32 0.0, %v4184
      %4186 = vmatmul.bf16.gmra.mxu0 %v4121
      %v4187 = vpop.f32.mrf.mxu0
      %v4188 = vadd.f32 0.0, %v4187
      %v4189 = vpop.f32.mrf.mxu0
      %v4190 = vadd.f32 0.0, %v4189
      %4191 = vmatmul.bf16.gmra.mxu0 %v4124
      %v4192 = vpop.f32.mrf.mxu0
      %v4193 = vadd.f32 0.0, %v4192
      %v4194 = vpop.f32.mrf.mxu0
      %v4195 = vadd.f32 0.0, %v4194
      %4196 = vmatmul.bf16.gmra.mxu0 %v4127
      %v4197 = vpop.f32.mrf.mxu0
      %v4198 = vadd.f32 0.0, %v4197
      %v4199 = vpop.f32.mrf.mxu0
      %v4200 = vadd.f32 0.0, %v4199
      %4201 = vmatmul.bf16.gmra.mxu0 %v4130
      %v4202 = vpop.f32.mrf.mxu0
      %v4203 = vadd.f32 0.0, %v4202
      %v4204 = vpop.f32.mrf.mxu0
      %v4205 = vadd.f32 0.0, %v4204
      %4206 = vmatmul.bf16.gmra.mxu0 %v4133
      %v4207 = vpop.f32.mrf.mxu0
      %v4208 = vadd.f32 0.0, %v4207
      %v4209 = vpop.f32.mrf.mxu0
      %v4210 = vadd.f32 0.0, %v4209
      %4211 = vmatmul.bf16.gmra.mxu0 %v4136
      %v4212 = vpop.f32.mrf.mxu0
      %v4213 = vadd.f32 0.0, %v4212
      %v4214 = vpop.f32.mrf.mxu0
      %v4215 = vadd.f32 0.0, %v4214
      %4216 = vmatmul.bf16.gmra.mxu0 %v4139
      %v4217 = vpop.f32.mrf.mxu0
      %v4218 = vadd.f32 0.0, %v4217
      %v4219 = vpop.f32.mrf.mxu0
      %v4220 = vadd.f32 0.0, %v4219
      %4221 = vmatmul.bf16.gmra.mxu0 %v4142
      %v4222 = vpop.f32.mrf.mxu0
      %v4223 = vadd.f32 0.0, %v4222
      %v4224 = vpop.f32.mrf.mxu0
      %v4225 = vadd.f32 0.0, %v4224
      %4226 = vmatmul.bf16.gmra.mxu0 %v4145
      %v4227 = vpop.f32.mrf.mxu0
      %v4228 = vadd.f32 0.0, %v4227
      %v4229 = vpop.f32.mrf.mxu0
      %v4230 = vadd.f32 0.0, %v4229
      %4231 = vmatmul.bf16.gmra.mxu0 %v4148
      %v4232 = vpop.f32.mrf.mxu0
      %v4233 = vadd.f32 0.0, %v4232
      %v4234 = vpop.f32.mrf.mxu0
      %v4235 = vadd.f32 0.0, %v4234
      %4236 = vmatmul.bf16.gmra.mxu0 %v4151
      %v4237 = vpop.f32.mrf.mxu0
      %v4238 = vadd.f32 0.0, %v4237
      %v4239 = vpop.f32.mrf.mxu0
      %v4240 = vadd.f32 0.0, %v4239
      %4241 = vmatmul.bf16.gmra.mxu0 %v4154
      %v4242 = vpop.f32.mrf.mxu0
      %v4243 = vadd.f32 0.0, %v4242
      %v4244 = vpop.f32.mrf.mxu0
      %v4245 = vadd.f32 0.0, %v4244
      %4246 = vmatmul.bf16.gmra.mxu0 %v4157
      %v4247 = vpop.f32.mrf.mxu0
      %v4248 = vadd.f32 0.0, %v4247
      %v4249 = vpop.f32.mrf.mxu0
      %v4250 = vadd.f32 0.0, %v4249
      %4251 = vdwg.mxu0
      %4252 = vst [vmem:[#allocation3] sm:$0xff] %v4173
      %4253 = vst [vmem:[#allocation3 + $0x8] sm:$0xff] %v4175
      %4254 = vst [vmem:[#allocation3 + $0x10] sm:$0xff] %v4178
      %4255 = vst [vmem:[#allocation3 + $0x18] sm:$0xff] %v4180
      %4256 = vst [vmem:[#allocation3 + $0x20] sm:$0xff] %v4183
      %4257 = vst [vmem:[#allocation3 + $0x28] sm:$0xff] %v4185
      %4258 = vst [vmem:[#allocation3 + $0x30] sm:$0xff] %v4188
      %4259 = vst [vmem:[#allocation3 + $0x38] sm:$0xff] %v4190
      %4260 = vst [vmem:[#allocation3 + $0x40] sm:$0xff] %v4193
      %4261 = vst [vmem:[#allocation3 + $0x48] sm:$0xff] %v4195
      %4262 = vst [vmem:[#allocation3 + $0x50] sm:$0xff] %v4198
      %4263 = vst [vmem:[#allocation3 + $0x58] sm:$0xff] %v4200
      %4264 = vst [vmem:[#allocation3 + $0x60] sm:$0xff] %v4203
      %4265 = vst [vmem:[#allocation3 + $0x68] sm:$0xff] %v4205
      %4266 = vst [vmem:[#allocation3 + $0x70] sm:$0xff] %v4208
      %4267 = vst [vmem:[#allocation3 + $0x78] sm:$0xff] %v4210
      %4268 = vst [vmem:[#allocation3 + $0x80] sm:$0xff] %v4213
      %4269 = vst [vmem:[#allocation3 + $0x88] sm:$0xff] %v4215
      %4270 = vst [vmem:[#allocation3 + $0x90] sm:$0xff] %v4218
      %4271 = vst [vmem:[#allocation3 + $0x98] sm:$0xff] %v4220
      %4272 = vst [vmem:[#allocation3 + $0xa0] sm:$0xff] %v4223
      %4273 = vst [vmem:[#allocation3 + $0xa8] sm:$0xff] %v4225
      %4274 = vst [vmem:[#allocation3 + $0xb0] sm:$0xff] %v4228
      %4275 = vst [vmem:[#allocation3 + $0xb8] sm:$0xff] %v4230
      %4276 = vst [vmem:[#allocation3 + $0xc0] sm:$0xff] %v4233
      %4277 = vst [vmem:[#allocation3 + $0xc8] sm:$0xff] %v4235
      %4278 = vst [vmem:[#allocation3 + $0xd0] sm:$0xff] %v4238
      %4279 = vst [vmem:[#allocation3 + $0xd8] sm:$0xff] %v4240
      %4280 = vst [vmem:[#allocation3 + $0xe0] sm:$0xff] %v4243
      %4281 = vst [vmem:[#allocation3 + $0xe8] sm:$0xff] %v4245
      %4282 = vst [vmem:[#allocation3 + $0xf0] sm:$0xff] %v4248
      %4283 = vst [vmem:[#allocation3 + $0xf8] sm:$0xff] %v4250
      %v4284 = vld [vmem:[#allocation3] sm:$0xff]
      %v4285 = vld [vmem:[#allocation3 + $0x8] sm:$0xff]
      %v4286 = vld [vmem:[#allocation3 + $0x10] sm:$0xff]
      %v4287 = vld [vmem:[#allocation3 + $0x18] sm:$0xff]
      %v4288 = vld [vmem:[#allocation3 + $0x20] sm:$0xff]
      %v4289 = vld [vmem:[#allocation3 + $0x28] sm:$0xff]
      %v4290 = vld [vmem:[#allocation3 + $0x30] sm:$0xff]
      %v4291 = vld [vmem:[#allocation3 + $0x38] sm:$0xff]
      %v4292 = vld [vmem:[#allocation3 + $0x40] sm:$0xff]
      %v4293 = vld [vmem:[#allocation3 + $0x48] sm:$0xff]
      %v4294 = vld [vmem:[#allocation3 + $0x50] sm:$0xff]
      %v4295 = vld [vmem:[#allocation3 + $0x58] sm:$0xff]
      %v4296 = vld [vmem:[#allocation3 + $0x60] sm:$0xff]
      %v4297 = vld [vmem:[#allocation3 + $0x68] sm:$0xff]
      %v4298 = vld [vmem:[#allocation3 + $0x70] sm:$0xff]
      %v4299 = vld [vmem:[#allocation3 + $0x78] sm:$0xff]
      %v4300 = vld [vmem:[#allocation3 + $0x80] sm:$0xff]
      %v4301 = vld [vmem:[#allocation3 + $0x88] sm:$0xff]
      %v4302 = vld [vmem:[#allocation3 + $0x90] sm:$0xff]
      %v4303 = vld [vmem:[#allocation3 + $0x98] sm:$0xff]
      %v4304 = vld [vmem:[#allocation3 + $0xa0] sm:$0xff]
      %v4305 = vld [vmem:[#allocation3 + $0xa8] sm:$0xff]
      %v4306 = vld [vmem:[#allocation3 + $0xb0] sm:$0xff]
      %v4307 = vld [vmem:[#allocation3 + $0xb8] sm:$0xff]
      %v4308 = vld [vmem:[#allocation3 + $0xc0] sm:$0xff]
      %v4309 = vld [vmem:[#allocation3 + $0xc8] sm:$0xff]
      %v4310 = vld [vmem:[#allocation3 + $0xd0] sm:$0xff]
      %v4311 = vld [vmem:[#allocation3 + $0xd8] sm:$0xff]
      %v4312 = vld [vmem:[#allocation3 + $0xe0] sm:$0xff]
      %v4313 = vld [vmem:[#allocation3 + $0xe8] sm:$0xff]
      %v4314 = vld [vmem:[#allocation3 + $0xf0] sm:$0xff]
      %v4315 = vld [vmem:[#allocation3 + $0xf8] sm:$0xff]
      %v4316 = vpack.c.bf16 %v4284, %v4284
      %v4317 = vpack.c.bf16 %v4285, %v4285
      %v4318 = vpack.c.bf16 %v4286, %v4286
      %v4319 = vpack.c.bf16 %v4287, %v4287
      %v4320 = vpack.c.bf16 %v4288, %v4288
      %v4321 = vpack.c.bf16 %v4289, %v4289
      %v4322 = vpack.c.bf16 %v4290, %v4290
      %v4323 = vpack.c.bf16 %v4291, %v4291
      %v4324 = vpack.c.bf16 %v4292, %v4292
      %v4325 = vpack.c.bf16 %v4293, %v4293
      %v4326 = vpack.c.bf16 %v4294, %v4294
      %v4327 = vpack.c.bf16 %v4295, %v4295
      %v4328 = vpack.c.bf16 %v4296, %v4296
      %v4329 = vpack.c.bf16 %v4297, %v4297
      %v4330 = vpack.c.bf16 %v4298, %v4298
      %v4331 = vpack.c.bf16 %v4299, %v4299
      %v4332 = vpack.c.bf16 %v4300, %v4300
      %v4333 = vpack.c.bf16 %v4301, %v4301
      %v4334 = vpack.c.bf16 %v4302, %v4302
      %v4335 = vpack.c.bf16 %v4303, %v4303
      %v4336 = vpack.c.bf16 %v4304, %v4304
      %v4337 = vpack.c.bf16 %v4305, %v4305
      %v4338 = vpack.c.bf16 %v4306, %v4306
      %v4339 = vpack.c.bf16 %v4307, %v4307
      %v4340 = vpack.c.bf16 %v4308, %v4308
      %v4341 = vpack.c.bf16 %v4309, %v4309
      %v4342 = vpack.c.bf16 %v4310, %v4310
      %v4343 = vpack.c.bf16 %v4311, %v4311
      %v4344 = vpack.c.bf16 %v4312, %v4312
      %v4345 = vpack.c.bf16 %v4313, %v4313
      %v4346 = vpack.c.bf16 %v4314, %v4314
      %v4347 = vpack.c.bf16 %v4315, %v4315
      %4348 = vst [vmem:[%s208] sm:$0xf] %v4316
      %4349 = vst [vmem:[%s208 + $0x4] sm:$0xf] %v4317
      %4350 = vst [vmem:[%s208 + $0x8] sm:$0xf] %v4318
      %4351 = vst [vmem:[%s208 + $0xc] sm:$0xf] %v4319
      %4352 = vst [vmem:[%s208 + $0x10] sm:$0xf] %v4320
      %4353 = vst [vmem:[%s208 + $0x14] sm:$0xf] %v4321
      %4354 = vst [vmem:[%s208 + $0x18] sm:$0xf] %v4322
      %4355 = vst [vmem:[%s208 + $0x1c] sm:$0xf] %v4323
      %4356 = vst [vmem:[%s208 + $0x20] sm:$0xf] %v4324
      %4357 = vst [vmem:[%s208 + $0x24] sm:$0xf] %v4325
      %4358 = vst [vmem:[%s208 + $0x28] sm:$0xf] %v4326
      %4359 = vst [vmem:[%s208 + $0x2c] sm:$0xf] %v4327
      %4360 = vst [vmem:[%s208 + $0x30] sm:$0xf] %v4328
      %4361 = vst [vmem:[%s208 + $0x34] sm:$0xf] %v4329
      %4362 = vst [vmem:[%s208 + $0x38] sm:$0xf] %v4330
      %4363 = vst [vmem:[%s208 + $0x3c] sm:$0xf] %v4331
      %4364 = vst [vmem:[%s208 + $0x40] sm:$0xf] %v4332
      %4365 = vst [vmem:[%s208 + $0x44] sm:$0xf] %v4333
      %4366 = vst [vmem:[%s208 + $0x48] sm:$0xf] %v4334
      %4367 = vst [vmem:[%s208 + $0x4c] sm:$0xf] %v4335
      %4368 = vst [vmem:[%s208 + $0x50] sm:$0xf] %v4336
      %4369 = vst [vmem:[%s208 + $0x54] sm:$0xf] %v4337
      %4370 = vst [vmem:[%s208 + $0x58] sm:$0xf] %v4338
      %4371 = vst [vmem:[%s208 + $0x5c] sm:$0xf] %v4339
      %4372 = vst [vmem:[%s208 + $0x60] sm:$0xf] %v4340
      %4373 = vst [vmem:[%s208 + $0x64] sm:$0xf] %v4341
      %4374 = vst [vmem:[%s208 + $0x68] sm:$0xf] %v4342
      %4375 = vst [vmem:[%s208 + $0x6c] sm:$0xf] %v4343
      %4376 = vst [vmem:[%s208 + $0x70] sm:$0xf] %v4344
      %4377 = vst [vmem:[%s208 + $0x74] sm:$0xf] %v4345
      %4378 = vst [vmem:[%s208 + $0x78] sm:$0xf] %v4346
      %4379 = vst [vmem:[%s208 + $0x7c] sm:$0xf] %v4347
      %v4380 = vadd.f32 %v4284, %v4285
      %v4381 = vadd.f32 %v4380, %v4286
      %v4382 = vadd.f32 %v4381, %v4287
      %v4383 = vadd.f32 %v4382, %v4288
      %v4384 = vadd.f32 %v4383, %v4289
      %v4385 = vadd.f32 %v4384, %v4290
      %v4386 = vadd.f32 %v4385, %v4291
      %v4387 = vadd.f32 %v4386, %v4292
      %v4388 = vadd.f32 %v4387, %v4293
      %v4389 = vadd.f32 %v4388, %v4294
      %v4390 = vadd.f32 %v4389, %v4295
      %v4391 = vadd.f32 %v4390, %v4296
      %v4392 = vadd.f32 %v4391, %v4297
      %v4393 = vadd.f32 %v4392, %v4298
      %v4394 = vadd.f32 %v4393, %v4299
      %v4395 = vadd.f32 %v4394, %v4300
      %v4396 = vadd.f32 %v4395, %v4301
      %v4397 = vadd.f32 %v4396, %v4302
      %v4398 = vadd.f32 %v4397, %v4303
      %v4399 = vadd.f32 %v4398, %v4304
      %v4400 = vadd.f32 %v4399, %v4305
      %v4401 = vadd.f32 %v4400, %v4306
      %v4402 = vadd.f32 %v4401, %v4307
      %v4403 = vadd.f32 %v4402, %v4308
      %v4404 = vadd.f32 %v4403, %v4309
      %v4405 = vadd.f32 %v4404, %v4310
      %v4406 = vadd.f32 %v4405, %v4311
      %v4407 = vadd.f32 %v4406, %v4312
      %v4408 = vadd.f32 %v4407, %v4313
      %v4409 = vadd.f32 %v4408, %v4314
      %v4410 = vadd.f32 %v4409, %v4315
      %v4411 = vrot.slane %v4410, 4
      %v4412 = vadd.f32 %v4410, %v4411
      %v4413 = vrot.slane %v4412, 2
      %v4414 = vadd.f32 %v4412, %v4413
      %v4415 = vrot.slane %v4414, 1
      %v4416 = vadd.f32 %v4414, %v4415
      %4417 = vst [vmem:[%s211] sm:$0x1] %v4416
      %v4418 = vmul.f32 %v4284, %v4284
      %v4419 = vmul.f32 %v4285, %v4285
      %v4420 = vmul.f32 %v4286, %v4286
      %v4421 = vmul.f32 %v4287, %v4287
      %v4422 = vmul.f32 %v4288, %v4288
      %v4423 = vmul.f32 %v4289, %v4289
      %v4424 = vmul.f32 %v4290, %v4290
      %v4425 = vmul.f32 %v4291, %v4291
      %v4426 = vmul.f32 %v4292, %v4292
      %v4427 = vmul.f32 %v4293, %v4293
      %v4428 = vmul.f32 %v4294, %v4294
      %v4429 = vmul.f32 %v4295, %v4295
      %v4430 = vmul.f32 %v4296, %v4296
      %v4431 = vmul.f32 %v4297, %v4297
      %v4432 = vmul.f32 %v4298, %v4298
      %v4433 = vmul.f32 %v4299, %v4299
      %v4434 = vmul.f32 %v4300, %v4300
      %v4435 = vmul.f32 %v4301, %v4301
      %v4436 = vmul.f32 %v4302, %v4302
      %v4437 = vmul.f32 %v4303, %v4303
      %v4438 = vmul.f32 %v4304, %v4304
      %v4439 = vmul.f32 %v4305, %v4305
      %v4440 = vmul.f32 %v4306, %v4306
      %v4441 = vmul.f32 %v4307, %v4307
      %v4442 = vmul.f32 %v4308, %v4308
      %v4443 = vmul.f32 %v4309, %v4309
      %v4444 = vmul.f32 %v4310, %v4310
      %v4445 = vmul.f32 %v4311, %v4311
      %v4446 = vmul.f32 %v4312, %v4312
      %v4447 = vmul.f32 %v4313, %v4313
      %v4448 = vmul.f32 %v4314, %v4314
      %v4449 = vmul.f32 %v4315, %v4315
      %v4450 = vadd.f32 %v4418, %v4419
      %v4451 = vadd.f32 %v4450, %v4420
      %v4452 = vadd.f32 %v4451, %v4421
      %v4453 = vadd.f32 %v4452, %v4422
      %v4454 = vadd.f32 %v4453, %v4423
      %v4455 = vadd.f32 %v4454, %v4424
      %v4456 = vadd.f32 %v4455, %v4425
      %v4457 = vadd.f32 %v4456, %v4426
      %v4458 = vadd.f32 %v4457, %v4427
      %v4459 = vadd.f32 %v4458, %v4428
      %v4460 = vadd.f32 %v4459, %v4429
      %v4461 = vadd.f32 %v4460, %v4430
      %v4462 = vadd.f32 %v4461, %v4431
      %v4463 = vadd.f32 %v4462, %v4432
      %v4464 = vadd.f32 %v4463, %v4433
      %v4465 = vadd.f32 %v4464, %v4434
      %v4466 = vadd.f32 %v4465, %v4435
      %v4467 = vadd.f32 %v4466, %v4436
      %v4468 = vadd.f32 %v4467, %v4437
      %v4469 = vadd.f32 %v4468, %v4438
      %v4470 = vadd.f32 %v4469, %v4439
      %v4471 = vadd.f32 %v4470, %v4440
      %v4472 = vadd.f32 %v4471, %v4441
      %v4473 = vadd.f32 %v4472, %v4442
      %v4474 = vadd.f32 %v4473, %v4443
      %v4475 = vadd.f32 %v4474, %v4444
      %v4476 = vadd.f32 %v4475, %v4445
      %v4477 = vadd.f32 %v4476, %v4446
      %v4478 = vadd.f32 %v4477, %v4447
      %v4479 = vadd.f32 %v4478, %v4448
      %v4480 = vadd.f32 %v4479, %v4449
      %v4481 = vrot.slane %v4480, 4
      %v4482 = vadd.f32 %v4480, %v4481
      %v4483 = vrot.slane %v4482, 2
      %v4484 = vadd.f32 %v4482, %v4483
      %v4485 = vrot.slane %v4484, 1
      %v4486 = vadd.f32 %v4484, %v4485
      %4487 = vst [vmem:[%s214] sm:$0x1] %v4486
      %p4488 = scmp.lt.s32.totalorder %s16, 1
      %s4489 = scalar_select %p4488, %s16, 1
      %s4490 = smul.addr %s4489, 32
      %s4491 = smul.addr %s4490, 4
      %s4492 = scalar_lea.vmem %s2, %s4491
      %p4493 = scmp.lt.s32.totalorder %s16, 1
      %s4494 = scalar_select %p4493, %s16, 1
      %s4495 = scalar_lea.vmem %s3, %s4494
      %p4496 = scmp.lt.s32.totalorder %s16, 1
      %s4497 = scalar_select %p4496, %s16, 1
      %s4498 = scalar_lea.vmem %s4, %s4497
      // Predicated region
      $region29: #{conv_block.3} parent=27 // pred_check
        %p4499 = pneg %p81
      $region30: #{conv_block.3} parent=27 // pred_check_branch
        %4501 = sbr.rel (%p4499) target = $region32
      $region31: #{conv_block.3} parent=27 // pred_region
        _
      $region32: #{conv_block.3} parent=27 // pred_fallthru
        _
      // Predicated region
      $region33: #{conv_block.3} parent=27 // pred_check
        %p4502 = pneg %p107
      $region34: #{conv_block.3} parent=27 // pred_check_branch
        %4504 = sbr.rel (%p4502) target = $region36
      $region35: #{conv_block.3} parent=27 // pred_region
        _
      $region36: #{conv_block.3} parent=27 // pred_fallthru
        _
      // Predicated region
      $region37: #{conv_block.3} parent=27 // pred_check
        %p4505 = pneg %p133
      $region38: #{conv_block.3} parent=27 // pred_check_branch
        %4507 = sbr.rel (%p4505) target = $region40
      $region39: #{conv_block.3} parent=27 // pred_region
        _
      $region40: #{conv_block.3} parent=27 // pred_fallthru
        _
    $region28: #{conv_block.3} parent=5 // pred_fallthru
      _
    %p4508 = scmp.le.s32.totalorder 2, %s11
    // Predicated region
    $region41: #{conv_block.3} parent=5 // pred_check
      %p4509 = pneg %p4508
    $region42: #{conv_block.3} parent=5 // pred_check_branch
      %4511 = sbr.rel (%p4509) target = $region44
    $region43: #{conv_block.3} parent=5 // pred_region
      %s4512 = ssub.s32 %s11, 2
      // Predicated region
      $region45: #{conv_block.3} parent=43 // pred_check
        %p4513 = pneg %p87
      $region46: #{conv_block.3} parent=43 // pred_check_branch
        %4515 = sbr.rel (%p4513) target = $region48
      $region47: #{conv_block.3} parent=43 // pred_region
        %p4516 = scmp.lt.s32.totalorder %s17, 1
        %s4517 = scalar_select %p4516, %s17, 1
        %s4518 = smul.addr %s4517, 32
        %s4519 = smul.addr %s4518, 4
        %s4520 = scalar_lea.vmem %s2, %s4519
      $region48: #{conv_block.3} parent=43 // pred_fallthru
        _
      // Predicated region
      $region49: #{conv_block.3} parent=43 // pred_check
        %p4521 = pneg %p113
      $region50: #{conv_block.3} parent=43 // pred_check_branch
        %4523 = sbr.rel (%p4521) target = $region52
      $region51: #{conv_block.3} parent=43 // pred_region
        %p4524 = scmp.lt.s32.totalorder %s17, 1
        %s4525 = scalar_select %p4524, %s17, 1
        %s4526 = scalar_lea.vmem %s3, %s4525
      $region52: #{conv_block.3} parent=43 // pred_fallthru
        _
      // Predicated region
      $region53: #{conv_block.3} parent=43 // pred_check
        %p4527 = pneg %p139
      $region54: #{conv_block.3} parent=43 // pred_check_branch
        %4529 = sbr.rel (%p4527) target = $region56
      $region55: #{conv_block.3} parent=43 // pred_region
        %p4530 = scmp.lt.s32.totalorder %s17, 1
        %s4531 = scalar_select %p4530, %s17, 1
        %s4532 = scalar_lea.vmem %s4, %s4531
      $region56: #{conv_block.3} parent=43 // pred_fallthru
        _
    $region44: #{conv_block.3} parent=5 // pred_fallthru
      _
  $region6: #{conv_block.3} parent=0 // loop_footer
    %s15 = sadd.s32 1, %s11
  $region7: #{conv_block.3} parent=0 // loop_footer_branch
    %10 = sbr.rel target = $region3
  $region8: #{conv_block.3} parent=0 // loop_exit
    _

// kernel: conv_block.4
$region0: #{conv_block.4}
  #allocation0 [shape = 'u32[]', space=smem, size = 0x4, offset = 0x4, fixed_abs, tag = 'smem constant byte address 0x4 - core index']
  #allocation1 [shape = 'u32[72,128]{1,0:T(1,128)}', space=vmem, size = 0x9000, scoped, tag = 'internal scratch']
  #allocation2 [shape = 'bf16[18,18,128]{2,1,0:T(8,128)(2,1)}', space=vmem, size = 0x1b000, scoped, tag = 'scratch operand']
  #allocation3 [shape = 'f32[256,128]{1,0:T(8,128)}', space=vmem, size = 0x20000, scoped, tag = 'scratch operand']
  %s0 = inlined_call_operand.vmem [shape: bf16[2,256,128], index: 0, kind: input, shape index: {}]
  %s1 = inlined_call_operand.vmem [shape: f32[1,128], index: 1, kind: input, shape index: {}]
  %s2 = inlined_call_operand.vmem [shape: f32[1,128], index: 2, kind: input, shape index: {}]
  %s3 = inlined_call_operand.vmem [shape: bf16[1152,128], index: 3, kind: input, shape index: {}]
  %s4 = inlined_call_operand.vmem [shape: bf16[2,256,128], index: 4, kind: output, shape index: {0}]
  %s5 = inlined_call_operand.vmem [shape: f32[2,1,128], index: 5, kind: output, shape index: {1}]
  %s6 = inlined_call_operand.vmem [shape: f32[2,1,128], index: 6, kind: output, shape index: {2}]
  %7 = xla_tuple %s4, %s5, %s6
  %s8 = sld [smem:[#allocation0]]
  $region65: #{conv_block.4} parent=0
    _
  %s10 = ssub.s32 1, %s8
  %s11 = scalar_select 0, %s10, %s8
  loop: start=0, step=1, limit=4
  $region2: #{conv_block.4} parent=0 // loop_pre_header
    _
  $region3: #{conv_block.4} parent=0 // loop_header
    %s13 = sphi 0, %s17
    %p14 = scmp.ge.s32.totalorder %s13, 4
    %s23 = sphi 0, %s25
    %s26 = sphi 0, %s23
    %s27 = sphi 0, %s26
    %s43 = sphi 0, %s27
    %s47 = sphi 0, %s47
    %s49 = sphi 0, %s47
    %s50 = sphi 0, %s49
    %s64 = sphi 0, %s50
    %s68 = sphi 0, %s68
    %s70 = sphi 0, %s68
    %s71 = sphi 0, %s70
    %s85 = sphi 0, %s71
    %s89 = sphi 0, %s89
    %s91 = sphi 0, %s89
    %s92 = sphi 0, %s91
    %s106 = sphi 0, %s92
    %s112 = sphi 0, %s114
    %s115 = sphi 0, %s112
    %s116 = sphi 0, %s115
    %s132 = sphi 0, %s116
    %s138 = sphi 0, %s140
    %s141 = sphi 0, %s138
    %s142 = sphi 0, %s141
    %s158 = sphi 0, %s142
    %s164 = sphi 0, %s166
    %s167 = sphi 0, %s164
    %s168 = sphi 0, %s167
    %s184 = sphi 0, %s168
  $region4: #{conv_block.4} parent=0 // loop_header_branch
    %16 = sbr.rel (%p14) target = $region8
  $region5: #{conv_block.4} parent=0 // loop_body
    %s18 = ssub.s32 %s13, 1
    %s19 = ssub.s32 %s13, 2
    %s20 = sadd.s32 %s13, 1
    %s21 = ssub.s32 %s13, %s20
    %p22 = scmp.eq.s32.totalorder %s21, 0
    %s24 = sadd.s32 %s23, 1
    %s25 = scalar_select %p22, %s23, %s24
    %p28 = pneg %p22
    %p29 = scmp.eq.s32.totalorder %s13, 1
    %p30 = por %p28, %p29
    %p31 = scmp.ne.s32.totalorder %s23, %s26
    %p32 = scmp.eq.s32.totalorder %s13, 0
    %p33 = por %p31, %p32
    %p34 = scmp.ne.s32.totalorder %s23, %s26
    %p35 = scmp.eq.s32.totalorder %s18, 1
    %p36 = por %p34, %p35
    %p37 = scmp.ne.s32.totalorder %s26, %s27
    %p38 = scmp.eq.s32.totalorder %s18, 0
    %p39 = por %p37, %p38
    %p40 = scmp.ne.s32.totalorder %s26, %s27
    %p41 = scmp.eq.s32.totalorder %s19, 1
    %p42 = por %p40, %p41
    %p44 = scmp.ne.s32.totalorder %s27, %s43
    %p45 = scmp.eq.s32.totalorder %s19, 0
    %p46 = por %p44, %p45
    %s48 = sadd.s32 %s47, 1
    %p51 = scmp.eq.s32.totalorder %s13, 1
    %p52 = scmp.ne.s32.totalorder %s47, %s49
    %p53 = scmp.eq.s32.totalorder %s13, 0
    %p54 = por %p52, %p53
    %p55 = scmp.ne.s32.totalorder %s47, %s49
    %p56 = scmp.eq.s32.totalorder %s18, 1
    %p57 = por %p55, %p56
    %p58 = scmp.ne.s32.totalorder %s49, %s50
    %p59 = scmp.eq.s32.totalorder %s18, 0
    %p60 = por %p58, %p59
    %p61 = scmp.ne.s32.totalorder %s49, %s50
    %p62 = scmp.eq.s32.totalorder %s19, 1
    %p63 = por %p61, %p62
    %p65 = scmp.ne.s32.totalorder %s50, %s64
    %p66 = scmp.eq.s32.totalorder %s19, 0
    %p67 = por %p65, %p66
    %s69 = sadd.s32 %s68, 1
    %p72 = scmp.eq.s32.totalorder %s13, 1
    %p73 = scmp.ne.s32.totalorder %s68, %s70
    %p74 = scmp.eq.s32.totalorder %s13, 0
    %p75 = por %p73, %p74
    %p76 = scmp.ne.s32.totalorder %s68, %s70
    %p77 = scmp.eq.s32.totalorder %s18, 1
    %p78 = por %p76, %p77
    %p79 = scmp.ne.s32.totalorder %s70, %s71
    %p80 = scmp.eq.s32.totalorder %s18, 0
    %p81 = por %p79, %p80
    %p82 = scmp.ne.s32.totalorder %s70, %s71
    %p83 = scmp.eq.s32.totalorder %s19, 1
    %p84 = por %p82, %p83
    %p86 = scmp.ne.s32.totalorder %s71, %s85
    %p87 = scmp.eq.s32.totalorder %s19, 0
    %p88 = por %p86, %p87
    %s90 = sadd.s32 %s89, 1
    %p93 = scmp.eq.s32.totalorder %s13, 1
    %p94 = scmp.ne.s32.totalorder %s89, %s91
    %p95 = scmp.eq.s32.totalorder %s13, 0
    %p96 = por %p94, %p95
    %p97 = scmp.ne.s32.totalorder %s89, %s91
    %p98 = scmp.eq.s32.totalorder %s18, 1
    %p99 = por %p97, %p98
    %p100 = scmp.ne.s32.totalorder %s91, %s92
    %p101 = scmp.eq.s32.totalorder %s18, 0
    %p102 = por %p100, %p101
    %p103 = scmp.ne.s32.totalorder %s91, %s92
    %p104 = scmp.eq.s32.totalorder %s19, 1
    %p105 = por %p103, %p104
    %p107 = scmp.ne.s32.totalorder %s92, %s106
    %p108 = scmp.eq.s32.totalorder %s19, 0
    %p109 = por %p107, %p108
    %s110 = ssub.s32 %s13, %s20
    %p111 = scmp.eq.s32.totalorder %s110, 0
    %s113 = sadd.s32 %s112, 1
    %s114 = scalar_select %p111, %s112, %s113
    %p117 = pneg %p111
    %p118 = scmp.eq.s32.totalorder %s13, 1
    %p119 = por %p117, %p118
    %p120 = scmp.ne.s32.totalorder %s112, %s115
    %p121 = scmp.eq.s32.totalorder %s13, 0
    %p122 = por %p120, %p121
    %p123 = scmp.ne.s32.totalorder %s112, %s115
    %p124 = scmp.eq.s32.totalorder %s18, 1
    %p125 = por %p123, %p124
    %p126 = scmp.ne.s32.totalorder %s115, %s116
    %p127 = scmp.eq.s32.totalorder %s18, 0
    %p128 = por %p126, %p127
    %p129 = scmp.ne.s32.totalorder %s115, %s116
    %p130 = scmp.eq.s32.totalorder %s19, 1
    %p131 = por %p129, %p130
    %p133 = scmp.ne.s32.totalorder %s116, %s132
    %p134 = scmp.eq.s32.totalorder %s19, 0
    %p135 = por %p133, %p134
    %s136 = ssub.s32 %s13, %s20
    %p137 = scmp.eq.s32.totalorder %s136, 0
    %s139 = sadd.s32 %s138, 1
    %s140 = scalar_select %p137, %s138, %s139
    %p143 = pneg %p137
    %p144 = scmp.eq.s32.totalorder %s13, 1
    %p145 = por %p143, %p144
    %p146 = scmp.ne.s32.totalorder %s138, %s141
    %p147 = scmp.eq.s32.totalorder %s13, 0
    %p148 = por %p146, %p147
    %p149 = scmp.ne.s32.totalorder %s138, %s141
    %p150 = scmp.eq.s32.totalorder %s18, 1
    %p151 = por %p149, %p150
    %p152 = scmp.ne.s32.totalorder %s141, %s142
    %p153 = scmp.eq.s32.totalorder %s18, 0
    %p154 = por %p152, %p153
    %p155 = scmp.ne.s32.totalorder %s141, %s142
    %p156 = scmp.eq.s32.totalorder %s19, 1
    %p157 = por %p155, %p156
    %p159 = scmp.ne.s32.totalorder %s142, %s158
    %p160 = scmp.eq.s32.totalorder %s19, 0
    %p161 = por %p159, %p160
    %s162 = ssub.s32 %s13, %s20
    %p163 = scmp.eq.s32.totalorder %s162, 0
    %s165 = sadd.s32 %s164, 1
    %s166 = scalar_select %p163, %s164, %s165
    %p169 = pneg %p163
    %p170 = scmp.eq.s32.totalorder %s13, 1
    %p171 = por %p169, %p170
    %p172 = scmp.ne.s32.totalorder %s164, %s167
    %p173 = scmp.eq.s32.totalorder %s13, 0
    %p174 = por %p172, %p173
    %p175 = scmp.ne.s32.totalorder %s164, %s167
    %p176 = scmp.eq.s32.totalorder %s18, 1
    %p177 = por %p175, %p176
    %p178 = scmp.ne.s32.totalorder %s167, %s168
    %p179 = scmp.eq.s32.totalorder %s18, 0
    %p180 = por %p178, %p179
    %p181 = scmp.ne.s32.totalorder %s167, %s168
    %p182 = scmp.eq.s32.totalorder %s19, 1
    %p183 = por %p181, %p182
    %p185 = scmp.ne.s32.totalorder %s168, %s184
    %p186 = scmp.eq.s32.totalorder %s19, 0
    %p187 = por %p185, %p186
    %p188 = scmp.le.s32.totalorder 1, %s13
    %p189 = scmp.lt.s32.totalorder %s13, 3
    %p190 = pnand %p188, %p189
    %p191 = pneg %p190
    // Predicated region
    $region9: #{conv_block.4} parent=5 // pred_check
      _
    $region10: #{conv_block.4} parent=5 // pred_check_branch
      %193 = sbr.rel (%p190) target = $region12
    $region11: #{conv_block.4} parent=5 // pred_region
      %s194 = ssub.s32 %s13, 1
      // Predicated region
      $region13: #{conv_block.4} parent=11 // pred_check
        %p195 = pneg %p60
      $region14: #{conv_block.4} parent=11 // pred_check_branch
        %197 = sbr.rel (%p195) target = $region16
      $region15: #{conv_block.4} parent=11 // pred_region
        _
      $region16: #{conv_block.4} parent=11 // pred_fallthru
        _
      // Predicated region
      $region17: #{conv_block.4} parent=11 // pred_check
        %p198 = pneg %p81
      $region18: #{conv_block.4} parent=11 // pred_check_branch
        %200 = sbr.rel (%p198) target = $region20
      $region19: #{conv_block.4} parent=11 // pred_region
        _
      $region20: #{conv_block.4} parent=11 // pred_fallthru
        _
      // Predicated region
      $region21: #{conv_block.4} parent=11 // pred_check
        %p201 = pneg %p102
      $region22: #{conv_block.4} parent=11 // pred_check_branch
        %203 = sbr.rel (%p201) target = $region24
      $region23: #{conv_block.4} parent=11 // pred_region
        _
      $region24: #{conv_block.4} parent=11 // pred_fallthru
        _
    $region12: #{conv_block.4} parent=5 // pred_fallthru
      _
    %p204 = scmp.lt.s32.totalorder %s13, 2
    // Predicated region
    $region25: #{conv_block.4} parent=5 // pred_check
      %p205 = pneg %p204
    $region26: #{conv_block.4} parent=5 // pred_check_branch
      %207 = sbr.rel (%p205) target = $region28
    $region27: #{conv_block.4} parent=5 // pred_region
      // Predicated region
      $region29: #{conv_block.4} parent=27 // pred_check
        %p208 = pneg %p33
      $region30: #{conv_block.4} parent=27 // pred_check_branch
        %210 = sbr.rel (%p208) target = $region32
      $region31: #{conv_block.4} parent=27 // pred_region
        %p211 = scmp.lt.s32.totalorder %s13, 1
        %s212 = scalar_select %p211, %s13, 1
        %s213 = smul.addr %s212, 32
        %s214 = smul.addr %s213, 4
        %s215 = scalar_lea.vmem %s0, %s214
      $region32: #{conv_block.4} parent=27 // pred_fallthru
        _
    $region28: #{conv_block.4} parent=5 // pred_fallthru
      _
    %p216 = scmp.le.s32.totalorder 1, %s13
    %p217 = scmp.lt.s32.totalorder %s13, 3
    %p218 = pnand %p216, %p217
    %p219 = pneg %p218
    // Predicated region
    $region33: #{conv_block.4} parent=5 // pred_check
      _
    $region34: #{conv_block.4} parent=5 // pred_check_branch
      %221 = sbr.rel (%p218) target = $region36
    $region35: #{conv_block.4} parent=5 // pred_region
      %s222 = ssub.s32 %s13, 1
      %p223 = scmp.lt.s32.totalorder %s18, 1
      %s224 = scalar_select %p223, %s18, 1
      %s225 = smul.addr %s224, 32
      %s226 = smul.addr %s225, 4
      %s227 = scalar_lea.vmem %s0, %s226
      %p228 = pneg %p39
      %p229 = pneg %p36
      %p230 = pneg %p60
      %p231 = pneg %p57
      %p232 = pneg %p81
      %p233 = pneg %p78
      %p234 = pneg %p102
      %p235 = pneg %p99
      %p236 = pneg %p128
      %p237 = pneg %p125
      %p238 = scmp.lt.s32.totalorder %s18, 1
      %s239 = scalar_select %p238, %s18, 1
      %s240 = smul.addr %s239, 32
      %s241 = smul.addr %s240, 4
      %s242 = scalar_lea.vmem %s4, %s241
      %p243 = pneg %p154
      %p244 = pneg %p151
      %p245 = scmp.lt.s32.totalorder %s18, 1
      %s246 = scalar_select %p245, %s18, 1
      %s247 = scalar_lea.vmem %s5, %s246
      %p248 = pneg %p180
      %p249 = pneg %p177
      %p250 = scmp.lt.s32.totalorder %s18, 1
      %s251 = scalar_select %p250, %s18, 1
      %s252 = scalar_lea.vmem %s6, %s251
      %p253 = scmp.lt.s32.totalorder %s18, 1
      %s254 = scalar_select %p253, %s18, 1
      %s255 = smul.addr %s254, 32
      %s256 = smul.addr %s255, 4
      %s257 = scalar_lea.vmem %s0, %s256
      %p258 = scmp.lt.s32.totalorder %s18, 1
      %s259 = scalar_select %p258, %s18, 1
      %s260 = smul.addr %s259, 32
      %s261 = smul.addr %s260, 4
      %s262 = scalar_lea.vmem %s4, %s261
      %p263 = scmp.lt.s32.totalorder %s18, 1
      %s264 = scalar_select %p263, %s18, 1
      %s265 = scalar_lea.vmem %s5, %s264
      %p266 = scmp.lt.s32.totalorder %s18, 1
      %s267 = scalar_select %p266, %s18, 1
      %s268 = scalar_lea.vmem %s6, %s267
      %270 = vst [vmem:[#allocation2] sm:$0xf] 0
      %271 = vst [vmem:[#allocation2 + $0x4] sm:$0xf] 0
      %272 = vst [vmem:[#allocation2 + $0x8] sm:$0x1] 0
      %s273 = scalar_lea.vmem [#allocation2], 204
      %274 = vst [vmem:[%s273] sm:$0xf] 0
      %275 = vst [vmem:[%s273 + $0x4] sm:$0xf] 0
      %276 = vst [vmem:[%s273 + $0x8] sm:$0x1] 0
      %s277 = scalar_lea.vmem [#allocation2], 12
      %vm278 = vcmask 1040384
      %vm279 = vsmask.f32 256
      %vm280 = vmand %vm278, %vm279
      %v281 = vld [vmem:[%s277] sm:$0x1]
      %v282 = vsel %vm280, 0, %v281
      %283 = vst [vmem:[%s277] sm:$0x1] %v282
      %v284 = vld [vmem:[%s277 + $0xc] sm:$0x1]
      %v285 = vsel %vm280, 0, %v284
      %286 = vst [vmem:[%s277 + $0xc] sm:$0x1] %v285
      %v287 = vld [vmem:[%s277 + $0x18] sm:$0x1]
      %v288 = vsel %vm280, 0, %v287
      %289 = vst [vmem:[%s277 + $0x18] sm:$0x1] %v288
      %v290 = vld [vmem:[%s277 + $0x24] sm:$0x1]
      %v291 = vsel %vm280, 0, %v290
      %292 = vst [vmem:[%s277 + $0x24] sm:$0x1] %v291
      %v293 = vld [vmem:[%s277 + $0x30] sm:$0x1]
      %v294 = vsel %vm280, 0, %v293
      %295 = vst [vmem:[%s277 + $0x30] sm:$0x1] %v294
      %v296 = vld [vmem:[%s277 + $0x3c] sm:$0x1]
      %v297 = vsel %vm280, 0, %v296
      %298 = vst [vmem:[%s277 + $0x3c] sm:$0x1] %v297
      %v299 = vld [vmem:[%s277 + $0x48] sm:$0x1]
      %v300 = vsel %vm280, 0, %v299
      %301 = vst [vmem:[%s277 + $0x48] sm:$0x1] %v300
      %v302 = vld [vmem:[%s277 + $0x54] sm:$0x1]
      %v303 = vsel %vm280, 0, %v302
      %304 = vst [vmem:[%s277 + $0x54] sm:$0x1] %v303
      %v305 = vld [vmem:[%s277 + $0x60] sm:$0x1]
      %v306 = vsel %vm280, 0, %v305
      %307 = vst [vmem:[%s277 + $0x60] sm:$0x1] %v306
      %v308 = vld [vmem:[%s277 + $0x6c] sm:$0x1]
      %v309 = vsel %vm280, 0, %v308
      %310 = vst [vmem:[%s277 + $0x6c] sm:$0x1] %v309
      %v311 = vld [vmem:[%s277 + $0x78] sm:$0x1]
      %v312 = vsel %vm280, 0, %v311
      %313 = vst [vmem:[%s277 + $0x78] sm:$0x1] %v312
      %v314 = vld [vmem:[%s277 + $0x84] sm:$0x1]
      %v315 = vsel %vm280, 0, %v314
      %316 = vst [vmem:[%s277 + $0x84] sm:$0x1] %v315
      %v317 = vld [vmem:[%s277 + $0x90] sm:$0x1]
      %v318 = vsel %vm280, 0, %v317
      %319 = vst [vmem:[%s277 + $0x90] sm:$0x1] %v318
      %v320 = vld [vmem:[%s277 + $0x9c] sm:$0x1]
      %v321 = vsel %vm280, 0, %v320
      %322 = vst [vmem:[%s277 + $0x9c] sm:$0x1] %v321
      %v323 = vld [vmem:[%s277 + $0xa8] sm:$0x1]
      %v324 = vsel %vm280, 0, %v323
      %325 = vst [vmem:[%s277 + $0xa8] sm:$0x1] %v324
      %v326 = vld [vmem:[%s277 + $0xb4] sm:$0x1]
      %v327 = vsel %vm280, 0, %v326
      %328 = vst [vmem:[%s277 + $0xb4] sm:$0x1] %v327
      %vm329 = vsmask.f32 7938
      %vm330 = vmand %vm278, %vm329
      %v331 = vld [vmem:[%s277 + $0x8] sm:$0x1]
      %v332 = vsel %vm330, 0, %v331
      %333 = vst [vmem:[%s277 + $0x8] sm:$0x1] %v332
      %v334 = vld [vmem:[%s277 + $0x14] sm:$0x1]
      %v335 = vsel %vm330, 0, %v334
      %336 = vst [vmem:[%s277 + $0x14] sm:$0x1] %v335
      %v337 = vld [vmem:[%s277 + $0x20] sm:$0x1]
      %v338 = vsel %vm330, 0, %v337
      %339 = vst [vmem:[%s277 + $0x20] sm:$0x1] %v338
      %v340 = vld [vmem:[%s277 + $0x2c] sm:$0x1]
      %v341 = vsel %vm330, 0, %v340
      %342 = vst [vmem:[%s277 + $0x2c] sm:$0x1] %v341
      %v343 = vld [vmem:[%s277 + $0x38] sm:$0x1]
      %v344 = vsel %vm330, 0, %v343
      %345 = vst [vmem:[%s277 + $0x38] sm:$0x1] %v344
      %v346 = vld [vmem:[%s277 + $0x44] sm:$0x1]
      %v347 = vsel %vm330, 0, %v346
      %348 = vst [vmem:[%s277 + $0x44] sm:$0x1] %v347
      %v349 = vld [vmem:[%s277 + $0x50] sm:$0x1]
      %v350 = vsel %vm330, 0, %v349
      %351 = vst [vmem:[%s277 + $0x50] sm:$0x1] %v350
      %v352 = vld [vmem:[%s277 + $0x5c] sm:$0x1]
      %v353 = vsel %vm330, 0, %v352
      %354 = vst [vmem:[%s277 + $0x5c] sm:$0x1] %v353
      %v355 = vld [vmem:[%s277 + $0x68] sm:$0x1]
      %v356 = vsel %vm330, 0, %v355
      %357 = vst [vmem:[%s277 + $0x68] sm:$0x1] %v356
      %v358 = vld [vmem:[%s277 + $0x74] sm:$0x1]
      %v359 = vsel %vm330, 0, %v358
      %360 = vst [vmem:[%s277 + $0x74] sm:$0x1] %v359
      %v361 = vld [vmem:[%s277 + $0x80] sm:$0x1]
      %v362 = vsel %vm330, 0, %v361
      %363 = vst [vmem:[%s277 + $0x80] sm:$0x1] %v362
      %v364 = vld [vmem:[%s277 + $0x8c] sm:$0x1]
      %v365 = vsel %vm330, 0, %v364
      %366 = vst [vmem:[%s277 + $0x8c] sm:$0x1] %v365
      %v367 = vld [vmem:[%s277 + $0x98] sm:$0x1]
      %v368 = vsel %vm330, 0, %v367
      %369 = vst [vmem:[%s277 + $0x98] sm:$0x1] %v368
      %v370 = vld [vmem:[%s277 + $0xa4] sm:$0x1]
      %v371 = vsel %vm330, 0, %v370
      %372 = vst [vmem:[%s277 + $0xa4] sm:$0x1] %v371
      %v373 = vld [vmem:[%s277 + $0xb0] sm:$0x1]
      %v374 = vsel %vm330, 0, %v373
      %375 = vst [vmem:[%s277 + $0xb0] sm:$0x1] %v374
      %v376 = vld [vmem:[%s277 + $0xbc] sm:$0x1]
      %v377 = vsel %vm330, 0, %v376
      %378 = vst [vmem:[%s277 + $0xbc] sm:$0x1] %v377
      %v379 = vld [vmem:[%s257] sm:$0xf]
      %v380 = vld [vmem:[%s257 + $0x4] sm:$0xf]
      %v381 = vld [vmem:[%s257 + $0x8] sm:$0xf]
      %v382 = vld [vmem:[%s257 + $0xc] sm:$0xf]
      %v383 = vld [vmem:[%s257 + $0x10] sm:$0xf]
      %v384 = vld [vmem:[%s257 + $0x14] sm:$0xf]
      %v385 = vld [vmem:[%s257 + $0x18] sm:$0xf]
      %v386 = vld [vmem:[%s257 + $0x1c] sm:$0xf]
      %v387 = vld [vmem:[%s257 + $0x20] sm:$0xf]
      %v388 = vld [vmem:[%s257 + $0x24] sm:$0xf]
      %v389 = vld [vmem:[%s257 + $0x28] sm:$0xf]
      %v390 = vld [vmem:[%s257 + $0x2c] sm:$0xf]
      %v391 = vld [vmem:[%s257 + $0x30] sm:$0xf]
      %v392 = vld [vmem:[%s257 + $0x34] sm:$0xf]
      %v393 = vld [vmem:[%s257 + $0x38] sm:$0xf]
      %v394 = vld [vmem:[%s257 + $0x3c] sm:$0xf]
      %v395 = vld [vmem:[%s257 + $0x40] sm:$0xf]
      %v396 = vld [vmem:[%s257 + $0x44] sm:$0xf]
      %v397 = vld [vmem:[%s257 + $0x48] sm:$0xf]
      %v398 = vld [vmem:[%s257 + $0x4c] sm:$0xf]
      %v399 = vld [vmem:[%s257 + $0x50] sm:$0xf]
      %v400 = vld [vmem:[%s257 + $0x54] sm:$0xf]
      %v401 = vld [vmem:[%s257 + $0x58] sm:$0xf]
      %v402 = vld [vmem:[%s257 + $0x5c] sm:$0xf]
      %v403 = vld [vmem:[%s257 + $0x60] sm:$0xf]
      %v404 = vld [vmem:[%s257 + $0x64] sm:$0xf]
      %v405 = vld [vmem:[%s257 + $0x68] sm:$0xf]
      %v406 = vld [vmem:[%s257 + $0x6c] sm:$0xf]
      %v407 = vld [vmem:[%s257 + $0x70] sm:$0xf]
      %v408 = vld [vmem:[%s257 + $0x74] sm:$0xf]
      %v409 = vld [vmem:[%s257 + $0x78] sm:$0xf]
      %v410 = vld [vmem:[%s257 + $0x7c] sm:$0xf]
      %v411 = vunpack.c.l.bf16 %v379
      %v412 = vunpack.c.l.bf16 %v380
      %v413 = vunpack.c.l.bf16 %v381
      %v414 = vunpack.c.l.bf16 %v382
      %v415 = vunpack.c.l.bf16 %v383
      %v416 = vunpack.c.l.bf16 %v384
      %v417 = vunpack.c.l.bf16 %v385
      %v418 = vunpack.c.l.bf16 %v386
      %v419 = vunpack.c.l.bf16 %v387
      %v420 = vunpack.c.l.bf16 %v388
      %v421 = vunpack.c.l.bf16 %v389
      %v422 = vunpack.c.l.bf16 %v390
      %v423 = vunpack.c.l.bf16 %v391
      %v424 = vunpack.c.l.bf16 %v392
      %v425 = vunpack.c.l.bf16 %v393
      %v426 = vunpack.c.l.bf16 %v394
      %v427 = vunpack.c.l.bf16 %v395
      %v428 = vunpack.c.l.bf16 %v396
      %v429 = vunpack.c.l.bf16 %v397
      %v430 = vunpack.c.l.bf16 %v398
      %v431 = vunpack.c.l.bf16 %v399
      %v432 = vunpack.c.l.bf16 %v400
      %v433 = vunpack.c.l.bf16 %v401
      %v434 = vunpack.c.l.bf16 %v402
      %v435 = vunpack.c.l.bf16 %v403
      %v436 = vunpack.c.l.bf16 %v404
      %v437 = vunpack.c.l.bf16 %v405
      %v438 = vunpack.c.l.bf16 %v406
      %v439 = vunpack.c.l.bf16 %v407
      %v440 = vunpack.c.l.bf16 %v408
      %v441 = vunpack.c.l.bf16 %v409
      %v442 = vunpack.c.l.bf16 %v410
      %v443 = vld [vmem:[%s1] sm:$0x1]
      %v445 = vperm.slane %v443, 0
      %v447 = vmul.f32 %v411, %v445
      %v448 = vmul.f32 %v412, %v445
      %v449 = vmul.f32 %v413, %v445
      %v450 = vmul.f32 %v414, %v445
      %v451 = vmul.f32 %v415, %v445
      %v452 = vmul.f32 %v416, %v445
      %v453 = vmul.f32 %v417, %v445
      %v454 = vmul.f32 %v418, %v445
      %v455 = vmul.f32 %v419, %v445
      %v456 = vmul.f32 %v420, %v445
      %v457 = vmul.f32 %v421, %v445
      %v458 = vmul.f32 %v422, %v445
      %v459 = vmul.f32 %v423, %v445
      %v460 = vmul.f32 %v424, %v445
      %v461 = vmul.f32 %v425, %v445
      %v462 = vmul.f32 %v426, %v445
      %v463 = vmul.f32 %v427, %v445
      %v464 = vmul.f32 %v428, %v445
      %v465 = vmul.f32 %v429, %v445
      %v466 = vmul.f32 %v430, %v445
      %v467 = vmul.f32 %v431, %v445
      %v468 = vmul.f32 %v432, %v445
      %v469 = vmul.f32 %v433, %v445
      %v470 = vmul.f32 %v434, %v445
      %v471 = vmul.f32 %v435, %v445
      %v472 = vmul.f32 %v436, %v445
      %v473 = vmul.f32 %v437, %v445
      %v474 = vmul.f32 %v438, %v445
      %v475 = vmul.f32 %v439, %v445
      %v476 = vmul.f32 %v440, %v445
      %v477 = vmul.f32 %v441, %v445
      %v478 = vmul.f32 %v442, %v445
      %v479 = vld [vmem:[%s2] sm:$0x1]
      %v481 = vperm.slane %v479, 0
      %v483 = vadd.f32 %v447, %v481
      %v484 = vadd.f32 %v448, %v481
      %v485 = vadd.f32 %v449, %v481
      %v486 = vadd.f32 %v450, %v481
      %v487 = vadd.f32 %v451, %v481
      %v488 = vadd.f32 %v452, %v481
      %v489 = vadd.f32 %v453, %v481
      %v490 = vadd.f32 %v454, %v481
      %v491 = vadd.f32 %v455, %v481
      %v492 = vadd.f32 %v456, %v481
      %v493 = vadd.f32 %v457, %v481
      %v494 = vadd.f32 %v458, %v481
      %v495 = vadd.f32 %v459, %v481
      %v496 = vadd.f32 %v460, %v481
      %v497 = vadd.f32 %v461, %v481
      %v498 = vadd.f32 %v462, %v481
      %v499 = vadd.f32 %v463, %v481
      %v500 = vadd.f32 %v464, %v481
      %v501 = vadd.f32 %v465, %v481
      %v502 = vadd.f32 %v466, %v481
      %v503 = vadd.f32 %v467, %v481
      %v504 = vadd.f32 %v468, %v481
      %v505 = vadd.f32 %v469, %v481
      %v506 = vadd.f32 %v470, %v481
      %v507 = vadd.f32 %v471, %v481
      %v508 = vadd.f32 %v472, %v481
      %v509 = vadd.f32 %v473, %v481
      %v510 = vadd.f32 %v474, %v481
      %v511 = vadd.f32 %v475, %v481
      %v512 = vadd.f32 %v476, %v481
      %v513 = vadd.f32 %v477, %v481
      %v514 = vadd.f32 %v478, %v481
      %v515 = vmax.f32 %v483, 0.0
      %v516 = vmax.f32 %v484, 0.0
      %v517 = vmax.f32 %v485, 0.0
      %v518 = vmax.f32 %v486, 0.0
      %v519 = vmax.f32 %v487, 0.0
      %v520 = vmax.f32 %v488, 0.0
      %v521 = vmax.f32 %v489, 0.0
      %v522 = vmax.f32 %v490, 0.0
      %v523 = vmax.f32 %v491, 0.0
      %v524 = vmax.f32 %v492, 0.0
      %v525 = vmax.f32 %v493, 0.0
      %v526 = vmax.f32 %v494, 0.0
      %v527 = vmax.f32 %v495, 0.0
      %v528 = vmax.f32 %v496, 0.0
      %v529 = vmax.f32 %v497, 0.0
      %v530 = vmax.f32 %v498, 0.0
      %v531 = vmax.f32 %v499, 0.0
      %v532 = vmax.f32 %v500, 0.0
      %v533 = vmax.f32 %v501, 0.0
      %v534 = vmax.f32 %v502, 0.0
      %v535 = vmax.f32 %v503, 0.0
      %v536 = vmax.f32 %v504, 0.0
      %v537 = vmax.f32 %v505, 0.0
      %v538 = vmax.f32 %v506, 0.0
      %v539 = vmax.f32 %v507, 0.0
      %v540 = vmax.f32 %v508, 0.0
      %v541 = vmax.f32 %v509, 0.0
      %v542 = vmax.f32 %v510, 0.0
      %v543 = vmax.f32 %v511, 0.0
      %v544 = vmax.f32 %v512, 0.0
      %v545 = vmax.f32 %v513, 0.0
      %v546 = vmax.f32 %v514, 0.0
      %v547 = vpack.c.bf16 %v515, %v515
      %v548 = vpack.c.bf16 %v516, %v516
      %v549 = vpack.c.bf16 %v517, %v517
      %v550 = vpack.c.bf16 %v518, %v518
      %v551 = vpack.c.bf16 %v519, %v519
      %v552 = vpack.c.bf16 %v520, %v520
      %v553 = vpack.c.bf16 %v521, %v521
      %v554 = vpack.c.bf16 %v522, %v522
      %v555 = vpack.c.bf16 %v523, %v523
      %v556 = vpack.c.bf16 %v524, %v524
      %v557 = vpack.c.bf16 %v525, %v525
      %v558 = vpack.c.bf16 %v526, %v526
      %v559 = vpack.c.bf16 %v527, %v527
      %v560 = vpack.c.bf16 %v528, %v528
      %v561 = vpack.c.bf16 %v529, %v529
      %v562 = vpack.c.bf16 %v530, %v530
      %v563 = vpack.c.bf16 %v531, %v531
      %v564 = vpack.c.bf16 %v532, %v532
      %v565 = vpack.c.bf16 %v533, %v533
      %v566 = vpack.c.bf16 %v534, %v534
      %v567 = vpack.c.bf16 %v535, %v535
      %v568 = vpack.c.bf16 %v536, %v536
      %v569 = vpack.c.bf16 %v537, %v537
      %v570 = vpack.c.bf16 %v538, %v538
      %v571 = vpack.c.bf16 %v539, %v539
      %v572 = vpack.c.bf16 %v540, %v540
      %v573 = vpack.c.bf16 %v541, %v541
      %v574 = vpack.c.bf16 %v542, %v542
      %v575 = vpack.c.bf16 %v543, %v543
      %v576 = vpack.c.bf16 %v544, %v544
      %v577 = vpack.c.bf16 %v545, %v545
      %v578 = vpack.c.bf16 %v546, %v546
      %vm579 = vsmask.f32 4368
      %vm580 = vmor %vm279, %vm579
      %v582 = vshrl.u32 %v547, 16
      %v584 = vrot.slane %v582, 7
      %v585 = vshll.u32 %v547, 16
      %v587 = vor.u32 %v584, %v585
      %v588 = vrot.slane %v584, 4
      %v590 = vshrl.u32 %v548, 16
      %v592 = vrot.slane %v590, 7
      %v593 = vshll.u32 %v548, 16
      %v595 = vor.u32 %v592, %v593
      %v596 = vsel %vm580, %v588, %v595
      %v597 = vrot.slane %v592, 4
      %v599 = vshrl.u32 %v549, 16
      %v601 = vrot.slane %v599, 7
      %v602 = vshll.u32 %v549, 16
      %v604 = vor.u32 %v601, %v602
      %v605 = vrot.slane %v601, 4
      %v607 = vshrl.u32 %v550, 16
      %v609 = vrot.slane %v607, 7
      %v610 = vshll.u32 %v550, 16
      %v612 = vor.u32 %v609, %v610
      %v613 = vsel %vm580, %v605, %v612
      %v614 = vrot.slane %v609, 4
      %v616 = vshrl.u32 %v551, 16
      %v618 = vrot.slane %v616, 7
      %v619 = vshll.u32 %v551, 16
      %v621 = vor.u32 %v618, %v619
      %v622 = vrot.slane %v618, 4
      %v624 = vshrl.u32 %v552, 16
      %v626 = vrot.slane %v624, 7
      %v627 = vshll.u32 %v552, 16
      %v629 = vor.u32 %v626, %v627
      %v630 = vsel %vm580, %v622, %v629
      %v631 = vrot.slane %v626, 4
      %v633 = vshrl.u32 %v553, 16
      %v635 = vrot.slane %v633, 7
      %v636 = vshll.u32 %v553, 16
      %v638 = vor.u32 %v635, %v636
      %v639 = vrot.slane %v635, 4
      %v641 = vshrl.u32 %v554, 16
      %v643 = vrot.slane %v641, 7
      %v644 = vshll.u32 %v554, 16
      %v646 = vor.u32 %v643, %v644
      %v647 = vsel %vm580, %v639, %v646
      %v648 = vrot.slane %v643, 4
      %v650 = vshrl.u32 %v555, 16
      %v652 = vrot.slane %v650, 7
      %v653 = vshll.u32 %v555, 16
      %v655 = vor.u32 %v652, %v653
      %v656 = vrot.slane %v652, 4
      %v658 = vshrl.u32 %v556, 16
      %v660 = vrot.slane %v658, 7
      %v661 = vshll.u32 %v556, 16
      %v663 = vor.u32 %v660, %v661
      %v664 = vsel %vm580, %v656, %v663
      %v665 = vrot.slane %v660, 4
      %v667 = vshrl.u32 %v557, 16
      %v669 = vrot.slane %v667, 7
      %v670 = vshll.u32 %v557, 16
      %v672 = vor.u32 %v669, %v670
      %v673 = vrot.slane %v669, 4
      %v675 = vshrl.u32 %v558, 16
      %v677 = vrot.slane %v675, 7
      %v678 = vshll.u32 %v558, 16
      %v680 = vor.u32 %v677, %v678
      %v681 = vsel %vm580, %v673, %v680
      %v682 = vrot.slane %v677, 4
      %v684 = vshrl.u32 %v559, 16
      %v686 = vrot.slane %v684, 7
      %v687 = vshll.u32 %v559, 16
      %v689 = vor.u32 %v686, %v687
      %v690 = vrot.slane %v686, 4
      %v692 = vshrl.u32 %v560, 16
      %v694 = vrot.slane %v692, 7
      %v695 = vshll.u32 %v560, 16
      %v697 = vor.u32 %v694, %v695
      %v698 = vsel %vm580, %v690, %v697
      %v699 = vrot.slane %v694, 4
      %v701 = vshrl.u32 %v561, 16
      %v703 = vrot.slane %v701, 7
      %v704 = vshll.u32 %v561, 16
      %v706 = vor.u32 %v703, %v704
      %v707 = vrot.slane %v703, 4
      %v709 = vshrl.u32 %v562, 16
      %v711 = vrot.slane %v709, 7
      %v712 = vshll.u32 %v562, 16
      %v714 = vor.u32 %v711, %v712
      %v715 = vsel %vm580, %v707, %v714
      %v716 = vrot.slane %v711, 4
      %v718 = vshrl.u32 %v563, 16
      %v720 = vrot.slane %v718, 7
      %v721 = vshll.u32 %v563, 16
      %v723 = vor.u32 %v720, %v721
      %v724 = vrot.slane %v720, 4
      %v726 = vshrl.u32 %v564, 16
      %v728 = vrot.slane %v726, 7
      %v729 = vshll.u32 %v564, 16
      %v731 = vor.u32 %v728, %v729
      %v732 = vsel %vm580, %v724, %v731
      %v733 = vrot.slane %v728, 4
      %v735 = vshrl.u32 %v565, 16
      %v737 = vrot.slane %v735, 7
      %v738 = vshll.u32 %v565, 16
      %v740 = vor.u32 %v737, %v738
      %v741 = vrot.slane %v737, 4
      %v743 = vshrl.u32 %v566, 16
      %v745 = vrot.slane %v743, 7
      %v746 = vshll.u32 %v566, 16
      %v748 = vor.u32 %v745, %v746
      %v749 = vsel %vm580, %v741, %v748
      %v750 = vrot.slane %v745, 4
      %v752 = vshrl.u32 %v567, 16
      %v754 = vrot.slane %v752, 7
      %v755 = vshll.u32 %v567, 16
      %v757 = vor.u32 %v754, %v755
      %v758 = vrot.slane %v754, 4
      %v760 = vshrl.u32 %v568, 16
      %v762 = vrot.slane %v760, 7
      %v763 = vshll.u32 %v568, 16
      %v765 = vor.u32 %v762, %v763
      %v766 = vsel %vm580, %v758, %v765
      %v767 = vrot.slane %v762, 4
      %v769 = vshrl.u32 %v569, 16
      %v771 = vrot.slane %v769, 7
      %v772 = vshll.u32 %v569, 16
      %v774 = vor.u32 %v771, %v772
      %v775 = vrot.slane %v771, 4
      %v777 = vshrl.u32 %v570, 16
      %v779 = vrot.slane %v777, 7
      %v780 = vshll.u32 %v570, 16
      %v782 = vor.u32 %v779, %v780
      %v783 = vsel %vm580, %v775, %v782
      %v784 = vrot.slane %v779, 4
      %v786 = vshrl.u32 %v571, 16
      %v788 = vrot.slane %v786, 7
      %v789 = vshll.u32 %v571, 16
      %v791 = vor.u32 %v788, %v789
      %v792 = vrot.slane %v788, 4
      %v794 = vshrl.u32 %v572, 16
      %v796 = vrot.slane %v794, 7
      %v797 = vshll.u32 %v572, 16
      %v799 = vor.u32 %v796, %v797
      %v800 = vsel %vm580, %v792, %v799
      %v801 = vrot.slane %v796, 4
      %v803 = vshrl.u32 %v573, 16
      %v805 = vrot.slane %v803, 7
      %v806 = vshll.u32 %v573, 16
      %v808 = vor.u32 %v805, %v806
      %v809 = vrot.slane %v805, 4
      %v811 = vshrl.u32 %v574, 16
      %v813 = vrot.slane %v811, 7
      %v814 = vshll.u32 %v574, 16
      %v816 = vor.u32 %v813, %v814
      %v817 = vsel %vm580, %v809, %v816
      %v818 = vrot.slane %v813, 4
      %v820 = vshrl.u32 %v575, 16
      %v822 = vrot.slane %v820, 7
      %v823 = vshll.u32 %v575, 16
      %v825 = vor.u32 %v822, %v823
      %v826 = vrot.slane %v822, 4
      %v828 = vshrl.u32 %v576, 16
      %v830 = vrot.slane %v828, 7
      %v831 = vshll.u32 %v576, 16
      %v833 = vor.u32 %v830, %v831
      %v834 = vsel %vm580, %v826, %v833
      %v835 = vrot.slane %v830, 4
      %v837 = vshrl.u32 %v577, 16
      %v839 = vrot.slane %v837, 7
      %v840 = vshll.u32 %v577, 16
      %v842 = vor.u32 %v839, %v840
      %v843 = vrot.slane %v839, 4
      %v845 = vshrl.u32 %v578, 16
      %v847 = vrot.slane %v845, 7
      %v848 = vshll.u32 %v578, 16
      %v850 = vor.u32 %v847, %v848
      %v851 = vsel %vm580, %v843, %v850
      %v852 = vrot.slane %v847, 4
      %vm901 = vcmask 1043456
      %vm902 = vmand %vm901, %vm329
      %v903 = vld [vmem:[%s277] sm:$0xf]
      %v904 = vsel %vm902, %v587, %v903
      %905 = vst [vmem:[%s277] sm:$0xf] %v904
      %906 = vst [vmem:[%s277 + $0x4] sm:$0xf] %v596
      %v907 = vld [vmem:[%s277 + $0x8] sm:$0x1]
      %v908 = vsel %vm280, %v597, %v907
      %909 = vst [vmem:[%s277 + $0x8] sm:$0x1] %v908
      %v910 = vld [vmem:[%s277 + $0xc] sm:$0xf]
      %v911 = vsel %vm902, %v604, %v910
      %912 = vst [vmem:[%s277 + $0xc] sm:$0xf] %v911
      %913 = vst [vmem:[%s277 + $0x10] sm:$0xf] %v613
      %v914 = vld [vmem:[%s277 + $0x14] sm:$0x1]
      %v915 = vsel %vm280, %v614, %v914
      %916 = vst [vmem:[%s277 + $0x14] sm:$0x1] %v915
      %v917 = vld [vmem:[%s277 + $0x18] sm:$0xf]
      %v918 = vsel %vm902, %v621, %v917
      %919 = vst [vmem:[%s277 + $0x18] sm:$0xf] %v918
      %920 = vst [vmem:[%s277 + $0x1c] sm:$0xf] %v630
      %v921 = vld [vmem:[%s277 + $0x20] sm:$0x1]
      %v922 = vsel %vm280, %v631, %v921
      %923 = vst [vmem:[%s277 + $0x20] sm:$0x1] %v922
      %v924 = vld [vmem:[%s277 + $0x24] sm:$0xf]
      %v925 = vsel %vm902, %v638, %v924
      %926 = vst [vmem:[%s277 + $0x24] sm:$0xf] %v925
      %927 = vst [vmem:[%s277 + $0x28] sm:$0xf] %v647
      %v928 = vld [vmem:[%s277 + $0x2c] sm:$0x1]
      %v929 = vsel %vm280, %v648, %v928
      %930 = vst [vmem:[%s277 + $0x2c] sm:$0x1] %v929
      %v931 = vld [vmem:[%s277 + $0x30] sm:$0xf]
      %v932 = vsel %vm902, %v655, %v931
      %933 = vst [vmem:[%s277 + $0x30] sm:$0xf] %v932
      %934 = vst [vmem:[%s277 + $0x34] sm:$0xf] %v664
      %v935 = vld [vmem:[%s277 + $0x38] sm:$0x1]
      %v936 = vsel %vm280, %v665, %v935
      %937 = vst [vmem:[%s277 + $0x38] sm:$0x1] %v936
      %v938 = vld [vmem:[%s277 + $0x3c] sm:$0xf]
      %v939 = vsel %vm902, %v672, %v938
      %940 = vst [vmem:[%s277 + $0x3c] sm:$0xf] %v939
      %941 = vst [vmem:[%s277 + $0x40] sm:$0xf] %v681
      %v942 = vld [vmem:[%s277 + $0x44] sm:$0x1]
      %v943 = vsel %vm280, %v682, %v942
      %944 = vst [vmem:[%s277 + $0x44] sm:$0x1] %v943
      %v945 = vld [vmem:[%s277 + $0x48] sm:$0xf]
      %v946 = vsel %vm902, %v689, %v945
      %947 = vst [vmem:[%s277 + $0x48] sm:$0xf] %v946
      %948 = vst [vmem:[%s277 + $0x4c] sm:$0xf] %v698
      %v949 = vld [vmem:[%s277 + $0x50] sm:$0x1]
      %v950 = vsel %vm280, %v699, %v949
      %951 = vst [vmem:[%s277 + $0x50] sm:$0x1] %v950
      %v952 = vld [vmem:[%s277 + $0x54] sm:$0xf]
      %v953 = vsel %vm902, %v706, %v952
      %954 = vst [vmem:[%s277 + $0x54] sm:$0xf] %v953
      %955 = vst [vmem:[%s277 + $0x58] sm:$0xf] %v715
      %v956 = vld [vmem:[%s277 + $0x5c] sm:$0x1]
      %v957 = vsel %vm280, %v716, %v956
      %958 = vst [vmem:[%s277 + $0x5c] sm:$0x1] %v957
      %v959 = vld [vmem:[%s277 + $0x60] sm:$0xf]
      %v960 = vsel %vm902, %v723, %v959
      %961 = vst [vmem:[%s277 + $0x60] sm:$0xf] %v960
      %962 = vst [vmem:[%s277 + $0x64] sm:$0xf] %v732
      %v963 = vld [vmem:[%s277 + $0x68] sm:$0x1]
      %v964 = vsel %vm280, %v733, %v963
      %965 = vst [vmem:[%s277 + $0x68] sm:$0x1] %v964
      %v966 = vld [vmem:[%s277 + $0x6c] sm:$0xf]
      %v967 = vsel %vm902, %v740, %v966
      %968 = vst [vmem:[%s277 + $0x6c] sm:$0xf] %v967
      %969 = vst [vmem:[%s277 + $0x70] sm:$0xf] %v749
      %v970 = vld [vmem:[%s277 + $0x74] sm:$0x1]
      %v971 = vsel %vm280, %v750, %v970
      %972 = vst [vmem:[%s277 + $0x74] sm:$0x1] %v971
      %v973 = vld [vmem:[%s277 + $0x78] sm:$0xf]
      %v974 = vsel %vm902, %v757, %v973
      %975 = vst [vmem:[%s277 + $0x78] sm:$0xf] %v974
      %976 = vst [vmem:[%s277 + $0x7c] sm:$0xf] %v766
      %v977 = vld [vmem:[%s277 + $0x80] sm:$0x1]
      %v978 = vsel %vm280, %v767, %v977
      %979 = vst [vmem:[%s277 + $0x80] sm:$0x1] %v978
      %v980 = vld [vmem:[%s277 + $0x84] sm:$0xf]
      %v981 = vsel %vm902, %v774, %v980
      %982 = vst [vmem:[%s277 + $0x84] sm:$0xf] %v981
      %983 = vst [vmem:[%s277 + $0x88] sm:$0xf] %v783
      %v984 = vld [vmem:[%s277 + $0x8c] sm:$0x1]
      %v985 = vsel %vm280, %v784, %v984
      %986 = vst [vmem:[%s277 + $0x8c] sm:$0x1] %v985
      %v987 = vld [vmem:[%s277 + $0x90] sm:$0xf]
      %v988 = vsel %vm902, %v791, %v987
      %989 = vst [vmem:[%s277 + $0x90] sm:$0xf] %v988
      %990 = vst [vmem:[%s277 + $0x94] sm:$0xf] %v800
      %v991 = vld [vmem:[%s277 + $0x98] sm:$0x1]
      %v992 = vsel %vm280, %v801, %v991
      %993 = vst [vmem:[%s277 + $0x98] sm:$0x1] %v992
      %v994 = vld [vmem:[%s277 + $0x9c] sm:$0xf]
      %v995 = vsel %vm902, %v808, %v994
      %996 = vst [vmem:[%s277 + $0x9c] sm:$0xf] %v995
      %997 = vst [vmem:[%s277 + $0xa0] sm:$0xf] %v817
      %v998 = vld [vmem:[%s277 + $0xa4] sm:$0x1]
      %v999 = vsel %vm280, %v818, %v998
      %1000 = vst [vmem:[%s277 + $0xa4] sm:$0x1] %v999
      %v1001 = vld [vmem:[%s277 + $0xa8] sm:$0xf]
      %v1002 = vsel %vm902, %v825, %v1001
      %1003 = vst [vmem:[%s277 + $0xa8] sm:$0xf] %v1002
      %1004 = vst [vmem:[%s277 + $0xac] sm:$0xf] %v834
      %v1005 = vld [vmem:[%s277 + $0xb0] sm:$0x1]
      %v1006 = vsel %vm280, %v835, %v1005
      %1007 = vst [vmem:[%s277 + $0xb0] sm:$0x1] %v1006
      %v1008 = vld [vmem:[%s277 + $0xb4] sm:$0xf]
      %v1009 = vsel %vm902, %v842, %v1008
      %1010 = vst [vmem:[%s277 + $0xb4] sm:$0xf] %v1009
      %1011 = vst [vmem:[%s277 + $0xb8] sm:$0xf] %v851
      %v1012 = vld [vmem:[%s277 + $0xbc] sm:$0x1]
      %v1013 = vsel %vm280, %v852, %v1012
      %1014 = vst [vmem:[%s277 + $0xbc] sm:$0x1] %v1013
      %v1015 = vld [vmem:[#allocation2] sm:$0xf]
      %v1016 = vld [vmem:[#allocation2 + $0x4] sm:$0xf]
      %v1017 = vld [vmem:[#allocation2 + $0xc] sm:$0xf]
      %v1018 = vld [vmem:[#allocation2 + $0x10] sm:$0xf]
      %v1019 = vld [vmem:[#allocation2 + $0x18] sm:$0xf]
      %v1020 = vld [vmem:[#allocation2 + $0x1c] sm:$0xf]
      %v1021 = vld [vmem:[#allocation2 + $0x24] sm:$0xf]
      %v1022 = vld [vmem:[#allocation2 + $0x28] sm:$0xf]
      %v1023 = vld [vmem:[#allocation2 + $0x30] sm:$0xf]
      %v1024 = vld [vmem:[#allocation2 + $0x34] sm:$0xf]
      %v1025 = vld [vmem:[#allocation2 + $0x3c] sm:$0xf]
      %v1026 = vld [vmem:[#allocation2 + $0x40] sm:$0xf]
      %v1027 = vld [vmem:[#allocation2 + $0x48] sm:$0xf]
      %v1028 = vld [vmem:[#allocation2 + $0x4c] sm:$0xf]
      %v1029 = vld [vmem:[#allocation2 + $0x54] sm:$0xf]
      %v1030 = vld [vmem:[#allocation2 + $0x58] sm:$0xf]
      %v1031 = vld [vmem:[#allocation2 + $0x60] sm:$0xf]
      %v1032 = vld [vmem:[#allocation2 + $0x64] sm:$0xf]
      %v1033 = vld [vmem:[#allocation2 + $0x6c] sm:$0xf]
      %v1034 = vld [vmem:[#allocation2 + $0x70] sm:$0xf]
      %v1035 = vld [vmem:[#allocation2 + $0x78] sm:$0xf]
      %v1036 = vld [vmem:[#allocation2 + $0x7c] sm:$0xf]
      %v1037 = vld [vmem:[#allocation2 + $0x84] sm:$0xf]
      %v1038 = vld [vmem:[#allocation2 + $0x88] sm:$0xf]
      %v1039 = vld [vmem:[#allocation2 + $0x90] sm:$0xf]
      %v1040 = vld [vmem:[#allocation2 + $0x94] sm:$0xf]
      %v1041 = vld [vmem:[#allocation2 + $0x9c] sm:$0xf]
      %v1042 = vld [vmem:[#allocation2 + $0xa0] sm:$0xf]
      %v1043 = vld [vmem:[#allocation2 + $0xa8] sm:$0xf]
      %v1044 = vld [vmem:[#allocation2 + $0xac] sm:$0xf]
      %v1045 = vld [vmem:[#allocation2 + $0xb4] sm:$0xf]
      %v1046 = vld [vmem:[#allocation2 + $0xb8] sm:$0xf]
      %v1047 = vld [vmem:[%s3] sm:$0xf]
      %v1048 = vld [vmem:[%s3 + $0x4] sm:$0xf]
      %v1049 = vld [vmem:[%s3 + $0x8] sm:$0xf]
      %v1050 = vld [vmem:[%s3 + $0xc] sm:$0xf]
      %v1051 = vld [vmem:[%s3 + $0x10] sm:$0xf]
      %v1052 = vld [vmem:[%s3 + $0x14] sm:$0xf]
      %v1053 = vld [vmem:[%s3 + $0x18] sm:$0xf]
      %v1054 = vld [vmem:[%s3 + $0x1c] sm:$0xf]
      %v1055 = vld [vmem:[%s3 + $0x20] sm:$0xf]
      %v1056 = vld [vmem:[%s3 + $0x24] sm:$0xf]
      %v1057 = vld [vmem:[%s3 + $0x28] sm:$0xf]
      %v1058 = vld [vmem:[%s3 + $0x2c] sm:$0xf]
      %v1059 = vld [vmem:[%s3 + $0x30] sm:$0xf]
      %v1060 = vld [vmem:[%s3 + $0x34] sm:$0xf]
      %v1061 = vld [vmem:[%s3 + $0x38] sm:$0xf]
      %v1062 = vld [vmem:[%s3 + $0x3c] sm:$0xf]
      %v1095 = vunpack.c.l.b16 %v1015
      %v1096 = vunpack.c.l.b16 %v1016
      %v1097 = vunpack.c.l.b16 %v1017
      %v1098 = vunpack.c.l.b16 %v1018
      %v1099 = vunpack.c.l.b16 %v1019
      %v1100 = vunpack.c.l.b16 %v1020
      %v1101 = vunpack.c.l.b16 %v1021
      %v1102 = vunpack.c.l.b16 %v1022
      %v1103 = vunpack.c.l.b16 %v1023
      %v1104 = vunpack.c.l.b16 %v1024
      %v1105 = vunpack.c.l.b16 %v1025
      %v1106 = vunpack.c.l.b16 %v1026
      %v1107 = vunpack.c.l.b16 %v1027
      %v1108 = vunpack.c.l.b16 %v1028
      %v1109 = vunpack.c.l.b16 %v1029
      %v1110 = vunpack.c.l.b16 %v1030
      %v1111 = vunpack.c.l.b16 %v1031
      %v1112 = vunpack.c.l.b16 %v1032
      %v1113 = vunpack.c.l.b16 %v1033
      %v1114 = vunpack.c.l.b16 %v1034
      %v1115 = vunpack.c.l.b16 %v1035
      %v1116 = vunpack.c.l.b16 %v1036
      %v1117 = vunpack.c.l.b16 %v1037
      %v1118 = vunpack.c.l.b16 %v1038
      %v1119 = vunpack.c.l.b16 %v1039
      %v1120 = vunpack.c.l.b16 %v1040
      %v1121 = vunpack.c.l.b16 %v1041
      %v1122 = vunpack.c.l.b16 %v1042
      %v1123 = vunpack.c.l.b16 %v1043
      %v1124 = vunpack.c.l.b16 %v1044
      %v1125 = vunpack.c.l.b16 %v1045
      %v1126 = vunpack.c.l.b16 %v1046
      %v1127 = vpack.c.b16 %v1096, %v1095
      %v1128 = vpack.c.b16 %v1098, %v1097
      %v1129 = vpack.c.b16 %v1100, %v1099
      %v1130 = vpack.c.b16 %v1102, %v1101
      %v1131 = vpack.c.b16 %v1104, %v1103
      %v1132 = vpack.c.b16 %v1106, %v1105
      %v1133 = vpack.c.b16 %v1108, %v1107
      %v1134 = vpack.c.b16 %v1110, %v1109
      %v1135 = vpack.c.b16 %v1112, %v1111
      %v1136 = vpack.c.b16 %v1114, %v1113
      %v1137 = vpack.c.b16 %v1116, %v1115
      %v1138 = vpack.c.b16 %v1118, %v1117
      %v1139 = vpack.c.b16 %v1120, %v1119
      %v1140 = vpack.c.b16 %v1122, %v1121
      %v1141 = vpack.c.b16 %v1124, %v1123
      %v1142 = vpack.c.b16 %v1126, %v1125
      %v1175 = vunpack.c.l.b16 %v1047
      %v1176 = vunpack.c.l.b16 %v1048
      %v1177 = vunpack.c.l.b16 %v1049
      %v1178 = vunpack.c.l.b16 %v1050
      %v1179 = vunpack.c.l.b16 %v1051
      %v1180 = vunpack.c.l.b16 %v1052
      %v1181 = vunpack.c.l.b16 %v1053
      %v1182 = vunpack.c.l.b16 %v1054
      %v1183 = vunpack.c.l.b16 %v1055
      %v1184 = vunpack.c.l.b16 %v1056
      %v1185 = vunpack.c.l.b16 %v1057
      %v1186 = vunpack.c.l.b16 %v1058
      %v1187 = vunpack.c.l.b16 %v1059
      %v1188 = vunpack.c.l.b16 %v1060
      %v1189 = vunpack.c.l.b16 %v1061
      %v1190 = vunpack.c.l.b16 %v1062
      %v1191 = vpack.c.b16 %v1176, %v1175
      %v1192 = vpack.c.b16 %v1178, %v1177
      %v1193 = vpack.c.b16 %v1180, %v1179
      %v1194 = vpack.c.b16 %v1182, %v1181
      %v1195 = vpack.c.b16 %v1184, %v1183
      %v1196 = vpack.c.b16 %v1186, %v1185
      %v1197 = vpack.c.b16 %v1188, %v1187
      %v1198 = vpack.c.b16 %v1190, %v1189
      %1207 = vmatpush.bf16.msra.mxu0 %v1198
      %1208 = vmatpush.bf16.msra.mxu0 %v1197
      %1209 = vmatpush.bf16.msra.mxu0 %v1196
      %1210 = vmatpush.bf16.msra.mxu0 %v1195
      %1211 = vmatpush.bf16.msra.mxu0 %v1194
      %1212 = vmatpush.bf16.msra.mxu0 %v1193
      %1213 = vmatpush.bf16.msra.mxu0 %v1192
      %1214 = vmatpush.bf16.msra.mxu0 %v1191
      %1215 = vmatmul.bf16.gmra.mxu0 %v1127
      %v1216 = vpop.f32.mrf.mxu0
      %v1217 = vadd.f32 0.0, %v1216
      %v1218 = vpop.f32.mrf.mxu0
      %v1219 = vadd.f32 0.0, %v1218
      %1220 = vmatmul.bf16.gmra.mxu0 %v1128
      %v1221 = vpop.f32.mrf.mxu0
      %v1222 = vadd.f32 0.0, %v1221
      %v1223 = vpop.f32.mrf.mxu0
      %v1224 = vadd.f32 0.0, %v1223
      %1225 = vmatmul.bf16.gmra.mxu0 %v1129
      %v1226 = vpop.f32.mrf.mxu0
      %v1227 = vadd.f32 0.0, %v1226
      %v1228 = vpop.f32.mrf.mxu0
      %v1229 = vadd.f32 0.0, %v1228
      %1230 = vmatmul.bf16.gmra.mxu0 %v1130
      %v1231 = vpop.f32.mrf.mxu0
      %v1232 = vadd.f32 0.0, %v1231
      %v1233 = vpop.f32.mrf.mxu0
      %v1234 = vadd.f32 0.0, %v1233
      %1235 = vmatmul.bf16.gmra.mxu0 %v1131
      %v1236 = vpop.f32.mrf.mxu0
      %v1237 = vadd.f32 0.0, %v1236
      %v1238 = vpop.f32.mrf.mxu0
      %v1239 = vadd.f32 0.0, %v1238
      %1240 = vmatmul.bf16.gmra.mxu0 %v1132
      %v1241 = vpop.f32.mrf.mxu0
      %v1242 = vadd.f32 0.0, %v1241
      %v1243 = vpop.f32.mrf.mxu0
      %v1244 = vadd.f32 0.0, %v1243
      %1245 = vmatmul.bf16.gmra.mxu0 %v1133
      %v1246 = vpop.f32.mrf.mxu0
      %v1247 = vadd.f32 0.0, %v1246
      %v1248 = vpop.f32.mrf.mxu0
      %v1249 = vadd.f32 0.0, %v1248
      %1250 = vmatmul.bf16.gmra.mxu0 %v1134
      %v1251 = vpop.f32.mrf.mxu0
      %v1252 = vadd.f32 0.0, %v1251
      %v1253 = vpop.f32.mrf.mxu0
      %v1254 = vadd.f32 0.0, %v1253
      %1255 = vmatmul.bf16.gmra.mxu0 %v1135
      %v1256 = vpop.f32.mrf.mxu0
      %v1257 = vadd.f32 0.0, %v1256
      %v1258 = vpop.f32.mrf.mxu0
      %v1259 = vadd.f32 0.0, %v1258
      %1260 = vmatmul.bf16.gmra.mxu0 %v1136
      %v1261 = vpop.f32.mrf.mxu0
      %v1262 = vadd.f32 0.0, %v1261
      %v1263 = vpop.f32.mrf.mxu0
      %v1264 = vadd.f32 0.0, %v1263
      %1265 = vmatmul.bf16.gmra.mxu0 %v1137
      %v1266 = vpop.f32.mrf.mxu0
      %v1267 = vadd.f32 0.0, %v1266
      %v1268 = vpop.f32.mrf.mxu0
      %v1269 = vadd.f32 0.0, %v1268
      %1270 = vmatmul.bf16.gmra.mxu0 %v1138
      %v1271 = vpop.f32.mrf.mxu0
      %v1272 = vadd.f32 0.0, %v1271
      %v1273 = vpop.f32.mrf.mxu0
      %v1274 = vadd.f32 0.0, %v1273
      %1275 = vmatmul.bf16.gmra.mxu0 %v1139
      %v1276 = vpop.f32.mrf.mxu0
      %v1277 = vadd.f32 0.0, %v1276
      %v1278 = vpop.f32.mrf.mxu0
      %v1279 = vadd.f32 0.0, %v1278
      %1280 = vmatmul.bf16.gmra.mxu0 %v1140
      %v1281 = vpop.f32.mrf.mxu0
      %v1282 = vadd.f32 0.0, %v1281
      %v1283 = vpop.f32.mrf.mxu0
      %v1284 = vadd.f32 0.0, %v1283
      %1285 = vmatmul.bf16.gmra.mxu0 %v1141
      %v1286 = vpop.f32.mrf.mxu0
      %v1287 = vadd.f32 0.0, %v1286
      %v1288 = vpop.f32.mrf.mxu0
      %v1289 = vadd.f32 0.0, %v1288
      %1290 = vmatmul.bf16.gmra.mxu0 %v1142
      %v1291 = vpop.f32.mrf.mxu0
      %v1292 = vadd.f32 0.0, %v1291
      %v1293 = vpop.f32.mrf.mxu0
      %v1294 = vadd.f32 0.0, %v1293
      %1295 = vdwg.mxu0
      %1296 = vst [vmem:[#allocation3] sm:$0xff] %v1217
      %1297 = vst [vmem:[#allocation3 + $0x8] sm:$0xff] %v1219
      %1298 = vst [vmem:[#allocation3 + $0x10] sm:$0xff] %v1222
      %1299 = vst [vmem:[#allocation3 + $0x18] sm:$0xff] %v1224
      %1300 = vst [vmem:[#allocation3 + $0x20] sm:$0xff] %v1227
      %1301 = vst [vmem:[#allocation3 + $0x28] sm:$0xff] %v1229
      %1302 = vst [vmem:[#allocation3 + $0x30] sm:$0xff] %v1232
      %1303 = vst [vmem:[#allocation3 + $0x38] sm:$0xff] %v1234
      %1304 = vst [vmem:[#allocation3 + $0x40] sm:$0xff] %v1237
      %1305 = vst [vmem:[#allocation3 + $0x48] sm:$0xff] %v1239
      %1306 = vst [vmem:[#allocation3 + $0x50] sm:$0xff] %v1242
      %1307 = vst [vmem:[#allocation3 + $0x58] sm:$0xff] %v1244
      %1308 = vst [vmem:[#allocation3 + $0x60] sm:$0xff] %v1247
      %1309 = vst [vmem:[#allocation3 + $0x68] sm:$0xff] %v1249
      %1310 = vst [vmem:[#allocation3 + $0x70] sm:$0xff] %v1252
      %1311 = vst [vmem:[#allocation3 + $0x78] sm:$0xff] %v1254
      %1312 = vst [vmem:[#allocation3 + $0x80] sm:$0xff] %v1257
      %1313 = vst [vmem:[#allocation3 + $0x88] sm:$0xff] %v1259
      %1314 = vst [vmem:[#allocation3 + $0x90] sm:$0xff] %v1262
      %1315 = vst [vmem:[#allocation3 + $0x98] sm:$0xff] %v1264
      %1316 = vst [vmem:[#allocation3 + $0xa0] sm:$0xff] %v1267
      %1317 = vst [vmem:[#allocation3 + $0xa8] sm:$0xff] %v1269
      %1318 = vst [vmem:[#allocation3 + $0xb0] sm:$0xff] %v1272
      %1319 = vst [vmem:[#allocation3 + $0xb8] sm:$0xff] %v1274
      %1320 = vst [vmem:[#allocation3 + $0xc0] sm:$0xff] %v1277
      %1321 = vst [vmem:[#allocation3 + $0xc8] sm:$0xff] %v1279
      %1322 = vst [vmem:[#allocation3 + $0xd0] sm:$0xff] %v1282
      %1323 = vst [vmem:[#allocation3 + $0xd8] sm:$0xff] %v1284
      %1324 = vst [vmem:[#allocation3 + $0xe0] sm:$0xff] %v1287
      %1325 = vst [vmem:[#allocation3 + $0xe8] sm:$0xff] %v1289
      %1326 = vst [vmem:[#allocation3 + $0xf0] sm:$0xff] %v1292
      %1327 = vst [vmem:[#allocation3 + $0xf8] sm:$0xff] %v1294
      %v1328 = vld [vmem:[#allocation2] sm:$0xf]
      %v1329 = vld [vmem:[#allocation2 + $0x4] sm:$0xf]
      %v1330 = vld [vmem:[#allocation2 + $0x8] sm:$0x1]
      %v1331 = vld [vmem:[#allocation2 + $0xc] sm:$0xf]
      %v1332 = vld [vmem:[#allocation2 + $0x10] sm:$0xf]
      %v1333 = vld [vmem:[#allocation2 + $0x14] sm:$0x1]
      %v1334 = vld [vmem:[#allocation2 + $0x18] sm:$0xf]
      %v1335 = vld [vmem:[#allocation2 + $0x1c] sm:$0xf]
      %v1336 = vld [vmem:[#allocation2 + $0x20] sm:$0x1]
      %v1337 = vld [vmem:[#allocation2 + $0x24] sm:$0xf]
      %v1338 = vld [vmem:[#allocation2 + $0x28] sm:$0xf]
      %v1339 = vld [vmem:[#allocation2 + $0x2c] sm:$0x1]
      %v1340 = vld [vmem:[#allocation2 + $0x30] sm:$0xf]
      %v1341 = vld [vmem:[#allocation2 + $0x34] sm:$0xf]
      %v1342 = vld [vmem:[#allocation2 + $0x38] sm:$0x1]
      %v1343 = vld [vmem:[#allocation2 + $0x3c] sm:$0xf]
      %v1344 = vld [vmem:[#allocation2 + $0x40] sm:$0xf]
      %v1345 = vld [vmem:[#allocation2 + $0x44] sm:$0x1]
      %v1346 = vld [vmem:[#allocation2 + $0x48] sm:$0xf]
      %v1347 = vld [vmem:[#allocation2 + $0x4c] sm:$0xf]
      %v1348 = vld [vmem:[#allocation2 + $0x50] sm:$0x1]
      %v1349 = vld [vmem:[#allocation2 + $0x54] sm:$0xf]
      %v1350 = vld [vmem:[#allocation2 + $0x58] sm:$0xf]
      %v1351 = vld [vmem:[#allocation2 + $0x5c] sm:$0x1]
      %v1352 = vld [vmem:[#allocation2 + $0x60] sm:$0xf]
      %v1353 = vld [vmem:[#allocation2 + $0x64] sm:$0xf]
      %v1354 = vld [vmem:[#allocation2 + $0x68] sm:$0x1]
      %v1355 = vld [vmem:[#allocation2 + $0x6c] sm:$0xf]
      %v1356 = vld [vmem:[#allocation2 + $0x70] sm:$0xf]
      %v1357 = vld [vmem:[#allocation2 + $0x74] sm:$0x1]
      %v1358 = vld [vmem:[#allocation2 + $0x78] sm:$0xf]
      %v1359 = vld [vmem:[#allocation2 + $0x7c] sm:$0xf]
      %v1360 = vld [vmem:[#allocation2 + $0x80] sm:$0x1]
      %v1361 = vld [vmem:[#allocation2 + $0x84] sm:$0xf]
      %v1362 = vld [vmem:[#allocation2 + $0x88] sm:$0xf]
      %v1363 = vld [vmem:[#allocation2 + $0x8c] sm:$0x1]
      %v1364 = vld [vmem:[#allocation2 + $0x90] sm:$0xf]
      %v1365 = vld [vmem:[#allocation2 + $0x94] sm:$0xf]
      %v1366 = vld [vmem:[#allocation2 + $0x98] sm:$0x1]
      %v1367 = vld [vmem:[#allocation2 + $0x9c] sm:$0xf]
      %v1368 = vld [vmem:[#allocation2 + $0xa0] sm:$0xf]
      %v1369 = vld [vmem:[#allocation2 + $0xa4] sm:$0x1]
      %v1370 = vld [vmem:[#allocation2 + $0xa8] sm:$0xf]
      %v1371 = vld [vmem:[#allocation2 + $0xac] sm:$0xf]
      %v1372 = vld [vmem:[#allocation2 + $0xb0] sm:$0x1]
      %v1373 = vld [vmem:[#allocation2 + $0xb4] sm:$0xf]
      %v1374 = vld [vmem:[#allocation2 + $0xb8] sm:$0xf]
      %v1375 = vld [vmem:[#allocation2 + $0xbc] sm:$0x1]
      %vm1376 = vsmask.f32 3328
      %vm1377 = vsmask.f32 7440
      %vm1378 = vmor %vm1376, %vm1377
      %v1380 = vshrl.u32 %v1328, 16
      %v1382 = vrot.slane %v1380, 4
      %v1383 = vshll.u32 %v1328, 16
      %v1385 = vrot.slane %v1383, 5
      %v1386 = vor.u32 %v1382, %v1385
      %v1387 = vrot.slane %v1386, 4
      %v1389 = vshll.u32 %v1329, 16
      %v1391 = vrot.slane %v1389, 5
      %v1392 = vsel %vm1378, %v1387, %v1391
      %v1393 = vshrl.u32 %v1329, 16
      %v1395 = vrot.slane %v1393, 4
      %v1396 = vor.u32 %v1395, %v1391
      %v1397 = vrot.slane %v1396, 4
      %v1399 = vshll.u32 %v1330, 16
      %v1401 = vrot.slane %v1399, 5
      %v1402 = vsel %vm1378, %v1397, %v1401
      %v1404 = vshrl.u32 %v1331, 16
      %v1406 = vrot.slane %v1404, 4
      %v1407 = vshll.u32 %v1331, 16
      %v1409 = vrot.slane %v1407, 5
      %v1410 = vor.u32 %v1406, %v1409
      %v1411 = vrot.slane %v1410, 4
      %v1413 = vshll.u32 %v1332, 16
      %v1415 = vrot.slane %v1413, 5
      %v1416 = vsel %vm1378, %v1411, %v1415
      %v1417 = vshrl.u32 %v1332, 16
      %v1419 = vrot.slane %v1417, 4
      %v1420 = vor.u32 %v1419, %v1415
      %v1421 = vrot.slane %v1420, 4
      %v1423 = vshll.u32 %v1333, 16
      %v1425 = vrot.slane %v1423, 5
      %v1426 = vsel %vm1378, %v1421, %v1425
      %v1428 = vshrl.u32 %v1334, 16
      %v1430 = vrot.slane %v1428, 4
      %v1431 = vshll.u32 %v1334, 16
      %v1433 = vrot.slane %v1431, 5
      %v1434 = vor.u32 %v1430, %v1433
      %v1435 = vrot.slane %v1434, 4
      %v1437 = vshll.u32 %v1335, 16
      %v1439 = vrot.slane %v1437, 5
      %v1440 = vsel %vm1378, %v1435, %v1439
      %v1441 = vshrl.u32 %v1335, 16
      %v1443 = vrot.slane %v1441, 4
      %v1444 = vor.u32 %v1443, %v1439
      %v1445 = vrot.slane %v1444, 4
      %v1447 = vshll.u32 %v1336, 16
      %v1449 = vrot.slane %v1447, 5
      %v1450 = vsel %vm1378, %v1445, %v1449
      %v1452 = vshrl.u32 %v1337, 16
      %v1454 = vrot.slane %v1452, 4
      %v1455 = vshll.u32 %v1337, 16
      %v1457 = vrot.slane %v1455, 5
      %v1458 = vor.u32 %v1454, %v1457
      %v1459 = vrot.slane %v1458, 4
      %v1461 = vshll.u32 %v1338, 16
      %v1463 = vrot.slane %v1461, 5
      %v1464 = vsel %vm1378, %v1459, %v1463
      %v1465 = vshrl.u32 %v1338, 16
      %v1467 = vrot.slane %v1465, 4
      %v1468 = vor.u32 %v1467, %v1463
      %v1469 = vrot.slane %v1468, 4
      %v1471 = vshll.u32 %v1339, 16
      %v1473 = vrot.slane %v1471, 5
      %v1474 = vsel %vm1378, %v1469, %v1473
      %v1476 = vshrl.u32 %v1340, 16
      %v1478 = vrot.slane %v1476, 4
      %v1479 = vshll.u32 %v1340, 16
      %v1481 = vrot.slane %v1479, 5
      %v1482 = vor.u32 %v1478, %v1481
      %v1483 = vrot.slane %v1482, 4
      %v1485 = vshll.u32 %v1341, 16
      %v1487 = vrot.slane %v1485, 5
      %v1488 = vsel %vm1378, %v1483, %v1487
      %v1489 = vshrl.u32 %v1341, 16
      %v1491 = vrot.slane %v1489, 4
      %v1492 = vor.u32 %v1491, %v1487
      %v1493 = vrot.slane %v1492, 4
      %v1495 = vshll.u32 %v1342, 16
      %v1497 = vrot.slane %v1495, 5
      %v1498 = vsel %vm1378, %v1493, %v1497
      %v1500 = vshrl.u32 %v1343, 16
      %v1502 = vrot.slane %v1500, 4
      %v1503 = vshll.u32 %v1343, 16
      %v1505 = vrot.slane %v1503, 5
      %v1506 = vor.u32 %v1502, %v1505
      %v1507 = vrot.slane %v1506, 4
      %v1509 = vshll.u32 %v1344, 16
      %v1511 = vrot.slane %v1509, 5
      %v1512 = vsel %vm1378, %v1507, %v1511
      %v1513 = vshrl.u32 %v1344, 16
      %v1515 = vrot.slane %v1513, 4
      %v1516 = vor.u32 %v1515, %v1511
      %v1517 = vrot.slane %v1516, 4
      %v1519 = vshll.u32 %v1345, 16
      %v1521 = vrot.slane %v1519, 5
      %v1522 = vsel %vm1378, %v1517, %v1521
      %v1524 = vshrl.u32 %v1346, 16
      %v1526 = vrot.slane %v1524, 4
      %v1527 = vshll.u32 %v1346, 16
      %v1529 = vrot.slane %v1527, 5
      %v1530 = vor.u32 %v1526, %v1529
      %v1531 = vrot.slane %v1530, 4
      %v1533 = vshll.u32 %v1347, 16
      %v1535 = vrot.slane %v1533, 5
      %v1536 = vsel %vm1378, %v1531, %v1535
      %v1537 = vshrl.u32 %v1347, 16
      %v1539 = vrot.slane %v1537, 4
      %v1540 = vor.u32 %v1539, %v1535
      %v1541 = vrot.slane %v1540, 4
      %v1543 = vshll.u32 %v1348, 16
      %v1545 = vrot.slane %v1543, 5
      %v1546 = vsel %vm1378, %v1541, %v1545
      %v1548 = vshrl.u32 %v1349, 16
      %v1550 = vrot.slane %v1548, 4
      %v1551 = vshll.u32 %v1349, 16
      %v1553 = vrot.slane %v1551, 5
      %v1554 = vor.u32 %v1550, %v1553
      %v1555 = vrot.slane %v1554, 4
      %v1557 = vshll.u32 %v1350, 16
      %v1559 = vrot.slane %v1557, 5
      %v1560 = vsel %vm1378, %v1555, %v1559
      %v1561 = vshrl.u32 %v1350, 16
      %v1563 = vrot.slane %v1561, 4
      %v1564 = vor.u32 %v1563, %v1559
      %v1565 = vrot.slane %v1564, 4
      %v1567 = vshll.u32 %v1351, 16
      %v1569 = vrot.slane %v1567, 5
      %v1570 = vsel %vm1378, %v1565, %v1569
      %v1572 = vshrl.u32 %v1352, 16
      %v1574 = vrot.slane %v1572, 4
      %v1575 = vshll.u32 %v1352, 16
      %v1577 = vrot.slane %v1575, 5
      %v1578 = vor.u32 %v1574, %v1577
      %v1579 = vrot.slane %v1578, 4
      %v1581 = vshll.u32 %v1353, 16
      %v1583 = vrot.slane %v1581, 5
      %v1584 = vsel %vm1378, %v1579, %v1583
      %v1585 = vshrl.u32 %v1353, 16
      %v1587 = vrot.slane %v1585, 4
      %v1588 = vor.u32 %v1587, %v1583
      %v1589 = vrot.slane %v1588, 4
      %v1591 = vshll.u32 %v1354, 16
      %v1593 = vrot.slane %v1591, 5
      %v1594 = vsel %vm1378, %v1589, %v1593
      %v1596 = vshrl.u32 %v1355, 16
      %v1598 = vrot.slane %v1596, 4
      %v1599 = vshll.u32 %v1355, 16
      %v1601 = vrot.slane %v1599, 5
      %v1602 = vor.u32 %v1598, %v1601
      %v1603 = vrot.slane %v1602, 4
      %v1605 = vshll.u32 %v1356, 16
      %v1607 = vrot.slane %v1605, 5
      %v1608 = vsel %vm1378, %v1603, %v1607
      %v1609 = vshrl.u32 %v1356, 16
      %v1611 = vrot.slane %v1609, 4
      %v1612 = vor.u32 %v1611, %v1607
      %v1613 = vrot.slane %v1612, 4
      %v1615 = vshll.u32 %v1357, 16
      %v1617 = vrot.slane %v1615, 5
      %v1618 = vsel %vm1378, %v1613, %v1617
      %v1620 = vshrl.u32 %v1358, 16
      %v1622 = vrot.slane %v1620, 4
      %v1623 = vshll.u32 %v1358, 16
      %v1625 = vrot.slane %v1623, 5
      %v1626 = vor.u32 %v1622, %v1625
      %v1627 = vrot.slane %v1626, 4
      %v1629 = vshll.u32 %v1359, 16
      %v1631 = vrot.slane %v1629, 5
      %v1632 = vsel %vm1378, %v1627, %v1631
      %v1633 = vshrl.u32 %v1359, 16
      %v1635 = vrot.slane %v1633, 4
      %v1636 = vor.u32 %v1635, %v1631
      %v1637 = vrot.slane %v1636, 4
      %v1639 = vshll.u32 %v1360, 16
      %v1641 = vrot.slane %v1639, 5
      %v1642 = vsel %vm1378, %v1637, %v1641
      %v1644 = vshrl.u32 %v1361, 16
      %v1646 = vrot.slane %v1644, 4
      %v1647 = vshll.u32 %v1361, 16
      %v1649 = vrot.slane %v1647, 5
      %v1650 = vor.u32 %v1646, %v1649
      %v1651 = vrot.slane %v1650, 4
      %v1653 = vshll.u32 %v1362, 16
      %v1655 = vrot.slane %v1653, 5
      %v1656 = vsel %vm1378, %v1651, %v1655
      %v1657 = vshrl.u32 %v1362, 16
      %v1659 = vrot.slane %v1657, 4
      %v1660 = vor.u32 %v1659, %v1655
      %v1661 = vrot.slane %v1660, 4
      %v1663 = vshll.u32 %v1363, 16
      %v1665 = vrot.slane %v1663, 5
      %v1666 = vsel %vm1378, %v1661, %v1665
      %v1668 = vshrl.u32 %v1364, 16
      %v1670 = vrot.slane %v1668, 4
      %v1671 = vshll.u32 %v1364, 16
      %v1673 = vrot.slane %v1671, 5
      %v1674 = vor.u32 %v1670, %v1673
      %v1675 = vrot.slane %v1674, 4
      %v1677 = vshll.u32 %v1365, 16
      %v1679 = vrot.slane %v1677, 5
      %v1680 = vsel %vm1378, %v1675, %v1679
      %v1681 = vshrl.u32 %v1365, 16
      %v1683 = vrot.slane %v1681, 4
      %v1684 = vor.u32 %v1683, %v1679
      %v1685 = vrot.slane %v1684, 4
      %v1687 = vshll.u32 %v1366, 16
      %v1689 = vrot.slane %v1687, 5
      %v1690 = vsel %vm1378, %v1685, %v1689
      %v1692 = vshrl.u32 %v1367, 16
      %v1694 = vrot.slane %v1692, 4
      %v1695 = vshll.u32 %v1367, 16
      %v1697 = vrot.slane %v1695, 5
      %v1698 = vor.u32 %v1694, %v1697
      %v1699 = vrot.slane %v1698, 4
      %v1701 = vshll.u32 %v1368, 16
      %v1703 = vrot.slane %v1701, 5
      %v1704 = vsel %vm1378, %v1699, %v1703
      %v1705 = vshrl.u32 %v1368, 16
      %v1707 = vrot.slane %v1705, 4
      %v1708 = vor.u32 %v1707, %v1703
      %v1709 = vrot.slane %v1708, 4
      %v1711 = vshll.u32 %v1369, 16
      %v1713 = vrot.slane %v1711, 5
      %v1714 = vsel %vm1378, %v1709, %v1713
      %v1716 = vshrl.u32 %v1370, 16
      %v1718 = vrot.slane %v1716, 4
      %v1719 = vshll.u32 %v1370, 16
      %v1721 = vrot.slane %v1719, 5
      %v1722 = vor.u32 %v1718, %v1721
      %v1723 = vrot.slane %v1722, 4
      %v1725 = vshll.u32 %v1371, 16
      %v1727 = vrot.slane %v1725, 5
      %v1728 = vsel %vm1378, %v1723, %v1727
      %v1729 = vshrl.u32 %v1371, 16
      %v1731 = vrot.slane %v1729, 4
      %v1732 = vor.u32 %v1731, %v1727
      %v1733 = vrot.slane %v1732, 4
      %v1735 = vshll.u32 %v1372, 16
      %v1737 = vrot.slane %v1735, 5
      %v1738 = vsel %vm1378, %v1733, %v1737
      %v1740 = vshrl.u32 %v1373, 16
      %v1742 = vrot.slane %v1740, 4
      %v1743 = vshll.u32 %v1373, 16
      %v1745 = vrot.slane %v1743, 5
      %v1746 = vor.u32 %v1742, %v1745
      %v1747 = vrot.slane %v1746, 4
      %v1749 = vshll.u32 %v1374, 16
      %v1751 = vrot.slane %v1749, 5
      %v1752 = vsel %vm1378, %v1747, %v1751
      %v1753 = vshrl.u32 %v1374, 16
      %v1755 = vrot.slane %v1753, 4
      %v1756 = vor.u32 %v1755, %v1751
      %v1757 = vrot.slane %v1756, 4
      %v1759 = vshll.u32 %v1375, 16
      %v1761 = vrot.slane %v1759, 5
      %v1762 = vsel %vm1378, %v1757, %v1761
      %v1763 = vld [vmem:[%s3 + $0x40] sm:$0xf]
      %v1764 = vld [vmem:[%s3 + $0x44] sm:$0xf]
      %v1765 = vld [vmem:[%s3 + $0x48] sm:$0xf]
      %v1766 = vld [vmem:[%s3 + $0x4c] sm:$0xf]
      %v1767 = vld [vmem:[%s3 + $0x50] sm:$0xf]
      %v1768 = vld [vmem:[%s3 + $0x54] sm:$0xf]
      %v1769 = vld [vmem:[%s3 + $0x58] sm:$0xf]
      %v1770 = vld [vmem:[%s3 + $0x5c] sm:$0xf]
      %v1771 = vld [vmem:[%s3 + $0x60] sm:$0xf]
      %v1772 = vld [vmem:[%s3 + $0x64] sm:$0xf]
      %v1773 = vld [vmem:[%s3 + $0x68] sm:$0xf]
      %v1774 = vld [vmem:[%s3 + $0x6c] sm:$0xf]
      %v1775 = vld [vmem:[%s3 + $0x70] sm:$0xf]
      %v1776 = vld [vmem:[%s3 + $0x74] sm:$0xf]
      %v1777 = vld [vmem:[%s3 + $0x78] sm:$0xf]
      %v1778 = vld [vmem:[%s3 + $0x7c] sm:$0xf]
      %v1779 = vunpack.c.l.b16 %v1392
      %v1780 = vunpack.c.l.b16 %v1402
      %v1781 = vunpack.c.l.b16 %v1416
      %v1782 = vunpack.c.l.b16 %v1426
      %v1783 = vunpack.c.l.b16 %v1440
      %v1784 = vunpack.c.l.b16 %v1450
      %v1785 = vunpack.c.l.b16 %v1464
      %v1786 = vunpack.c.l.b16 %v1474
      %v1787 = vunpack.c.l.b16 %v1488
      %v1788 = vunpack.c.l.b16 %v1498
      %v1789 = vunpack.c.l.b16 %v1512
      %v1790 = vunpack.c.l.b16 %v1522
      %v1791 = vunpack.c.l.b16 %v1536
      %v1792 = vunpack.c.l.b16 %v1546
      %v1793 = vunpack.c.l.b16 %v1560
      %v1794 = vunpack.c.l.b16 %v1570
      %v1795 = vunpack.c.l.b16 %v1584
      %v1796 = vunpack.c.l.b16 %v1594
      %v1797 = vunpack.c.l.b16 %v1608
      %v1798 = vunpack.c.l.b16 %v1618
      %v1799 = vunpack.c.l.b16 %v1632
      %v1800 = vunpack.c.l.b16 %v1642
      %v1801 = vunpack.c.l.b16 %v1656
      %v1802 = vunpack.c.l.b16 %v1666
      %v1803 = vunpack.c.l.b16 %v1680
      %v1804 = vunpack.c.l.b16 %v1690
      %v1805 = vunpack.c.l.b16 %v1704
      %v1806 = vunpack.c.l.b16 %v1714
      %v1807 = vunpack.c.l.b16 %v1728
      %v1808 = vunpack.c.l.b16 %v1738
      %v1809 = vunpack.c.l.b16 %v1752
      %v1810 = vunpack.c.l.b16 %v1762
      %v1811 = vpack.c.b16 %v1780, %v1779
      %v1812 = vpack.c.b16 %v1782, %v1781
      %v1813 = vpack.c.b16 %v1784, %v1783
      %v1814 = vpack.c.b16 %v1786, %v1785
      %v1815 = vpack.c.b16 %v1788, %v1787
      %v1816 = vpack.c.b16 %v1790, %v1789
      %v1817 = vpack.c.b16 %v1792, %v1791
      %v1818 = vpack.c.b16 %v1794, %v1793
      %v1819 = vpack.c.b16 %v1796, %v1795
      %v1820 = vpack.c.b16 %v1798, %v1797
      %v1821 = vpack.c.b16 %v1800, %v1799
      %v1822 = vpack.c.b16 %v1802, %v1801
      %v1823 = vpack.c.b16 %v1804, %v1803
      %v1824 = vpack.c.b16 %v1806, %v1805
      %v1825 = vpack.c.b16 %v1808, %v1807
      %v1826 = vpack.c.b16 %v1810, %v1809
      %v1859 = vunpack.c.l.b16 %v1763
      %v1860 = vunpack.c.l.b16 %v1764
      %v1861 = vunpack.c.l.b16 %v1765
      %v1862 = vunpack.c.l.b16 %v1766
      %v1863 = vunpack.c.l.b16 %v1767
      %v1864 = vunpack.c.l.b16 %v1768
      %v1865 = vunpack.c.l.b16 %v1769
      %v1866 = vunpack.c.l.b16 %v1770
      %v1867 = vunpack.c.l.b16 %v1771
      %v1868 = vunpack.c.l.b16 %v1772
      %v1869 = vunpack.c.l.b16 %v1773
      %v1870 = vunpack.c.l.b16 %v1774
      %v1871 = vunpack.c.l.b16 %v1775
      %v1872 = vunpack.c.l.b16 %v1776
      %v1873 = vunpack.c.l.b16 %v1777
      %v1874 = vunpack.c.l.b16 %v1778
      %v1875 = vpack.c.b16 %v1860, %v1859
      %v1876 = vpack.c.b16 %v1862, %v1861
      %v1877 = vpack.c.b16 %v1864, %v1863
      %v1878 = vpack.c.b16 %v1866, %v1865
      %v1879 = vpack.c.b16 %v1868, %v1867
      %v1880 = vpack.c.b16 %v1870, %v1869
      %v1881 = vpack.c.b16 %v1872, %v1871
      %v1882 = vpack.c.b16 %v1874, %v1873
      %1891 = vmatpush.bf16.msra.mxu0 %v1882
      %1892 = vmatpush.bf16.msra.mxu0 %v1881
      %1893 = vmatpush.bf16.msra.mxu0 %v1880
      %1894 = vmatpush.bf16.msra.mxu0 %v1879
      %1895 = vmatpush.bf16.msra.mxu0 %v1878
      %1896 = vmatpush.bf16.msra.mxu0 %v1877
      %1897 = vmatpush.bf16.msra.mxu0 %v1876
      %1898 = vmatpush.bf16.msra.mxu0 %v1875
      %1899 = vmatmul.bf16.gmra.mxu0 %v1811
      %v1900 = vpop.f32.mrf.mxu0
      %v1901 = vadd.f32 0.0, %v1900
      %v1902 = vpop.f32.mrf.mxu0
      %v1903 = vadd.f32 0.0, %v1902
      %1904 = vmatmul.bf16.gmra.mxu0 %v1812
      %v1905 = vpop.f32.mrf.mxu0
      %v1906 = vadd.f32 0.0, %v1905
      %v1907 = vpop.f32.mrf.mxu0
      %v1908 = vadd.f32 0.0, %v1907
      %1909 = vmatmul.bf16.gmra.mxu0 %v1813
      %v1910 = vpop.f32.mrf.mxu0
      %v1911 = vadd.f32 0.0, %v1910
      %v1912 = vpop.f32.mrf.mxu0
      %v1913 = vadd.f32 0.0, %v1912
      %1914 = vmatmul.bf16.gmra.mxu0 %v1814
      %v1915 = vpop.f32.mrf.mxu0
      %v1916 = vadd.f32 0.0, %v1915
      %v1917 = vpop.f32.mrf.mxu0
      %v1918 = vadd.f32 0.0, %v1917
      %1919 = vmatmul.bf16.gmra.mxu0 %v1815
      %v1920 = vpop.f32.mrf.mxu0
      %v1921 = vadd.f32 0.0, %v1920
      %v1922 = vpop.f32.mrf.mxu0
      %v1923 = vadd.f32 0.0, %v1922
      %1924 = vmatmul.bf16.gmra.mxu0 %v1816
      %v1925 = vpop.f32.mrf.mxu0
      %v1926 = vadd.f32 0.0, %v1925
      %v1927 = vpop.f32.mrf.mxu0
      %v1928 = vadd.f32 0.0, %v1927
      %1929 = vmatmul.bf16.gmra.mxu0 %v1817
      %v1930 = vpop.f32.mrf.mxu0
      %v1931 = vadd.f32 0.0, %v1930
      %v1932 = vpop.f32.mrf.mxu0
      %v1933 = vadd.f32 0.0, %v1932
      %1934 = vmatmul.bf16.gmra.mxu0 %v1818
      %v1935 = vpop.f32.mrf.mxu0
      %v1936 = vadd.f32 0.0, %v1935
      %v1937 = vpop.f32.mrf.mxu0
      %v1938 = vadd.f32 0.0, %v1937
      %1939 = vmatmul.bf16.gmra.mxu0 %v1819
      %v1940 = vpop.f32.mrf.mxu0
      %v1941 = vadd.f32 0.0, %v1940
      %v1942 = vpop.f32.mrf.mxu0
      %v1943 = vadd.f32 0.0, %v1942
      %1944 = vmatmul.bf16.gmra.mxu0 %v1820
      %v1945 = vpop.f32.mrf.mxu0
      %v1946 = vadd.f32 0.0, %v1945
      %v1947 = vpop.f32.mrf.mxu0
      %v1948 = vadd.f32 0.0, %v1947
      %1949 = vmatmul.bf16.gmra.mxu0 %v1821
      %v1950 = vpop.f32.mrf.mxu0
      %v1951 = vadd.f32 0.0, %v1950
      %v1952 = vpop.f32.mrf.mxu0
      %v1953 = vadd.f32 0.0, %v1952
      %1954 = vmatmul.bf16.gmra.mxu0 %v1822
      %v1955 = vpop.f32.mrf.mxu0
      %v1956 = vadd.f32 0.0, %v1955
      %v1957 = vpop.f32.mrf.mxu0
      %v1958 = vadd.f32 0.0, %v1957
      %1959 = vmatmul.bf16.gmra.mxu0 %v1823
      %v1960 = vpop.f32.mrf.mxu0
      %v1961 = vadd.f32 0.0, %v1960
      %v1962 = vpop.f32.mrf.mxu0
      %v1963 = vadd.f32 0.0, %v1962
      %1964 = vmatmul.bf16.gmra.mxu0 %v1824
      %v1965 = vpop.f32.mrf.mxu0
      %v1966 = vadd.f32 0.0, %v1965
      %v1967 = vpop.f32.mrf.mxu0
      %v1968 = vadd.f32 0.0, %v1967
      %1969 = vmatmul.bf16.gmra.mxu0 %v1825
      %v1970 = vpop.f32.mrf.mxu0
      %v1971 = vadd.f32 0.0, %v1970
      %v1972 = vpop.f32.mrf.mxu0
      %v1973 = vadd.f32 0.0, %v1972
      %1974 = vmatmul.bf16.gmra.mxu0 %v1826
      %v1975 = vpop.f32.mrf.mxu0
      %v1976 = vadd.f32 0.0, %v1975
      %v1977 = vpop.f32.mrf.mxu0
      %v1978 = vadd.f32 0.0, %v1977
      %1979 = vdwg.mxu0
      %v1980 = vld [vmem:[#allocation3] sm:$0xff]
      %v1981 = vld [vmem:[#allocation3 + $0x8] sm:$0xff]
      %v1982 = vld [vmem:[#allocation3 + $0x10] sm:$0xff]
      %v1983 = vld [vmem:[#allocation3 + $0x18] sm:$0xff]
      %v1984 = vld [vmem:[#allocation3 + $0x20] sm:$0xff]
      %v1985 = vld [vmem:[#allocation3 + $0x28] sm:$0xff]
      %v1986 = vld [vmem:[#allocation3 + $0x30] sm:$0xff]
      %v1987 = vld [vmem:[#allocation3 + $0x38] sm:$0xff]
      %v1988 = vld [vmem:[#allocation3 + $0x40] sm:$0xff]
      %v1989 = vld [vmem:[#allocation3 + $0x48] sm:$0xff]
      %v1990 = vld [vmem:[#allocation3 + $0x50] sm:$0xff]
      %v1991 = vld [vmem:[#allocation3 + $0x58] sm:$0xff]
      %v1992 = vld [vmem:[#allocation3 + $0x60] sm:$0xff]
      %v1993 = vld [vmem:[#allocation3 + $0x68] sm:$0xff]
      %v1994 = vld [vmem:[#allocation3 + $0x70] sm:$0xff]
      %v1995 = vld [vmem:[#allocation3 + $0x78] sm:$0xff]
      %v1996 = vld [vmem:[#allocation3 + $0x80] sm:$0xff]
      %v1997 = vld [vmem:[#allocation3 + $0x88] sm:$0xff]
      %v1998 = vld [vmem:[#allocation3 + $0x90] sm:$0xff]
      %v1999 = vld [vmem:[#allocation3 + $0x98] sm:$0xff]
      %v2000 = vld [vmem:[#allocation3 + $0xa0] sm:$0xff]
      %v2001 = vld [vmem:[#allocation3 + $0xa8] sm:$0xff]
      %v2002 = vld [vmem:[#allocation3 + $0xb0] sm:$0xff]
      %v2003 = vld [vmem:[#allocation3 + $0xb8] sm:$0xff]
      %v2004 = vld [vmem:[#allocation3 + $0xc0] sm:$0xff]
      %v2005 = vld [vmem:[#allocation3 + $0xc8] sm:$0xff]
      %v2006 = vld [vmem:[#allocation3 + $0xd0] sm:$0xff]
      %v2007 = vld [vmem:[#allocation3 + $0xd8] sm:$0xff]
      %v2008 = vld [vmem:[#allocation3 + $0xe0] sm:$0xff]
      %v2009 = vld [vmem:[#allocation3 + $0xe8] sm:$0xff]
      %v2010 = vld [vmem:[#allocation3 + $0xf0] sm:$0xff]
      %v2011 = vld [vmem:[#allocation3 + $0xf8] sm:$0xff]
      %v2012 = vadd.f32 %v1980, %v1901
      %v2013 = vadd.f32 %v1981, %v1903
      %v2014 = vadd.f32 %v1982, %v1906
      %v2015 = vadd.f32 %v1983, %v1908
      %v2016 = vadd.f32 %v1984, %v1911
      %v2017 = vadd.f32 %v1985, %v1913
      %v2018 = vadd.f32 %v1986, %v1916
      %v2019 = vadd.f32 %v1987, %v1918
      %v2020 = vadd.f32 %v1988, %v1921
      %v2021 = vadd.f32 %v1989, %v1923
      %v2022 = vadd.f32 %v1990, %v1926
      %v2023 = vadd.f32 %v1991, %v1928
      %v2024 = vadd.f32 %v1992, %v1931
      %v2025 = vadd.f32 %v1993, %v1933
      %v2026 = vadd.f32 %v1994, %v1936
      %v2027 = vadd.f32 %v1995, %v1938
      %v2028 = vadd.f32 %v1996, %v1941
      %v2029 = vadd.f32 %v1997, %v1943
      %v2030 = vadd.f32 %v1998, %v1946
      %v2031 = vadd.f32 %v1999, %v1948
      %v2032 = vadd.f32 %v2000, %v1951
      %v2033 = vadd.f32 %v2001, %v1953
      %v2034 = vadd.f32 %v2002, %v1956
      %v2035 = vadd.f32 %v2003, %v1958
      %v2036 = vadd.f32 %v2004, %v1961
      %v2037 = vadd.f32 %v2005, %v1963
      %v2038 = vadd.f32 %v2006, %v1966
      %v2039 = vadd.f32 %v2007, %v1968
      %v2040 = vadd.f32 %v2008, %v1971
      %v2041 = vadd.f32 %v2009, %v1973
      %v2042 = vadd.f32 %v2010, %v1976
      %v2043 = vadd.f32 %v2011, %v1978
      %2044 = vst [vmem:[#allocation3] sm:$0xff] %v2012
      %2045 = vst [vmem:[#allocation3 + $0x8] sm:$0xff] %v2013
      %2046 = vst [vmem:[#allocation3 + $0x10] sm:$0xff] %v2014
      %2047 = vst [vmem:[#allocation3 + $0x18] sm:$0xff] %v2015
      %2048 = vst [vmem:[#allocation3 + $0x20] sm:$0xff] %v2016
      %2049 = vst [vmem:[#allocation3 + $0x28] sm:$0xff] %v2017
      %2050 = vst [vmem:[#allocation3 + $0x30] sm:$0xff] %v2018
      %2051 = vst [vmem:[#allocation3 + $0x38] sm:$0xff] %v2019
      %2052 = vst [vmem:[#allocation3 + $0x40] sm:$0xff] %v2020
      %2053 = vst [vmem:[#allocation3 + $0x48] sm:$0xff] %v2021
      %2054 = vst [vmem:[#allocation3 + $0x50] sm:$0xff] %v2022
      %2055 = vst [vmem:[#allocation3 + $0x58] sm:$0xff] %v2023
      %2056 = vst [vmem:[#allocation3 + $0x60] sm:$0xff] %v2024
      %2057 = vst [vmem:[#allocation3 + $0x68] sm:$0xff] %v2025
      %2058 = vst [vmem:[#allocation3 + $0x70] sm:$0xff] %v2026
      %2059 = vst [vmem:[#allocation3 + $0x78] sm:$0xff] %v2027
      %2060 = vst [vmem:[#allocation3 + $0x80] sm:$0xff] %v2028
      %2061 = vst [vmem:[#allocation3 + $0x88] sm:$0xff] %v2029
      %2062 = vst [vmem:[#allocation3 + $0x90] sm:$0xff] %v2030
      %2063 = vst [vmem:[#allocation3 + $0x98] sm:$0xff] %v2031
      %2064 = vst [vmem:[#allocation3 + $0xa0] sm:$0xff] %v2032
      %2065 = vst [vmem:[#allocation3 + $0xa8] sm:$0xff] %v2033
      %2066 = vst [vmem:[#allocation3 + $0xb0] sm:$0xff] %v2034
      %2067 = vst [vmem:[#allocation3 + $0xb8] sm:$0xff] %v2035
      %2068 = vst [vmem:[#allocation3 + $0xc0] sm:$0xff] %v2036
      %2069 = vst [vmem:[#allocation3 + $0xc8] sm:$0xff] %v2037
      %2070 = vst [vmem:[#allocation3 + $0xd0] sm:$0xff] %v2038
      %2071 = vst [vmem:[#allocation3 + $0xd8] sm:$0xff] %v2039
      %2072 = vst [vmem:[#allocation3 + $0xe0] sm:$0xff] %v2040
      %2073 = vst [vmem:[#allocation3 + $0xe8] sm:$0xff] %v2041
      %2074 = vst [vmem:[#allocation3 + $0xf0] sm:$0xff] %v2042
      %2075 = vst [vmem:[#allocation3 + $0xf8] sm:$0xff] %v2043
      %v2076 = vld [vmem:[#allocation2] sm:$0xe]
      %v2077 = vld [vmem:[#allocation2 + $0x4] sm:$0xf]
      %v2078 = vld [vmem:[#allocation2 + $0x8] sm:$0x1]
      %v2079 = vld [vmem:[#allocation2 + $0xc] sm:$0xe]
      %v2080 = vld [vmem:[#allocation2 + $0x10] sm:$0xf]
      %v2081 = vld [vmem:[#allocation2 + $0x14] sm:$0x1]
      %v2082 = vld [vmem:[#allocation2 + $0x18] sm:$0xe]
      %v2083 = vld [vmem:[#allocation2 + $0x1c] sm:$0xf]
      %v2084 = vld [vmem:[#allocation2 + $0x20] sm:$0x1]
      %v2085 = vld [vmem:[#allocation2 + $0x24] sm:$0xe]
      %v2086 = vld [vmem:[#allocation2 + $0x28] sm:$0xf]
      %v2087 = vld [vmem:[#allocation2 + $0x2c] sm:$0x1]
      %v2088 = vld [vmem:[#allocation2 + $0x30] sm:$0xe]
      %v2089 = vld [vmem:[#allocation2 + $0x34] sm:$0xf]
      %v2090 = vld [vmem:[#allocation2 + $0x38] sm:$0x1]
      %v2091 = vld [vmem:[#allocation2 + $0x3c] sm:$0xe]
      %v2092 = vld [vmem:[#allocation2 + $0x40] sm:$0xf]
      %v2093 = vld [vmem:[#allocation2 + $0x44] sm:$0x1]
      %v2094 = vld [vmem:[#allocation2 + $0x48] sm:$0xe]
      %v2095 = vld [vmem:[#allocation2 + $0x4c] sm:$0xf]
      %v2096 = vld [vmem:[#allocation2 + $0x50] sm:$0x1]
      %v2097 = vld [vmem:[#allocation2 + $0x54] sm:$0xe]
      %v2098 = vld [vmem:[#allocation2 + $0x58] sm:$0xf]
      %v2099 = vld [vmem:[#allocation2 + $0x5c] sm:$0x1]
      %v2100 = vld [vmem:[#allocation2 + $0x60] sm:$0xe]
      %v2101 = vld [vmem:[#allocation2 + $0x64] sm:$0xf]
      %v2102 = vld [vmem:[#allocation2 + $0x68] sm:$0x1]
      %v2103 = vld [vmem:[#allocation2 + $0x6c] sm:$0xe]
      %v2104 = vld [vmem:[#allocation2 + $0x70] sm:$0xf]
      %v2105 = vld [vmem:[#allocation2 + $0x74] sm:$0x1]
      %v2106 = vld [vmem:[#allocation2 + $0x78] sm:$0xe]
      %v2107 = vld [vmem:[#allocation2 + $0x7c] sm:$0xf]
      %v2108 = vld [vmem:[#allocation2 + $0x80] sm:$0x1]
      %v2109 = vld [vmem:[#allocation2 + $0x84] sm:$0xe]
      %v2110 = vld [vmem:[#allocation2 + $0x88] sm:$0xf]
      %v2111 = vld [vmem:[#allocation2 + $0x8c] sm:$0x1]
      %v2112 = vld [vmem:[#allocation2 + $0x90] sm:$0xe]
      %v2113 = vld [vmem:[#allocation2 + $0x94] sm:$0xf]
      %v2114 = vld [vmem:[#allocation2 + $0x98] sm:$0x1]
      %v2115 = vld [vmem:[#allocation2 + $0x9c] sm:$0xe]
      %v2116 = vld [vmem:[#allocation2 + $0xa0] sm:$0xf]
      %v2117 = vld [vmem:[#allocation2 + $0xa4] sm:$0x1]
      %v2118 = vld [vmem:[#allocation2 + $0xa8] sm:$0xe]
      %v2119 = vld [vmem:[#allocation2 + $0xac] sm:$0xf]
      %v2120 = vld [vmem:[#allocation2 + $0xb0] sm:$0x1]
      %v2121 = vld [vmem:[#allocation2 + $0xb4] sm:$0xe]
      %v2122 = vld [vmem:[#allocation2 + $0xb8] sm:$0xf]
      %v2123 = vld [vmem:[#allocation2 + $0xbc] sm:$0x1]
      %vm2172 = vcmask 1042432
      %vm2173 = vcmask 1046532
      %vm2174 = vmor %vm2172, %vm2173
      %v2175 = vrot.slane %v2076, 5
      %v2176 = vrot.slane %v2175, 4
      %v2177 = vrot.slane %v2077, 5
      %v2178 = vsel %vm2174, %v2176, %v2177
      %v2179 = vrot.slane %v2177, 4
      %v2180 = vrot.slane %v2078, 5
      %v2181 = vsel %vm2174, %v2179, %v2180
      %v2182 = vrot.slane %v2079, 5
      %v2183 = vrot.slane %v2182, 4
      %v2184 = vrot.slane %v2080, 5
      %v2185 = vsel %vm2174, %v2183, %v2184
      %v2186 = vrot.slane %v2184, 4
      %v2187 = vrot.slane %v2081, 5
      %v2188 = vsel %vm2174, %v2186, %v2187
      %v2189 = vrot.slane %v2082, 5
      %v2190 = vrot.slane %v2189, 4
      %v2191 = vrot.slane %v2083, 5
      %v2192 = vsel %vm2174, %v2190, %v2191
      %v2193 = vrot.slane %v2191, 4
      %v2194 = vrot.slane %v2084, 5
      %v2195 = vsel %vm2174, %v2193, %v2194
      %v2196 = vrot.slane %v2085, 5
      %v2197 = vrot.slane %v2196, 4
      %v2198 = vrot.slane %v2086, 5
      %v2199 = vsel %vm2174, %v2197, %v2198
      %v2200 = vrot.slane %v2198, 4
      %v2201 = vrot.slane %v2087, 5
      %v2202 = vsel %vm2174, %v2200, %v2201
      %v2203 = vrot.slane %v2088, 5
      %v2204 = vrot.slane %v2203, 4
      %v2205 = vrot.slane %v2089, 5
      %v2206 = vsel %vm2174, %v2204, %v2205
      %v2207 = vrot.slane %v2205, 4
      %v2208 = vrot.slane %v2090, 5
      %v2209 = vsel %vm2174, %v2207, %v2208
      %v2210 = vrot.slane %v2091, 5
      %v2211 = vrot.slane %v2210, 4
      %v2212 = vrot.slane %v2092, 5
      %v2213 = vsel %vm2174, %v2211, %v2212
      %v2214 = vrot.slane %v2212, 4
      %v2215 = vrot.slane %v2093, 5
      %v2216 = vsel %vm2174, %v2214, %v2215
      %v2217 = vrot.slane %v2094, 5
      %v2218 = vrot.slane %v2217, 4
      %v2219 = vrot.slane %v2095, 5
      %v2220 = vsel %vm2174, %v2218, %v2219
      %v2221 = vrot.slane %v2219, 4
      %v2222 = vrot.slane %v2096, 5
      %v2223 = vsel %vm2174, %v2221, %v2222
      %v2224 = vrot.slane %v2097, 5
      %v2225 = vrot.slane %v2224, 4
      %v2226 = vrot.slane %v2098, 5
      %v2227 = vsel %vm2174, %v2225, %v2226
      %v2228 = vrot.slane %v2226, 4
      %v2229 = vrot.slane %v2099, 5
      %v2230 = vsel %vm2174, %v2228, %v2229
      %v2231 = vrot.slane %v2100, 5
      %v2232 = vrot.slane %v2231, 4
      %v2233 = vrot.slane %v2101, 5
      %v2234 = vsel %vm2174, %v2232, %v2233
      %v2235 = vrot.slane %v2233, 4
      %v2236 = vrot.slane %v2102, 5
      %v2237 = vsel %vm2174, %v2235, %v2236
      %v2238 = vrot.slane %v2103, 5
      %v2239 = vrot.slane %v2238, 4
      %v2240 = vrot.slane %v2104, 5
      %v2241 = vsel %vm2174, %v2239, %v2240
      %v2242 = vrot.slane %v2240, 4
      %v2243 = vrot.slane %v2105, 5
      %v2244 = vsel %vm2174, %v2242, %v2243
      %v2245 = vrot.slane %v2106, 5
      %v2246 = vrot.slane %v2245, 4
      %v2247 = vrot.slane %v2107, 5
      %v2248 = vsel %vm2174, %v2246, %v2247
      %v2249 = vrot.slane %v2247, 4
      %v2250 = vrot.slane %v2108, 5
      %v2251 = vsel %vm2174, %v2249, %v2250
      %v2252 = vrot.slane %v2109, 5
      %v2253 = vrot.slane %v2252, 4
      %v2254 = vrot.slane %v2110, 5
      %v2255 = vsel %vm2174, %v2253, %v2254
      %v2256 = vrot.slane %v2254, 4
      %v2257 = vrot.slane %v2111, 5
      %v2258 = vsel %vm2174, %v2256, %v2257
      %v2259 = vrot.slane %v2112, 5
      %v2260 = vrot.slane %v2259, 4
      %v2261 = vrot.slane %v2113, 5
      %v2262 = vsel %vm2174, %v2260, %v2261
      %v2263 = vrot.slane %v2261, 4
      %v2264 = vrot.slane %v2114, 5
      %v2265 = vsel %vm2174, %v2263, %v2264
      %v2266 = vrot.slane %v2115, 5
      %v2267 = vrot.slane %v2266, 4
      %v2268 = vrot.slane %v2116, 5
      %v2269 = vsel %vm2174, %v2267, %v2268
      %v2270 = vrot.slane %v2268, 4
      %v2271 = vrot.slane %v2117, 5
      %v2272 = vsel %vm2174, %v2270, %v2271
      %v2273 = vrot.slane %v2118, 5
      %v2274 = vrot.slane %v2273, 4
      %v2275 = vrot.slane %v2119, 5
      %v2276 = vsel %vm2174, %v2274, %v2275
      %v2277 = vrot.slane %v2275, 4
      %v2278 = vrot.slane %v2120, 5
      %v2279 = vsel %vm2174, %v2277, %v2278
      %v2280 = vrot.slane %v2121, 5
      %v2281 = vrot.slane %v2280, 4
      %v2282 = vrot.slane %v2122, 5
      %v2283 = vsel %vm2174, %v2281, %v2282
      %v2284 = vrot.slane %v2282, 4
      %v2285 = vrot.slane %v2123, 5
      %v2286 = vsel %vm2174, %v2284, %v2285
      %v2287 = vld [vmem:[%s3 + $0x80] sm:$0xf]
      %v2288 = vld [vmem:[%s3 + $0x84] sm:$0xf]
      %v2289 = vld [vmem:[%s3 + $0x88] sm:$0xf]
      %v2290 = vld [vmem:[%s3 + $0x8c] sm:$0xf]
      %v2291 = vld [vmem:[%s3 + $0x90] sm:$0xf]
      %v2292 = vld [vmem:[%s3 + $0x94] sm:$0xf]
      %v2293 = vld [vmem:[%s3 + $0x98] sm:$0xf]
      %v2294 = vld [vmem:[%s3 + $0x9c] sm:$0xf]
      %v2295 = vld [vmem:[%s3 + $0xa0] sm:$0xf]
      %v2296 = vld [vmem:[%s3 + $0xa4] sm:$0xf]
      %v2297 = vld [vmem:[%s3 + $0xa8] sm:$0xf]
      %v2298 = vld [vmem:[%s3 + $0xac] sm:$0xf]
      %v2299 = vld [vmem:[%s3 + $0xb0] sm:$0xf]
      %v2300 = vld [vmem:[%s3 + $0xb4] sm:$0xf]
      %v2301 = vld [vmem:[%s3 + $0xb8] sm:$0xf]
      %v2302 = vld [vmem:[%s3 + $0xbc] sm:$0xf]
      %v2303 = vunpack.c.l.b16 %v2178
      %v2304 = vunpack.c.l.b16 %v2181
      %v2305 = vunpack.c.l.b16 %v2185
      %v2306 = vunpack.c.l.b16 %v2188
      %v2307 = vunpack.c.l.b16 %v2192
      %v2308 = vunpack.c.l.b16 %v2195
      %v2309 = vunpack.c.l.b16 %v2199
      %v2310 = vunpack.c.l.b16 %v2202
      %v2311 = vunpack.c.l.b16 %v2206
      %v2312 = vunpack.c.l.b16 %v2209
      %v2313 = vunpack.c.l.b16 %v2213
      %v2314 = vunpack.c.l.b16 %v2216
      %v2315 = vunpack.c.l.b16 %v2220
      %v2316 = vunpack.c.l.b16 %v2223
      %v2317 = vunpack.c.l.b16 %v2227
      %v2318 = vunpack.c.l.b16 %v2230
      %v2319 = vunpack.c.l.b16 %v2234
      %v2320 = vunpack.c.l.b16 %v2237
      %v2321 = vunpack.c.l.b16 %v2241
      %v2322 = vunpack.c.l.b16 %v2244
      %v2323 = vunpack.c.l.b16 %v2248
      %v2324 = vunpack.c.l.b16 %v2251
      %v2325 = vunpack.c.l.b16 %v2255
      %v2326 = vunpack.c.l.b16 %v2258
      %v2327 = vunpack.c.l.b16 %v2262
      %v2328 = vunpack.c.l.b16 %v2265
      %v2329 = vunpack.c.l.b16 %v2269
      %v2330 = vunpack.c.l.b16 %v2272
      %v2331 = vunpack.c.l.b16 %v2276
      %v2332 = vunpack.c.l.b16 %v2279
      %v2333 = vunpack.c.l.b16 %v2283
      %v2334 = vunpack.c.l.b16 %v2286
      %v2335 = vpack.c.b16 %v2304, %v2303
      %v2336 = vpack.c.b16 %v2306, %v2305
      %v2337 = vpack.c.b16 %v2308, %v2307
      %v2338 = vpack.c.b16 %v2310, %v2309
      %v2339 = vpack.c.b16 %v2312, %v2311
      %v2340 = vpack.c.b16 %v2314, %v2313
      %v2341 = vpack.c.b16 %v2316, %v2315
      %v2342 = vpack.c.b16 %v2318, %v2317
      %v2343 = vpack.c.b16 %v2320, %v2319
      %v2344 = vpack.c.b16 %v2322, %v2321
      %v2345 = vpack.c.b16 %v2324, %v2323
      %v2346 = vpack.c.b16 %v2326, %v2325
      %v2347 = vpack.c.b16 %v2328, %v2327
      %v2348 = vpack.c.b16 %v2330, %v2329
      %v2349 = vpack.c.b16 %v2332, %v2331
      %v2350 = vpack.c.b16 %v2334, %v2333
      %v2383 = vunpack.c.l.b16 %v2287
      %v2384 = vunpack.c.l.b16 %v2288
      %v2385 = vunpack.c.l.b16 %v2289
      %v2386 = vunpack.c.l.b16 %v2290
      %v2387 = vunpack.c.l.b16 %v2291
      %v2388 = vunpack.c.l.b16 %v2292
      %v2389 = vunpack.c.l.b16 %v2293
      %v2390 = vunpack.c.l.b16 %v2294
      %v2391 = vunpack.c.l.b16 %v2295
      %v2392 = vunpack.c.l.b16 %v2296
      %v2393 = vunpack.c.l.b16 %v2297
      %v2394 = vunpack.c.l.b16 %v2298
      %v2395 = vunpack.c.l.b16 %v2299
      %v2396 = vunpack.c.l.b16 %v2300
      %v2397 = vunpack.c.l.b16 %v2301
      %v2398 = vunpack.c.l.b16 %v2302
      %v2399 = vpack.c.b16 %v2384, %v2383
      %v2400 = vpack.c.b16 %v2386, %v2385
      %v2401 = vpack.c.b16 %v2388, %v2387
      %v2402 = vpack.c.b16 %v2390, %v2389
      %v2403 = vpack.c.b16 %v2392, %v2391
      %v2404 = vpack.c.b16 %v2394, %v2393
      %v2405 = vpack.c.b16 %v2396, %v2395
      %v2406 = vpack.c.b16 %v2398, %v2397
      %2415 = vmatpush.bf16.msra.mxu0 %v2406
      %2416 = vmatpush.bf16.msra.mxu0 %v2405
      %2417 = vmatpush.bf16.msra.mxu0 %v2404
      %2418 = vmatpush.bf16.msra.mxu0 %v2403
      %2419 = vmatpush.bf16.msra.mxu0 %v2402
      %2420 = vmatpush.bf16.msra.mxu0 %v2401
      %2421 = vmatpush.bf16.msra.mxu0 %v2400
      %2422 = vmatpush.bf16.msra.mxu0 %v2399
      %2423 = vmatmul.bf16.gmra.mxu0 %v2335
      %v2424 = vpop.f32.mrf.mxu0
      %v2425 = vadd.f32 0.0, %v2424
      %v2426 = vpop.f32.mrf.mxu0
      %v2427 = vadd.f32 0.0, %v2426
      %2428 = vmatmul.bf16.gmra.mxu0 %v2336
      %v2429 = vpop.f32.mrf.mxu0
      %v2430 = vadd.f32 0.0, %v2429
      %v2431 = vpop.f32.mrf.mxu0
      %v2432 = vadd.f32 0.0, %v2431
      %2433 = vmatmul.bf16.gmra.mxu0 %v2337
      %v2434 = vpop.f32.mrf.mxu0
      %v2435 = vadd.f32 0.0, %v2434
      %v2436 = vpop.f32.mrf.mxu0
      %v2437 = vadd.f32 0.0, %v2436
      %2438 = vmatmul.bf16.gmra.mxu0 %v2338
      %v2439 = vpop.f32.mrf.mxu0
      %v2440 = vadd.f32 0.0, %v2439
      %v2441 = vpop.f32.mrf.mxu0
      %v2442 = vadd.f32 0.0, %v2441
      %2443 = vmatmul.bf16.gmra.mxu0 %v2339
      %v2444 = vpop.f32.mrf.mxu0
      %v2445 = vadd.f32 0.0, %v2444
      %v2446 = vpop.f32.mrf.mxu0
      %v2447 = vadd.f32 0.0, %v2446
      %2448 = vmatmul.bf16.gmra.mxu0 %v2340
      %v2449 = vpop.f32.mrf.mxu0
      %v2450 = vadd.f32 0.0, %v2449
      %v2451 = vpop.f32.mrf.mxu0
      %v2452 = vadd.f32 0.0, %v2451
      %2453 = vmatmul.bf16.gmra.mxu0 %v2341
      %v2454 = vpop.f32.mrf.mxu0
      %v2455 = vadd.f32 0.0, %v2454
      %v2456 = vpop.f32.mrf.mxu0
      %v2457 = vadd.f32 0.0, %v2456
      %2458 = vmatmul.bf16.gmra.mxu0 %v2342
      %v2459 = vpop.f32.mrf.mxu0
      %v2460 = vadd.f32 0.0, %v2459
      %v2461 = vpop.f32.mrf.mxu0
      %v2462 = vadd.f32 0.0, %v2461
      %2463 = vmatmul.bf16.gmra.mxu0 %v2343
      %v2464 = vpop.f32.mrf.mxu0
      %v2465 = vadd.f32 0.0, %v2464
      %v2466 = vpop.f32.mrf.mxu0
      %v2467 = vadd.f32 0.0, %v2466
      %2468 = vmatmul.bf16.gmra.mxu0 %v2344
      %v2469 = vpop.f32.mrf.mxu0
      %v2470 = vadd.f32 0.0, %v2469
      %v2471 = vpop.f32.mrf.mxu0
      %v2472 = vadd.f32 0.0, %v2471
      %2473 = vmatmul.bf16.gmra.mxu0 %v2345
      %v2474 = vpop.f32.mrf.mxu0
      %v2475 = vadd.f32 0.0, %v2474
      %v2476 = vpop.f32.mrf.mxu0
      %v2477 = vadd.f32 0.0, %v2476
      %2478 = vmatmul.bf16.gmra.mxu0 %v2346
      %v2479 = vpop.f32.mrf.mxu0
      %v2480 = vadd.f32 0.0, %v2479
      %v2481 = vpop.f32.mrf.mxu0
      %v2482 = vadd.f32 0.0, %v2481
      %2483 = vmatmul.bf16.gmra.mxu0 %v2347
      %v2484 = vpop.f32.mrf.mxu0
      %v2485 = vadd.f32 0.0, %v2484
      %v2486 = vpop.f32.mrf.mxu0
      %v2487 = vadd.f32 0.0, %v2486
      %2488 = vmatmul.bf16.gmra.mxu0 %v2348
      %v2489 = vpop.f32.mrf.mxu0
      %v2490 = vadd.f32 0.0, %v2489
      %v2491 = vpop.f32.mrf.mxu0
      %v2492 = vadd.f32 0.0, %v2491
      %2493 = vmatmul.bf16.gmra.mxu0 %v2349
      %v2494 = vpop.f32.mrf.mxu0
      %v2495 = vadd.f32 0.0, %v2494
      %v2496 = vpop.f32.mrf.mxu0
      %v2497 = vadd.f32 0.0, %v2496
      %2498 = vmatmul.bf16.gmra.mxu0 %v2350
      %v2499 = vpop.f32.mrf.mxu0
      %v2500 = vadd.f32 0.0, %v2499
      %v2501 = vpop.f32.mrf.mxu0
      %v2502 = vadd.f32 0.0, %v2501
      %2503 = vdwg.mxu0
      %v2504 = vld [vmem:[#allocation3] sm:$0xff]
      %v2505 = vld [vmem:[#allocation3 + $0x8] sm:$0xff]
      %v2506 = vld [vmem:[#allocation3 + $0x10] sm:$0xff]
      %v2507 = vld [vmem:[#allocation3 + $0x18] sm:$0xff]
      %v2508 = vld [vmem:[#allocation3 + $0x20] sm:$0xff]
      %v2509 = vld [vmem:[#allocation3 + $0x28] sm:$0xff]
      %v2510 = vld [vmem:[#allocation3 + $0x30] sm:$0xff]
      %v2511 = vld [vmem:[#allocation3 + $0x38] sm:$0xff]
      %v2512 = vld [vmem:[#allocation3 + $0x40] sm:$0xff]
      %v2513 = vld [vmem:[#allocation3 + $0x48] sm:$0xff]
      %v2514 = vld [vmem:[#allocation3 + $0x50] sm:$0xff]
      %v2515 = vld [vmem:[#allocation3 + $0x58] sm:$0xff]
      %v2516 = vld [vmem:[#allocation3 + $0x60] sm:$0xff]
      %v2517 = vld [vmem:[#allocation3 + $0x68] sm:$0xff]
      %v2518 = vld [vmem:[#allocation3 + $0x70] sm:$0xff]
      %v2519 = vld [vmem:[#allocation3 + $0x78] sm:$0xff]
      %v2520 = vld [vmem:[#allocation3 + $0x80] sm:$0xff]
      %v2521 = vld [vmem:[#allocation3 + $0x88] sm:$0xff]
      %v2522 = vld [vmem:[#allocation3 + $0x90] sm:$0xff]
      %v2523 = vld [vmem:[#allocation3 + $0x98] sm:$0xff]
      %v2524 = vld [vmem:[#allocation3 + $0xa0] sm:$0xff]
      %v2525 = vld [vmem:[#allocation3 + $0xa8] sm:$0xff]
      %v2526 = vld [vmem:[#allocation3 + $0xb0] sm:$0xff]
      %v2527 = vld [vmem:[#allocation3 + $0xb8] sm:$0xff]
      %v2528 = vld [vmem:[#allocation3 + $0xc0] sm:$0xff]
      %v2529 = vld [vmem:[#allocation3 + $0xc8] sm:$0xff]
      %v2530 = vld [vmem:[#allocation3 + $0xd0] sm:$0xff]
      %v2531 = vld [vmem:[#allocation3 + $0xd8] sm:$0xff]
      %v2532 = vld [vmem:[#allocation3 + $0xe0] sm:$0xff]
      %v2533 = vld [vmem:[#allocation3 + $0xe8] sm:$0xff]
      %v2534 = vld [vmem:[#allocation3 + $0xf0] sm:$0xff]
      %v2535 = vld [vmem:[#allocation3 + $0xf8] sm:$0xff]
      %v2536 = vadd.f32 %v2504, %v2425
      %v2537 = vadd.f32 %v2505, %v2427
      %v2538 = vadd.f32 %v2506, %v2430
      %v2539 = vadd.f32 %v2507, %v2432
      %v2540 = vadd.f32 %v2508, %v2435
      %v2541 = vadd.f32 %v2509, %v2437
      %v2542 = vadd.f32 %v2510, %v2440
      %v2543 = vadd.f32 %v2511, %v2442
      %v2544 = vadd.f32 %v2512, %v2445
      %v2545 = vadd.f32 %v2513, %v2447
      %v2546 = vadd.f32 %v2514, %v2450
      %v2547 = vadd.f32 %v2515, %v2452
      %v2548 = vadd.f32 %v2516, %v2455
      %v2549 = vadd.f32 %v2517, %v2457
      %v2550 = vadd.f32 %v2518, %v2460
      %v2551 = vadd.f32 %v2519, %v2462
      %v2552 = vadd.f32 %v2520, %v2465
      %v2553 = vadd.f32 %v2521, %v2467
      %v2554 = vadd.f32 %v2522, %v2470
      %v2555 = vadd.f32 %v2523, %v2472
      %v2556 = vadd.f32 %v2524, %v2475
      %v2557 = vadd.f32 %v2525, %v2477
      %v2558 = vadd.f32 %v2526, %v2480
      %v2559 = vadd.f32 %v2527, %v2482
      %v2560 = vadd.f32 %v2528, %v2485
      %v2561 = vadd.f32 %v2529, %v2487
      %v2562 = vadd.f32 %v2530, %v2490
      %v2563 = vadd.f32 %v2531, %v2492
      %v2564 = vadd.f32 %v2532, %v2495
      %v2565 = vadd.f32 %v2533, %v2497
      %v2566 = vadd.f32 %v2534, %v2500
      %v2567 = vadd.f32 %v2535, %v2502
      %2568 = vst [vmem:[#allocation3] sm:$0xff] %v2536
      %2569 = vst [vmem:[#allocation3 + $0x8] sm:$0xff] %v2537
      %2570 = vst [vmem:[#allocation3 + $0x10] sm:$0xff] %v2538
      %2571 = vst [vmem:[#allocation3 + $0x18] sm:$0xff] %v2539
      %2572 = vst [vmem:[#allocation3 + $0x20] sm:$0xff] %v2540
      %2573 = vst [vmem:[#allocation3 + $0x28] sm:$0xff] %v2541
      %2574 = vst [vmem:[#allocation3 + $0x30] sm:$0xff] %v2542
      %2575 = vst [vmem:[#allocation3 + $0x38] sm:$0xff] %v2543
      %2576 = vst [vmem:[#allocation3 + $0x40] sm:$0xff] %v2544
      %2577 = vst [vmem:[#allocation3 + $0x48] sm:$0xff] %v2545
      %2578 = vst [vmem:[#allocation3 + $0x50] sm:$0xff] %v2546
      %2579 = vst [vmem:[#allocation3 + $0x58] sm:$0xff] %v2547
      %2580 = vst [vmem:[#allocation3 + $0x60] sm:$0xff] %v2548
      %2581 = vst [vmem:[#allocation3 + $0x68] sm:$0xff] %v2549
      %2582 = vst [vmem:[#allocation3 + $0x70] sm:$0xff] %v2550
      %2583 = vst [vmem:[#allocation3 + $0x78] sm:$0xff] %v2551
      %2584 = vst [vmem:[#allocation3 + $0x80] sm:$0xff] %v2552
      %2585 = vst [vmem:[#allocation3 + $0x88] sm:$0xff] %v2553
      %2586 = vst [vmem:[#allocation3 + $0x90] sm:$0xff] %v2554
      %2587 = vst [vmem:[#allocation3 + $0x98] sm:$0xff] %v2555
      %2588 = vst [vmem:[#allocation3 + $0xa0] sm:$0xff] %v2556
      %2589 = vst [vmem:[#allocation3 + $0xa8] sm:$0xff] %v2557
      %2590 = vst [vmem:[#allocation3 + $0xb0] sm:$0xff] %v2558
      %2591 = vst [vmem:[#allocation3 + $0xb8] sm:$0xff] %v2559
      %2592 = vst [vmem:[#allocation3 + $0xc0] sm:$0xff] %v2560
      %2593 = vst [vmem:[#allocation3 + $0xc8] sm:$0xff] %v2561
      %2594 = vst [vmem:[#allocation3 + $0xd0] sm:$0xff] %v2562
      %2595 = vst [vmem:[#allocation3 + $0xd8] sm:$0xff] %v2563
      %2596 = vst [vmem:[#allocation3 + $0xe0] sm:$0xff] %v2564
      %2597 = vst [vmem:[#allocation3 + $0xe8] sm:$0xff] %v2565
      %2598 = vst [vmem:[#allocation3 + $0xf0] sm:$0xff] %v2566
      %2599 = vst [vmem:[#allocation3 + $0xf8] sm:$0xff] %v2567
      %v2600 = vld [vmem:[%s277] sm:$0xf]
      %v2601 = vld [vmem:[%s277 + $0x4] sm:$0xf]
      %v2602 = vld [vmem:[%s277 + $0xc] sm:$0xf]
      %v2603 = vld [vmem:[%s277 + $0x10] sm:$0xf]
      %v2604 = vld [vmem:[%s277 + $0x18] sm:$0xf]
      %v2605 = vld [vmem:[%s277 + $0x1c] sm:$0xf]
      %v2606 = vld [vmem:[%s277 + $0x24] sm:$0xf]
      %v2607 = vld [vmem:[%s277 + $0x28] sm:$0xf]
      %v2608 = vld [vmem:[%s277 + $0x30] sm:$0xf]
      %v2609 = vld [vmem:[%s277 + $0x34] sm:$0xf]
      %v2610 = vld [vmem:[%s277 + $0x3c] sm:$0xf]
      %v2611 = vld [vmem:[%s277 + $0x40] sm:$0xf]
      %v2612 = vld [vmem:[%s277 + $0x48] sm:$0xf]
      %v2613 = vld [vmem:[%s277 + $0x4c] sm:$0xf]
      %v2614 = vld [vmem:[%s277 + $0x54] sm:$0xf]
      %v2615 = vld [vmem:[%s277 + $0x58] sm:$0xf]
      %v2616 = vld [vmem:[%s277 + $0x60] sm:$0xf]
      %v2617 = vld [vmem:[%s277 + $0x64] sm:$0xf]
      %v2618 = vld [vmem:[%s277 + $0x6c] sm:$0xf]
      %v2619 = vld [vmem:[%s277 + $0x70] sm:$0xf]
      %v2620 = vld [vmem:[%s277 + $0x78] sm:$0xf]
      %v2621 = vld [vmem:[%s277 + $0x7c] sm:$0xf]
      %v2622 = vld [vmem:[%s277 + $0x84] sm:$0xf]
      %v2623 = vld [vmem:[%s277 + $0x88] sm:$0xf]
      %v2624 = vld [vmem:[%s277 + $0x90] sm:$0xf]
      %v2625 = vld [vmem:[%s277 + $0x94] sm:$0xf]
      %v2626 = vld [vmem:[%s277 + $0x9c] sm:$0xf]
      %v2627 = vld [vmem:[%s277 + $0xa0] sm:$0xf]
      %v2628 = vld [vmem:[%s277 + $0xa8] sm:$0xf]
      %v2629 = vld [vmem:[%s277 + $0xac] sm:$0xf]
      %v2630 = vld [vmem:[%s277 + $0xb4] sm:$0xf]
      %v2631 = vld [vmem:[%s277 + $0xb8] sm:$0xf]
      %v2632 = vld [vmem:[%s3 + $0xc0] sm:$0xf]
      %v2633 = vld [vmem:[%s3 + $0xc4] sm:$0xf]
      %v2634 = vld [vmem:[%s3 + $0xc8] sm:$0xf]
      %v2635 = vld [vmem:[%s3 + $0xcc] sm:$0xf]
      %v2636 = vld [vmem:[%s3 + $0xd0] sm:$0xf]
      %v2637 = vld [vmem:[%s3 + $0xd4] sm:$0xf]
      %v2638 = vld [vmem:[%s3 + $0xd8] sm:$0xf]
      %v2639 = vld [vmem:[%s3 + $0xdc] sm:$0xf]
      %v2640 = vld [vmem:[%s3 + $0xe0] sm:$0xf]
      %v2641 = vld [vmem:[%s3 + $0xe4] sm:$0xf]
      %v2642 = vld [vmem:[%s3 + $0xe8] sm:$0xf]
      %v2643 = vld [vmem:[%s3 + $0xec] sm:$0xf]
      %v2644 = vld [vmem:[%s3 + $0xf0] sm:$0xf]
      %v2645 = vld [vmem:[%s3 + $0xf4] sm:$0xf]
      %v2646 = vld [vmem:[%s3 + $0xf8] sm:$0xf]
      %v2647 = vld [vmem:[%s3 + $0xfc] sm:$0xf]
      %v2680 = vunpack.c.l.b16 %v2600
      %v2681 = vunpack.c.l.b16 %v2601
      %v2682 = vunpack.c.l.b16 %v2602
      %v2683 = vunpack.c.l.b16 %v2603
      %v2684 = vunpack.c.l.b16 %v2604
      %v2685 = vunpack.c.l.b16 %v2605
      %v2686 = vunpack.c.l.b16 %v2606
      %v2687 = vunpack.c.l.b16 %v2607
      %v2688 = vunpack.c.l.b16 %v2608
      %v2689 = vunpack.c.l.b16 %v2609
      %v2690 = vunpack.c.l.b16 %v2610
      %v2691 = vunpack.c.l.b16 %v2611
      %v2692 = vunpack.c.l.b16 %v2612
      %v2693 = vunpack.c.l.b16 %v2613
      %v2694 = vunpack.c.l.b16 %v2614
      %v2695 = vunpack.c.l.b16 %v2615
      %v2696 = vunpack.c.l.b16 %v2616
      %v2697 = vunpack.c.l.b16 %v2617
      %v2698 = vunpack.c.l.b16 %v2618
      %v2699 = vunpack.c.l.b16 %v2619
      %v2700 = vunpack.c.l.b16 %v2620
      %v2701 = vunpack.c.l.b16 %v2621
      %v2702 = vunpack.c.l.b16 %v2622
      %v2703 = vunpack.c.l.b16 %v2623
      %v2704 = vunpack.c.l.b16 %v2624
      %v2705 = vunpack.c.l.b16 %v2625
      %v2706 = vunpack.c.l.b16 %v2626
      %v2707 = vunpack.c.l.b16 %v2627
      %v2708 = vunpack.c.l.b16 %v2628
      %v2709 = vunpack.c.l.b16 %v2629
      %v2710 = vunpack.c.l.b16 %v2630
      %v2711 = vunpack.c.l.b16 %v2631
      %v2712 = vpack.c.b16 %v2681, %v2680
      %v2713 = vpack.c.b16 %v2683, %v2682
      %v2714 = vpack.c.b16 %v2685, %v2684
      %v2715 = vpack.c.b16 %v2687, %v2686
      %v2716 = vpack.c.b16 %v2689, %v2688
      %v2717 = vpack.c.b16 %v2691, %v2690
      %v2718 = vpack.c.b16 %v2693, %v2692
      %v2719 = vpack.c.b16 %v2695, %v2694
      %v2720 = vpack.c.b16 %v2697, %v2696
      %v2721 = vpack.c.b16 %v2699, %v2698
      %v2722 = vpack.c.b16 %v2701, %v2700
      %v2723 = vpack.c.b16 %v2703, %v2702
      %v2724 = vpack.c.b16 %v2705, %v2704
      %v2725 = vpack.c.b16 %v2707, %v2706
      %v2726 = vpack.c.b16 %v2709, %v2708
      %v2727 = vpack.c.b16 %v2711, %v2710
      %v2760 = vunpack.c.l.b16 %v2632
      %v2761 = vunpack.c.l.b16 %v2633
      %v2762 = vunpack.c.l.b16 %v2634
      %v2763 = vunpack.c.l.b16 %v2635
      %v2764 = vunpack.c.l.b16 %v2636
      %v2765 = vunpack.c.l.b16 %v2637
      %v2766 = vunpack.c.l.b16 %v2638
      %v2767 = vunpack.c.l.b16 %v2639
      %v2768 = vunpack.c.l.b16 %v2640
      %v2769 = vunpack.c.l.b16 %v2641
      %v2770 = vunpack.c.l.b16 %v2642
      %v2771 = vunpack.c.l.b16 %v2643
      %v2772 = vunpack.c.l.b16 %v2644
      %v2773 = vunpack.c.l.b16 %v2645
      %v2774 = vunpack.c.l.b16 %v2646
      %v2775 = vunpack.c.l.b16 %v2647
      %v2776 = vpack.c.b16 %v2761, %v2760
      %v2777 = vpack.c.b16 %v2763, %v2762
      %v2778 = vpack.c.b16 %v2765, %v2764
      %v2779 = vpack.c.b16 %v2767, %v2766
      %v2780 = vpack.c.b16 %v2769, %v2768
      %v2781 = vpack.c.b16 %v2771, %v2770
      %v2782 = vpack.c.b16 %v2773, %v2772
      %v2783 = vpack.c.b16 %v2775, %v2774
      %2792 = vmatpush.bf16.msra.mxu0 %v2783
      %2793 = vmatpush.bf16.msra.mxu0 %v2782
      %2794 = vmatpush.bf16.msra.mxu0 %v2781
      %2795 = vmatpush.bf16.msra.mxu0 %v2780
      %2796 = vmatpush.bf16.msra.mxu0 %v2779
      %2797 = vmatpush.bf16.msra.mxu0 %v2778
      %2798 = vmatpush.bf16.msra.mxu0 %v2777
      %2799 = vmatpush.bf16.msra.mxu0 %v2776
      %2800 = vmatmul.bf16.gmra.mxu0 %v2712
      %v2801 = vpop.f32.mrf.mxu0
      %v2802 = vadd.f32 0.0, %v2801
      %v2803 = vpop.f32.mrf.mxu0
      %v2804 = vadd.f32 0.0, %v2803
      %2805 = vmatmul.bf16.gmra.mxu0 %v2713
      %v2806 = vpop.f32.mrf.mxu0
      %v2807 = vadd.f32 0.0, %v2806
      %v2808 = vpop.f32.mrf.mxu0
      %v2809 = vadd.f32 0.0, %v2808
      %2810 = vmatmul.bf16.gmra.mxu0 %v2714
      %v2811 = vpop.f32.mrf.mxu0
      %v2812 = vadd.f32 0.0, %v2811
      %v2813 = vpop.f32.mrf.mxu0
      %v2814 = vadd.f32 0.0, %v2813
      %2815 = vmatmul.bf16.gmra.mxu0 %v2715
      %v2816 = vpop.f32.mrf.mxu0
      %v2817 = vadd.f32 0.0, %v2816
      %v2818 = vpop.f32.mrf.mxu0
      %v2819 = vadd.f32 0.0, %v2818
      %2820 = vmatmul.bf16.gmra.mxu0 %v2716
      %v2821 = vpop.f32.mrf.mxu0
      %v2822 = vadd.f32 0.0, %v2821
      %v2823 = vpop.f32.mrf.mxu0
      %v2824 = vadd.f32 0.0, %v2823
      %2825 = vmatmul.bf16.gmra.mxu0 %v2717
      %v2826 = vpop.f32.mrf.mxu0
      %v2827 = vadd.f32 0.0, %v2826
      %v2828 = vpop.f32.mrf.mxu0
      %v2829 = vadd.f32 0.0, %v2828
      %2830 = vmatmul.bf16.gmra.mxu0 %v2718
      %v2831 = vpop.f32.mrf.mxu0
      %v2832 = vadd.f32 0.0, %v2831
      %v2833 = vpop.f32.mrf.mxu0
      %v2834 = vadd.f32 0.0, %v2833
      %2835 = vmatmul.bf16.gmra.mxu0 %v2719
      %v2836 = vpop.f32.mrf.mxu0
      %v2837 = vadd.f32 0.0, %v2836
      %v2838 = vpop.f32.mrf.mxu0
      %v2839 = vadd.f32 0.0, %v2838
      %2840 = vmatmul.bf16.gmra.mxu0 %v2720
      %v2841 = vpop.f32.mrf.mxu0
      %v2842 = vadd.f32 0.0, %v2841
      %v2843 = vpop.f32.mrf.mxu0
      %v2844 = vadd.f32 0.0, %v2843
      %2845 = vmatmul.bf16.gmra.mxu0 %v2721
      %v2846 = vpop.f32.mrf.mxu0
      %v2847 = vadd.f32 0.0, %v2846
      %v2848 = vpop.f32.mrf.mxu0
      %v2849 = vadd.f32 0.0, %v2848
      %2850 = vmatmul.bf16.gmra.mxu0 %v2722
      %v2851 = vpop.f32.mrf.mxu0
      %v2852 = vadd.f32 0.0, %v2851
      %v2853 = vpop.f32.mrf.mxu0
      %v2854 = vadd.f32 0.0, %v2853
      %2855 = vmatmul.bf16.gmra.mxu0 %v2723
      %v2856 = vpop.f32.mrf.mxu0
      %v2857 = vadd.f32 0.0, %v2856
      %v2858 = vpop.f32.mrf.mxu0
      %v2859 = vadd.f32 0.0, %v2858
      %2860 = vmatmul.bf16.gmra.mxu0 %v2724
      %v2861 = vpop.f32.mrf.mxu0
      %v2862 = vadd.f32 0.0, %v2861
      %v2863 = vpop.f32.mrf.mxu0
      %v2864 = vadd.f32 0.0, %v2863
      %2865 = vmatmul.bf16.gmra.mxu0 %v2725
      %v2866 = vpop.f32.mrf.mxu0
      %v2867 = vadd.f32 0.0, %v2866
      %v2868 = vpop.f32.mrf.mxu0
      %v2869 = vadd.f32 0.0, %v2868
      %2870 = vmatmul.bf16.gmra.mxu0 %v2726
      %v2871 = vpop.f32.mrf.mxu0
      %v2872 = vadd.f32 0.0, %v2871
      %v2873 = vpop.f32.mrf.mxu0
      %v2874 = vadd.f32 0.0, %v2873
      %2875 = vmatmul.bf16.gmra.mxu0 %v2727
      %v2876 = vpop.f32.mrf.mxu0
      %v2877 = vadd.f32 0.0, %v2876
      %v2878 = vpop.f32.mrf.mxu0
      %v2879 = vadd.f32 0.0, %v2878
      %2880 = vdwg.mxu0
      %v2881 = vld [vmem:[#allocation3] sm:$0xff]
      %v2882 = vld [vmem:[#allocation3 + $0x8] sm:$0xff]
      %v2883 = vld [vmem:[#allocation3 + $0x10] sm:$0xff]
      %v2884 = vld [vmem:[#allocation3 + $0x18] sm:$0xff]
      %v2885 = vld [vmem:[#allocation3 + $0x20] sm:$0xff]
      %v2886 = vld [vmem:[#allocation3 + $0x28] sm:$0xff]
      %v2887 = vld [vmem:[#allocation3 + $0x30] sm:$0xff]
      %v2888 = vld [vmem:[#allocation3 + $0x38] sm:$0xff]
      %v2889 = vld [vmem:[#allocation3 + $0x40] sm:$0xff]
      %v2890 = vld [vmem:[#allocation3 + $0x48] sm:$0xff]
      %v2891 = vld [vmem:[#allocation3 + $0x50] sm:$0xff]
      %v2892 = vld [vmem:[#allocation3 + $0x58] sm:$0xff]
      %v2893 = vld [vmem:[#allocation3 + $0x60] sm:$0xff]
      %v2894 = vld [vmem:[#allocation3 + $0x68] sm:$0xff]
      %v2895 = vld [vmem:[#allocation3 + $0x70] sm:$0xff]
      %v2896 = vld [vmem:[#allocation3 + $0x78] sm:$0xff]
      %v2897 = vld [vmem:[#allocation3 + $0x80] sm:$0xff]
      %v2898 = vld [vmem:[#allocation3 + $0x88] sm:$0xff]
      %v2899 = vld [vmem:[#allocation3 + $0x90] sm:$0xff]
      %v2900 = vld [vmem:[#allocation3 + $0x98] sm:$0xff]
      %v2901 = vld [vmem:[#allocation3 + $0xa0] sm:$0xff]
      %v2902 = vld [vmem:[#allocation3 + $0xa8] sm:$0xff]
      %v2903 = vld [vmem:[#allocation3 + $0xb0] sm:$0xff]
      %v2904 = vld [vmem:[#allocation3 + $0xb8] sm:$0xff]
      %v2905 = vld [vmem:[#allocation3 + $0xc0] sm:$0xff]
      %v2906 = vld [vmem:[#allocation3 + $0xc8] sm:$0xff]
      %v2907 = vld [vmem:[#allocation3 + $0xd0] sm:$0xff]
      %v2908 = vld [vmem:[#allocation3 + $0xd8] sm:$0xff]
      %v2909 = vld [vmem:[#allocation3 + $0xe0] sm:$0xff]
      %v2910 = vld [vmem:[#allocation3 + $0xe8] sm:$0xff]
      %v2911 = vld [vmem:[#allocation3 + $0xf0] sm:$0xff]
      %v2912 = vld [vmem:[#allocation3 + $0xf8] sm:$0xff]
      %v2913 = vadd.f32 %v2881, %v2802
      %v2914 = vadd.f32 %v2882, %v2804
      %v2915 = vadd.f32 %v2883, %v2807
      %v2916 = vadd.f32 %v2884, %v2809
      %v2917 = vadd.f32 %v2885, %v2812
      %v2918 = vadd.f32 %v2886, %v2814
      %v2919 = vadd.f32 %v2887, %v2817
      %v2920 = vadd.f32 %v2888, %v2819
      %v2921 = vadd.f32 %v2889, %v2822
      %v2922 = vadd.f32 %v2890, %v2824
      %v2923 = vadd.f32 %v2891, %v2827
      %v2924 = vadd.f32 %v2892, %v2829
      %v2925 = vadd.f32 %v2893, %v2832
      %v2926 = vadd.f32 %v2894, %v2834
      %v2927 = vadd.f32 %v2895, %v2837
      %v2928 = vadd.f32 %v2896, %v2839
      %v2929 = vadd.f32 %v2897, %v2842
      %v2930 = vadd.f32 %v2898, %v2844
      %v2931 = vadd.f32 %v2899, %v2847
      %v2932 = vadd.f32 %v2900, %v2849
      %v2933 = vadd.f32 %v2901, %v2852
      %v2934 = vadd.f32 %v2902, %v2854
      %v2935 = vadd.f32 %v2903, %v2857
      %v2936 = vadd.f32 %v2904, %v2859
      %v2937 = vadd.f32 %v2905, %v2862
      %v2938 = vadd.f32 %v2906, %v2864
      %v2939 = vadd.f32 %v2907, %v2867
      %v2940 = vadd.f32 %v2908, %v2869
      %v2941 = vadd.f32 %v2909, %v2872
      %v2942 = vadd.f32 %v2910, %v2874
      %v2943 = vadd.f32 %v2911, %v2877
      %v2944 = vadd.f32 %v2912, %v2879
      %2945 = vst [vmem:[#allocation3] sm:$0xff] %v2913
      %2946 = vst [vmem:[#allocation3 + $0x8] sm:$0xff] %v2914
      %2947 = vst [vmem:[#allocation3 + $0x10] sm:$0xff] %v2915
      %2948 = vst [vmem:[#allocation3 + $0x18] sm:$0xff] %v2916
      %2949 = vst [vmem:[#allocation3 + $0x20] sm:$0xff] %v2917
      %2950 = vst [vmem:[#allocation3 + $0x28] sm:$0xff] %v2918
      %2951 = vst [vmem:[#allocation3 + $0x30] sm:$0xff] %v2919
      %2952 = vst [vmem:[#allocation3 + $0x38] sm:$0xff] %v2920
      %2953 = vst [vmem:[#allocation3 + $0x40] sm:$0xff] %v2921
      %2954 = vst [vmem:[#allocation3 + $0x48] sm:$0xff] %v2922
      %2955 = vst [vmem:[#allocation3 + $0x50] sm:$0xff] %v2923
      %2956 = vst [vmem:[#allocation3 + $0x58] sm:$0xff] %v2924
      %2957 = vst [vmem:[#allocation3 + $0x60] sm:$0xff] %v2925
      %2958 = vst [vmem:[#allocation3 + $0x68] sm:$0xff] %v2926
      %2959 = vst [vmem:[#allocation3 + $0x70] sm:$0xff] %v2927
      %2960 = vst [vmem:[#allocation3 + $0x78] sm:$0xff] %v2928
      %2961 = vst [vmem:[#allocation3 + $0x80] sm:$0xff] %v2929
      %2962 = vst [vmem:[#allocation3 + $0x88] sm:$0xff] %v2930
      %2963 = vst [vmem:[#allocation3 + $0x90] sm:$0xff] %v2931
      %2964 = vst [vmem:[#allocation3 + $0x98] sm:$0xff] %v2932
      %2965 = vst [vmem:[#allocation3 + $0xa0] sm:$0xff] %v2933
      %2966 = vst [vmem:[#allocation3 + $0xa8] sm:$0xff] %v2934
      %2967 = vst [vmem:[#allocation3 + $0xb0] sm:$0xff] %v2935
      %2968 = vst [vmem:[#allocation3 + $0xb8] sm:$0xff] %v2936
      %2969 = vst [vmem:[#allocation3 + $0xc0] sm:$0xff] %v2937
      %2970 = vst [vmem:[#allocation3 + $0xc8] sm:$0xff] %v2938
      %2971 = vst [vmem:[#allocation3 + $0xd0] sm:$0xff] %v2939
      %2972 = vst [vmem:[#allocation3 + $0xd8] sm:$0xff] %v2940
      %2973 = vst [vmem:[#allocation3 + $0xe0] sm:$0xff] %v2941
      %2974 = vst [vmem:[#allocation3 + $0xe8] sm:$0xff] %v2942
      %2975 = vst [vmem:[#allocation3 + $0xf0] sm:$0xff] %v2943
      %2976 = vst [vmem:[#allocation3 + $0xf8] sm:$0xff] %v2944
      %v2977 = vld [vmem:[%s277] sm:$0xf]
      %v2978 = vld [vmem:[%s277 + $0x4] sm:$0xf]
      %v2979 = vld [vmem:[%s277 + $0x8] sm:$0x1]
      %v2980 = vld [vmem:[%s277 + $0xc] sm:$0xf]
      %v2981 = vld [vmem:[%s277 + $0x10] sm:$0xf]
      %v2982 = vld [vmem:[%s277 + $0x14] sm:$0x1]
      %v2983 = vld [vmem:[%s277 + $0x18] sm:$0xf]
      %v2984 = vld [vmem:[%s277 + $0x1c] sm:$0xf]
      %v2985 = vld [vmem:[%s277 + $0x20] sm:$0x1]
      %v2986 = vld [vmem:[%s277 + $0x24] sm:$0xf]
      %v2987 = vld [vmem:[%s277 + $0x28] sm:$0xf]
      %v2988 = vld [vmem:[%s277 + $0x2c] sm:$0x1]
      %v2989 = vld [vmem:[%s277 + $0x30] sm:$0xf]
      %v2990 = vld [vmem:[%s277 + $0x34] sm:$0xf]
      %v2991 = vld [vmem:[%s277 + $0x38] sm:$0x1]
      %v2992 = vld [vmem:[%s277 + $0x3c] sm:$0xf]
      %v2993 = vld [vmem:[%s277 + $0x40] sm:$0xf]
      %v2994 = vld [vmem:[%s277 + $0x44] sm:$0x1]
      %v2995 = vld [vmem:[%s277 + $0x48] sm:$0xf]
      %v2996 = vld [vmem:[%s277 + $0x4c] sm:$0xf]
      %v2997 = vld [vmem:[%s277 + $0x50] sm:$0x1]
      %v2998 = vld [vmem:[%s277 + $0x54] sm:$0xf]
      %v2999 = vld [vmem:[%s277 + $0x58] sm:$0xf]
      %v3000 = vld [vmem:[%s277 + $0x5c] sm:$0x1]
      %v3001 = vld [vmem:[%s277 + $0x60] sm:$0xf]
      %v3002 = vld [vmem:[%s277 + $0x64] sm:$0xf]
      %v3003 = vld [vmem:[%s277 + $0x68] sm:$0x1]
      %v3004 = vld [vmem:[%s277 + $0x6c] sm:$0xf]
      %v3005 = vld [vmem:[%s277 + $0x70] sm:$0xf]
      %v3006 = vld [vmem:[%s277 + $0x74] sm:$0x1]
      %v3007 = vld [vmem:[%s277 + $0x78] sm:$0xf]
      %v3008 = vld [vmem:[%s277 + $0x7c] sm:$0xf]
      %v3009 = vld [vmem:[%s277 + $0x80] sm:$0x1]
      %v3010 = vld [vmem:[%s277 + $0x84] sm:$0xf]
      %v3011 = vld [vmem:[%s277 + $0x88] sm:$0xf]
      %v3012 = vld [vmem:[%s277 + $0x8c] sm:$0x1]
      %v3013 = vld [vmem:[%s277 + $0x90] sm:$0xf]
      %v3014 = vld [vmem:[%s277 + $0x94] sm:$0xf]
      %v3015 = vld [vmem:[%s277 + $0x98] sm:$0x1]
      %v3016 = vld [vmem:[%s277 + $0x9c] sm:$0xf]
      %v3017 = vld [vmem:[%s277 + $0xa0] sm:$0xf]
      %v3018 = vld [vmem:[%s277 + $0xa4] sm:$0x1]
      %v3019 = vld [vmem:[%s277 + $0xa8] sm:$0xf]
      %v3020 = vld [vmem:[%s277 + $0xac] sm:$0xf]
      %v3021 = vld [vmem:[%s277 + $0xb0] sm:$0x1]
      %v3022 = vld [vmem:[%s277 + $0xb4] sm:$0xf]
      %v3023 = vld [vmem:[%s277 + $0xb8] sm:$0xf]
      %v3024 = vld [vmem:[%s277 + $0xbc] sm:$0x1]
      %v3026 = vshrl.u32 %v2977, 16
      %v3028 = vrot.slane %v3026, 4
      %v3029 = vshll.u32 %v2977, 16
      %v3031 = vrot.slane %v3029, 5
      %v3032 = vor.u32 %v3028, %v3031
      %v3033 = vrot.slane %v3032, 4
      %v3035 = vshll.u32 %v2978, 16
      %v3037 = vrot.slane %v3035, 5
      %v3038 = vsel %vm1378, %v3033, %v3037
      %v3039 = vshrl.u32 %v2978, 16
      %v3041 = vrot.slane %v3039, 4
      %v3042 = vor.u32 %v3041, %v3037
      %v3043 = vrot.slane %v3042, 4
      %v3045 = vshll.u32 %v2979, 16
      %v3047 = vrot.slane %v3045, 5
      %v3048 = vsel %vm1378, %v3043, %v3047
      %v3050 = vshrl.u32 %v2980, 16
      %v3052 = vrot.slane %v3050, 4
      %v3053 = vshll.u32 %v2980, 16
      %v3055 = vrot.slane %v3053, 5
      %v3056 = vor.u32 %v3052, %v3055
      %v3057 = vrot.slane %v3056, 4
      %v3059 = vshll.u32 %v2981, 16
      %v3061 = vrot.slane %v3059, 5
      %v3062 = vsel %vm1378, %v3057, %v3061
      %v3063 = vshrl.u32 %v2981, 16
      %v3065 = vrot.slane %v3063, 4
      %v3066 = vor.u32 %v3065, %v3061
      %v3067 = vrot.slane %v3066, 4
      %v3069 = vshll.u32 %v2982, 16
      %v3071 = vrot.slane %v3069, 5
      %v3072 = vsel %vm1378, %v3067, %v3071
      %v3074 = vshrl.u32 %v2983, 16
      %v3076 = vrot.slane %v3074, 4
      %v3077 = vshll.u32 %v2983, 16
      %v3079 = vrot.slane %v3077, 5
      %v3080 = vor.u32 %v3076, %v3079
      %v3081 = vrot.slane %v3080, 4
      %v3083 = vshll.u32 %v2984, 16
      %v3085 = vrot.slane %v3083, 5
      %v3086 = vsel %vm1378, %v3081, %v3085
      %v3087 = vshrl.u32 %v2984, 16
      %v3089 = vrot.slane %v3087, 4
      %v3090 = vor.u32 %v3089, %v3085
      %v3091 = vrot.slane %v3090, 4
      %v3093 = vshll.u32 %v2985, 16
      %v3095 = vrot.slane %v3093, 5
      %v3096 = vsel %vm1378, %v3091, %v3095
      %v3098 = vshrl.u32 %v2986, 16
      %v3100 = vrot.slane %v3098, 4
      %v3101 = vshll.u32 %v2986, 16
      %v3103 = vrot.slane %v3101, 5
      %v3104 = vor.u32 %v3100, %v3103
      %v3105 = vrot.slane %v3104, 4
      %v3107 = vshll.u32 %v2987, 16
      %v3109 = vrot.slane %v3107, 5
      %v3110 = vsel %vm1378, %v3105, %v3109
      %v3111 = vshrl.u32 %v2987, 16
      %v3113 = vrot.slane %v3111, 4
      %v3114 = vor.u32 %v3113, %v3109
      %v3115 = vrot.slane %v3114, 4
      %v3117 = vshll.u32 %v2988, 16
      %v3119 = vrot.slane %v3117, 5
      %v3120 = vsel %vm1378, %v3115, %v3119
      %v3122 = vshrl.u32 %v2989, 16
      %v3124 = vrot.slane %v3122, 4
      %v3125 = vshll.u32 %v2989, 16
      %v3127 = vrot.slane %v3125, 5
      %v3128 = vor.u32 %v3124, %v3127
      %v3129 = vrot.slane %v3128, 4
      %v3131 = vshll.u32 %v2990, 16
      %v3133 = vrot.slane %v3131, 5
      %v3134 = vsel %vm1378, %v3129, %v3133
      %v3135 = vshrl.u32 %v2990, 16
      %v3137 = vrot.slane %v3135, 4
      %v3138 = vor.u32 %v3137, %v3133
      %v3139 = vrot.slane %v3138, 4
      %v3141 = vshll.u32 %v2991, 16
      %v3143 = vrot.slane %v3141, 5
      %v3144 = vsel %vm1378, %v3139, %v3143
      %v3146 = vshrl.u32 %v2992, 16
      %v3148 = vrot.slane %v3146, 4
      %v3149 = vshll.u32 %v2992, 16
      %v3151 = vrot.slane %v3149, 5
      %v3152 = vor.u32 %v3148, %v3151
      %v3153 = vrot.slane %v3152, 4
      %v3155 = vshll.u32 %v2993, 16
      %v3157 = vrot.slane %v3155, 5
      %v3158 = vsel %vm1378, %v3153, %v3157
      %v3159 = vshrl.u32 %v2993, 16
      %v3161 = vrot.slane %v3159, 4
      %v3162 = vor.u32 %v3161, %v3157
      %v3163 = vrot.slane %v3162, 4
      %v3165 = vshll.u32 %v2994, 16
      %v3167 = vrot.slane %v3165, 5
      %v3168 = vsel %vm1378, %v3163, %v3167
      %v3170 = vshrl.u32 %v2995, 16
      %v3172 = vrot.slane %v3170, 4
      %v3173 = vshll.u32 %v2995, 16
      %v3175 = vrot.slane %v3173, 5
      %v3176 = vor.u32 %v3172, %v3175
      %v3177 = vrot.slane %v3176, 4
      %v3179 = vshll.u32 %v2996, 16
      %v3181 = vrot.slane %v3179, 5
      %v3182 = vsel %vm1378, %v3177, %v3181
      %v3183 = vshrl.u32 %v2996, 16
      %v3185 = vrot.slane %v3183, 4
      %v3186 = vor.u32 %v3185, %v3181
      %v3187 = vrot.slane %v3186, 4
      %v3189 = vshll.u32 %v2997, 16
      %v3191 = vrot.slane %v3189, 5
      %v3192 = vsel %vm1378, %v3187, %v3191
      %v3194 = vshrl.u32 %v2998, 16
      %v3196 = vrot.slane %v3194, 4
      %v3197 = vshll.u32 %v2998, 16
      %v3199 = vrot.slane %v3197, 5
      %v3200 = vor.u32 %v3196, %v3199
      %v3201 = vrot.slane %v3200, 4
      %v3203 = vshll.u32 %v2999, 16
      %v3205 = vrot.slane %v3203, 5
      %v3206 = vsel %vm1378, %v3201, %v3205
      %v3207 = vshrl.u32 %v2999, 16
      %v3209 = vrot.slane %v3207, 4
      %v3210 = vor.u32 %v3209, %v3205
      %v3211 = vrot.slane %v3210, 4
      %v3213 = vshll.u32 %v3000, 16
      %v3215 = vrot.slane %v3213, 5
      %v3216 = vsel %vm1378, %v3211, %v3215
      %v3218 = vshrl.u32 %v3001, 16
      %v3220 = vrot.slane %v3218, 4
      %v3221 = vshll.u32 %v3001, 16
      %v3223 = vrot.slane %v3221, 5
      %v3224 = vor.u32 %v3220, %v3223
      %v3225 = vrot.slane %v3224, 4
      %v3227 = vshll.u32 %v3002, 16
      %v3229 = vrot.slane %v3227, 5
      %v3230 = vsel %vm1378, %v3225, %v3229
      %v3231 = vshrl.u32 %v3002, 16
      %v3233 = vrot.slane %v3231, 4
      %v3234 = vor.u32 %v3233, %v3229
      %v3235 = vrot.slane %v3234, 4
      %v3237 = vshll.u32 %v3003, 16
      %v3239 = vrot.slane %v3237, 5
      %v3240 = vsel %vm1378, %v3235, %v3239
      %v3242 = vshrl.u32 %v3004, 16
      %v3244 = vrot.slane %v3242, 4
      %v3245 = vshll.u32 %v3004, 16
      %v3247 = vrot.slane %v3245, 5
      %v3248 = vor.u32 %v3244, %v3247
      %v3249 = vrot.slane %v3248, 4
      %v3251 = vshll.u32 %v3005, 16
      %v3253 = vrot.slane %v3251, 5
      %v3254 = vsel %vm1378, %v3249, %v3253
      %v3255 = vshrl.u32 %v3005, 16
      %v3257 = vrot.slane %v3255, 4
      %v3258 = vor.u32 %v3257, %v3253
      %v3259 = vrot.slane %v3258, 4
      %v3261 = vshll.u32 %v3006, 16
      %v3263 = vrot.slane %v3261, 5
      %v3264 = vsel %vm1378, %v3259, %v3263
      %v3266 = vshrl.u32 %v3007, 16
      %v3268 = vrot.slane %v3266, 4
      %v3269 = vshll.u32 %v3007, 16
      %v3271 = vrot.slane %v3269, 5
      %v3272 = vor.u32 %v3268, %v3271
      %v3273 = vrot.slane %v3272, 4
      %v3275 = vshll.u32 %v3008, 16
      %v3277 = vrot.slane %v3275, 5
      %v3278 = vsel %vm1378, %v3273, %v3277
      %v3279 = vshrl.u32 %v3008, 16
      %v3281 = vrot.slane %v3279, 4
      %v3282 = vor.u32 %v3281, %v3277
      %v3283 = vrot.slane %v3282, 4
      %v3285 = vshll.u32 %v3009, 16
      %v3287 = vrot.slane %v3285, 5
      %v3288 = vsel %vm1378, %v3283, %v3287
      %v3290 = vshrl.u32 %v3010, 16
      %v3292 = vrot.slane %v3290, 4
      %v3293 = vshll.u32 %v3010, 16
      %v3295 = vrot.slane %v3293, 5
      %v3296 = vor.u32 %v3292, %v3295
      %v3297 = vrot.slane %v3296, 4
      %v3299 = vshll.u32 %v3011, 16
      %v3301 = vrot.slane %v3299, 5
      %v3302 = vsel %vm1378, %v3297, %v3301
      %v3303 = vshrl.u32 %v3011, 16
      %v3305 = vrot.slane %v3303, 4
      %v3306 = vor.u32 %v3305, %v3301
      %v3307 = vrot.slane %v3306, 4
      %v3309 = vshll.u32 %v3012, 16
      %v3311 = vrot.slane %v3309, 5
      %v3312 = vsel %vm1378, %v3307, %v3311
      %v3314 = vshrl.u32 %v3013, 16
      %v3316 = vrot.slane %v3314, 4
      %v3317 = vshll.u32 %v3013, 16
      %v3319 = vrot.slane %v3317, 5
      %v3320 = vor.u32 %v3316, %v3319
      %v3321 = vrot.slane %v3320, 4
      %v3323 = vshll.u32 %v3014, 16
      %v3325 = vrot.slane %v3323, 5
      %v3326 = vsel %vm1378, %v3321, %v3325
      %v3327 = vshrl.u32 %v3014, 16
      %v3329 = vrot.slane %v3327, 4
      %v3330 = vor.u32 %v3329, %v3325
      %v3331 = vrot.slane %v3330, 4
      %v3333 = vshll.u32 %v3015, 16
      %v3335 = vrot.slane %v3333, 5
      %v3336 = vsel %vm1378, %v3331, %v3335
      %v3338 = vshrl.u32 %v3016, 16
      %v3340 = vrot.slane %v3338, 4
      %v3341 = vshll.u32 %v3016, 16
      %v3343 = vrot.slane %v3341, 5
      %v3344 = vor.u32 %v3340, %v3343
      %v3345 = vrot.slane %v3344, 4
      %v3347 = vshll.u32 %v3017, 16
      %v3349 = vrot.slane %v3347, 5
      %v3350 = vsel %vm1378, %v3345, %v3349
      %v3351 = vshrl.u32 %v3017, 16
      %v3353 = vrot.slane %v3351, 4
      %v3354 = vor.u32 %v3353, %v3349
      %v3355 = vrot.slane %v3354, 4
      %v3357 = vshll.u32 %v3018, 16
      %v3359 = vrot.slane %v3357, 5
      %v3360 = vsel %vm1378, %v3355, %v3359
      %v3362 = vshrl.u32 %v3019, 16
      %v3364 = vrot.slane %v3362, 4
      %v3365 = vshll.u32 %v3019, 16
      %v3367 = vrot.slane %v3365, 5
      %v3368 = vor.u32 %v3364, %v3367
      %v3369 = vrot.slane %v3368, 4
      %v3371 = vshll.u32 %v3020, 16
      %v3373 = vrot.slane %v3371, 5
      %v3374 = vsel %vm1378, %v3369, %v3373
      %v3375 = vshrl.u32 %v3020, 16
      %v3377 = vrot.slane %v3375, 4
      %v3378 = vor.u32 %v3377, %v3373
      %v3379 = vrot.slane %v3378, 4
      %v3381 = vshll.u32 %v3021, 16
      %v3383 = vrot.slane %v3381, 5
      %v3384 = vsel %vm1378, %v3379, %v3383
      %v3386 = vshrl.u32 %v3022, 16
      %v3388 = vrot.slane %v3386, 4
      %v3389 = vshll.u32 %v3022, 16
      %v3391 = vrot.slane %v3389, 5
      %v3392 = vor.u32 %v3388, %v3391
      %v3393 = vrot.slane %v3392, 4
      %v3395 = vshll.u32 %v3023, 16
      %v3397 = vrot.slane %v3395, 5
      %v3398 = vsel %vm1378, %v3393, %v3397
      %v3399 = vshrl.u32 %v3023, 16
      %v3401 = vrot.slane %v3399, 4
      %v3402 = vor.u32 %v3401, %v3397
      %v3403 = vrot.slane %v3402, 4
      %v3405 = vshll.u32 %v3024, 16
      %v3407 = vrot.slane %v3405, 5
      %v3408 = vsel %vm1378, %v3403, %v3407
      %v3409 = vld [vmem:[%s3 + $0x100] sm:$0xf]
      %v3410 = vld [vmem:[%s3 + $0x104] sm:$0xf]
      %v3411 = vld [vmem:[%s3 + $0x108] sm:$0xf]
      %v3412 = vld [vmem:[%s3 + $0x10c] sm:$0xf]
      %v3413 = vld [vmem:[%s3 + $0x110] sm:$0xf]
      %v3414 = vld [vmem:[%s3 + $0x114] sm:$0xf]
      %v3415 = vld [vmem:[%s3 + $0x118] sm:$0xf]
      %v3416 = vld [vmem:[%s3 + $0x11c] sm:$0xf]
      %v3417 = vld [vmem:[%s3 + $0x120] sm:$0xf]
      %v3418 = vld [vmem:[%s3 + $0x124] sm:$0xf]
      %v3419 = vld [vmem:[%s3 + $0x128] sm:$0xf]
      %v3420 = vld [vmem:[%s3 + $0x12c] sm:$0xf]
      %v3421 = vld [vmem:[%s3 + $0x130] sm:$0xf]
      %v3422 = vld [vmem:[%s3 + $0x134] sm:$0xf]
      %v3423 = vld [vmem:[%s3 + $0x138] sm:$0xf]
      %v3424 = vld [vmem:[%s3 + $0x13c] sm:$0xf]
      %v3425 = vunpack.c.l.b16 %v3038
      %v3426 = vunpack.c.l.b16 %v3048
      %v3427 = vunpack.c.l.b16 %v3062
      %v3428 = vunpack.c.l.b16 %v3072
      %v3429 = vunpack.c.l.b16 %v3086
      %v3430 = vunpack.c.l.b16 %v3096
      %v3431 = vunpack.c.l.b16 %v3110
      %v3432 = vunpack.c.l.b16 %v3120
      %v3433 = vunpack.c.l.b16 %v3134
      %v3434 = vunpack.c.l.b16 %v3144
      %v3435 = vunpack.c.l.b16 %v3158
      %v3436 = vunpack.c.l.b16 %v3168
      %v3437 = vunpack.c.l.b16 %v3182
      %v3438 = vunpack.c.l.b16 %v3192
      %v3439 = vunpack.c.l.b16 %v3206
      %v3440 = vunpack.c.l.b16 %v3216
      %v3441 = vunpack.c.l.b16 %v3230
      %v3442 = vunpack.c.l.b16 %v3240
      %v3443 = vunpack.c.l.b16 %v3254
      %v3444 = vunpack.c.l.b16 %v3264
      %v3445 = vunpack.c.l.b16 %v3278
      %v3446 = vunpack.c.l.b16 %v3288
      %v3447 = vunpack.c.l.b16 %v3302
      %v3448 = vunpack.c.l.b16 %v3312
      %v3449 = vunpack.c.l.b16 %v3326
      %v3450 = vunpack.c.l.b16 %v3336
      %v3451 = vunpack.c.l.b16 %v3350
      %v3452 = vunpack.c.l.b16 %v3360
      %v3453 = vunpack.c.l.b16 %v3374
      %v3454 = vunpack.c.l.b16 %v3384
      %v3455 = vunpack.c.l.b16 %v3398
      %v3456 = vunpack.c.l.b16 %v3408
      %v3457 = vpack.c.b16 %v3426, %v3425
      %v3458 = vpack.c.b16 %v3428, %v3427
      %v3459 = vpack.c.b16 %v3430, %v3429
      %v3460 = vpack.c.b16 %v3432, %v3431
      %v3461 = vpack.c.b16 %v3434, %v3433
      %v3462 = vpack.c.b16 %v3436, %v3435
      %v3463 = vpack.c.b16 %v3438, %v3437
      %v3464 = vpack.c.b16 %v3440, %v3439
      %v3465 = vpack.c.b16 %v3442, %v3441
      %v3466 = vpack.c.b16 %v3444, %v3443
      %v3467 = vpack.c.b16 %v3446, %v3445
      %v3468 = vpack.c.b16 %v3448, %v3447
      %v3469 = vpack.c.b16 %v3450, %v3449
      %v3470 = vpack.c.b16 %v3452, %v3451
      %v3471 = vpack.c.b16 %v3454, %v3453
      %v3472 = vpack.c.b16 %v3456, %v3455
      %v3505 = vunpack.c.l.b16 %v3409
      %v3506 = vunpack.c.l.b16 %v3410
      %v3507 = vunpack.c.l.b16 %v3411
      %v3508 = vunpack.c.l.b16 %v3412
      %v3509 = vunpack.c.l.b16 %v3413
      %v3510 = vunpack.c.l.b16 %v3414
      %v3511 = vunpack.c.l.b16 %v3415
      %v3512 = vunpack.c.l.b16 %v3416
      %v3513 = vunpack.c.l.b16 %v3417
      %v3514 = vunpack.c.l.b16 %v3418
      %v3515 = vunpack.c.l.b16 %v3419
      %v3516 = vunpack.c.l.b16 %v3420
      %v3517 = vunpack.c.l.b16 %v3421
      %v3518 = vunpack.c.l.b16 %v3422
      %v3519 = vunpack.c.l.b16 %v3423
      %v3520 = vunpack.c.l.b16 %v3424
      %v3521 = vpack.c.b16 %v3506, %v3505
      %v3522 = vpack.c.b16 %v3508, %v3507
      %v3523 = vpack.c.b16 %v3510, %v3509
      %v3524 = vpack.c.b16 %v3512, %v3511
      %v3525 = vpack.c.b16 %v3514, %v3513
      %v3526 = vpack.c.b16 %v3516, %v3515
      %v3527 = vpack.c.b16 %v3518, %v3517
      %v3528 = vpack.c.b16 %v3520, %v3519
      %3537 = vmatpush.bf16.msra.mxu0 %v3528
      %3538 = vmatpush.bf16.msra.mxu0 %v3527
      %3539 = vmatpush.bf16.msra.mxu0 %v3526
      %3540 = vmatpush.bf16.msra.mxu0 %v3525
      %3541 = vmatpush.bf16.msra.mxu0 %v3524
      %3542 = vmatpush.bf16.msra.mxu0 %v3523
      %3543 = vmatpush.bf16.msra.mxu0 %v3522
      %3544 = vmatpush.bf16.msra.mxu0 %v3521
      %3545 = vmatmul.bf16.gmra.mxu0 %v3457
      %v3546 = vpop.f32.mrf.mxu0
      %v3547 = vadd.f32 0.0, %v3546
      %v3548 = vpop.f32.mrf.mxu0
      %v3549 = vadd.f32 0.0, %v3548
      %3550 = vmatmul.bf16.gmra.mxu0 %v3458
      %v3551 = vpop.f32.mrf.mxu0
      %v3552 = vadd.f32 0.0, %v3551
      %v3553 = vpop.f32.mrf.mxu0
      %v3554 = vadd.f32 0.0, %v3553
      %3555 = vmatmul.bf16.gmra.mxu0 %v3459
      %v3556 = vpop.f32.mrf.mxu0
      %v3557 = vadd.f32 0.0, %v3556
      %v3558 = vpop.f32.mrf.mxu0
      %v3559 = vadd.f32 0.0, %v3558
      %3560 = vmatmul.bf16.gmra.mxu0 %v3460
      %v3561 = vpop.f32.mrf.mxu0
      %v3562 = vadd.f32 0.0, %v3561
      %v3563 = vpop.f32.mrf.mxu0
      %v3564 = vadd.f32 0.0, %v3563
      %3565 = vmatmul.bf16.gmra.mxu0 %v3461
      %v3566 = vpop.f32.mrf.mxu0
      %v3567 = vadd.f32 0.0, %v3566
      %v3568 = vpop.f32.mrf.mxu0
      %v3569 = vadd.f32 0.0, %v3568
      %3570 = vmatmul.bf16.gmra.mxu0 %v3462
      %v3571 = vpop.f32.mrf.mxu0
      %v3572 = vadd.f32 0.0, %v3571
      %v3573 = vpop.f32.mrf.mxu0
      %v3574 = vadd.f32 0.0, %v3573
      %3575 = vmatmul.bf16.gmra.mxu0 %v3463
      %v3576 = vpop.f32.mrf.mxu0
      %v3577 = vadd.f32 0.0, %v3576
      %v3578 = vpop.f32.mrf.mxu0
      %v3579 = vadd.f32 0.0, %v3578
      %3580 = vmatmul.bf16.gmra.mxu0 %v3464
      %v3581 = vpop.f32.mrf.mxu0
      %v3582 = vadd.f32 0.0, %v3581
      %v3583 = vpop.f32.mrf.mxu0
      %v3584 = vadd.f32 0.0, %v3583
      %3585 = vmatmul.bf16.gmra.mxu0 %v3465
      %v3586 = vpop.f32.mrf.mxu0
      %v3587 = vadd.f32 0.0, %v3586
      %v3588 = vpop.f32.mrf.mxu0
      %v3589 = vadd.f32 0.0, %v3588
      %3590 = vmatmul.bf16.gmra.mxu0 %v3466
      %v3591 = vpop.f32.mrf.mxu0
      %v3592 = vadd.f32 0.0, %v3591
      %v3593 = vpop.f32.mrf.mxu0
      %v3594 = vadd.f32 0.0, %v3593
      %3595 = vmatmul.bf16.gmra.mxu0 %v3467
      %v3596 = vpop.f32.mrf.mxu0
      %v3597 = vadd.f32 0.0, %v3596
      %v3598 = vpop.f32.mrf.mxu0
      %v3599 = vadd.f32 0.0, %v3598
      %3600 = vmatmul.bf16.gmra.mxu0 %v3468
      %v3601 = vpop.f32.mrf.mxu0
      %v3602 = vadd.f32 0.0, %v3601
      %v3603 = vpop.f32.mrf.mxu0
      %v3604 = vadd.f32 0.0, %v3603
      %3605 = vmatmul.bf16.gmra.mxu0 %v3469
      %v3606 = vpop.f32.mrf.mxu0
      %v3607 = vadd.f32 0.0, %v3606
      %v3608 = vpop.f32.mrf.mxu0
      %v3609 = vadd.f32 0.0, %v3608
      %3610 = vmatmul.bf16.gmra.mxu0 %v3470
      %v3611 = vpop.f32.mrf.mxu0
      %v3612 = vadd.f32 0.0, %v3611
      %v3613 = vpop.f32.mrf.mxu0
      %v3614 = vadd.f32 0.0, %v3613
      %3615 = vmatmul.bf16.gmra.mxu0 %v3471
      %v3616 = vpop.f32.mrf.mxu0
      %v3617 = vadd.f32 0.0, %v3616
      %v3618 = vpop.f32.mrf.mxu0
      %v3619 = vadd.f32 0.0, %v3618
      %3620 = vmatmul.bf16.gmra.mxu0 %v3472
      %v3621 = vpop.f32.mrf.mxu0
      %v3622 = vadd.f32 0.0, %v3621
      %v3623 = vpop.f32.mrf.mxu0
      %v3624 = vadd.f32 0.0, %v3623
      %3625 = vdwg.mxu0
      %v3626 = vld [vmem:[#allocation3] sm:$0xff]
      %v3627 = vld [vmem:[#allocation3 + $0x8] sm:$0xff]
      %v3628 = vld [vmem:[#allocation3 + $0x10] sm:$0xff]
      %v3629 = vld [vmem:[#allocation3 + $0x18] sm:$0xff]
      %v3630 = vld [vmem:[#allocation3 + $0x20] sm:$0xff]
      %v3631 = vld [vmem:[#allocation3 + $0x28] sm:$0xff]
      %v3632 = vld [vmem:[#allocation3 + $0x30] sm:$0xff]
      %v3633 = vld [vmem:[#allocation3 + $0x38] sm:$0xff]
      %v3634 = vld [vmem:[#allocation3 + $0x40] sm:$0xff]
      %v3635 = vld [vmem:[#allocation3 + $0x48] sm:$0xff]
      %v3636 = vld [vmem:[#allocation3 + $0x50] sm:$0xff]
      %v3637 = vld [vmem:[#allocation3 + $0x58] sm:$0xff]
      %v3638 = vld [vmem:[#allocation3 + $0x60] sm:$0xff]
      %v3639 = vld [vmem:[#allocation3 + $0x68] sm:$0xff]
      %v3640 = vld [vmem:[#allocation3 + $0x70] sm:$0xff]
      %v3641 = vld [vmem:[#allocation3 + $0x78] sm:$0xff]
      %v3642 = vld [vmem:[#allocation3 + $0x80] sm:$0xff]
      %v3643 = vld [vmem:[#allocation3 + $0x88] sm:$0xff]
      %v3644 = vld [vmem:[#allocation3 + $0x90] sm:$0xff]
      %v3645 = vld [vmem:[#allocation3 + $0x98] sm:$0xff]
      %v3646 = vld [vmem:[#allocation3 + $0xa0] sm:$0xff]
      %v3647 = vld [vmem:[#allocation3 + $0xa8] sm:$0xff]
      %v3648 = vld [vmem:[#allocation3 + $0xb0] sm:$0xff]
      %v3649 = vld [vmem:[#allocation3 + $0xb8] sm:$0xff]
      %v3650 = vld [vmem:[#allocation3 + $0xc0] sm:$0xff]
      %v3651 = vld [vmem:[#allocation3 + $0xc8] sm:$0xff]
      %v3652 = vld [vmem:[#allocation3 + $0xd0] sm:$0xff]
      %v3653 = vld [vmem:[#allocation3 + $0xd8] sm:$0xff]
      %v3654 = vld [vmem:[#allocation3 + $0xe0] sm:$0xff]
      %v3655 = vld [vmem:[#allocation3 + $0xe8] sm:$0xff]
      %v3656 = vld [vmem:[#allocation3 + $0xf0] sm:$0xff]
      %v3657 = vld [vmem:[#allocation3 + $0xf8] sm:$0xff]
      %v3658 = vadd.f32 %v3626, %v3547
      %v3659 = vadd.f32 %v3627, %v3549
      %v3660 = vadd.f32 %v3628, %v3552
      %v3661 = vadd.f32 %v3629, %v3554
      %v3662 = vadd.f32 %v3630, %v3557
      %v3663 = vadd.f32 %v3631, %v3559
      %v3664 = vadd.f32 %v3632, %v3562
      %v3665 = vadd.f32 %v3633, %v3564
      %v3666 = vadd.f32 %v3634, %v3567
      %v3667 = vadd.f32 %v3635, %v3569
      %v3668 = vadd.f32 %v3636, %v3572
      %v3669 = vadd.f32 %v3637, %v3574
      %v3670 = vadd.f32 %v3638, %v3577
      %v3671 = vadd.f32 %v3639, %v3579
      %v3672 = vadd.f32 %v3640, %v3582
      %v3673 = vadd.f32 %v3641, %v3584
      %v3674 = vadd.f32 %v3642, %v3587
      %v3675 = vadd.f32 %v3643, %v3589
      %v3676 = vadd.f32 %v3644, %v3592
      %v3677 = vadd.f32 %v3645, %v3594
      %v3678 = vadd.f32 %v3646, %v3597
      %v3679 = vadd.f32 %v3647, %v3599
      %v3680 = vadd.f32 %v3648, %v3602
      %v3681 = vadd.f32 %v3649, %v3604
      %v3682 = vadd.f32 %v3650, %v3607
      %v3683 = vadd.f32 %v3651, %v3609
      %v3684 = vadd.f32 %v3652, %v3612
      %v3685 = vadd.f32 %v3653, %v3614
      %v3686 = vadd.f32 %v3654, %v3617
      %v3687 = vadd.f32 %v3655, %v3619
      %v3688 = vadd.f32 %v3656, %v3622
      %v3689 = vadd.f32 %v3657, %v3624
      %3690 = vst [vmem:[#allocation3] sm:$0xff] %v3658
      %3691 = vst [vmem:[#allocation3 + $0x8] sm:$0xff] %v3659
      %3692 = vst [vmem:[#allocation3 + $0x10] sm:$0xff] %v3660
      %3693 = vst [vmem:[#allocation3 + $0x18] sm:$0xff] %v3661
      %3694 = vst [vmem:[#allocation3 + $0x20] sm:$0xff] %v3662
      %3695 = vst [vmem:[#allocation3 + $0x28] sm:$0xff] %v3663
      %3696 = vst [vmem:[#allocation3 + $0x30] sm:$0xff] %v3664
      %3697 = vst [vmem:[#allocation3 + $0x38] sm:$0xff] %v3665
      %3698 = vst [vmem:[#allocation3 + $0x40] sm:$0xff] %v3666
      %3699 = vst [vmem:[#allocation3 + $0x48] sm:$0xff] %v3667
      %3700 = vst [vmem:[#allocation3 + $0x50] sm:$0xff] %v3668
      %3701 = vst [vmem:[#allocation3 + $0x58] sm:$0xff] %v3669
      %3702 = vst [vmem:[#allocation3 + $0x60] sm:$0xff] %v3670
      %3703 = vst [vmem:[#allocation3 + $0x68] sm:$0xff] %v3671
      %3704 = vst [vmem:[#allocation3 + $0x70] sm:$0xff] %v3672
      %3705 = vst [vmem:[#allocation3 + $0x78] sm:$0xff] %v3673
      %3706 = vst [vmem:[#allocation3 + $0x80] sm:$0xff] %v3674
      %3707 = vst [vmem:[#allocation3 + $0x88] sm:$0xff] %v3675
      %3708 = vst [vmem:[#allocation3 + $0x90] sm:$0xff] %v3676
      %3709 = vst [vmem:[#allocation3 + $0x98] sm:$0xff] %v3677
      %3710 = vst [vmem:[#allocation3 + $0xa0] sm:$0xff] %v3678
      %3711 = vst [vmem:[#allocation3 + $0xa8] sm:$0xff] %v3679
      %3712 = vst [vmem:[#allocation3 + $0xb0] sm:$0xff] %v3680
      %3713 = vst [vmem:[#allocation3 + $0xb8] sm:$0xff] %v3681
      %3714 = vst [vmem:[#allocation3 + $0xc0] sm:$0xff] %v3682
      %3715 = vst [vmem:[#allocation3 + $0xc8] sm:$0xff] %v3683
      %3716 = vst [vmem:[#allocation3 + $0xd0] sm:$0xff] %v3684
      %3717 = vst [vmem:[#allocation3 + $0xd8] sm:$0xff] %v3685
      %3718 = vst [vmem:[#allocation3 + $0xe0] sm:$0xff] %v3686
      %3719 = vst [vmem:[#allocation3 + $0xe8] sm:$0xff] %v3687
      %3720 = vst [vmem:[#allocation3 + $0xf0] sm:$0xff] %v3688
      %3721 = vst [vmem:[#allocation3 + $0xf8] sm:$0xff] %v3689
      %v3722 = vld [vmem:[%s277] sm:$0xe]
      %v3723 = vld [vmem:[%s277 + $0x4] sm:$0xf]
      %v3724 = vld [vmem:[%s277 + $0x8] sm:$0x1]
      %v3725 = vld [vmem:[%s277 + $0xc] sm:$0xe]
      %v3726 = vld [vmem:[%s277 + $0x10] sm:$0xf]
      %v3727 = vld [vmem:[%s277 + $0x14] sm:$0x1]
      %v3728 = vld [vmem:[%s277 + $0x18] sm:$0xe]
      %v3729 = vld [vmem:[%s277 + $0x1c] sm:$0xf]
      %v3730 = vld [vmem:[%s277 + $0x20] sm:$0x1]
      %v3731 = vld [vmem:[%s277 + $0x24] sm:$0xe]
      %v3732 = vld [vmem:[%s277 + $0x28] sm:$0xf]
      %v3733 = vld [vmem:[%s277 + $0x2c] sm:$0x1]
      %v3734 = vld [vmem:[%s277 + $0x30] sm:$0xe]
      %v3735 = vld [vmem:[%s277 + $0x34] sm:$0xf]
      %v3736 = vld [vmem:[%s277 + $0x38] sm:$0x1]
      %v3737 = vld [vmem:[%s277 + $0x3c] sm:$0xe]
      %v3738 = vld [vmem:[%s277 + $0x40] sm:$0xf]
      %v3739 = vld [vmem:[%s277 + $0x44] sm:$0x1]
      %v3740 = vld [vmem:[%s277 + $0x48] sm:$0xe]
      %v3741 = vld [vmem:[%s277 + $0x4c] sm:$0xf]
      %v3742 = vld [vmem:[%s277 + $0x50] sm:$0x1]
      %v3743 = vld [vmem:[%s277 + $0x54] sm:$0xe]
      %v3744 = vld [vmem:[%s277 + $0x58] sm:$0xf]
      %v3745 = vld [vmem:[%s277 + $0x5c] sm:$0x1]
      %v3746 = vld [vmem:[%s277 + $0x60] sm:$0xe]
      %v3747 = vld [vmem:[%s277 + $0x64] sm:$0xf]
      %v3748 = vld [vmem:[%s277 + $0x68] sm:$0x1]
      %v3749 = vld [vmem:[%s277 + $0x6c] sm:$0xe]
      %v3750 = vld [vmem:[%s277 + $0x70] sm:$0xf]
      %v3751 = vld [vmem:[%s277 + $0x74] sm:$0x1]
      %v3752 = vld [vmem:[%s277 + $0x78] sm:$0xe]
      %v3753 = vld [vmem:[%s277 + $0x7c] sm:$0xf]
      %v3754 = vld [vmem:[%s277 + $0x80] sm:$0x1]
      %v3755 = vld [vmem:[%s277 + $0x84] sm:$0xe]
      %v3756 = vld [vmem:[%s277 + $0x88] sm:$0xf]
      %v3757 = vld [vmem:[%s277 + $0x8c] sm:$0x1]
      %v3758 = vld [vmem:[%s277 + $0x90] sm:$0xe]
      %v3759 = vld [vmem:[%s277 + $0x94] sm:$0xf]
      %v3760 = vld [vmem:[%s277 + $0x98] sm:$0x1]
      %v3761 = vld [vmem:[%s277 + $0x9c] sm:$0xe]
      %v3762 = vld [vmem:[%s277 + $0xa0] sm:$0xf]
      %v3763 = vld [vmem:[%s277 + $0xa4] sm:$0x1]
      %v3764 = vld [vmem:[%s277 + $0xa8] sm:$0xe]
      %v3765 = vld [vmem:[%s277 + $0xac] sm:$0xf]
      %v3766 = vld [vmem:[%s277 + $0xb0] sm:$0x1]
      %v3767 = vld [vmem:[%s277 + $0xb4] sm:$0xe]
      %v3768 = vld [vmem:[%s277 + $0xb8] sm:$0xf]
      %v3769 = vld [vmem:[%s277 + $0xbc] sm:$0x1]
      %v3818 = vrot.slane %v3722, 5
      %v3819 = vrot.slane %v3818, 4
      %v3820 = vrot.slane %v3723, 5
      %v3821 = vsel %vm2174, %v3819, %v3820
      %v3822 = vrot.slane %v3820, 4
      %v3823 = vrot.slane %v3724, 5
      %v3824 = vsel %vm2174, %v3822, %v3823
      %v3825 = vrot.slane %v3725, 5
      %v3826 = vrot.slane %v3825, 4
      %v3827 = vrot.slane %v3726, 5
      %v3828 = vsel %vm2174, %v3826, %v3827
      %v3829 = vrot.slane %v3827, 4
      %v3830 = vrot.slane %v3727, 5
      %v3831 = vsel %vm2174, %v3829, %v3830
      %v3832 = vrot.slane %v3728, 5
      %v3833 = vrot.slane %v3832, 4
      %v3834 = vrot.slane %v3729, 5
      %v3835 = vsel %vm2174, %v3833, %v3834
      %v3836 = vrot.slane %v3834, 4
      %v3837 = vrot.slane %v3730, 5
      %v3838 = vsel %vm2174, %v3836, %v3837
      %v3839 = vrot.slane %v3731, 5
      %v3840 = vrot.slane %v3839, 4
      %v3841 = vrot.slane %v3732, 5
      %v3842 = vsel %vm2174, %v3840, %v3841
      %v3843 = vrot.slane %v3841, 4
      %v3844 = vrot.slane %v3733, 5
      %v3845 = vsel %vm2174, %v3843, %v3844
      %v3846 = vrot.slane %v3734, 5
      %v3847 = vrot.slane %v3846, 4
      %v3848 = vrot.slane %v3735, 5
      %v3849 = vsel %vm2174, %v3847, %v3848
      %v3850 = vrot.slane %v3848, 4
      %v3851 = vrot.slane %v3736, 5
      %v3852 = vsel %vm2174, %v3850, %v3851
      %v3853 = vrot.slane %v3737, 5
      %v3854 = vrot.slane %v3853, 4
      %v3855 = vrot.slane %v3738, 5
      %v3856 = vsel %vm2174, %v3854, %v3855
      %v3857 = vrot.slane %v3855, 4
      %v3858 = vrot.slane %v3739, 5
      %v3859 = vsel %vm2174, %v3857, %v3858
      %v3860 = vrot.slane %v3740, 5
      %v3861 = vrot.slane %v3860, 4
      %v3862 = vrot.slane %v3741, 5
      %v3863 = vsel %vm2174, %v3861, %v3862
      %v3864 = vrot.slane %v3862, 4
      %v3865 = vrot.slane %v3742, 5
      %v3866 = vsel %vm2174, %v3864, %v3865
      %v3867 = vrot.slane %v3743, 5
      %v3868 = vrot.slane %v3867, 4
      %v3869 = vrot.slane %v3744, 5
      %v3870 = vsel %vm2174, %v3868, %v3869
      %v3871 = vrot.slane %v3869, 4
      %v3872 = vrot.slane %v3745, 5
      %v3873 = vsel %vm2174, %v3871, %v3872
      %v3874 = vrot.slane %v3746, 5
      %v3875 = vrot.slane %v3874, 4
      %v3876 = vrot.slane %v3747, 5
      %v3877 = vsel %vm2174, %v3875, %v3876
      %v3878 = vrot.slane %v3876, 4
      %v3879 = vrot.slane %v3748, 5
      %v3880 = vsel %vm2174, %v3878, %v3879
      %v3881 = vrot.slane %v3749, 5
      %v3882 = vrot.slane %v3881, 4
      %v3883 = vrot.slane %v3750, 5
      %v3884 = vsel %vm2174, %v3882, %v3883
      %v3885 = vrot.slane %v3883, 4
      %v3886 = vrot.slane %v3751, 5
      %v3887 = vsel %vm2174, %v3885, %v3886
      %v3888 = vrot.slane %v3752, 5
      %v3889 = vrot.slane %v3888, 4
      %v3890 = vrot.slane %v3753, 5
      %v3891 = vsel %vm2174, %v3889, %v3890
      %v3892 = vrot.slane %v3890, 4
      %v3893 = vrot.slane %v3754, 5
      %v3894 = vsel %vm2174, %v3892, %v3893
      %v3895 = vrot.slane %v3755, 5
      %v3896 = vrot.slane %v3895, 4
      %v3897 = vrot.slane %v3756, 5
      %v3898 = vsel %vm2174, %v3896, %v3897
      %v3899 = vrot.slane %v3897, 4
      %v3900 = vrot.slane %v3757, 5
      %v3901 = vsel %vm2174, %v3899, %v3900
      %v3902 = vrot.slane %v3758, 5
      %v3903 = vrot.slane %v3902, 4
      %v3904 = vrot.slane %v3759, 5
      %v3905 = vsel %vm2174, %v3903, %v3904
      %v3906 = vrot.slane %v3904, 4
      %v3907 = vrot.slane %v3760, 5
      %v3908 = vsel %vm2174, %v3906, %v3907
      %v3909 = vrot.slane %v3761, 5
      %v3910 = vrot.slane %v3909, 4
      %v3911 = vrot.slane %v3762, 5
      %v3912 = vsel %vm2174, %v3910, %v3911
      %v3913 = vrot.slane %v3911, 4
      %v3914 = vrot.slane %v3763, 5
      %v3915 = vsel %vm2174, %v3913, %v3914
      %v3916 = vrot.slane %v3764, 5
      %v3917 = vrot.slane %v3916, 4
      %v3918 = vrot.slane %v3765, 5
      %v3919 = vsel %vm2174, %v3917, %v3918
      %v3920 = vrot.slane %v3918, 4
      %v3921 = vrot.slane %v3766, 5
      %v3922 = vsel %vm2174, %v3920, %v3921
      %v3923 = vrot.slane %v3767, 5
      %v3924 = vrot.slane %v3923, 4
      %v3925 = vrot.slane %v3768, 5
      %v3926 = vsel %vm2174, %v3924, %v3925
      %v3927 = vrot.slane %v3925, 4
      %v3928 = vrot.slane %v3769, 5
      %v3929 = vsel %vm2174, %v3927, %v3928
      %v3930 = vld [vmem:[%s3 + $0x140] sm:$0xf]
      %v3931 = vld [vmem:[%s3 + $0x144] sm:$0xf]
      %v3932 = vld [vmem:[%s3 + $0x148] sm:$0xf]
      %v3933 = vld [vmem:[%s3 + $0x14c] sm:$0xf]
      %v3934 = vld [vmem:[%s3 + $0x150] sm:$0xf]
      %v3935 = vld [vmem:[%s3 + $0x154] sm:$0xf]
      %v3936 = vld [vmem:[%s3 + $0x158] sm:$0xf]
      %v3937 = vld [vmem:[%s3 + $0x15c] sm:$0xf]
      %v3938 = vld [vmem:[%s3 + $0x160] sm:$0xf]
      %v3939 = vld [vmem:[%s3 + $0x164] sm:$0xf]
      %v3940 = vld [vmem:[%s3 + $0x168] sm:$0xf]
      %v3941 = vld [vmem:[%s3 + $0x16c] sm:$0xf]
      %v3942 = vld [vmem:[%s3 + $0x170] sm:$0xf]
      %v3943 = vld [vmem:[%s3 + $0x174] sm:$0xf]
      %v3944 = vld [vmem:[%s3 + $0x178] sm:$0xf]
      %v3945 = vld [vmem:[%s3 + $0x17c] sm:$0xf]
      %v3946 = vunpack.c.l.b16 %v3821
      %v3947 = vunpack.c.l.b16 %v3824
      %v3948 = vunpack.c.l.b16 %v3828
      %v3949 = vunpack.c.l.b16 %v3831
      %v3950 = vunpack.c.l.b16 %v3835
      %v3951 = vunpack.c.l.b16 %v3838
      %v3952 = vunpack.c.l.b16 %v3842
      %v3953 = vunpack.c.l.b16 %v3845
      %v3954 = vunpack.c.l.b16 %v3849
      %v3955 = vunpack.c.l.b16 %v3852
      %v3956 = vunpack.c.l.b16 %v3856
      %v3957 = vunpack.c.l.b16 %v3859
      %v3958 = vunpack.c.l.b16 %v3863
      %v3959 = vunpack.c.l.b16 %v3866
      %v3960 = vunpack.c.l.b16 %v3870
      %v3961 = vunpack.c.l.b16 %v3873
      %v3962 = vunpack.c.l.b16 %v3877
      %v3963 = vunpack.c.l.b16 %v3880
      %v3964 = vunpack.c.l.b16 %v3884
      %v3965 = vunpack.c.l.b16 %v3887
      %v3966 = vunpack.c.l.b16 %v3891
      %v3967 = vunpack.c.l.b16 %v3894
      %v3968 = vunpack.c.l.b16 %v3898
      %v3969 = vunpack.c.l.b16 %v3901
      %v3970 = vunpack.c.l.b16 %v3905
      %v3971 = vunpack.c.l.b16 %v3908
      %v3972 = vunpack.c.l.b16 %v3912
      %v3973 = vunpack.c.l.b16 %v3915
      %v3974 = vunpack.c.l.b16 %v3919
      %v3975 = vunpack.c.l.b16 %v3922
      %v3976 = vunpack.c.l.b16 %v3926
      %v3977 = vunpack.c.l.b16 %v3929
      %v3978 = vpack.c.b16 %v3947, %v3946
      %v3979 = vpack.c.b16 %v3949, %v3948
      %v3980 = vpack.c.b16 %v3951, %v3950
      %v3981 = vpack.c.b16 %v3953, %v3952
      %v3982 = vpack.c.b16 %v3955, %v3954
      %v3983 = vpack.c.b16 %v3957, %v3956
      %v3984 = vpack.c.b16 %v3959, %v3958
      %v3985 = vpack.c.b16 %v3961, %v3960
      %v3986 = vpack.c.b16 %v3963, %v3962
      %v3987 = vpack.c.b16 %v3965, %v3964
      %v3988 = vpack.c.b16 %v3967, %v3966
      %v3989 = vpack.c.b16 %v3969, %v3968
      %v3990 = vpack.c.b16 %v3971, %v3970
      %v3991 = vpack.c.b16 %v3973, %v3972
      %v3992 = vpack.c.b16 %v3975, %v3974
      %v3993 = vpack.c.b16 %v3977, %v3976
      %v4026 = vunpack.c.l.b16 %v3930
      %v4027 = vunpack.c.l.b16 %v3931
      %v4028 = vunpack.c.l.b16 %v3932
      %v4029 = vunpack.c.l.b16 %v3933
      %v4030 = vunpack.c.l.b16 %v3934
      %v4031 = vunpack.c.l.b16 %v3935
      %v4032 = vunpack.c.l.b16 %v3936
      %v4033 = vunpack.c.l.b16 %v3937
      %v4034 = vunpack.c.l.b16 %v3938
      %v4035 = vunpack.c.l.b16 %v3939
      %v4036 = vunpack.c.l.b16 %v3940
      %v4037 = vunpack.c.l.b16 %v3941
      %v4038 = vunpack.c.l.b16 %v3942
      %v4039 = vunpack.c.l.b16 %v3943
      %v4040 = vunpack.c.l.b16 %v3944
      %v4041 = vunpack.c.l.b16 %v3945
      %v4042 = vpack.c.b16 %v4027, %v4026
      %v4043 = vpack.c.b16 %v4029, %v4028
      %v4044 = vpack.c.b16 %v4031, %v4030
      %v4045 = vpack.c.b16 %v4033, %v4032
      %v4046 = vpack.c.b16 %v4035, %v4034
      %v4047 = vpack.c.b16 %v4037, %v4036
      %v4048 = vpack.c.b16 %v4039, %v4038
      %v4049 = vpack.c.b16 %v4041, %v4040
      %4058 = vmatpush.bf16.msra.mxu0 %v4049
      %4059 = vmatpush.bf16.msra.mxu0 %v4048
      %4060 = vmatpush.bf16.msra.mxu0 %v4047
      %4061 = vmatpush.bf16.msra.mxu0 %v4046
      %4062 = vmatpush.bf16.msra.mxu0 %v4045
      %4063 = vmatpush.bf16.msra.mxu0 %v4044
      %4064 = vmatpush.bf16.msra.mxu0 %v4043
      %4065 = vmatpush.bf16.msra.mxu0 %v4042
      %4066 = vmatmul.bf16.gmra.mxu0 %v3978
      %v4067 = vpop.f32.mrf.mxu0
      %v4068 = vadd.f32 0.0, %v4067
      %v4069 = vpop.f32.mrf.mxu0
      %v4070 = vadd.f32 0.0, %v4069
      %4071 = vmatmul.bf16.gmra.mxu0 %v3979
      %v4072 = vpop.f32.mrf.mxu0
      %v4073 = vadd.f32 0.0, %v4072
      %v4074 = vpop.f32.mrf.mxu0
      %v4075 = vadd.f32 0.0, %v4074
      %4076 = vmatmul.bf16.gmra.mxu0 %v3980
      %v4077 = vpop.f32.mrf.mxu0
      %v4078 = vadd.f32 0.0, %v4077
      %v4079 = vpop.f32.mrf.mxu0
      %v4080 = vadd.f32 0.0, %v4079
      %4081 = vmatmul.bf16.gmra.mxu0 %v3981
      %v4082 = vpop.f32.mrf.mxu0
      %v4083 = vadd.f32 0.0, %v4082
      %v4084 = vpop.f32.mrf.mxu0
      %v4085 = vadd.f32 0.0, %v4084
      %4086 = vmatmul.bf16.gmra.mxu0 %v3982
      %v4087 = vpop.f32.mrf.mxu0
      %v4088 = vadd.f32 0.0, %v4087
      %v4089 = vpop.f32.mrf.mxu0
      %v4090 = vadd.f32 0.0, %v4089
      %4091 = vmatmul.bf16.gmra.mxu0 %v3983
      %v4092 = vpop.f32.mrf.mxu0
      %v4093 = vadd.f32 0.0, %v4092
      %v4094 = vpop.f32.mrf.mxu0
      %v4095 = vadd.f32 0.0, %v4094
      %4096 = vmatmul.bf16.gmra.mxu0 %v3984
      %v4097 = vpop.f32.mrf.mxu0
      %v4098 = vadd.f32 0.0, %v4097
      %v4099 = vpop.f32.mrf.mxu0
      %v4100 = vadd.f32 0.0, %v4099
      %4101 = vmatmul.bf16.gmra.mxu0 %v3985
      %v4102 = vpop.f32.mrf.mxu0
      %v4103 = vadd.f32 0.0, %v4102
      %v4104 = vpop.f32.mrf.mxu0
      %v4105 = vadd.f32 0.0, %v4104
      %4106 = vmatmul.bf16.gmra.mxu0 %v3986
      %v4107 = vpop.f32.mrf.mxu0
      %v4108 = vadd.f32 0.0, %v4107
      %v4109 = vpop.f32.mrf.mxu0
      %v4110 = vadd.f32 0.0, %v4109
      %4111 = vmatmul.bf16.gmra.mxu0 %v3987
      %v4112 = vpop.f32.mrf.mxu0
      %v4113 = vadd.f32 0.0, %v4112
      %v4114 = vpop.f32.mrf.mxu0
      %v4115 = vadd.f32 0.0, %v4114
      %4116 = vmatmul.bf16.gmra.mxu0 %v3988
      %v4117 = vpop.f32.mrf.mxu0
      %v4118 = vadd.f32 0.0, %v4117
      %v4119 = vpop.f32.mrf.mxu0
      %v4120 = vadd.f32 0.0, %v4119
      %4121 = vmatmul.bf16.gmra.mxu0 %v3989
      %v4122 = vpop.f32.mrf.mxu0
      %v4123 = vadd.f32 0.0, %v4122
      %v4124 = vpop.f32.mrf.mxu0
      %v4125 = vadd.f32 0.0, %v4124
      %4126 = vmatmul.bf16.gmra.mxu0 %v3990
      %v4127 = vpop.f32.mrf.mxu0
      %v4128 = vadd.f32 0.0, %v4127
      %v4129 = vpop.f32.mrf.mxu0
      %v4130 = vadd.f32 0.0, %v4129
      %4131 = vmatmul.bf16.gmra.mxu0 %v3991
      %v4132 = vpop.f32.mrf.mxu0
      %v4133 = vadd.f32 0.0, %v4132
      %v4134 = vpop.f32.mrf.mxu0
      %v4135 = vadd.f32 0.0, %v4134
      %4136 = vmatmul.bf16.gmra.mxu0 %v3992
      %v4137 = vpop.f32.mrf.mxu0
      %v4138 = vadd.f32 0.0, %v4137
      %v4139 = vpop.f32.mrf.mxu0
      %v4140 = vadd.f32 0.0, %v4139
      %4141 = vmatmul.bf16.gmra.mxu0 %v3993
      %v4142 = vpop.f32.mrf.mxu0
      %v4143 = vadd.f32 0.0, %v4142
      %v4144 = vpop.f32.mrf.mxu0
      %v4145 = vadd.f32 0.0, %v4144
      %4146 = vdwg.mxu0
      %v4147 = vld [vmem:[#allocation3] sm:$0xff]
      %v4148 = vld [vmem:[#allocation3 + $0x8] sm:$0xff]
      %v4149 = vld [vmem:[#allocation3 + $0x10] sm:$0xff]
      %v4150 = vld [vmem:[#allocation3 + $0x18] sm:$0xff]
      %v4151 = vld [vmem:[#allocation3 + $0x20] sm:$0xff]
      %v4152 = vld [vmem:[#allocation3 + $0x28] sm:$0xff]
      %v4153 = vld [vmem:[#allocation3 + $0x30] sm:$0xff]
      %v4154 = vld [vmem:[#allocation3 + $0x38] sm:$0xff]
      %v4155 = vld [vmem:[#allocation3 + $0x40] sm:$0xff]
      %v4156 = vld [vmem:[#allocation3 + $0x48] sm:$0xff]
      %v4157 = vld [vmem:[#allocation3 + $0x50] sm:$0xff]
      %v4158 = vld [vmem:[#allocation3 + $0x58] sm:$0xff]
      %v4159 = vld [vmem:[#allocation3 + $0x60] sm:$0xff]
      %v4160 = vld [vmem:[#allocation3 + $0x68] sm:$0xff]
      %v4161 = vld [vmem:[#allocation3 + $0x70] sm:$0xff]
      %v4162 = vld [vmem:[#allocation3 + $0x78] sm:$0xff]
      %v4163 = vld [vmem:[#allocation3 + $0x80] sm:$0xff]
      %v4164 = vld [vmem:[#allocation3 + $0x88] sm:$0xff]
      %v4165 = vld [vmem:[#allocation3 + $0x90] sm:$0xff]
      %v4166 = vld [vmem:[#allocation3 + $0x98] sm:$0xff]
      %v4167 = vld [vmem:[#allocation3 + $0xa0] sm:$0xff]
      %v4168 = vld [vmem:[#allocation3 + $0xa8] sm:$0xff]
      %v4169 = vld [vmem:[#allocation3 + $0xb0] sm:$0xff]
      %v4170 = vld [vmem:[#allocation3 + $0xb8] sm:$0xff]
      %v4171 = vld [vmem:[#allocation3 + $0xc0] sm:$0xff]
      %v4172 = vld [vmem:[#allocation3 + $0xc8] sm:$0xff]
      %v4173 = vld [vmem:[#allocation3 + $0xd0] sm:$0xff]
      %v4174 = vld [vmem:[#allocation3 + $0xd8] sm:$0xff]
      %v4175 = vld [vmem:[#allocation3 + $0xe0] sm:$0xff]
      %v4176 = vld [vmem:[#allocation3 + $0xe8] sm:$0xff]
      %v4177 = vld [vmem:[#allocation3 + $0xf0] sm:$0xff]
      %v4178 = vld [vmem:[#allocation3 + $0xf8] sm:$0xff]
      %v4179 = vadd.f32 %v4147, %v4068
      %v4180 = vadd.f32 %v4148, %v4070
      %v4181 = vadd.f32 %v4149, %v4073
      %v4182 = vadd.f32 %v4150, %v4075
      %v4183 = vadd.f32 %v4151, %v4078
      %v4184 = vadd.f32 %v4152, %v4080
      %v4185 = vadd.f32 %v4153, %v4083
      %v4186 = vadd.f32 %v4154, %v4085
      %v4187 = vadd.f32 %v4155, %v4088
      %v4188 = vadd.f32 %v4156, %v4090
      %v4189 = vadd.f32 %v4157, %v4093
      %v4190 = vadd.f32 %v4158, %v4095
      %v4191 = vadd.f32 %v4159, %v4098
      %v4192 = vadd.f32 %v4160, %v4100
      %v4193 = vadd.f32 %v4161, %v4103
      %v4194 = vadd.f32 %v4162, %v4105
      %v4195 = vadd.f32 %v4163, %v4108
      %v4196 = vadd.f32 %v4164, %v4110
      %v4197 = vadd.f32 %v4165, %v4113
      %v4198 = vadd.f32 %v4166, %v4115
      %v4199 = vadd.f32 %v4167, %v4118
      %v4200 = vadd.f32 %v4168, %v4120
      %v4201 = vadd.f32 %v4169, %v4123
      %v4202 = vadd.f32 %v4170, %v4125
      %v4203 = vadd.f32 %v4171, %v4128
      %v4204 = vadd.f32 %v4172, %v4130
      %v4205 = vadd.f32 %v4173, %v4133
      %v4206 = vadd.f32 %v4174, %v4135
      %v4207 = vadd.f32 %v4175, %v4138
      %v4208 = vadd.f32 %v4176, %v4140
      %v4209 = vadd.f32 %v4177, %v4143
      %v4210 = vadd.f32 %v4178, %v4145
      %4211 = vst [vmem:[#allocation3] sm:$0xff] %v4179
      %4212 = vst [vmem:[#allocation3 + $0x8] sm:$0xff] %v4180
      %4213 = vst [vmem:[#allocation3 + $0x10] sm:$0xff] %v4181
      %4214 = vst [vmem:[#allocation3 + $0x18] sm:$0xff] %v4182
      %4215 = vst [vmem:[#allocation3 + $0x20] sm:$0xff] %v4183
      %4216 = vst [vmem:[#allocation3 + $0x28] sm:$0xff] %v4184
      %4217 = vst [vmem:[#allocation3 + $0x30] sm:$0xff] %v4185
      %4218 = vst [vmem:[#allocation3 + $0x38] sm:$0xff] %v4186
      %4219 = vst [vmem:[#allocation3 + $0x40] sm:$0xff] %v4187
      %4220 = vst [vmem:[#allocation3 + $0x48] sm:$0xff] %v4188
      %4221 = vst [vmem:[#allocation3 + $0x50] sm:$0xff] %v4189
      %4222 = vst [vmem:[#allocation3 + $0x58] sm:$0xff] %v4190
      %4223 = vst [vmem:[#allocation3 + $0x60] sm:$0xff] %v4191
      %4224 = vst [vmem:[#allocation3 + $0x68] sm:$0xff] %v4192
      %4225 = vst [vmem:[#allocation3 + $0x70] sm:$0xff] %v4193
      %4226 = vst [vmem:[#allocation3 + $0x78] sm:$0xff] %v4194
      %4227 = vst [vmem:[#allocation3 + $0x80] sm:$0xff] %v4195
      %4228 = vst [vmem:[#allocation3 + $0x88] sm:$0xff] %v4196
      %4229 = vst [vmem:[#allocation3 + $0x90] sm:$0xff] %v4197
      %4230 = vst [vmem:[#allocation3 + $0x98] sm:$0xff] %v4198
      %4231 = vst [vmem:[#allocation3 + $0xa0] sm:$0xff] %v4199
      %4232 = vst [vmem:[#allocation3 + $0xa8] sm:$0xff] %v4200
      %4233 = vst [vmem:[#allocation3 + $0xb0] sm:$0xff] %v4201
      %4234 = vst [vmem:[#allocation3 + $0xb8] sm:$0xff] %v4202
      %4235 = vst [vmem:[#allocation3 + $0xc0] sm:$0xff] %v4203
      %4236 = vst [vmem:[#allocation3 + $0xc8] sm:$0xff] %v4204
      %4237 = vst [vmem:[#allocation3 + $0xd0] sm:$0xff] %v4205
      %4238 = vst [vmem:[#allocation3 + $0xd8] sm:$0xff] %v4206
      %4239 = vst [vmem:[#allocation3 + $0xe0] sm:$0xff] %v4207
      %4240 = vst [vmem:[#allocation3 + $0xe8] sm:$0xff] %v4208
      %4241 = vst [vmem:[#allocation3 + $0xf0] sm:$0xff] %v4209
      %4242 = vst [vmem:[#allocation3 + $0xf8] sm:$0xff] %v4210
      %s4243 = scalar_lea.vmem [#allocation2], 24
      %v4244 = vld [vmem:[%s4243] sm:$0xf]
      %v4245 = vld [vmem:[%s4243 + $0x4] sm:$0xf]
      %v4246 = vld [vmem:[%s4243 + $0xc] sm:$0xf]
      %v4247 = vld [vmem:[%s4243 + $0x10] sm:$0xf]
      %v4248 = vld [vmem:[%s4243 + $0x18] sm:$0xf]
      %v4249 = vld [vmem:[%s4243 + $0x1c] sm:$0xf]
      %v4250 = vld [vmem:[%s4243 + $0x24] sm:$0xf]
      %v4251 = vld [vmem:[%s4243 + $0x28] sm:$0xf]
      %v4252 = vld [vmem:[%s4243 + $0x30] sm:$0xf]
      %v4253 = vld [vmem:[%s4243 + $0x34] sm:$0xf]
      %v4254 = vld [vmem:[%s4243 + $0x3c] sm:$0xf]
      %v4255 = vld [vmem:[%s4243 + $0x40] sm:$0xf]
      %v4256 = vld [vmem:[%s4243 + $0x48] sm:$0xf]
      %v4257 = vld [vmem:[%s4243 + $0x4c] sm:$0xf]
      %v4258 = vld [vmem:[%s4243 + $0x54] sm:$0xf]
      %v4259 = vld [vmem:[%s4243 + $0x58] sm:$0xf]
      %v4260 = vld [vmem:[%s4243 + $0x60] sm:$0xf]
      %v4261 = vld [vmem:[%s4243 + $0x64] sm:$0xf]
      %v4262 = vld [vmem:[%s4243 + $0x6c] sm:$0xf]
      %v4263 = vld [vmem:[%s4243 + $0x70] sm:$0xf]
      %v4264 = vld [vmem:[%s4243 + $0x78] sm:$0xf]
      %v4265 = vld [vmem:[%s4243 + $0x7c] sm:$0xf]
      %v4266 = vld [vmem:[%s4243 + $0x84] sm:$0xf]
      %v4267 = vld [vmem:[%s4243 + $0x88] sm:$0xf]
      %v4268 = vld [vmem:[%s4243 + $0x90] sm:$0xf]
      %v4269 = vld [vmem:[%s4243 + $0x94] sm:$0xf]
      %v4270 = vld [vmem:[%s4243 + $0x9c] sm:$0xf]
      %v4271 = vld [vmem:[%s4243 + $0xa0] sm:$0xf]
      %v4272 = vld [vmem:[%s4243 + $0xa8] sm:$0xf]
      %v4273 = vld [vmem:[%s4243 + $0xac] sm:$0xf]
      %v4274 = vld [vmem:[%s4243 + $0xb4] sm:$0xf]
      %v4275 = vld [vmem:[%s4243 + $0xb8] sm:$0xf]
      %v4276 = vld [vmem:[%s3 + $0x180] sm:$0xf]
      %v4277 = vld [vmem:[%s3 + $0x184] sm:$0xf]
      %v4278 = vld [vmem:[%s3 + $0x188] sm:$0xf]
      %v4279 = vld [vmem:[%s3 + $0x18c] sm:$0xf]
      %v4280 = vld [vmem:[%s3 + $0x190] sm:$0xf]
      %v4281 = vld [vmem:[%s3 + $0x194] sm:$0xf]
      %v4282 = vld [vmem:[%s3 + $0x198] sm:$0xf]
      %v4283 = vld [vmem:[%s3 + $0x19c] sm:$0xf]
      %v4284 = vld [vmem:[%s3 + $0x1a0] sm:$0xf]
      %v4285 = vld [vmem:[%s3 + $0x1a4] sm:$0xf]
      %v4286 = vld [vmem:[%s3 + $0x1a8] sm:$0xf]
      %v4287 = vld [vmem:[%s3 + $0x1ac] sm:$0xf]
      %v4288 = vld [vmem:[%s3 + $0x1b0] sm:$0xf]
      %v4289 = vld [vmem:[%s3 + $0x1b4] sm:$0xf]
      %v4290 = vld [vmem:[%s3 + $0x1b8] sm:$0xf]
      %v4291 = vld [vmem:[%s3 + $0x1bc] sm:$0xf]
      %v4324 = vunpack.c.l.b16 %v4244
      %v4325 = vunpack.c.l.b16 %v4245
      %v4326 = vunpack.c.l.b16 %v4246
      %v4327 = vunpack.c.l.b16 %v4247
      %v4328 = vunpack.c.l.b16 %v4248
      %v4329 = vunpack.c.l.b16 %v4249
      %v4330 = vunpack.c.l.b16 %v4250
      %v4331 = vunpack.c.l.b16 %v4251
      %v4332 = vunpack.c.l.b16 %v4252
      %v4333 = vunpack.c.l.b16 %v4253
      %v4334 = vunpack.c.l.b16 %v4254
      %v4335 = vunpack.c.l.b16 %v4255
      %v4336 = vunpack.c.l.b16 %v4256
      %v4337 = vunpack.c.l.b16 %v4257
      %v4338 = vunpack.c.l.b16 %v4258
      %v4339 = vunpack.c.l.b16 %v4259
      %v4340 = vunpack.c.l.b16 %v4260
      %v4341 = vunpack.c.l.b16 %v4261
      %v4342 = vunpack.c.l.b16 %v4262
      %v4343 = vunpack.c.l.b16 %v4263
      %v4344 = vunpack.c.l.b16 %v4264
      %v4345 = vunpack.c.l.b16 %v4265
      %v4346 = vunpack.c.l.b16 %v4266
      %v4347 = vunpack.c.l.b16 %v4267
      %v4348 = vunpack.c.l.b16 %v4268
      %v4349 = vunpack.c.l.b16 %v4269
      %v4350 = vunpack.c.l.b16 %v4270
      %v4351 = vunpack.c.l.b16 %v4271
      %v4352 = vunpack.c.l.b16 %v4272
      %v4353 = vunpack.c.l.b16 %v4273
      %v4354 = vunpack.c.l.b16 %v4274
      %v4355 = vunpack.c.l.b16 %v4275
      %v4356 = vpack.c.b16 %v4325, %v4324
      %v4357 = vpack.c.b16 %v4327, %v4326
      %v4358 = vpack.c.b16 %v4329, %v4328
      %v4359 = vpack.c.b16 %v4331, %v4330
      %v4360 = vpack.c.b16 %v4333, %v4332
      %v4361 = vpack.c.b16 %v4335, %v4334
      %v4362 = vpack.c.b16 %v4337, %v4336
      %v4363 = vpack.c.b16 %v4339, %v4338
      %v4364 = vpack.c.b16 %v4341, %v4340
      %v4365 = vpack.c.b16 %v4343, %v4342
      %v4366 = vpack.c.b16 %v4345, %v4344
      %v4367 = vpack.c.b16 %v4347, %v4346
      %v4368 = vpack.c.b16 %v4349, %v4348
      %v4369 = vpack.c.b16 %v4351, %v4350
      %v4370 = vpack.c.b16 %v4353, %v4352
      %v4371 = vpack.c.b16 %v4355, %v4354
      %v4404 = vunpack.c.l.b16 %v4276
      %v4405 = vunpack.c.l.b16 %v4277
      %v4406 = vunpack.c.l.b16 %v4278
      %v4407 = vunpack.c.l.b16 %v4279
      %v4408 = vunpack.c.l.b16 %v4280
      %v4409 = vunpack.c.l.b16 %v4281
      %v4410 = vunpack.c.l.b16 %v4282
      %v4411 = vunpack.c.l.b16 %v4283
      %v4412 = vunpack.c.l.b16 %v4284
      %v4413 = vunpack.c.l.b16 %v4285
      %v4414 = vunpack.c.l.b16 %v4286
      %v4415 = vunpack.c.l.b16 %v4287
      %v4416 = vunpack.c.l.b16 %v4288
      %v4417 = vunpack.c.l.b16 %v4289
      %v4418 = vunpack.c.l.b16 %v4290
      %v4419 = vunpack.c.l.b16 %v4291
      %v4420 = vpack.c.b16 %v4405, %v4404
      %v4421 = vpack.c.b16 %v4407, %v4406
      %v4422 = vpack.c.b16 %v4409, %v4408
      %v4423 = vpack.c.b16 %v4411, %v4410
      %v4424 = vpack.c.b16 %v4413, %v4412
      %v4425 = vpack.c.b16 %v4415, %v4414
      %v4426 = vpack.c.b16 %v4417, %v4416
      %v4427 = vpack.c.b16 %v4419, %v4418
      %4436 = vmatpush.bf16.msra.mxu0 %v4427
      %4437 = vmatpush.bf16.msra.mxu0 %v4426
      %4438 = vmatpush.bf16.msra.mxu0 %v4425
      %4439 = vmatpush.bf16.msra.mxu0 %v4424
      %4440 = vmatpush.bf16.msra.mxu0 %v4423
      %4441 = vmatpush.bf16.msra.mxu0 %v4422
      %4442 = vmatpush.bf16.msra.mxu0 %v4421
      %4443 = vmatpush.bf16.msra.mxu0 %v4420
      %4444 = vmatmul.bf16.gmra.mxu0 %v4356
      %v4445 = vpop.f32.mrf.mxu0
      %v4446 = vadd.f32 0.0, %v4445
      %v4447 = vpop.f32.mrf.mxu0
      %v4448 = vadd.f32 0.0, %v4447
      %4449 = vmatmul.bf16.gmra.mxu0 %v4357
      %v4450 = vpop.f32.mrf.mxu0
      %v4451 = vadd.f32 0.0, %v4450
      %v4452 = vpop.f32.mrf.mxu0
      %v4453 = vadd.f32 0.0, %v4452
      %4454 = vmatmul.bf16.gmra.mxu0 %v4358
      %v4455 = vpop.f32.mrf.mxu0
      %v4456 = vadd.f32 0.0, %v4455
      %v4457 = vpop.f32.mrf.mxu0
      %v4458 = vadd.f32 0.0, %v4457
      %4459 = vmatmul.bf16.gmra.mxu0 %v4359
      %v4460 = vpop.f32.mrf.mxu0
      %v4461 = vadd.f32 0.0, %v4460
      %v4462 = vpop.f32.mrf.mxu0
      %v4463 = vadd.f32 0.0, %v4462
      %4464 = vmatmul.bf16.gmra.mxu0 %v4360
      %v4465 = vpop.f32.mrf.mxu0
      %v4466 = vadd.f32 0.0, %v4465
      %v4467 = vpop.f32.mrf.mxu0
      %v4468 = vadd.f32 0.0, %v4467
      %4469 = vmatmul.bf16.gmra.mxu0 %v4361
      %v4470 = vpop.f32.mrf.mxu0
      %v4471 = vadd.f32 0.0, %v4470
      %v4472 = vpop.f32.mrf.mxu0
      %v4473 = vadd.f32 0.0, %v4472
      %4474 = vmatmul.bf16.gmra.mxu0 %v4362
      %v4475 = vpop.f32.mrf.mxu0
      %v4476 = vadd.f32 0.0, %v4475
      %v4477 = vpop.f32.mrf.mxu0
      %v4478 = vadd.f32 0.0, %v4477
      %4479 = vmatmul.bf16.gmra.mxu0 %v4363
      %v4480 = vpop.f32.mrf.mxu0
      %v4481 = vadd.f32 0.0, %v4480
      %v4482 = vpop.f32.mrf.mxu0
      %v4483 = vadd.f32 0.0, %v4482
      %4484 = vmatmul.bf16.gmra.mxu0 %v4364
      %v4485 = vpop.f32.mrf.mxu0
      %v4486 = vadd.f32 0.0, %v4485
      %v4487 = vpop.f32.mrf.mxu0
      %v4488 = vadd.f32 0.0, %v4487
      %4489 = vmatmul.bf16.gmra.mxu0 %v4365
      %v4490 = vpop.f32.mrf.mxu0
      %v4491 = vadd.f32 0.0, %v4490
      %v4492 = vpop.f32.mrf.mxu0
      %v4493 = vadd.f32 0.0, %v4492
      %4494 = vmatmul.bf16.gmra.mxu0 %v4366
      %v4495 = vpop.f32.mrf.mxu0
      %v4496 = vadd.f32 0.0, %v4495
      %v4497 = vpop.f32.mrf.mxu0
      %v4498 = vadd.f32 0.0, %v4497
      %4499 = vmatmul.bf16.gmra.mxu0 %v4367
      %v4500 = vpop.f32.mrf.mxu0
      %v4501 = vadd.f32 0.0, %v4500
      %v4502 = vpop.f32.mrf.mxu0
      %v4503 = vadd.f32 0.0, %v4502
      %4504 = vmatmul.bf16.gmra.mxu0 %v4368
      %v4505 = vpop.f32.mrf.mxu0
      %v4506 = vadd.f32 0.0, %v4505
      %v4507 = vpop.f32.mrf.mxu0
      %v4508 = vadd.f32 0.0, %v4507
      %4509 = vmatmul.bf16.gmra.mxu0 %v4369
      %v4510 = vpop.f32.mrf.mxu0
      %v4511 = vadd.f32 0.0, %v4510
      %v4512 = vpop.f32.mrf.mxu0
      %v4513 = vadd.f32 0.0, %v4512
      %4514 = vmatmul.bf16.gmra.mxu0 %v4370
      %v4515 = vpop.f32.mrf.mxu0
      %v4516 = vadd.f32 0.0, %v4515
      %v4517 = vpop.f32.mrf.mxu0
      %v4518 = vadd.f32 0.0, %v4517
      %4519 = vmatmul.bf16.gmra.mxu0 %v4371
      %v4520 = vpop.f32.mrf.mxu0
      %v4521 = vadd.f32 0.0, %v4520
      %v4522 = vpop.f32.mrf.mxu0
      %v4523 = vadd.f32 0.0, %v4522
      %4524 = vdwg.mxu0
      %v4525 = vld [vmem:[#allocation3] sm:$0xff]
      %v4526 = vld [vmem:[#allocation3 + $0x8] sm:$0xff]
      %v4527 = vld [vmem:[#allocation3 + $0x10] sm:$0xff]
      %v4528 = vld [vmem:[#allocation3 + $0x18] sm:$0xff]
      %v4529 = vld [vmem:[#allocation3 + $0x20] sm:$0xff]
      %v4530 = vld [vmem:[#allocation3 + $0x28] sm:$0xff]
      %v4531 = vld [vmem:[#allocation3 + $0x30] sm:$0xff]
      %v4532 = vld [vmem:[#allocation3 + $0x38] sm:$0xff]
      %v4533 = vld [vmem:[#allocation3 + $0x40] sm:$0xff]
      %v4534 = vld [vmem:[#allocation3 + $0x48] sm:$0xff]
      %v4535 = vld [vmem:[#allocation3 + $0x50] sm:$0xff]
      %v4536 = vld [vmem:[#allocation3 + $0x58] sm:$0xff]
      %v4537 = vld [vmem:[#allocation3 + $0x60] sm:$0xff]
      %v4538 = vld [vmem:[#allocation3 + $0x68] sm:$0xff]
      %v4539 = vld [vmem:[#allocation3 + $0x70] sm:$0xff]
      %v4540 = vld [vmem:[#allocation3 + $0x78] sm:$0xff]
      %v4541 = vld [vmem:[#allocation3 + $0x80] sm:$0xff]
      %v4542 = vld [vmem:[#allocation3 + $0x88] sm:$0xff]
      %v4543 = vld [vmem:[#allocation3 + $0x90] sm:$0xff]
      %v4544 = vld [vmem:[#allocation3 + $0x98] sm:$0xff]
      %v4545 = vld [vmem:[#allocation3 + $0xa0] sm:$0xff]
      %v4546 = vld [vmem:[#allocation3 + $0xa8] sm:$0xff]
      %v4547 = vld [vmem:[#allocation3 + $0xb0] sm:$0xff]
      %v4548 = vld [vmem:[#allocation3 + $0xb8] sm:$0xff]
      %v4549 = vld [vmem:[#allocation3 + $0xc0] sm:$0xff]
      %v4550 = vld [vmem:[#allocation3 + $0xc8] sm:$0xff]
      %v4551 = vld [vmem:[#allocation3 + $0xd0] sm:$0xff]
      %v4552 = vld [vmem:[#allocation3 + $0xd8] sm:$0xff]
      %v4553 = vld [vmem:[#allocation3 + $0xe0] sm:$0xff]
      %v4554 = vld [vmem:[#allocation3 + $0xe8] sm:$0xff]
      %v4555 = vld [vmem:[#allocation3 + $0xf0] sm:$0xff]
      %v4556 = vld [vmem:[#allocation3 + $0xf8] sm:$0xff]
      %v4557 = vadd.f32 %v4525, %v4446
      %v4558 = vadd.f32 %v4526, %v4448
      %v4559 = vadd.f32 %v4527, %v4451
      %v4560 = vadd.f32 %v4528, %v4453
      %v4561 = vadd.f32 %v4529, %v4456
      %v4562 = vadd.f32 %v4530, %v4458
      %v4563 = vadd.f32 %v4531, %v4461
      %v4564 = vadd.f32 %v4532, %v4463
      %v4565 = vadd.f32 %v4533, %v4466
      %v4566 = vadd.f32 %v4534, %v4468
      %v4567 = vadd.f32 %v4535, %v4471
      %v4568 = vadd.f32 %v4536, %v4473
      %v4569 = vadd.f32 %v4537, %v4476
      %v4570 = vadd.f32 %v4538, %v4478
      %v4571 = vadd.f32 %v4539, %v4481
      %v4572 = vadd.f32 %v4540, %v4483
      %v4573 = vadd.f32 %v4541, %v4486
      %v4574 = vadd.f32 %v4542, %v4488
      %v4575 = vadd.f32 %v4543, %v4491
      %v4576 = vadd.f32 %v4544, %v4493
      %v4577 = vadd.f32 %v4545, %v4496
      %v4578 = vadd.f32 %v4546, %v4498
      %v4579 = vadd.f32 %v4547, %v4501
      %v4580 = vadd.f32 %v4548, %v4503
      %v4581 = vadd.f32 %v4549, %v4506
      %v4582 = vadd.f32 %v4550, %v4508
      %v4583 = vadd.f32 %v4551, %v4511
      %v4584 = vadd.f32 %v4552, %v4513
      %v4585 = vadd.f32 %v4553, %v4516
      %v4586 = vadd.f32 %v4554, %v4518
      %v4587 = vadd.f32 %v4555, %v4521
      %v4588 = vadd.f32 %v4556, %v4523
      %4589 = vst [vmem:[#allocation3] sm:$0xff] %v4557
      %4590 = vst [vmem:[#allocation3 + $0x8] sm:$0xff] %v4558
      %4591 = vst [vmem:[#allocation3 + $0x10] sm:$0xff] %v4559
      %4592 = vst [vmem:[#allocation3 + $0x18] sm:$0xff] %v4560
      %4593 = vst [vmem:[#allocation3 + $0x20] sm:$0xff] %v4561
      %4594 = vst [vmem:[#allocation3 + $0x28] sm:$0xff] %v4562
      %4595 = vst [vmem:[#allocation3 + $0x30] sm:$0xff] %v4563
      %4596 = vst [vmem:[#allocation3 + $0x38] sm:$0xff] %v4564
      %4597 = vst [vmem:[#allocation3 + $0x40] sm:$0xff] %v4565
      %4598 = vst [vmem:[#allocation3 + $0x48] sm:$0xff] %v4566
      %4599 = vst [vmem:[#allocation3 + $0x50] sm:$0xff] %v4567
      %4600 = vst [vmem:[#allocation3 + $0x58] sm:$0xff] %v4568
      %4601 = vst [vmem:[#allocation3 + $0x60] sm:$0xff] %v4569
      %4602 = vst [vmem:[#allocation3 + $0x68] sm:$0xff] %v4570
      %4603 = vst [vmem:[#allocation3 + $0x70] sm:$0xff] %v4571
      %4604 = vst [vmem:[#allocation3 + $0x78] sm:$0xff] %v4572
      %4605 = vst [vmem:[#allocation3 + $0x80] sm:$0xff] %v4573
      %4606 = vst [vmem:[#allocation3 + $0x88] sm:$0xff] %v4574
      %4607 = vst [vmem:[#allocation3 + $0x90] sm:$0xff] %v4575
      %4608 = vst [vmem:[#allocation3 + $0x98] sm:$0xff] %v4576
      %4609 = vst [vmem:[#allocation3 + $0xa0] sm:$0xff] %v4577
      %4610 = vst [vmem:[#allocation3 + $0xa8] sm:$0xff] %v4578
      %4611 = vst [vmem:[#allocation3 + $0xb0] sm:$0xff] %v4579
      %4612 = vst [vmem:[#allocation3 + $0xb8] sm:$0xff] %v4580
      %4613 = vst [vmem:[#allocation3 + $0xc0] sm:$0xff] %v4581
      %4614 = vst [vmem:[#allocation3 + $0xc8] sm:$0xff] %v4582
      %4615 = vst [vmem:[#allocation3 + $0xd0] sm:$0xff] %v4583
      %4616 = vst [vmem:[#allocation3 + $0xd8] sm:$0xff] %v4584
      %4617 = vst [vmem:[#allocation3 + $0xe0] sm:$0xff] %v4585
      %4618 = vst [vmem:[#allocation3 + $0xe8] sm:$0xff] %v4586
      %4619 = vst [vmem:[#allocation3 + $0xf0] sm:$0xff] %v4587
      %4620 = vst [vmem:[#allocation3 + $0xf8] sm:$0xff] %v4588
      %v4621 = vld [vmem:[%s4243] sm:$0xf]
      %v4622 = vld [vmem:[%s4243 + $0x4] sm:$0xf]
      %v4623 = vld [vmem:[%s4243 + $0x8] sm:$0x1]
      %v4624 = vld [vmem:[%s4243 + $0xc] sm:$0xf]
      %v4625 = vld [vmem:[%s4243 + $0x10] sm:$0xf]
      %v4626 = vld [vmem:[%s4243 + $0x14] sm:$0x1]
      %v4627 = vld [vmem:[%s4243 + $0x18] sm:$0xf]
      %v4628 = vld [vmem:[%s4243 + $0x1c] sm:$0xf]
      %v4629 = vld [vmem:[%s4243 + $0x20] sm:$0x1]
      %v4630 = vld [vmem:[%s4243 + $0x24] sm:$0xf]
      %v4631 = vld [vmem:[%s4243 + $0x28] sm:$0xf]
      %v4632 = vld [vmem:[%s4243 + $0x2c] sm:$0x1]
      %v4633 = vld [vmem:[%s4243 + $0x30] sm:$0xf]
      %v4634 = vld [vmem:[%s4243 + $0x34] sm:$0xf]
      %v4635 = vld [vmem:[%s4243 + $0x38] sm:$0x1]
      %v4636 = vld [vmem:[%s4243 + $0x3c] sm:$0xf]
      %v4637 = vld [vmem:[%s4243 + $0x40] sm:$0xf]
      %v4638 = vld [vmem:[%s4243 + $0x44] sm:$0x1]
      %v4639 = vld [vmem:[%s4243 + $0x48] sm:$0xf]
      %v4640 = vld [vmem:[%s4243 + $0x4c] sm:$0xf]
      %v4641 = vld [vmem:[%s4243 + $0x50] sm:$0x1]
      %v4642 = vld [vmem:[%s4243 + $0x54] sm:$0xf]
      %v4643 = vld [vmem:[%s4243 + $0x58] sm:$0xf]
      %v4644 = vld [vmem:[%s4243 + $0x5c] sm:$0x1]
      %v4645 = vld [vmem:[%s4243 + $0x60] sm:$0xf]
      %v4646 = vld [vmem:[%s4243 + $0x64] sm:$0xf]
      %v4647 = vld [vmem:[%s4243 + $0x68] sm:$0x1]
      %v4648 = vld [vmem:[%s4243 + $0x6c] sm:$0xf]
      %v4649 = vld [vmem:[%s4243 + $0x70] sm:$0xf]
      %v4650 = vld [vmem:[%s4243 + $0x74] sm:$0x1]
      %v4651 = vld [vmem:[%s4243 + $0x78] sm:$0xf]
      %v4652 = vld [vmem:[%s4243 + $0x7c] sm:$0xf]
      %v4653 = vld [vmem:[%s4243 + $0x80] sm:$0x1]
      %v4654 = vld [vmem:[%s4243 + $0x84] sm:$0xf]
      %v4655 = vld [vmem:[%s4243 + $0x88] sm:$0xf]
      %v4656 = vld [vmem:[%s4243 + $0x8c] sm:$0x1]
      %v4657 = vld [vmem:[%s4243 + $0x90] sm:$0xf]
      %v4658 = vld [vmem:[%s4243 + $0x94] sm:$0xf]
      %v4659 = vld [vmem:[%s4243 + $0x98] sm:$0x1]
      %v4660 = vld [vmem:[%s4243 + $0x9c] sm:$0xf]
      %v4661 = vld [vmem:[%s4243 + $0xa0] sm:$0xf]
      %v4662 = vld [vmem:[%s4243 + $0xa4] sm:$0x1]
      %v4663 = vld [vmem:[%s4243 + $0xa8] sm:$0xf]
      %v4664 = vld [vmem:[%s4243 + $0xac] sm:$0xf]
      %v4665 = vld [vmem:[%s4243 + $0xb0] sm:$0x1]
      %v4666 = vld [vmem:[%s4243 + $0xb4] sm:$0xf]
      %v4667 = vld [vmem:[%s4243 + $0xb8] sm:$0xf]
      %v4668 = vld [vmem:[%s4243 + $0xbc] sm:$0x1]
      %v4670 = vshrl.u32 %v4621, 16
      %v4672 = vrot.slane %v4670, 4
      %v4673 = vshll.u32 %v4621, 16
      %v4675 = vrot.slane %v4673, 5
      %v4676 = vor.u32 %v4672, %v4675
      %v4677 = vrot.slane %v4676, 4
      %v4679 = vshll.u32 %v4622, 16
      %v4681 = vrot.slane %v4679, 5
      %v4682 = vsel %vm1378, %v4677, %v4681
      %v4683 = vshrl.u32 %v4622, 16
      %v4685 = vrot.slane %v4683, 4
      %v4686 = vor.u32 %v4685, %v4681
      %v4687 = vrot.slane %v4686, 4
      %v4689 = vshll.u32 %v4623, 16
      %v4691 = vrot.slane %v4689, 5
      %v4692 = vsel %vm1378, %v4687, %v4691
      %v4694 = vshrl.u32 %v4624, 16
      %v4696 = vrot.slane %v4694, 4
      %v4697 = vshll.u32 %v4624, 16
      %v4699 = vrot.slane %v4697, 5
      %v4700 = vor.u32 %v4696, %v4699
      %v4701 = vrot.slane %v4700, 4
      %v4703 = vshll.u32 %v4625, 16
      %v4705 = vrot.slane %v4703, 5
      %v4706 = vsel %vm1378, %v4701, %v4705
      %v4707 = vshrl.u32 %v4625, 16
      %v4709 = vrot.slane %v4707, 4
      %v4710 = vor.u32 %v4709, %v4705
      %v4711 = vrot.slane %v4710, 4
      %v4713 = vshll.u32 %v4626, 16
      %v4715 = vrot.slane %v4713, 5
      %v4716 = vsel %vm1378, %v4711, %v4715
      %v4718 = vshrl.u32 %v4627, 16
      %v4720 = vrot.slane %v4718, 4
      %v4721 = vshll.u32 %v4627, 16
      %v4723 = vrot.slane %v4721, 5
      %v4724 = vor.u32 %v4720, %v4723
      %v4725 = vrot.slane %v4724, 4
      %v4727 = vshll.u32 %v4628, 16
      %v4729 = vrot.slane %v4727, 5
      %v4730 = vsel %vm1378, %v4725, %v4729
      %v4731 = vshrl.u32 %v4628, 16
      %v4733 = vrot.slane %v4731, 4
      %v4734 = vor.u32 %v4733, %v4729
      %v4735 = vrot.slane %v4734, 4
      %v4737 = vshll.u32 %v4629, 16
      %v4739 = vrot.slane %v4737, 5
      %v4740 = vsel %vm1378, %v4735, %v4739
      %v4742 = vshrl.u32 %v4630, 16
      %v4744 = vrot.slane %v4742, 4
      %v4745 = vshll.u32 %v4630, 16
      %v4747 = vrot.slane %v4745, 5
      %v4748 = vor.u32 %v4744, %v4747
      %v4749 = vrot.slane %v4748, 4
      %v4751 = vshll.u32 %v4631, 16
      %v4753 = vrot.slane %v4751, 5
      %v4754 = vsel %vm1378, %v4749, %v4753
      %v4755 = vshrl.u32 %v4631, 16
      %v4757 = vrot.slane %v4755, 4
      %v4758 = vor.u32 %v4757, %v4753
      %v4759 = vrot.slane %v4758, 4
      %v4761 = vshll.u32 %v4632, 16
      %v4763 = vrot.slane %v4761, 5
      %v4764 = vsel %vm1378, %v4759, %v4763
      %v4766 = vshrl.u32 %v4633, 16
      %v4768 = vrot.slane %v4766, 4
      %v4769 = vshll.u32 %v4633, 16
      %v4771 = vrot.slane %v4769, 5
      %v4772 = vor.u32 %v4768, %v4771
      %v4773 = vrot.slane %v4772, 4
      %v4775 = vshll.u32 %v4634, 16
      %v4777 = vrot.slane %v4775, 5
      %v4778 = vsel %vm1378, %v4773, %v4777
      %v4779 = vshrl.u32 %v4634, 16
      %v4781 = vrot.slane %v4779, 4
      %v4782 = vor.u32 %v4781, %v4777
      %v4783 = vrot.slane %v4782, 4
      %v4785 = vshll.u32 %v4635, 16
      %v4787 = vrot.slane %v4785, 5
      %v4788 = vsel %vm1378, %v4783, %v4787
      %v4790 = vshrl.u32 %v4636, 16
      %v4792 = vrot.slane %v4790, 4
      %v4793 = vshll.u32 %v4636, 16
      %v4795 = vrot.slane %v4793, 5
      %v4796 = vor.u32 %v4792, %v4795
      %v4797 = vrot.slane %v4796, 4
      %v4799 = vshll.u32 %v4637, 16
      %v4801 = vrot.slane %v4799, 5
      %v4802 = vsel %vm1378, %v4797, %v4801
      %v4803 = vshrl.u32 %v4637, 16
      %v4805 = vrot.slane %v4803, 4
      %v4806 = vor.u32 %v4805, %v4801
      %v4807 = vrot.slane %v4806, 4
      %v4809 = vshll.u32 %v4638, 16
      %v4811 = vrot.slane %v4809, 5
      %v4812 = vsel %vm1378, %v4807, %v4811
      %v4814 = vshrl.u32 %v4639, 16
      %v4816 = vrot.slane %v4814, 4
      %v4817 = vshll.u32 %v4639, 16
      %v4819 = vrot.slane %v4817, 5
      %v4820 = vor.u32 %v4816, %v4819
      %v4821 = vrot.slane %v4820, 4
      %v4823 = vshll.u32 %v4640, 16
      %v4825 = vrot.slane %v4823, 5
      %v4826 = vsel %vm1378, %v4821, %v4825
      %v4827 = vshrl.u32 %v4640, 16
      %v4829 = vrot.slane %v4827, 4
      %v4830 = vor.u32 %v4829, %v4825
      %v4831 = vrot.slane %v4830, 4
      %v4833 = vshll.u32 %v4641, 16
      %v4835 = vrot.slane %v4833, 5
      %v4836 = vsel %vm1378, %v4831, %v4835
      %v4838 = vshrl.u32 %v4642, 16
      %v4840 = vrot.slane %v4838, 4
      %v4841 = vshll.u32 %v4642, 16
      %v4843 = vrot.slane %v4841, 5
      %v4844 = vor.u32 %v4840, %v4843
      %v4845 = vrot.slane %v4844, 4
      %v4847 = vshll.u32 %v4643, 16
      %v4849 = vrot.slane %v4847, 5
      %v4850 = vsel %vm1378, %v4845, %v4849
      %v4851 = vshrl.u32 %v4643, 16
      %v4853 = vrot.slane %v4851, 4
      %v4854 = vor.u32 %v4853, %v4849
      %v4855 = vrot.slane %v4854, 4
      %v4857 = vshll.u32 %v4644, 16
      %v4859 = vrot.slane %v4857, 5
      %v4860 = vsel %vm1378, %v4855, %v4859
      %v4862 = vshrl.u32 %v4645, 16
      %v4864 = vrot.slane %v4862, 4
      %v4865 = vshll.u32 %v4645, 16
      %v4867 = vrot.slane %v4865, 5
      %v4868 = vor.u32 %v4864, %v4867
      %v4869 = vrot.slane %v4868, 4
      %v4871 = vshll.u32 %v4646, 16
      %v4873 = vrot.slane %v4871, 5
      %v4874 = vsel %vm1378, %v4869, %v4873
      %v4875 = vshrl.u32 %v4646, 16
      %v4877 = vrot.slane %v4875, 4
      %v4878 = vor.u32 %v4877, %v4873
      %v4879 = vrot.slane %v4878, 4
      %v4881 = vshll.u32 %v4647, 16
      %v4883 = vrot.slane %v4881, 5
      %v4884 = vsel %vm1378, %v4879, %v4883
      %v4886 = vshrl.u32 %v4648, 16
      %v4888 = vrot.slane %v4886, 4
      %v4889 = vshll.u32 %v4648, 16
      %v4891 = vrot.slane %v4889, 5
      %v4892 = vor.u32 %v4888, %v4891
      %v4893 = vrot.slane %v4892, 4
      %v4895 = vshll.u32 %v4649, 16
      %v4897 = vrot.slane %v4895, 5
      %v4898 = vsel %vm1378, %v4893, %v4897
      %v4899 = vshrl.u32 %v4649, 16
      %v4901 = vrot.slane %v4899, 4
      %v4902 = vor.u32 %v4901, %v4897
      %v4903 = vrot.slane %v4902, 4
      %v4905 = vshll.u32 %v4650, 16
      %v4907 = vrot.slane %v4905, 5
      %v4908 = vsel %vm1378, %v4903, %v4907
      %v4910 = vshrl.u32 %v4651, 16
      %v4912 = vrot.slane %v4910, 4
      %v4913 = vshll.u32 %v4651, 16
      %v4915 = vrot.slane %v4913, 5
      %v4916 = vor.u32 %v4912, %v4915
      %v4917 = vrot.slane %v4916, 4
      %v4919 = vshll.u32 %v4652, 16
      %v4921 = vrot.slane %v4919, 5
      %v4922 = vsel %vm1378, %v4917, %v4921
      %v4923 = vshrl.u32 %v4652, 16
      %v4925 = vrot.slane %v4923, 4
      %v4926 = vor.u32 %v4925, %v4921
      %v4927 = vrot.slane %v4926, 4
      %v4929 = vshll.u32 %v4653, 16
      %v4931 = vrot.slane %v4929, 5
      %v4932 = vsel %vm1378, %v4927, %v4931
      %v4934 = vshrl.u32 %v4654, 16
      %v4936 = vrot.slane %v4934, 4
      %v4937 = vshll.u32 %v4654, 16
      %v4939 = vrot.slane %v4937, 5
      %v4940 = vor.u32 %v4936, %v4939
      %v4941 = vrot.slane %v4940, 4
      %v4943 = vshll.u32 %v4655, 16
      %v4945 = vrot.slane %v4943, 5
      %v4946 = vsel %vm1378, %v4941, %v4945
      %v4947 = vshrl.u32 %v4655, 16
      %v4949 = vrot.slane %v4947, 4
      %v4950 = vor.u32 %v4949, %v4945
      %v4951 = vrot.slane %v4950, 4
      %v4953 = vshll.u32 %v4656, 16
      %v4955 = vrot.slane %v4953, 5
      %v4956 = vsel %vm1378, %v4951, %v4955
      %v4958 = vshrl.u32 %v4657, 16
      %v4960 = vrot.slane %v4958, 4
      %v4961 = vshll.u32 %v4657, 16
      %v4963 = vrot.slane %v4961, 5
      %v4964 = vor.u32 %v4960, %v4963
      %v4965 = vrot.slane %v4964, 4
      %v4967 = vshll.u32 %v4658, 16
      %v4969 = vrot.slane %v4967, 5
      %v4970 = vsel %vm1378, %v4965, %v4969
      %v4971 = vshrl.u32 %v4658, 16
      %v4973 = vrot.slane %v4971, 4
      %v4974 = vor.u32 %v4973, %v4969
      %v4975 = vrot.slane %v4974, 4
      %v4977 = vshll.u32 %v4659, 16
      %v4979 = vrot.slane %v4977, 5
      %v4980 = vsel %vm1378, %v4975, %v4979
      %v4982 = vshrl.u32 %v4660, 16
      %v4984 = vrot.slane %v4982, 4
      %v4985 = vshll.u32 %v4660, 16
      %v4987 = vrot.slane %v4985, 5
      %v4988 = vor.u32 %v4984, %v4987
      %v4989 = vrot.slane %v4988, 4
      %v4991 = vshll.u32 %v4661, 16
      %v4993 = vrot.slane %v4991, 5
      %v4994 = vsel %vm1378, %v4989, %v4993
      %v4995 = vshrl.u32 %v4661, 16
      %v4997 = vrot.slane %v4995, 4
      %v4998 = vor.u32 %v4997, %v4993
      %v4999 = vrot.slane %v4998, 4
      %v5001 = vshll.u32 %v4662, 16
      %v5003 = vrot.slane %v5001, 5
      %v5004 = vsel %vm1378, %v4999, %v5003
      %v5006 = vshrl.u32 %v4663, 16
      %v5008 = vrot.slane %v5006, 4
      %v5009 = vshll.u32 %v4663, 16
      %v5011 = vrot.slane %v5009, 5
      %v5012 = vor.u32 %v5008, %v5011
      %v5013 = vrot.slane %v5012, 4
      %v5015 = vshll.u32 %v4664, 16
      %v5017 = vrot.slane %v5015, 5
      %v5018 = vsel %vm1378, %v5013, %v5017
      %v5019 = vshrl.u32 %v4664, 16
      %v5021 = vrot.slane %v5019, 4
      %v5022 = vor.u32 %v5021, %v5017
      %v5023 = vrot.slane %v5022, 4
      %v5025 = vshll.u32 %v4665, 16
      %v5027 = vrot.slane %v5025, 5
      %v5028 = vsel %vm1378, %v5023, %v5027
      %v5030 = vshrl.u32 %v4666, 16
      %v5032 = vrot.slane %v5030, 4
      %v5033 = vshll.u32 %v4666, 16
      %v5035 = vrot.slane %v5033, 5
      %v5036 = vor.u32 %v5032, %v5035
      %v5037 = vrot.slane %v5036, 4
      %v5039 = vshll.u32 %v4667, 16
      %v5041 = vrot.slane %v5039, 5
      %v5042 = vsel %vm1378, %v5037, %v5041
      %v5043 = vshrl.u32 %v4667, 16
      %v5045 = vrot.slane %v5043, 4
      %v5046 = vor.u32 %v5045, %v5041
      %v5047 = vrot.slane %v5046, 4
      %v5049 = vshll.u32 %v4668, 16
      %v5051 = vrot.slane %v5049, 5
      %v5052 = vsel %vm1378, %v5047, %v5051
      %v5053 = vld [vmem:[%s3 + $0x1c0] sm:$0xf]
      %v5054 = vld [vmem:[%s3 + $0x1c4] sm:$0xf]
      %v5055 = vld [vmem:[%s3 + $0x1c8] sm:$0xf]
      %v5056 = vld [vmem:[%s3 + $0x1cc] sm:$0xf]
      %v5057 = vld [vmem:[%s3 + $0x1d0] sm:$0xf]
      %v5058 = vld [vmem:[%s3 + $0x1d4] sm:$0xf]
      %v5059 = vld [vmem:[%s3 + $0x1d8] sm:$0xf]
      %v5060 = vld [vmem:[%s3 + $0x1dc] sm:$0xf]
      %v5061 = vld [vmem:[%s3 + $0x1e0] sm:$0xf]
      %v5062 = vld [vmem:[%s3 + $0x1e4] sm:$0xf]
      %v5063 = vld [vmem:[%s3 + $0x1e8] sm:$0xf]
      %v5064 = vld [vmem:[%s3 + $0x1ec] sm:$0xf]
      %v5065 = vld [vmem:[%s3 + $0x1f0] sm:$0xf]
      %v5066 = vld [vmem:[%s3 + $0x1f4] sm:$0xf]
      %v5067 = vld [vmem:[%s3 + $0x1f8] sm:$0xf]
      %v5068 = vld [vmem:[%s3 + $0x1fc] sm:$0xf]
      %v5069 = vunpack.c.l.b16 %v4682
      %v5070 = vunpack.c.l.b16 %v4692
      %v5071 = vunpack.c.l.b16 %v4706
      %v5072 = vunpack.c.l.b16 %v4716
      %v5073 = vunpack.c.l.b16 %v4730
      %v5074 = vunpack.c.l.b16 %v4740
      %v5075 = vunpack.c.l.b16 %v4754
      %v5076 = vunpack.c.l.b16 %v4764
      %v5077 = vunpack.c.l.b16 %v4778
      %v5078 = vunpack.c.l.b16 %v4788
      %v5079 = vunpack.c.l.b16 %v4802
      %v5080 = vunpack.c.l.b16 %v4812
      %v5081 = vunpack.c.l.b16 %v4826
      %v5082 = vunpack.c.l.b16 %v4836
      %v5083 = vunpack.c.l.b16 %v4850
      %v5084 = vunpack.c.l.b16 %v4860
      %v5085 = vunpack.c.l.b16 %v4874
      %v5086 = vunpack.c.l.b16 %v4884
      %v5087 = vunpack.c.l.b16 %v4898
      %v5088 = vunpack.c.l.b16 %v4908
      %v5089 = vunpack.c.l.b16 %v4922
      %v5090 = vunpack.c.l.b16 %v4932
      %v5091 = vunpack.c.l.b16 %v4946
      %v5092 = vunpack.c.l.b16 %v4956
      %v5093 = vunpack.c.l.b16 %v4970
      %v5094 = vunpack.c.l.b16 %v4980
      %v5095 = vunpack.c.l.b16 %v4994
      %v5096 = vunpack.c.l.b16 %v5004
      %v5097 = vunpack.c.l.b16 %v5018
      %v5098 = vunpack.c.l.b16 %v5028
      %v5099 = vunpack.c.l.b16 %v5042
      %v5100 = vunpack.c.l.b16 %v5052
      %v5101 = vpack.c.b16 %v5070, %v5069
      %v5102 = vpack.c.b16 %v5072, %v5071
      %v5103 = vpack.c.b16 %v5074, %v5073
      %v5104 = vpack.c.b16 %v5076, %v5075
      %v5105 = vpack.c.b16 %v5078, %v5077
      %v5106 = vpack.c.b16 %v5080, %v5079
      %v5107 = vpack.c.b16 %v5082, %v5081
      %v5108 = vpack.c.b16 %v5084, %v5083
      %v5109 = vpack.c.b16 %v5086, %v5085
      %v5110 = vpack.c.b16 %v5088, %v5087
      %v5111 = vpack.c.b16 %v5090, %v5089
      %v5112 = vpack.c.b16 %v5092, %v5091
      %v5113 = vpack.c.b16 %v5094, %v5093
      %v5114 = vpack.c.b16 %v5096, %v5095
      %v5115 = vpack.c.b16 %v5098, %v5097
      %v5116 = vpack.c.b16 %v5100, %v5099
      %v5149 = vunpack.c.l.b16 %v5053
      %v5150 = vunpack.c.l.b16 %v5054
      %v5151 = vunpack.c.l.b16 %v5055
      %v5152 = vunpack.c.l.b16 %v5056
      %v5153 = vunpack.c.l.b16 %v5057
      %v5154 = vunpack.c.l.b16 %v5058
      %v5155 = vunpack.c.l.b16 %v5059
      %v5156 = vunpack.c.l.b16 %v5060
      %v5157 = vunpack.c.l.b16 %v5061
      %v5158 = vunpack.c.l.b16 %v5062
      %v5159 = vunpack.c.l.b16 %v5063
      %v5160 = vunpack.c.l.b16 %v5064
      %v5161 = vunpack.c.l.b16 %v5065
      %v5162 = vunpack.c.l.b16 %v5066
      %v5163 = vunpack.c.l.b16 %v5067
      %v5164 = vunpack.c.l.b16 %v5068
      %v5165 = vpack.c.b16 %v5150, %v5149
      %v5166 = vpack.c.b16 %v5152, %v5151
      %v5167 = vpack.c.b16 %v5154, %v5153
      %v5168 = vpack.c.b16 %v5156, %v5155
      %v5169 = vpack.c.b16 %v5158, %v5157
      %v5170 = vpack.c.b16 %v5160, %v5159
      %v5171 = vpack.c.b16 %v5162, %v5161
      %v5172 = vpack.c.b16 %v5164, %v5163
      %5181 = vmatpush.bf16.msra.mxu0 %v5172
      %5182 = vmatpush.bf16.msra.mxu0 %v5171
      %5183 = vmatpush.bf16.msra.mxu0 %v5170
      %5184 = vmatpush.bf16.msra.mxu0 %v5169
      %5185 = vmatpush.bf16.msra.mxu0 %v5168
      %5186 = vmatpush.bf16.msra.mxu0 %v5167
      %5187 = vmatpush.bf16.msra.mxu0 %v5166
      %5188 = vmatpush.bf16.msra.mxu0 %v5165
      %5189 = vmatmul.bf16.gmra.mxu0 %v5101
      %v5190 = vpop.f32.mrf.mxu0
      %v5191 = vadd.f32 0.0, %v5190
      %v5192 = vpop.f32.mrf.mxu0
      %v5193 = vadd.f32 0.0, %v5192
      %5194 = vmatmul.bf16.gmra.mxu0 %v5102
      %v5195 = vpop.f32.mrf.mxu0
      %v5196 = vadd.f32 0.0, %v5195
      %v5197 = vpop.f32.mrf.mxu0
      %v5198 = vadd.f32 0.0, %v5197
      %5199 = vmatmul.bf16.gmra.mxu0 %v5103
      %v5200 = vpop.f32.mrf.mxu0
      %v5201 = vadd.f32 0.0, %v5200
      %v5202 = vpop.f32.mrf.mxu0
      %v5203 = vadd.f32 0.0, %v5202
      %5204 = vmatmul.bf16.gmra.mxu0 %v5104
      %v5205 = vpop.f32.mrf.mxu0
      %v5206 = vadd.f32 0.0, %v5205
      %v5207 = vpop.f32.mrf.mxu0
      %v5208 = vadd.f32 0.0, %v5207
      %5209 = vmatmul.bf16.gmra.mxu0 %v5105
      %v5210 = vpop.f32.mrf.mxu0
      %v5211 = vadd.f32 0.0, %v5210
      %v5212 = vpop.f32.mrf.mxu0
      %v5213 = vadd.f32 0.0, %v5212
      %5214 = vmatmul.bf16.gmra.mxu0 %v5106
      %v5215 = vpop.f32.mrf.mxu0
      %v5216 = vadd.f32 0.0, %v5215
      %v5217 = vpop.f32.mrf.mxu0
      %v5218 = vadd.f32 0.0, %v5217
      %5219 = vmatmul.bf16.gmra.mxu0 %v5107
      %v5220 = vpop.f32.mrf.mxu0
      %v5221 = vadd.f32 0.0, %v5220
      %v5222 = vpop.f32.mrf.mxu0
      %v5223 = vadd.f32 0.0, %v5222
      %5224 = vmatmul.bf16.gmra.mxu0 %v5108
      %v5225 = vpop.f32.mrf.mxu0
      %v5226 = vadd.f32 0.0, %v5225
      %v5227 = vpop.f32.mrf.mxu0
      %v5228 = vadd.f32 0.0, %v5227
      %5229 = vmatmul.bf16.gmra.mxu0 %v5109
      %v5230 = vpop.f32.mrf.mxu0
      %v5231 = vadd.f32 0.0, %v5230
      %v5232 = vpop.f32.mrf.mxu0
      %v5233 = vadd.f32 0.0, %v5232
      %5234 = vmatmul.bf16.gmra.mxu0 %v5110
      %v5235 = vpop.f32.mrf.mxu0
      %v5236 = vadd.f32 0.0, %v5235
      %v5237 = vpop.f32.mrf.mxu0
      %v5238 = vadd.f32 0.0, %v5237
      %5239 = vmatmul.bf16.gmra.mxu0 %v5111
      %v5240 = vpop.f32.mrf.mxu0
      %v5241 = vadd.f32 0.0, %v5240
      %v5242 = vpop.f32.mrf.mxu0
      %v5243 = vadd.f32 0.0, %v5242
      %5244 = vmatmul.bf16.gmra.mxu0 %v5112
      %v5245 = vpop.f32.mrf.mxu0
      %v5246 = vadd.f32 0.0, %v5245
      %v5247 = vpop.f32.mrf.mxu0
      %v5248 = vadd.f32 0.0, %v5247
      %5249 = vmatmul.bf16.gmra.mxu0 %v5113
      %v5250 = vpop.f32.mrf.mxu0
      %v5251 = vadd.f32 0.0, %v5250
      %v5252 = vpop.f32.mrf.mxu0
      %v5253 = vadd.f32 0.0, %v5252
      %5254 = vmatmul.bf16.gmra.mxu0 %v5114
      %v5255 = vpop.f32.mrf.mxu0
      %v5256 = vadd.f32 0.0, %v5255
      %v5257 = vpop.f32.mrf.mxu0
      %v5258 = vadd.f32 0.0, %v5257
      %5259 = vmatmul.bf16.gmra.mxu0 %v5115
      %v5260 = vpop.f32.mrf.mxu0
      %v5261 = vadd.f32 0.0, %v5260
      %v5262 = vpop.f32.mrf.mxu0
      %v5263 = vadd.f32 0.0, %v5262
      %5264 = vmatmul.bf16.gmra.mxu0 %v5116
      %v5265 = vpop.f32.mrf.mxu0
      %v5266 = vadd.f32 0.0, %v5265
      %v5267 = vpop.f32.mrf.mxu0
      %v5268 = vadd.f32 0.0, %v5267
      %5269 = vdwg.mxu0
      %v5270 = vld [vmem:[#allocation3] sm:$0xff]
      %v5271 = vld [vmem:[#allocation3 + $0x8] sm:$0xff]
      %v5272 = vld [vmem:[#allocation3 + $0x10] sm:$0xff]
      %v5273 = vld [vmem:[#allocation3 + $0x18] sm:$0xff]
      %v5274 = vld [vmem:[#allocation3 + $0x20] sm:$0xff]
      %v5275 = vld [vmem:[#allocation3 + $0x28] sm:$0xff]
      %v5276 = vld [vmem:[#allocation3 + $0x30] sm:$0xff]
      %v5277 = vld [vmem:[#allocation3 + $0x38] sm:$0xff]
      %v5278 = vld [vmem:[#allocation3 + $0x40] sm:$0xff]
      %v5279 = vld [vmem:[#allocation3 + $0x48] sm:$0xff]
      %v5280 = vld [vmem:[#allocation3 + $0x50] sm:$0xff]
      %v5281 = vld [vmem:[#allocation3 + $0x58] sm:$0xff]
      %v5282 = vld [vmem:[#allocation3 + $0x60] sm:$0xff]
      %v5283 = vld [vmem:[#allocation3 + $0x68] sm:$0xff]
      %v5284 = vld [vmem:[#allocation3 + $0x70] sm:$0xff]
      %v5285 = vld [vmem:[#allocation3 + $0x78] sm:$0xff]
      %v5286 = vld [vmem:[#allocation3 + $0x80] sm:$0xff]
      %v5287 = vld [vmem:[#allocation3 + $0x88] sm:$0xff]
      %v5288 = vld [vmem:[#allocation3 + $0x90] sm:$0xff]
      %v5289 = vld [vmem:[#allocation3 + $0x98] sm:$0xff]
      %v5290 = vld [vmem:[#allocation3 + $0xa0] sm:$0xff]
      %v5291 = vld [vmem:[#allocation3 + $0xa8] sm:$0xff]
      %v5292 = vld [vmem:[#allocation3 + $0xb0] sm:$0xff]
      %v5293 = vld [vmem:[#allocation3 + $0xb8] sm:$0xff]
      %v5294 = vld [vmem:[#allocation3 + $0xc0] sm:$0xff]
      %v5295 = vld [vmem:[#allocation3 + $0xc8] sm:$0xff]
      %v5296 = vld [vmem:[#allocation3 + $0xd0] sm:$0xff]
      %v5297 = vld [vmem:[#allocation3 + $0xd8] sm:$0xff]
      %v5298 = vld [vmem:[#allocation3 + $0xe0] sm:$0xff]
      %v5299 = vld [vmem:[#allocation3 + $0xe8] sm:$0xff]
      %v5300 = vld [vmem:[#allocation3 + $0xf0] sm:$0xff]
      %v5301 = vld [vmem:[#allocation3 + $0xf8] sm:$0xff]
      %v5302 = vadd.f32 %v5270, %v5191
      %v5303 = vadd.f32 %v5271, %v5193
      %v5304 = vadd.f32 %v5272, %v5196
      %v5305 = vadd.f32 %v5273, %v5198
      %v5306 = vadd.f32 %v5274, %v5201
      %v5307 = vadd.f32 %v5275, %v5203
      %v5308 = vadd.f32 %v5276, %v5206
      %v5309 = vadd.f32 %v5277, %v5208
      %v5310 = vadd.f32 %v5278, %v5211
      %v5311 = vadd.f32 %v5279, %v5213
      %v5312 = vadd.f32 %v5280, %v5216
      %v5313 = vadd.f32 %v5281, %v5218
      %v5314 = vadd.f32 %v5282, %v5221
      %v5315 = vadd.f32 %v5283, %v5223
      %v5316 = vadd.f32 %v5284, %v5226
      %v5317 = vadd.f32 %v5285, %v5228
      %v5318 = vadd.f32 %v5286, %v5231
      %v5319 = vadd.f32 %v5287, %v5233
      %v5320 = vadd.f32 %v5288, %v5236
      %v5321 = vadd.f32 %v5289, %v5238
      %v5322 = vadd.f32 %v5290, %v5241
      %v5323 = vadd.f32 %v5291, %v5243
      %v5324 = vadd.f32 %v5292, %v5246
      %v5325 = vadd.f32 %v5293, %v5248
      %v5326 = vadd.f32 %v5294, %v5251
      %v5327 = vadd.f32 %v5295, %v5253
      %v5328 = vadd.f32 %v5296, %v5256
      %v5329 = vadd.f32 %v5297, %v5258
      %v5330 = vadd.f32 %v5298, %v5261
      %v5331 = vadd.f32 %v5299, %v5263
      %v5332 = vadd.f32 %v5300, %v5266
      %v5333 = vadd.f32 %v5301, %v5268
      %5334 = vst [vmem:[#allocation3] sm:$0xff] %v5302
      %5335 = vst [vmem:[#allocation3 + $0x8] sm:$0xff] %v5303
      %5336 = vst [vmem:[#allocation3 + $0x10] sm:$0xff] %v5304
      %5337 = vst [vmem:[#allocation3 + $0x18] sm:$0xff] %v5305
      %5338 = vst [vmem:[#allocation3 + $0x20] sm:$0xff] %v5306
      %5339 = vst [vmem:[#allocation3 + $0x28] sm:$0xff] %v5307
      %5340 = vst [vmem:[#allocation3 + $0x30] sm:$0xff] %v5308
      %5341 = vst [vmem:[#allocation3 + $0x38] sm:$0xff] %v5309
      %5342 = vst [vmem:[#allocation3 + $0x40] sm:$0xff] %v5310
      %5343 = vst [vmem:[#allocation3 + $0x48] sm:$0xff] %v5311
      %5344 = vst [vmem:[#allocation3 + $0x50] sm:$0xff] %v5312
      %5345 = vst [vmem:[#allocation3 + $0x58] sm:$0xff] %v5313
      %5346 = vst [vmem:[#allocation3 + $0x60] sm:$0xff] %v5314
      %5347 = vst [vmem:[#allocation3 + $0x68] sm:$0xff] %v5315
      %5348 = vst [vmem:[#allocation3 + $0x70] sm:$0xff] %v5316
      %5349 = vst [vmem:[#allocation3 + $0x78] sm:$0xff] %v5317
      %5350 = vst [vmem:[#allocation3 + $0x80] sm:$0xff] %v5318
      %5351 = vst [vmem:[#allocation3 + $0x88] sm:$0xff] %v5319
      %5352 = vst [vmem:[#allocation3 + $0x90] sm:$0xff] %v5320
      %5353 = vst [vmem:[#allocation3 + $0x98] sm:$0xff] %v5321
      %5354 = vst [vmem:[#allocation3 + $0xa0] sm:$0xff] %v5322
      %5355 = vst [vmem:[#allocation3 + $0xa8] sm:$0xff] %v5323
      %5356 = vst [vmem:[#allocation3 + $0xb0] sm:$0xff] %v5324
      %5357 = vst [vmem:[#allocation3 + $0xb8] sm:$0xff] %v5325
      %5358 = vst [vmem:[#allocation3 + $0xc0] sm:$0xff] %v5326
      %5359 = vst [vmem:[#allocation3 + $0xc8] sm:$0xff] %v5327
      %5360 = vst [vmem:[#allocation3 + $0xd0] sm:$0xff] %v5328
      %5361 = vst [vmem:[#allocation3 + $0xd8] sm:$0xff] %v5329
      %5362 = vst [vmem:[#allocation3 + $0xe0] sm:$0xff] %v5330
      %5363 = vst [vmem:[#allocation3 + $0xe8] sm:$0xff] %v5331
      %5364 = vst [vmem:[#allocation3 + $0xf0] sm:$0xff] %v5332
      %5365 = vst [vmem:[#allocation3 + $0xf8] sm:$0xff] %v5333
      %v5366 = vld [vmem:[%s4243] sm:$0xe]
      %v5367 = vld [vmem:[%s4243 + $0x4] sm:$0xf]
      %v5368 = vld [vmem:[%s4243 + $0x8] sm:$0x1]
      %v5369 = vld [vmem:[%s4243 + $0xc] sm:$0xe]
      %v5370 = vld [vmem:[%s4243 + $0x10] sm:$0xf]
      %v5371 = vld [vmem:[%s4243 + $0x14] sm:$0x1]
      %v5372 = vld [vmem:[%s4243 + $0x18] sm:$0xe]
      %v5373 = vld [vmem:[%s4243 + $0x1c] sm:$0xf]
      %v5374 = vld [vmem:[%s4243 + $0x20] sm:$0x1]
      %v5375 = vld [vmem:[%s4243 + $0x24] sm:$0xe]
      %v5376 = vld [vmem:[%s4243 + $0x28] sm:$0xf]
      %v5377 = vld [vmem:[%s4243 + $0x2c] sm:$0x1]
      %v5378 = vld [vmem:[%s4243 + $0x30] sm:$0xe]
      %v5379 = vld [vmem:[%s4243 + $0x34] sm:$0xf]
      %v5380 = vld [vmem:[%s4243 + $0x38] sm:$0x1]
      %v5381 = vld [vmem:[%s4243 + $0x3c] sm:$0xe]
      %v5382 = vld [vmem:[%s4243 + $0x40] sm:$0xf]
      %v5383 = vld [vmem:[%s4243 + $0x44] sm:$0x1]
      %v5384 = vld [vmem:[%s4243 + $0x48] sm:$0xe]
      %v5385 = vld [vmem:[%s4243 + $0x4c] sm:$0xf]
      %v5386 = vld [vmem:[%s4243 + $0x50] sm:$0x1]
      %v5387 = vld [vmem:[%s4243 + $0x54] sm:$0xe]
      %v5388 = vld [vmem:[%s4243 + $0x58] sm:$0xf]
      %v5389 = vld [vmem:[%s4243 + $0x5c] sm:$0x1]
      %v5390 = vld [vmem:[%s4243 + $0x60] sm:$0xe]
      %v5391 = vld [vmem:[%s4243 + $0x64] sm:$0xf]
      %v5392 = vld [vmem:[%s4243 + $0x68] sm:$0x1]
      %v5393 = vld [vmem:[%s4243 + $0x6c] sm:$0xe]
      %v5394 = vld [vmem:[%s4243 + $0x70] sm:$0xf]
      %v5395 = vld [vmem:[%s4243 + $0x74] sm:$0x1]
      %v5396 = vld [vmem:[%s4243 + $0x78] sm:$0xe]
      %v5397 = vld [vmem:[%s4243 + $0x7c] sm:$0xf]
      %v5398 = vld [vmem:[%s4243 + $0x80] sm:$0x1]
      %v5399 = vld [vmem:[%s4243 + $0x84] sm:$0xe]
      %v5400 = vld [vmem:[%s4243 + $0x88] sm:$0xf]
      %v5401 = vld [vmem:[%s4243 + $0x8c] sm:$0x1]
      %v5402 = vld [vmem:[%s4243 + $0x90] sm:$0xe]
      %v5403 = vld [vmem:[%s4243 + $0x94] sm:$0xf]
      %v5404 = vld [vmem:[%s4243 + $0x98] sm:$0x1]
      %v5405 = vld [vmem:[%s4243 + $0x9c] sm:$0xe]
      %v5406 = vld [vmem:[%s4243 + $0xa0] sm:$0xf]
      %v5407 = vld [vmem:[%s4243 + $0xa4] sm:$0x1]
      %v5408 = vld [vmem:[%s4243 + $0xa8] sm:$0xe]
      %v5409 = vld [vmem:[%s4243 + $0xac] sm:$0xf]
      %v5410 = vld [vmem:[%s4243 + $0xb0] sm:$0x1]
      %v5411 = vld [vmem:[%s4243 + $0xb4] sm:$0xe]
      %v5412 = vld [vmem:[%s4243 + $0xb8] sm:$0xf]
      %v5413 = vld [vmem:[%s4243 + $0xbc] sm:$0x1]
      %v5462 = vrot.slane %v5366, 5
      %v5463 = vrot.slane %v5462, 4
      %v5464 = vrot.slane %v5367, 5
      %v5465 = vsel %vm2174, %v5463, %v5464
      %v5466 = vrot.slane %v5464, 4
      %v5467 = vrot.slane %v5368, 5
      %v5468 = vsel %vm2174, %v5466, %v5467
      %v5469 = vrot.slane %v5369, 5
      %v5470 = vrot.slane %v5469, 4
      %v5471 = vrot.slane %v5370, 5
      %v5472 = vsel %vm2174, %v5470, %v5471
      %v5473 = vrot.slane %v5471, 4
      %v5474 = vrot.slane %v5371, 5
      %v5475 = vsel %vm2174, %v5473, %v5474
      %v5476 = vrot.slane %v5372, 5
      %v5477 = vrot.slane %v5476, 4
      %v5478 = vrot.slane %v5373, 5
      %v5479 = vsel %vm2174, %v5477, %v5478
      %v5480 = vrot.slane %v5478, 4
      %v5481 = vrot.slane %v5374, 5
      %v5482 = vsel %vm2174, %v5480, %v5481
      %v5483 = vrot.slane %v5375, 5
      %v5484 = vrot.slane %v5483, 4
      %v5485 = vrot.slane %v5376, 5
      %v5486 = vsel %vm2174, %v5484, %v5485
      %v5487 = vrot.slane %v5485, 4
      %v5488 = vrot.slane %v5377, 5
      %v5489 = vsel %vm2174, %v5487, %v5488
      %v5490 = vrot.slane %v5378, 5
      %v5491 = vrot.slane %v5490, 4
      %v5492 = vrot.slane %v5379, 5
      %v5493 = vsel %vm2174, %v5491, %v5492
      %v5494 = vrot.slane %v5492, 4
      %v5495 = vrot.slane %v5380, 5
      %v5496 = vsel %vm2174, %v5494, %v5495
      %v5497 = vrot.slane %v5381, 5
      %v5498 = vrot.slane %v5497, 4
      %v5499 = vrot.slane %v5382, 5
      %v5500 = vsel %vm2174, %v5498, %v5499
      %v5501 = vrot.slane %v5499, 4
      %v5502 = vrot.slane %v5383, 5
      %v5503 = vsel %vm2174, %v5501, %v5502
      %v5504 = vrot.slane %v5384, 5
      %v5505 = vrot.slane %v5504, 4
      %v5506 = vrot.slane %v5385, 5
      %v5507 = vsel %vm2174, %v5505, %v5506
      %v5508 = vrot.slane %v5506, 4
      %v5509 = vrot.slane %v5386, 5
      %v5510 = vsel %vm2174, %v5508, %v5509
      %v5511 = vrot.slane %v5387, 5
      %v5512 = vrot.slane %v5511, 4
      %v5513 = vrot.slane %v5388, 5
      %v5514 = vsel %vm2174, %v5512, %v5513
      %v5515 = vrot.slane %v5513, 4
      %v5516 = vrot.slane %v5389, 5
      %v5517 = vsel %vm2174, %v5515, %v5516
      %v5518 = vrot.slane %v5390, 5
      %v5519 = vrot.slane %v5518, 4
      %v5520 = vrot.slane %v5391, 5
      %v5521 = vsel %vm2174, %v5519, %v5520
      %v5522 = vrot.slane %v5520, 4
      %v5523 = vrot.slane %v5392, 5
      %v5524 = vsel %vm2174, %v5522, %v5523
      %v5525 = vrot.slane %v5393, 5
      %v5526 = vrot.slane %v5525, 4
      %v5527 = vrot.slane %v5394, 5
      %v5528 = vsel %vm2174, %v5526, %v5527
      %v5529 = vrot.slane %v5527, 4
      %v5530 = vrot.slane %v5395, 5
      %v5531 = vsel %vm2174, %v5529, %v5530
      %v5532 = vrot.slane %v5396, 5
      %v5533 = vrot.slane %v5532, 4
      %v5534 = vrot.slane %v5397, 5
      %v5535 = vsel %vm2174, %v5533, %v5534
      %v5536 = vrot.slane %v5534, 4
      %v5537 = vrot.slane %v5398, 5
      %v5538 = vsel %vm2174, %v5536, %v5537
      %v5539 = vrot.slane %v5399, 5
      %v5540 = vrot.slane %v5539, 4
      %v5541 = vrot.slane %v5400, 5
      %v5542 = vsel %vm2174, %v5540, %v5541
      %v5543 = vrot.slane %v5541, 4
      %v5544 = vrot.slane %v5401, 5
      %v5545 = vsel %vm2174, %v5543, %v5544
      %v5546 = vrot.slane %v5402, 5
      %v5547 = vrot.slane %v5546, 4
      %v5548 = vrot.slane %v5403, 5
      %v5549 = vsel %vm2174, %v5547, %v5548
      %v5550 = vrot.slane %v5548, 4
      %v5551 = vrot.slane %v5404, 5
      %v5552 = vsel %vm2174, %v5550, %v5551
      %v5553 = vrot.slane %v5405, 5
      %v5554 = vrot.slane %v5553, 4
      %v5555 = vrot.slane %v5406, 5
      %v5556 = vsel %vm2174, %v5554, %v5555
      %v5557 = vrot.slane %v5555, 4
      %v5558 = vrot.slane %v5407, 5
      %v5559 = vsel %vm2174, %v5557, %v5558
      %v5560 = vrot.slane %v5408, 5
      %v5561 = vrot.slane %v5560, 4
      %v5562 = vrot.slane %v5409, 5
      %v5563 = vsel %vm2174, %v5561, %v5562
      %v5564 = vrot.slane %v5562, 4
      %v5565 = vrot.slane %v5410, 5
      %v5566 = vsel %vm2174, %v5564, %v5565
      %v5567 = vrot.slane %v5411, 5
      %v5568 = vrot.slane %v5567, 4
      %v5569 = vrot.slane %v5412, 5
      %v5570 = vsel %vm2174, %v5568, %v5569
      %v5571 = vrot.slane %v5569, 4
      %v5572 = vrot.slane %v5413, 5
      %v5573 = vsel %vm2174, %v5571, %v5572
      %v5574 = vld [vmem:[%s3 + $0x200] sm:$0xf]
      %v5575 = vld [vmem:[%s3 + $0x204] sm:$0xf]
      %v5576 = vld [vmem:[%s3 + $0x208] sm:$0xf]
      %v5577 = vld [vmem:[%s3 + $0x20c] sm:$0xf]
      %v5578 = vld [vmem:[%s3 + $0x210] sm:$0xf]
      %v5579 = vld [vmem:[%s3 + $0x214] sm:$0xf]
      %v5580 = vld [vmem:[%s3 + $0x218] sm:$0xf]
      %v5581 = vld [vmem:[%s3 + $0x21c] sm:$0xf]
      %v5582 = vld [vmem:[%s3 + $0x220] sm:$0xf]
      %v5583 = vld [vmem:[%s3 + $0x224] sm:$0xf]
      %v5584 = vld [vmem:[%s3 + $0x228] sm:$0xf]
      %v5585 = vld [vmem:[%s3 + $0x22c] sm:$0xf]
      %v5586 = vld [vmem:[%s3 + $0x230] sm:$0xf]
      %v5587 = vld [vmem:[%s3 + $0x234] sm:$0xf]
      %v5588 = vld [vmem:[%s3 + $0x238] sm:$0xf]
      %v5589 = vld [vmem:[%s3 + $0x23c] sm:$0xf]
      %v5590 = vunpack.c.l.b16 %v5465
      %v5591 = vunpack.c.l.b16 %v5468
      %v5592 = vunpack.c.l.b16 %v5472
      %v5593 = vunpack.c.l.b16 %v5475
      %v5594 = vunpack.c.l.b16 %v5479
      %v5595 = vunpack.c.l.b16 %v5482
      %v5596 = vunpack.c.l.b16 %v5486
      %v5597 = vunpack.c.l.b16 %v5489
      %v5598 = vunpack.c.l.b16 %v5493
      %v5599 = vunpack.c.l.b16 %v5496
      %v5600 = vunpack.c.l.b16 %v5500
      %v5601 = vunpack.c.l.b16 %v5503
      %v5602 = vunpack.c.l.b16 %v5507
      %v5603 = vunpack.c.l.b16 %v5510
      %v5604 = vunpack.c.l.b16 %v5514
      %v5605 = vunpack.c.l.b16 %v5517
      %v5606 = vunpack.c.l.b16 %v5521
      %v5607 = vunpack.c.l.b16 %v5524
      %v5608 = vunpack.c.l.b16 %v5528
      %v5609 = vunpack.c.l.b16 %v5531
      %v5610 = vunpack.c.l.b16 %v5535
      %v5611 = vunpack.c.l.b16 %v5538
      %v5612 = vunpack.c.l.b16 %v5542
      %v5613 = vunpack.c.l.b16 %v5545
      %v5614 = vunpack.c.l.b16 %v5549
      %v5615 = vunpack.c.l.b16 %v5552
      %v5616 = vunpack.c.l.b16 %v5556
      %v5617 = vunpack.c.l.b16 %v5559
      %v5618 = vunpack.c.l.b16 %v5563
      %v5619 = vunpack.c.l.b16 %v5566
      %v5620 = vunpack.c.l.b16 %v5570
      %v5621 = vunpack.c.l.b16 %v5573
      %v5622 = vpack.c.b16 %v5591, %v5590
      %v5623 = vpack.c.b16 %v5593, %v5592
      %v5624 = vpack.c.b16 %v5595, %v5594
      %v5625 = vpack.c.b16 %v5597, %v5596
      %v5626 = vpack.c.b16 %v5599, %v5598
      %v5627 = vpack.c.b16 %v5601, %v5600
      %v5628 = vpack.c.b16 %v5603, %v5602
      %v5629 = vpack.c.b16 %v5605, %v5604
      %v5630 = vpack.c.b16 %v5607, %v5606
      %v5631 = vpack.c.b16 %v5609, %v5608
      %v5632 = vpack.c.b16 %v5611, %v5610
      %v5633 = vpack.c.b16 %v5613, %v5612
      %v5634 = vpack.c.b16 %v5615, %v5614
      %v5635 = vpack.c.b16 %v5617, %v5616
      %v5636 = vpack.c.b16 %v5619, %v5618
      %v5637 = vpack.c.b16 %v5621, %v5620
      %v5670 = vunpack.c.l.b16 %v5574
      %v5671 = vunpack.c.l.b16 %v5575
      %v5672 = vunpack.c.l.b16 %v5576
      %v5673 = vunpack.c.l.b16 %v5577
      %v5674 = vunpack.c.l.b16 %v5578
      %v5675 = vunpack.c.l.b16 %v5579
      %v5676 = vunpack.c.l.b16 %v5580
      %v5677 = vunpack.c.l.b16 %v5581
      %v5678 = vunpack.c.l.b16 %v5582
      %v5679 = vunpack.c.l.b16 %v5583
      %v5680 = vunpack.c.l.b16 %v5584
      %v5681 = vunpack.c.l.b16 %v5585
      %v5682 = vunpack.c.l.b16 %v5586
      %v5683 = vunpack.c.l.b16 %v5587
      %v5684 = vunpack.c.l.b16 %v5588
      %v5685 = vunpack.c.l.b16 %v5589
      %v5686 = vpack.c.b16 %v5671, %v5670
      %v5687 = vpack.c.b16 %v5673, %v5672
      %v5688 = vpack.c.b16 %v5675, %v5674
      %v5689 = vpack.c.b16 %v5677, %v5676
      %v5690 = vpack.c.b16 %v5679, %v5678
      %v5691 = vpack.c.b16 %v5681, %v5680
      %v5692 = vpack.c.b16 %v5683, %v5682
      %v5693 = vpack.c.b16 %v5685, %v5684
      %5702 = vmatpush.bf16.msra.mxu0 %v5693
      %5703 = vmatpush.bf16.msra.mxu0 %v5692
      %5704 = vmatpush.bf16.msra.mxu0 %v5691
      %5705 = vmatpush.bf16.msra.mxu0 %v5690
      %5706 = vmatpush.bf16.msra.mxu0 %v5689
      %5707 = vmatpush.bf16.msra.mxu0 %v5688
      %5708 = vmatpush.bf16.msra.mxu0 %v5687
      %5709 = vmatpush.bf16.msra.mxu0 %v5686
      %5710 = vmatmul.bf16.gmra.mxu0 %v5622
      %v5711 = vpop.f32.mrf.mxu0
      %v5712 = vadd.f32 0.0, %v5711
      %v5713 = vpop.f32.mrf.mxu0
      %v5714 = vadd.f32 0.0, %v5713
      %5715 = vmatmul.bf16.gmra.mxu0 %v5623
      %v5716 = vpop.f32.mrf.mxu0
      %v5717 = vadd.f32 0.0, %v5716
      %v5718 = vpop.f32.mrf.mxu0
      %v5719 = vadd.f32 0.0, %v5718
      %5720 = vmatmul.bf16.gmra.mxu0 %v5624
      %v5721 = vpop.f32.mrf.mxu0
      %v5722 = vadd.f32 0.0, %v5721
      %v5723 = vpop.f32.mrf.mxu0
      %v5724 = vadd.f32 0.0, %v5723
      %5725 = vmatmul.bf16.gmra.mxu0 %v5625
      %v5726 = vpop.f32.mrf.mxu0
      %v5727 = vadd.f32 0.0, %v5726
      %v5728 = vpop.f32.mrf.mxu0
      %v5729 = vadd.f32 0.0, %v5728
      %5730 = vmatmul.bf16.gmra.mxu0 %v5626
      %v5731 = vpop.f32.mrf.mxu0
      %v5732 = vadd.f32 0.0, %v5731
      %v5733 = vpop.f32.mrf.mxu0
      %v5734 = vadd.f32 0.0, %v5733
      %5735 = vmatmul.bf16.gmra.mxu0 %v5627
      %v5736 = vpop.f32.mrf.mxu0
      %v5737 = vadd.f32 0.0, %v5736
      %v5738 = vpop.f32.mrf.mxu0
      %v5739 = vadd.f32 0.0, %v5738
      %5740 = vmatmul.bf16.gmra.mxu0 %v5628
      %v5741 = vpop.f32.mrf.mxu0
      %v5742 = vadd.f32 0.0, %v5741
      %v5743 = vpop.f32.mrf.mxu0
      %v5744 = vadd.f32 0.0, %v5743
      %5745 = vmatmul.bf16.gmra.mxu0 %v5629
      %v5746 = vpop.f32.mrf.mxu0
      %v5747 = vadd.f32 0.0, %v5746
      %v5748 = vpop.f32.mrf.mxu0
      %v5749 = vadd.f32 0.0, %v5748
      %5750 = vmatmul.bf16.gmra.mxu0 %v5630
      %v5751 = vpop.f32.mrf.mxu0
      %v5752 = vadd.f32 0.0, %v5751
      %v5753 = vpop.f32.mrf.mxu0
      %v5754 = vadd.f32 0.0, %v5753
      %5755 = vmatmul.bf16.gmra.mxu0 %v5631
      %v5756 = vpop.f32.mrf.mxu0
      %v5757 = vadd.f32 0.0, %v5756
      %v5758 = vpop.f32.mrf.mxu0
      %v5759 = vadd.f32 0.0, %v5758
      %5760 = vmatmul.bf16.gmra.mxu0 %v5632
      %v5761 = vpop.f32.mrf.mxu0
      %v5762 = vadd.f32 0.0, %v5761
      %v5763 = vpop.f32.mrf.mxu0
      %v5764 = vadd.f32 0.0, %v5763
      %5765 = vmatmul.bf16.gmra.mxu0 %v5633
      %v5766 = vpop.f32.mrf.mxu0
      %v5767 = vadd.f32 0.0, %v5766
      %v5768 = vpop.f32.mrf.mxu0
      %v5769 = vadd.f32 0.0, %v5768
      %5770 = vmatmul.bf16.gmra.mxu0 %v5634
      %v5771 = vpop.f32.mrf.mxu0
      %v5772 = vadd.f32 0.0, %v5771
      %v5773 = vpop.f32.mrf.mxu0
      %v5774 = vadd.f32 0.0, %v5773
      %5775 = vmatmul.bf16.gmra.mxu0 %v5635
      %v5776 = vpop.f32.mrf.mxu0
      %v5777 = vadd.f32 0.0, %v5776
      %v5778 = vpop.f32.mrf.mxu0
      %v5779 = vadd.f32 0.0, %v5778
      %5780 = vmatmul.bf16.gmra.mxu0 %v5636
      %v5781 = vpop.f32.mrf.mxu0
      %v5782 = vadd.f32 0.0, %v5781
      %v5783 = vpop.f32.mrf.mxu0
      %v5784 = vadd.f32 0.0, %v5783
      %5785 = vmatmul.bf16.gmra.mxu0 %v5637
      %v5786 = vpop.f32.mrf.mxu0
      %v5787 = vadd.f32 0.0, %v5786
      %v5788 = vpop.f32.mrf.mxu0
      %v5789 = vadd.f32 0.0, %v5788
      %5790 = vdwg.mxu0
      %v5791 = vld [vmem:[#allocation3] sm:$0xff]
      %v5792 = vld [vmem:[#allocation3 + $0x8] sm:$0xff]
      %v5793 = vld [vmem:[#allocation3 + $0x10] sm:$0xff]
      %v5794 = vld [vmem:[#allocation3 + $0x18] sm:$0xff]
      %v5795 = vld [vmem:[#allocation3 + $0x20] sm:$0xff]
      %v5796 = vld [vmem:[#allocation3 + $0x28] sm:$0xff]
      %v5797 = vld [vmem:[#allocation3 + $0x30] sm:$0xff]
      %v5798 = vld [vmem:[#allocation3 + $0x38] sm:$0xff]
      %v5799 = vld [vmem:[#allocation3 + $0x40] sm:$0xff]
      %v5800 = vld [vmem:[#allocation3 + $0x48] sm:$0xff]
      %v5801 = vld [vmem:[#allocation3 + $0x50] sm:$0xff]
      %v5802 = vld [vmem:[#allocation3 + $0x58] sm:$0xff]
      %v5803 = vld [vmem:[#allocation3 + $0x60] sm:$0xff]
      %v5804 = vld [vmem:[#allocation3 + $0x68] sm:$0xff]
      %v5805 = vld [vmem:[#allocation3 + $0x70] sm:$0xff]
      %v5806 = vld [vmem:[#allocation3 + $0x78] sm:$0xff]
      %v5807 = vld [vmem:[#allocation3 + $0x80] sm:$0xff]
      %v5808 = vld [vmem:[#allocation3 + $0x88] sm:$0xff]
      %v5809 = vld [vmem:[#allocation3 + $0x90] sm:$0xff]
      %v5810 = vld [vmem:[#allocation3 + $0x98] sm:$0xff]
      %v5811 = vld [vmem:[#allocation3 + $0xa0] sm:$0xff]
      %v5812 = vld [vmem:[#allocation3 + $0xa8] sm:$0xff]
      %v5813 = vld [vmem:[#allocation3 + $0xb0] sm:$0xff]
      %v5814 = vld [vmem:[#allocation3 + $0xb8] sm:$0xff]
      %v5815 = vld [vmem:[#allocation3 + $0xc0] sm:$0xff]
      %v5816 = vld [vmem:[#allocation3 + $0xc8] sm:$0xff]
      %v5817 = vld [vmem:[#allocation3 + $0xd0] sm:$0xff]
      %v5818 = vld [vmem:[#allocation3 + $0xd8] sm:$0xff]
      %v5819 = vld [vmem:[#allocation3 + $0xe0] sm:$0xff]
      %v5820 = vld [vmem:[#allocation3 + $0xe8] sm:$0xff]
      %v5821 = vld [vmem:[#allocation3 + $0xf0] sm:$0xff]
      %v5822 = vld [vmem:[#allocation3 + $0xf8] sm:$0xff]
      %v5823 = vadd.f32 %v5791, %v5712
      %v5824 = vadd.f32 %v5792, %v5714
      %v5825 = vadd.f32 %v5793, %v5717
      %v5826 = vadd.f32 %v5794, %v5719
      %v5827 = vadd.f32 %v5795, %v5722
      %v5828 = vadd.f32 %v5796, %v5724
      %v5829 = vadd.f32 %v5797, %v5727
      %v5830 = vadd.f32 %v5798, %v5729
      %v5831 = vadd.f32 %v5799, %v5732
      %v5832 = vadd.f32 %v5800, %v5734
      %v5833 = vadd.f32 %v5801, %v5737
      %v5834 = vadd.f32 %v5802, %v5739
      %v5835 = vadd.f32 %v5803, %v5742
      %v5836 = vadd.f32 %v5804, %v5744
      %v5837 = vadd.f32 %v5805, %v5747
      %v5838 = vadd.f32 %v5806, %v5749
      %v5839 = vadd.f32 %v5807, %v5752
      %v5840 = vadd.f32 %v5808, %v5754
      %v5841 = vadd.f32 %v5809, %v5757
      %v5842 = vadd.f32 %v5810, %v5759
      %v5843 = vadd.f32 %v5811, %v5762
      %v5844 = vadd.f32 %v5812, %v5764
      %v5845 = vadd.f32 %v5813, %v5767
      %v5846 = vadd.f32 %v5814, %v5769
      %v5847 = vadd.f32 %v5815, %v5772
      %v5848 = vadd.f32 %v5816, %v5774
      %v5849 = vadd.f32 %v5817, %v5777
      %v5850 = vadd.f32 %v5818, %v5779
      %v5851 = vadd.f32 %v5819, %v5782
      %v5852 = vadd.f32 %v5820, %v5784
      %v5853 = vadd.f32 %v5821, %v5787
      %v5854 = vadd.f32 %v5822, %v5789
      %5855 = vst [vmem:[#allocation3] sm:$0xff] %v5823
      %5856 = vst [vmem:[#allocation3 + $0x8] sm:$0xff] %v5824
      %5857 = vst [vmem:[#allocation3 + $0x10] sm:$0xff] %v5825
      %5858 = vst [vmem:[#allocation3 + $0x18] sm:$0xff] %v5826
      %5859 = vst [vmem:[#allocation3 + $0x20] sm:$0xff] %v5827
      %5860 = vst [vmem:[#allocation3 + $0x28] sm:$0xff] %v5828
      %5861 = vst [vmem:[#allocation3 + $0x30] sm:$0xff] %v5829
      %5862 = vst [vmem:[#allocation3 + $0x38] sm:$0xff] %v5830
      %5863 = vst [vmem:[#allocation3 + $0x40] sm:$0xff] %v5831
      %5864 = vst [vmem:[#allocation3 + $0x48] sm:$0xff] %v5832
      %5865 = vst [vmem:[#allocation3 + $0x50] sm:$0xff] %v5833
      %5866 = vst [vmem:[#allocation3 + $0x58] sm:$0xff] %v5834
      %5867 = vst [vmem:[#allocation3 + $0x60] sm:$0xff] %v5835
      %5868 = vst [vmem:[#allocation3 + $0x68] sm:$0xff] %v5836
      %5869 = vst [vmem:[#allocation3 + $0x70] sm:$0xff] %v5837
      %5870 = vst [vmem:[#allocation3 + $0x78] sm:$0xff] %v5838
      %5871 = vst [vmem:[#allocation3 + $0x80] sm:$0xff] %v5839
      %5872 = vst [vmem:[#allocation3 + $0x88] sm:$0xff] %v5840
      %5873 = vst [vmem:[#allocation3 + $0x90] sm:$0xff] %v5841
      %5874 = vst [vmem:[#allocation3 + $0x98] sm:$0xff] %v5842
      %5875 = vst [vmem:[#allocation3 + $0xa0] sm:$0xff] %v5843
      %5876 = vst [vmem:[#allocation3 + $0xa8] sm:$0xff] %v5844
      %5877 = vst [vmem:[#allocation3 + $0xb0] sm:$0xff] %v5845
      %5878 = vst [vmem:[#allocation3 + $0xb8] sm:$0xff] %v5846
      %5879 = vst [vmem:[#allocation3 + $0xc0] sm:$0xff] %v5847
      %5880 = vst [vmem:[#allocation3 + $0xc8] sm:$0xff] %v5848
      %5881 = vst [vmem:[#allocation3 + $0xd0] sm:$0xff] %v5849
      %5882 = vst [vmem:[#allocation3 + $0xd8] sm:$0xff] %v5850
      %5883 = vst [vmem:[#allocation3 + $0xe0] sm:$0xff] %v5851
      %5884 = vst [vmem:[#allocation3 + $0xe8] sm:$0xff] %v5852
      %5885 = vst [vmem:[#allocation3 + $0xf0] sm:$0xff] %v5853
      %5886 = vst [vmem:[#allocation3 + $0xf8] sm:$0xff] %v5854
      %v5887 = vld [vmem:[#allocation3] sm:$0xff]
      %v5888 = vld [vmem:[#allocation3 + $0x8] sm:$0xff]
      %v5889 = vld [vmem:[#allocation3 + $0x10] sm:$0xff]
      %v5890 = vld [vmem:[#allocation3 + $0x18] sm:$0xff]
      %v5891 = vld [vmem:[#allocation3 + $0x20] sm:$0xff]
      %v5892 = vld [vmem:[#allocation3 + $0x28] sm:$0xff]
      %v5893 = vld [vmem:[#allocation3 + $0x30] sm:$0xff]
      %v5894 = vld [vmem:[#allocation3 + $0x38] sm:$0xff]
      %v5895 = vld [vmem:[#allocation3 + $0x40] sm:$0xff]
      %v5896 = vld [vmem:[#allocation3 + $0x48] sm:$0xff]
      %v5897 = vld [vmem:[#allocation3 + $0x50] sm:$0xff]
      %v5898 = vld [vmem:[#allocation3 + $0x58] sm:$0xff]
      %v5899 = vld [vmem:[#allocation3 + $0x60] sm:$0xff]
      %v5900 = vld [vmem:[#allocation3 + $0x68] sm:$0xff]
      %v5901 = vld [vmem:[#allocation3 + $0x70] sm:$0xff]
      %v5902 = vld [vmem:[#allocation3 + $0x78] sm:$0xff]
      %v5903 = vld [vmem:[#allocation3 + $0x80] sm:$0xff]
      %v5904 = vld [vmem:[#allocation3 + $0x88] sm:$0xff]
      %v5905 = vld [vmem:[#allocation3 + $0x90] sm:$0xff]
      %v5906 = vld [vmem:[#allocation3 + $0x98] sm:$0xff]
      %v5907 = vld [vmem:[#allocation3 + $0xa0] sm:$0xff]
      %v5908 = vld [vmem:[#allocation3 + $0xa8] sm:$0xff]
      %v5909 = vld [vmem:[#allocation3 + $0xb0] sm:$0xff]
      %v5910 = vld [vmem:[#allocation3 + $0xb8] sm:$0xff]
      %v5911 = vld [vmem:[#allocation3 + $0xc0] sm:$0xff]
      %v5912 = vld [vmem:[#allocation3 + $0xc8] sm:$0xff]
      %v5913 = vld [vmem:[#allocation3 + $0xd0] sm:$0xff]
      %v5914 = vld [vmem:[#allocation3 + $0xd8] sm:$0xff]
      %v5915 = vld [vmem:[#allocation3 + $0xe0] sm:$0xff]
      %v5916 = vld [vmem:[#allocation3 + $0xe8] sm:$0xff]
      %v5917 = vld [vmem:[#allocation3 + $0xf0] sm:$0xff]
      %v5918 = vld [vmem:[#allocation3 + $0xf8] sm:$0xff]
      %v5919 = vpack.c.bf16 %v5887, %v5887
      %v5920 = vpack.c.bf16 %v5888, %v5888
      %v5921 = vpack.c.bf16 %v5889, %v5889
      %v5922 = vpack.c.bf16 %v5890, %v5890
      %v5923 = vpack.c.bf16 %v5891, %v5891
      %v5924 = vpack.c.bf16 %v5892, %v5892
      %v5925 = vpack.c.bf16 %v5893, %v5893
      %v5926 = vpack.c.bf16 %v5894, %v5894
      %v5927 = vpack.c.bf16 %v5895, %v5895
      %v5928 = vpack.c.bf16 %v5896, %v5896
      %v5929 = vpack.c.bf16 %v5897, %v5897
      %v5930 = vpack.c.bf16 %v5898, %v5898
      %v5931 = vpack.c.bf16 %v5899, %v5899
      %v5932 = vpack.c.bf16 %v5900, %v5900
      %v5933 = vpack.c.bf16 %v5901, %v5901
      %v5934 = vpack.c.bf16 %v5902, %v5902
      %v5935 = vpack.c.bf16 %v5903, %v5903
      %v5936 = vpack.c.bf16 %v5904, %v5904
      %v5937 = vpack.c.bf16 %v5905, %v5905
      %v5938 = vpack.c.bf16 %v5906, %v5906
      %v5939 = vpack.c.bf16 %v5907, %v5907
      %v5940 = vpack.c.bf16 %v5908, %v5908
      %v5941 = vpack.c.bf16 %v5909, %v5909
      %v5942 = vpack.c.bf16 %v5910, %v5910
      %v5943 = vpack.c.bf16 %v5911, %v5911
      %v5944 = vpack.c.bf16 %v5912, %v5912
      %v5945 = vpack.c.bf16 %v5913, %v5913
      %v5946 = vpack.c.bf16 %v5914, %v5914
      %v5947 = vpack.c.bf16 %v5915, %v5915
      %v5948 = vpack.c.bf16 %v5916, %v5916
      %v5949 = vpack.c.bf16 %v5917, %v5917
      %v5950 = vpack.c.bf16 %v5918, %v5918
      %5951 = vst [vmem:[%s262] sm:$0xf] %v5919
      %5952 = vst [vmem:[%s262 + $0x4] sm:$0xf] %v5920
      %5953 = vst [vmem:[%s262 + $0x8] sm:$0xf] %v5921
      %5954 = vst [vmem:[%s262 + $0xc] sm:$0xf] %v5922
      %5955 = vst [vmem:[%s262 + $0x10] sm:$0xf] %v5923
      %5956 = vst [vmem:[%s262 + $0x14] sm:$0xf] %v5924
      %5957 = vst [vmem:[%s262 + $0x18] sm:$0xf] %v5925
      %5958 = vst [vmem:[%s262 + $0x1c] sm:$0xf] %v5926
      %5959 = vst [vmem:[%s262 + $0x20] sm:$0xf] %v5927
      %5960 = vst [vmem:[%s262 + $0x24] sm:$0xf] %v5928
      %5961 = vst [vmem:[%s262 + $0x28] sm:$0xf] %v5929
      %5962 = vst [vmem:[%s262 + $0x2c] sm:$0xf] %v5930
      %5963 = vst [vmem:[%s262 + $0x30] sm:$0xf] %v5931
      %5964 = vst [vmem:[%s262 + $0x34] sm:$0xf] %v5932
      %5965 = vst [vmem:[%s262 + $0x38] sm:$0xf] %v5933
      %5966 = vst [vmem:[%s262 + $0x3c] sm:$0xf] %v5934
      %5967 = vst [vmem:[%s262 + $0x40] sm:$0xf] %v5935
      %5968 = vst [vmem:[%s262 + $0x44] sm:$0xf] %v5936
      %5969 = vst [vmem:[%s262 + $0x48] sm:$0xf] %v5937
      %5970 = vst [vmem:[%s262 + $0x4c] sm:$0xf] %v5938
      %5971 = vst [vmem:[%s262 + $0x50] sm:$0xf] %v5939
      %5972 = vst [vmem:[%s262 + $0x54] sm:$0xf] %v5940
      %5973 = vst [vmem:[%s262 + $0x58] sm:$0xf] %v5941
      %5974 = vst [vmem:[%s262 + $0x5c] sm:$0xf] %v5942
      %5975 = vst [vmem:[%s262 + $0x60] sm:$0xf] %v5943
      %5976 = vst [vmem:[%s262 + $0x64] sm:$0xf] %v5944
      %5977 = vst [vmem:[%s262 + $0x68] sm:$0xf] %v5945
      %5978 = vst [vmem:[%s262 + $0x6c] sm:$0xf] %v5946
      %5979 = vst [vmem:[%s262 + $0x70] sm:$0xf] %v5947
      %5980 = vst [vmem:[%s262 + $0x74] sm:$0xf] %v5948
      %5981 = vst [vmem:[%s262 + $0x78] sm:$0xf] %v5949
      %5982 = vst [vmem:[%s262 + $0x7c] sm:$0xf] %v5950
      %v5983 = vadd.f32 %v5887, %v5888
      %v5984 = vadd.f32 %v5983, %v5889
      %v5985 = vadd.f32 %v5984, %v5890
      %v5986 = vadd.f32 %v5985, %v5891
      %v5987 = vadd.f32 %v5986, %v5892
      %v5988 = vadd.f32 %v5987, %v5893
      %v5989 = vadd.f32 %v5988, %v5894
      %v5990 = vadd.f32 %v5989, %v5895
      %v5991 = vadd.f32 %v5990, %v5896
      %v5992 = vadd.f32 %v5991, %v5897
      %v5993 = vadd.f32 %v5992, %v5898
      %v5994 = vadd.f32 %v5993, %v5899
      %v5995 = vadd.f32 %v5994, %v5900
      %v5996 = vadd.f32 %v5995, %v5901
      %v5997 = vadd.f32 %v5996, %v5902
      %v5998 = vadd.f32 %v5997, %v5903
      %v5999 = vadd.f32 %v5998, %v5904
      %v6000 = vadd.f32 %v5999, %v5905
      %v6001 = vadd.f32 %v6000, %v5906
      %v6002 = vadd.f32 %v6001, %v5907
      %v6003 = vadd.f32 %v6002, %v5908
      %v6004 = vadd.f32 %v6003, %v5909
      %v6005 = vadd.f32 %v6004, %v5910
      %v6006 = vadd.f32 %v6005, %v5911
      %v6007 = vadd.f32 %v6006, %v5912
      %v6008 = vadd.f32 %v6007, %v5913
      %v6009 = vadd.f32 %v6008, %v5914
      %v6010 = vadd.f32 %v6009, %v5915
      %v6011 = vadd.f32 %v6010, %v5916
      %v6012 = vadd.f32 %v6011, %v5917
      %v6013 = vadd.f32 %v6012, %v5918
      %v6014 = vrot.slane %v6013, 4
      %v6015 = vadd.f32 %v6013, %v6014
      %v6016 = vrot.slane %v6015, 2
      %v6017 = vadd.f32 %v6015, %v6016
      %v6018 = vrot.slane %v6017, 1
      %v6019 = vadd.f32 %v6017, %v6018
      %6020 = vst [vmem:[%s265] sm:$0x1] %v6019
      %v6021 = vmul.f32 %v5887, %v5887
      %v6022 = vmul.f32 %v5888, %v5888
      %v6023 = vmul.f32 %v5889, %v5889
      %v6024 = vmul.f32 %v5890, %v5890
      %v6025 = vmul.f32 %v5891, %v5891
      %v6026 = vmul.f32 %v5892, %v5892
      %v6027 = vmul.f32 %v5893, %v5893
      %v6028 = vmul.f32 %v5894, %v5894
      %v6029 = vmul.f32 %v5895, %v5895
      %v6030 = vmul.f32 %v5896, %v5896
      %v6031 = vmul.f32 %v5897, %v5897
      %v6032 = vmul.f32 %v5898, %v5898
      %v6033 = vmul.f32 %v5899, %v5899
      %v6034 = vmul.f32 %v5900, %v5900
      %v6035 = vmul.f32 %v5901, %v5901
      %v6036 = vmul.f32 %v5902, %v5902
      %v6037 = vmul.f32 %v5903, %v5903
      %v6038 = vmul.f32 %v5904, %v5904
      %v6039 = vmul.f32 %v5905, %v5905
      %v6040 = vmul.f32 %v5906, %v5906
      %v6041 = vmul.f32 %v5907, %v5907
      %v6042 = vmul.f32 %v5908, %v5908
      %v6043 = vmul.f32 %v5909, %v5909
      %v6044 = vmul.f32 %v5910, %v5910
      %v6045 = vmul.f32 %v5911, %v5911
      %v6046 = vmul.f32 %v5912, %v5912
      %v6047 = vmul.f32 %v5913, %v5913
      %v6048 = vmul.f32 %v5914, %v5914
      %v6049 = vmul.f32 %v5915, %v5915
      %v6050 = vmul.f32 %v5916, %v5916
      %v6051 = vmul.f32 %v5917, %v5917
      %v6052 = vmul.f32 %v5918, %v5918
      %v6053 = vadd.f32 %v6021, %v6022
      %v6054 = vadd.f32 %v6053, %v6023
      %v6055 = vadd.f32 %v6054, %v6024
      %v6056 = vadd.f32 %v6055, %v6025
      %v6057 = vadd.f32 %v6056, %v6026
      %v6058 = vadd.f32 %v6057, %v6027
      %v6059 = vadd.f32 %v6058, %v6028
      %v6060 = vadd.f32 %v6059, %v6029
      %v6061 = vadd.f32 %v6060, %v6030
      %v6062 = vadd.f32 %v6061, %v6031
      %v6063 = vadd.f32 %v6062, %v6032
      %v6064 = vadd.f32 %v6063, %v6033
      %v6065 = vadd.f32 %v6064, %v6034
      %v6066 = vadd.f32 %v6065, %v6035
      %v6067 = vadd.f32 %v6066, %v6036
      %v6068 = vadd.f32 %v6067, %v6037
      %v6069 = vadd.f32 %v6068, %v6038
      %v6070 = vadd.f32 %v6069, %v6039
      %v6071 = vadd.f32 %v6070, %v6040
      %v6072 = vadd.f32 %v6071, %v6041
      %v6073 = vadd.f32 %v6072, %v6042
      %v6074 = vadd.f32 %v6073, %v6043
      %v6075 = vadd.f32 %v6074, %v6044
      %v6076 = vadd.f32 %v6075, %v6045
      %v6077 = vadd.f32 %v6076, %v6046
      %v6078 = vadd.f32 %v6077, %v6047
      %v6079 = vadd.f32 %v6078, %v6048
      %v6080 = vadd.f32 %v6079, %v6049
      %v6081 = vadd.f32 %v6080, %v6050
      %v6082 = vadd.f32 %v6081, %v6051
      %v6083 = vadd.f32 %v6082, %v6052
      %v6084 = vrot.slane %v6083, 4
      %v6085 = vadd.f32 %v6083, %v6084
      %v6086 = vrot.slane %v6085, 2
      %v6087 = vadd.f32 %v6085, %v6086
      %v6088 = vrot.slane %v6087, 1
      %v6089 = vadd.f32 %v6087, %v6088
      %6090 = vst [vmem:[%s268] sm:$0x1] %v6089
      %p6091 = scmp.lt.s32.totalorder %s18, 1
      %s6092 = scalar_select %p6091, %s18, 1
      %s6093 = smul.addr %s6092, 32
      %s6094 = smul.addr %s6093, 4
      %s6095 = scalar_lea.vmem %s4, %s6094
      %p6096 = scmp.lt.s32.totalorder %s18, 1
      %s6097 = scalar_select %p6096, %s18, 1
      %s6098 = scalar_lea.vmem %s5, %s6097
      %p6099 = scmp.lt.s32.totalorder %s18, 1
      %s6100 = scalar_select %p6099, %s18, 1
      %s6101 = scalar_lea.vmem %s6, %s6100
      // Predicated region
      $region37: #{conv_block.4} parent=35 // pred_check
        %p6102 = pneg %p125
      $region38: #{conv_block.4} parent=35 // pred_check_branch
        %6104 = sbr.rel (%p6102) target = $region40
      $region39: #{conv_block.4} parent=35 // pred_region
        _
      $region40: #{conv_block.4} parent=35 // pred_fallthru
        _
      // Predicated region
      $region41: #{conv_block.4} parent=35 // pred_check
        %p6105 = pneg %p151
      $region42: #{conv_block.4} parent=35 // pred_check_branch
        %6107 = sbr.rel (%p6105) target = $region44
      $region43: #{conv_block.4} parent=35 // pred_region
        _
      $region44: #{conv_block.4} parent=35 // pred_fallthru
        _
      // Predicated region
      $region45: #{conv_block.4} parent=35 // pred_check
        %p6108 = pneg %p177
      $region46: #{conv_block.4} parent=35 // pred_check_branch
        %6110 = sbr.rel (%p6108) target = $region48
      $region47: #{conv_block.4} parent=35 // pred_region
        _
      $region48: #{conv_block.4} parent=35 // pred_fallthru
        _
    $region36: #{conv_block.4} parent=5 // pred_fallthru
      _
    %p6111 = scmp.le.s32.totalorder 2, %s13
    // Predicated region
    $region49: #{conv_block.4} parent=5 // pred_check
      %p6112 = pneg %p6111
    $region50: #{conv_block.4} parent=5 // pred_check_branch
      %6114 = sbr.rel (%p6112) target = $region52
    $region51: #{conv_block.4} parent=5 // pred_region
      %s6115 = ssub.s32 %s13, 2
      // Predicated region
      $region53: #{conv_block.4} parent=51 // pred_check
        %p6116 = pneg %p131
      $region54: #{conv_block.4} parent=51 // pred_check_branch
        %6118 = sbr.rel (%p6116) target = $region56
      $region55: #{conv_block.4} parent=51 // pred_region
        %p6119 = scmp.lt.s32.totalorder %s19, 1
        %s6120 = scalar_select %p6119, %s19, 1
        %s6121 = smul.addr %s6120, 32
        %s6122 = smul.addr %s6121, 4
        %s6123 = scalar_lea.vmem %s4, %s6122
      $region56: #{conv_block.4} parent=51 // pred_fallthru
        _
      // Predicated region
      $region57: #{conv_block.4} parent=51 // pred_check
        %p6124 = pneg %p157
      $region58: #{conv_block.4} parent=51 // pred_check_branch
        %6126 = sbr.rel (%p6124) target = $region60
      $region59: #{conv_block.4} parent=51 // pred_region
        %p6127 = scmp.lt.s32.totalorder %s19, 1
        %s6128 = scalar_select %p6127, %s19, 1
        %s6129 = scalar_lea.vmem %s5, %s6128
      $region60: #{conv_block.4} parent=51 // pred_fallthru
        _
      // Predicated region
      $region61: #{conv_block.4} parent=51 // pred_check
        %p6130 = pneg %p183
      $region62: #{conv_block.4} parent=51 // pred_check_branch
        %6132 = sbr.rel (%p6130) target = $region64
      $region63: #{conv_block.4} parent=51 // pred_region
        %p6133 = scmp.lt.s32.totalorder %s19, 1
        %s6134 = scalar_select %p6133, %s19, 1
        %s6135 = scalar_lea.vmem %s6, %s6134
      $region64: #{conv_block.4} parent=51 // pred_fallthru
        _
    $region52: #{conv_block.4} parent=5 // pred_fallthru
      _
  $region6: #{conv_block.4} parent=0 // loop_footer
    %s17 = sadd.s32 1, %s13
  $region7: #{conv_block.4} parent=0 // loop_footer_branch
    %12 = sbr.rel target = $region3
  $region8: #{conv_block.4} parent=0 // loop_exit
    _

</llo_original>
